<compile_context>
chip_gen: v5e
topology: v5e:2x2
jax: 0.10.0
libtpu: 0.0.40
codegen_flags: <defaults>
</compile_context>

<pallas_src>
import functools
import math

import jax
import jax.numpy as jnp
from jax import lax
from jax.experimental import pallas as pl
from jax.experimental.pallas import tpu as pltpu

F32 = jnp.float32
BF16 = jnp.bfloat16

COMPILER_PARAMS = pltpu.CompilerParams(
    dimension_semantics=("parallel",),
    vmem_limit_bytes=64 * 1024 * 1024,
)


def _full_spec(shape):
    zeros = (0,) * len(shape)
    return pl.BlockSpec(shape, lambda b: zeros)


def _batch_spec(block_shape):
    tail = (0,) * (len(block_shape) - 1)
    return pl.BlockSpec(block_shape, lambda b: (b,) + tail)


# --------------------------------------------------------------------------
# In-kernel helpers
# --------------------------------------------------------------------------

def _layernorm(x, g, b, eps):
    mean = jnp.mean(x, axis=-1, keepdims=True)
    var = jnp.mean((x - mean) ** 2, axis=-1, keepdims=True)
    return (x - mean) * lax.rsqrt(var + eps) * g + b


def _im2col_same(y, K):
    """SAME 1-D conv along time via im2col: (T, C) -> (T, K*C)."""
    T, C = y.shape
    lpad = K // 2
    rpad = K - 1 - lpad
    parts = []
    if lpad:
        parts.append(jnp.zeros((lpad, C), y.dtype))
    parts.append(y)
    if rpad:
        parts.append(jnp.zeros((rpad, C), y.dtype))
    yp = jnp.concatenate(parts, axis=0) if len(parts) > 1 else y
    return jnp.concatenate([yp[kk:kk + T, :] for kk in range(K)], axis=-1)


# --------------------------------------------------------------------------
# Fused FFT-stack kernel (whole encoder / decoder in one pallas_call)
# --------------------------------------------------------------------------

def _build_fft_stack_kernel(*, n_layers, num_heads, K, with_pos, with_proj,
                            n_dur_layers, dur_K, ln_eps, final_eps, dur_ln_eps):
    def kernel(*refs):
        i = 0
        x_ref = refs[i]; i += 1
        pos_ref = None
        if with_pos:
            pos_ref = refs[i]; i += 1
        kpad_ref = refs[i]; i += 1
        nonpad_ref = refs[i]; i += 1
        layer_refs = refs[i:i + 12 * n_layers]; i += 12 * n_layers
        fg_ref = refs[i]; fb_ref = refs[i + 1]; i += 2
        if with_proj:
            pw_ref = refs[i]; pb_ref = refs[i + 1]; npo_ref = refs[i + 2]; i += 3
        if n_dur_layers:
            dur_refs = refs[i:i + 4 * n_dur_layers]; i += 4 * n_dur_layers
            dlin_w_ref = refs[i]; dlin_b_ref = refs[i + 1]; i += 2
        o_ref = refs[i]; i += 1
        if n_dur_layers:
            dur_ref = refs[i]; i += 1

        nonpad = nonpad_ref[0]                      # (T, 1)
        neg = kpad_ref[0] * (-1e9)                  # (1, T) large-negative at padded keys

        x = x_ref[0]                                # (T, H) f32
        if with_pos:
            x = x + pos_ref[0]
        x = x * nonpad
        T, H = x.shape
        Dh = H // num_heads
        ffn_scale = K ** -0.5

        for l in range(n_layers):                   # static unroll over layers
            (g1, b1, wqkv, bqkv, wo, bo,
             g2, b2, fw1, fb1, fw2, fb2) = layer_refs[12 * l: 12 * (l + 1)]

            # ---- pre-LN self-attention sub-layer ----
            y = _layernorm(x, g1[...], b1[...], ln_eps)
            qkv = jnp.dot(y.astype(BF16), wqkv[...],
                          preferred_element_type=jnp.float32) + bqkv[...]   # (T, 3H)
            heads = []
            for h in range(num_heads):              # static unroll over heads
                q = qkv[:, h * Dh:(h + 1) * Dh] * (Dh ** -0.5)
                k = qkv[:, H + h * Dh: H + (h + 1) * Dh]
                v = qkv[:, 2 * H + h * Dh: 2 * H + (h + 1) * Dh]
                s = lax.dot_general(q.astype(BF16), k.astype(BF16),
                                    (((1,), (1,)), ((), ())),
                                    preferred_element_type=jnp.float32) + neg  # (T, T)
                m = jnp.max(s, axis=-1, keepdims=True)
                p = jnp.exp(s - m)
                denom = jnp.sum(p, axis=-1, keepdims=True)
                oh = jnp.dot(p.astype(BF16), v.astype(BF16),
                             preferred_element_type=jnp.float32)
                heads.append(oh * pl.reciprocal(denom, approx=True))  # EUP reciprocal
            o_heads = jnp.concatenate(heads, axis=-1) if num_heads > 1 else heads[0]
            attn = jnp.dot(o_heads.astype(BF16), wo[...],
                           preferred_element_type=jnp.float32) + bo[...]
            x = (x + attn) * nonpad

            # ---- pre-LN conv-FFN sub-layer ----
            y = _layernorm(x, g2[...], b2[...], ln_eps)
            cols = _im2col_same(y, K)               # (T, K*H)
            h1 = (jnp.dot(cols.astype(BF16), fw1[...],
                          preferred_element_type=jnp.float32) + fb1[...]) * ffn_scale
            # TODO(synk): torch F.gelu default is erf-based; tanh approximation used here.
            h1 = jax.nn.gelu(h1, approximate=True)
            z = jnp.dot(h1.astype(BF16), fw2[...],
                        preferred_element_type=jnp.float32) + fb2[...]
            x = (x + z) * nonpad

        # ---- final LayerNorm (+ pad mask) ----
        xf = _layernorm(x, fg_ref[...], fb_ref[...], final_eps) * nonpad

        if with_proj:
            mel = jnp.dot(xf.astype(BF16), pw_ref[...],
                          preferred_element_type=jnp.float32) + pb_ref[...]
            o_ref[0] = mel * npo_ref[0]
        else:
            o_ref[0] = xf

        # ---- fused duration predictor epilogue ----
        if n_dur_layers:
            hcur = xf
            for l in range(n_dur_layers):
                dw, db, dg, dbeta = dur_refs[4 * l: 4 * (l + 1)]
                cols = _im2col_same(hcur, dur_K)
                hcur = jnp.dot(cols.astype(BF16), dw[...],
                               preferred_element_type=jnp.float32) + db[...]
                hcur = jnp.maximum(hcur, 0.0)
                hcur = _layernorm(hcur, dg[...], dbeta[...], dur_ln_eps)
                hcur = hcur * nonpad
            dur = jnp.dot(hcur.astype(BF16), dlin_w_ref[...],
                          preferred_element_type=jnp.float32) + dlin_b_ref[...]   # (T, 1)
            # numerically-stable softplus (log1p avoided for Mosaic friendliness)
            dur = jnp.maximum(dur, 0.0) + jnp.log(1.0 + jnp.exp(-jnp.abs(dur)))
            dur_ref[0] = dur * nonpad

    return kernel


def fused_fft_stack(x, layers, final_g, final_b, kpad, nonpad, *, num_heads,
                    ffn_kernel, posemb=None, proj_w=None, proj_b=None,
                    nonpad_out=None, dur_params=None, dur_kernel=3):
    """Runs a whole FFT stack for one batch element per grid step.

    Optionally fuses: positional-embedding add (posemb), output projection +
    target mask (proj_w/proj_b/nonpad_out), and the full duration predictor
    (dur_params).  Returns a tuple of outputs.
    """
    B, T, H = x.shape
    with_pos = posemb is not None
    with_proj = proj_w is not None
    n_dur_layers = len(dur_params['convs']) if dur_params is not None else 0

    inputs = [x]
    in_specs = [_batch_spec((1, T, H))]
    if with_pos:
        inputs.append(posemb)
        in_specs.append(_batch_spec((1, T, H)))
    inputs += [kpad, nonpad]
    in_specs += [_batch_spec((1, 1, T)), _batch_spec((1, T, 1))]

    layer_fields = [('ln1_g', True), ('ln1_b', True), ('wqkv', False),
                    ('bqkv', True), ('wo', False), ('bo', True),
                    ('ln2_g', True), ('ln2_b', True), ('ffn1_w', False),
                    ('ffn1_b', True), ('ffn2_w', False), ('ffn2_b', True)]
    for lp in layers:
        for name, is_vec in layer_fields:
            a = lp[name]
            if is_vec:
                a = a.reshape(1, -1)
            inputs.append(a)
            in_specs.append(_full_spec(a.shape))

    inputs += [final_g.reshape(1, -1), final_b.reshape(1, -1)]
    in_specs += [_full_spec((1, H)), _full_spec((1, H))]

    out_shapes = []
    out_specs = []
    if with_proj:
        N = proj_w.shape[1]
        inputs += [proj_w, proj_b.reshape(1, -1), nonpad_out]
        in_specs += [_full_spec((H, N)), _full_spec((1, N)), _batch_spec((1, T, 1))]
        out_shapes.append(jax.ShapeDtypeStruct((B, T, N), F32))
        out_specs.append(_batch_spec((1, T, N)))
    else:
        out_shapes.append(jax.ShapeDtypeStruct((B, T, H), F32))
        out_specs.append(_batch_spec((1, T, H)))

    if n_dur_layers:
        for layer in dur_params['convs']:
            C = layer['w'].shape[1]
            inputs += [layer['w'], layer['b'].reshape(1, -1),
                       layer['ln_g'].reshape(1, -1), layer['ln_b'].reshape(1, -1)]
            in_specs += [_full_spec(layer['w'].shape), _full_spec((1, C)),
                         _full_spec((1, C)), _full_spec((1, C))]
        inputs += [dur_params['lin_w'], dur_params['lin_b'].reshape(1, -1)]
        in_specs += [_full_spec(dur_params['lin_w'].shape), _full_spec((1, 1))]
        out_shapes.append(jax.ShapeDtypeStruct((B, T, 1), F32))
        out_specs.append(_batch_spec((1, T, 1)))

    kernel = _build_fft_stack_kernel(
        n_layers=len(layers), num_heads=num_heads, K=ffn_kernel,
        with_pos=with_pos, with_proj=with_proj,
        n_dur_layers=n_dur_layers, dur_K=dur_kernel,
        ln_eps=1e-12, final_eps=1e-5, dur_ln_eps=1e-12)

    outs = pl.pallas_call(
        kernel,
        out_shape=tuple(out_shapes),
        grid=(B,),
        in_specs=in_specs,
        out_specs=tuple(out_specs),
        compiler_params=COMPILER_PARAMS,
    )(*inputs)
    if not isinstance(outs, (tuple, list)):
        outs = (outs,)
    return tuple(outs)


# --------------------------------------------------------------------------
# Model glue (plain JAX): embeddings, masks, gathers
# --------------------------------------------------------------------------

def sinusoidal_table(num_pos, dim):
    half = dim // 2
    step = math.log(10000.0) / (half - 1)
    freqs = jnp.exp(jnp.arange(half, dtype=jnp.float32) * -step)
    args = jnp.arange(num_pos, dtype=jnp.float32)[:, None] * freqs[None, :]
    tab = jnp.concatenate([jnp.sin(args), jnp.cos(args)], axis=1)
    return tab.at[0].set(0.0)            # padding_idx row zeroed


def positions_from_mask(nonpad_mask):
    m = nonpad_mask.astype(jnp.int32)
    return jnp.cumsum(m, axis=1) * m     # fairseq make_positions, padding_idx=0


def fastspeech_forward(params, hp, txt_tokens, mel2ph, pos_table):
    ret = {}
    H = hp['hidden_size']

    # ---- encoder (+ fused duration predictor) ----
    pad = txt_tokens == 0
    kpad = pad.astype(F32)[:, None, :]
    src_nonpad = (~pad).astype(F32)[:, :, None]
    enc = params['encoder']
    x = math.sqrt(H) * enc['embed_tokens'][txt_tokens]        # embed_scale * emb
    x = x + pos_table[positions_from_mask(~pad)]              # sinusoidal pos emb
    # spk / emo / intensity embeddings disabled by hparams -> contribute 0, so
    # dur_inp == encoder_out (masked); the duration predictor is fused into the
    # encoder kernel's epilogue.
    encoder_out, dur = fused_fft_stack(
        x, enc['layers'], enc['ln_g'], enc['ln_b'], kpad, src_nonpad,
        num_heads=hp['num_heads'], ffn_kernel=hp['enc_ffn_kernel_size'],
        dur_params=params['dur_predictor'],
        dur_kernel=hp['dur_predictor_kernel'])
    ret['dur'] = dur[..., 0]

    # ---- forward_dur: mel2ph provided (training path) -> LengthRegulator skipped ----
    max_frames = (mel2ph.shape[1] // hp['frames_multiple']) * hp['frames_multiple']
    mel2ph = mel2ph[:, :max_frames]
    ret['mel2ph'] = mel2ph
    tgt_nonpad = (mel2ph > 0).astype(F32)[:, :, None]

    # expand_states(encoder_out, mel2ph)
    h = jnp.pad(encoder_out, ((0, 0), (1, 0), (0, 0)))
    idx = jnp.broadcast_to(mel2ph[:, :, None], mel2ph.shape + (H,))
    decoder_inp = jnp.take_along_axis(h, idx, axis=1)
    ret['decoder_inp'] = decoder_inp = decoder_inp * tgt_nonpad

    # ---- decoder FFT stack + mel_out projection + target mask (one kernel) ----
    dec_pad = jnp.sum(jnp.abs(decoder_inp), axis=-1) == 0
    dec_kpad = dec_pad.astype(F32)[:, None, :]
    dec_nonpad = (~dec_pad).astype(F32)[:, :, None]
    dec = params['decoder']
    posemb = dec['pos_alpha'] * pos_table[
        positions_from_mask(decoder_inp[..., 0] != 0)]
    (mel_out,) = fused_fft_stack(
        decoder_inp, dec['layers'], dec['ln_g'], dec['ln_b'], dec_kpad, dec_nonpad,
        num_heads=hp['num_heads'], ffn_kernel=hp['dec_ffn_kernel_size'],
        posemb=posemb,
        proj_w=params['mel_out_w'], proj_b=params['mel_out_b'],
        nonpad_out=tgt_nonpad)
    ret['mel_out'] = mel_out
    return ret


# --------------------------------------------------------------------------
# Deterministic parameter initialization
# --------------------------------------------------------------------------

class KeyGen:
    def __init__(self, key):
        self.key = key

    def __call__(self):
        self.key, sub = jax.random.split(self.key)
        return sub


def init_params(key, hp, dict_size):
    kg = KeyGen(key)
    H = hp['hidden_size']
    Ff = 4 * H

    def nrm(shape, scale=0.02):
        return scale * jax.random.normal(kg(), shape, jnp.float32)

    def sa_layer(ffn_k):
        wqkv = jnp.concatenate([nrm((H, H)), nrm((H, H)), nrm((H, H))], axis=1)
        return dict(
            ln1_g=jnp.ones((H,), F32), ln1_b=jnp.zeros((H,), F32),
            wqkv=wqkv.astype(BF16), bqkv=jnp.zeros((3 * H,), F32),
            wo=nrm((H, H)).astype(BF16), bo=jnp.zeros((H,), F32),
            ln2_g=jnp.ones((H,), F32), ln2_b=jnp.zeros((H,), F32),
            # conv weight stored pre-im2col'd: [K*Cin, Cout]
            ffn1_w=nrm((ffn_k * H, Ff)).astype(BF16), ffn1_b=jnp.zeros((Ff,), F32),
            ffn2_w=nrm((Ff, H)).astype(BF16), ffn2_b=jnp.zeros((H,), F32),
        )

    emb = (H ** -0.5) * jax.random.normal(kg(), (dict_size, H), jnp.float32)
    emb = emb.at[0].set(0.0)                              # padding_idx
    encoder = dict(embed_tokens=emb,
                   layers=[sa_layer(hp['enc_ffn_kernel_size'])
                           for _ in range(hp['enc_layers'])],
                   ln_g=jnp.ones((H,), F32), ln_b=jnp.zeros((H,), F32))
    decoder = dict(pos_alpha=jnp.ones((), F32),
                   layers=[sa_layer(hp['dec_ffn_kernel_size'])
                           for _ in range(hp['dec_layers'])],
                   ln_g=jnp.ones((H,), F32), ln_b=jnp.zeros((H,), F32))
    C = hp['predictor_hidden'] if hp['predictor_hidden'] > 0 else H
    K = hp['dur_predictor_kernel']
    convs = []
    for i in range(hp['dur_predictor_layers']):
        cin = H if i == 0 else C
        convs.append(dict(w=nrm((K * cin, C)).astype(BF16),
                          b=jnp.zeros((C,), F32),
                          ln_g=jnp.ones((C,), F32), ln_b=jnp.zeros((C,), F32)))
    dur_pred = dict(convs=convs,
                    lin_w=nrm((C, 1)).astype(BF16), lin_b=jnp.zeros((1,), F32))
    return dict(encoder=encoder, decoder=decoder, dur_predictor=dur_pred,
                mel_out_w=nrm((H, hp['audio_num_mel_bins'])).astype(BF16),
                mel_out_b=jnp.zeros((hp['audio_num_mel_bins'],), F32))


# --------------------------------------------------------------------------

if __name__ == "__main__":
    hp = dict(hidden_size=32, enc_layers=2, dec_layers=2,
              enc_ffn_kernel_size=9, dec_ffn_kernel_size=9, num_heads=2,
              audio_num_mel_bins=20, predictor_hidden=32,
              dur_predictor_layers=2, dur_predictor_kernel=3,
              frames_multiple=1, predictor_grad=1.0,
              encoder_type='fft', decoder_type='fft',
              use_spk_lookup=False, use_emo_lookup=False,
              use_spk_embed=False, use_emo_embed=False,
              use_pitch_embed=False, dec_inp_add_noise=False)
    dict_size = 50
    B, Tt, Tm = 2, 8, 16

    key = jax.random.PRNGKey(0)
    kp, kt = jax.random.split(key)
    params = init_params(kp, hp, dict_size)
    pos_table = sinusoidal_table(Tm + 2, hp['hidden_size'])

    # txt tokens: batch 0 fully valid, batch 1 has 2 trailing pads (id 0)
    txt_tokens = jax.random.randint(kt, (B, Tt), 1, dict_size)
    txt_tokens = txt_tokens.at[1, 6:].set(0)

    # mel2ph (ground-truth alignment, training path): each token -> 2 frames
    m2p0 = jnp.repeat(jnp.arange(1, Tt + 1, dtype=jnp.int32), 2)
    m2p1 = jnp.concatenate([jnp.repeat(jnp.arange(1, 7, dtype=jnp.int32), 2),
                            jnp.zeros(4, jnp.int32)])
    mel2ph = jnp.stack([m2p0, m2p1]).astype(jnp.int32)

    fwd = jax.jit(lambda p, toks, m2p: fastspeech_forward(p, hp, toks, m2p, pos_table))
    ret = fwd(params, txt_tokens, mel2ph)
    jax.block_until_ready(ret['mel_out'])
    jax.block_until_ready(ret['dur'])

    assert ret['mel_out'].shape == (B, Tm, hp['audio_num_mel_bins'])
    assert ret['dur'].shape == (B, Tt)
    assert ret['decoder_inp'].shape == (B, Tm, hp['hidden_size'])
    assert bool(jnp.all(jnp.isfinite(ret['mel_out'])))
    assert bool(jnp.all(jnp.isfinite(ret['dur'])))
    print("KERNEL_OK")
</pallas_src>

<mosaic_0001>
module attributes {stable_mosaic.version = 11 : i64} {
  func.func @kernel(%arg0: i32, %arg1: memref<1x8x32xf32, #tpu.memory_space<vmem>>, %arg2: memref<1x1x8xf32, #tpu.memory_space<vmem>>, %arg3: memref<1x8x1xf32, #tpu.memory_space<vmem>>, %arg4: memref<1x32xf32, #tpu.memory_space<vmem>>, %arg5: memref<1x32xf32, #tpu.memory_space<vmem>>, %arg6: memref<32x96xbf16, #tpu.memory_space<vmem>>, %arg7: memref<1x96xf32, #tpu.memory_space<vmem>>, %arg8: memref<32x32xbf16, #tpu.memory_space<vmem>>, %arg9: memref<1x32xf32, #tpu.memory_space<vmem>>, %arg10: memref<1x32xf32, #tpu.memory_space<vmem>>, %arg11: memref<1x32xf32, #tpu.memory_space<vmem>>, %arg12: memref<288x128xbf16, #tpu.memory_space<vmem>>, %arg13: memref<1x128xf32, #tpu.memory_space<vmem>>, %arg14: memref<128x32xbf16, #tpu.memory_space<vmem>>, %arg15: memref<1x32xf32, #tpu.memory_space<vmem>>, %arg16: memref<1x32xf32, #tpu.memory_space<vmem>>, %arg17: memref<1x32xf32, #tpu.memory_space<vmem>>, %arg18: memref<32x96xbf16, #tpu.memory_space<vmem>>, %arg19: memref<1x96xf32, #tpu.memory_space<vmem>>, %arg20: memref<32x32xbf16, #tpu.memory_space<vmem>>, %arg21: memref<1x32xf32, #tpu.memory_space<vmem>>, %arg22: memref<1x32xf32, #tpu.memory_space<vmem>>, %arg23: memref<1x32xf32, #tpu.memory_space<vmem>>, %arg24: memref<288x128xbf16, #tpu.memory_space<vmem>>, %arg25: memref<1x128xf32, #tpu.memory_space<vmem>>, %arg26: memref<128x32xbf16, #tpu.memory_space<vmem>>, %arg27: memref<1x32xf32, #tpu.memory_space<vmem>>, %arg28: memref<1x32xf32, #tpu.memory_space<vmem>>, %arg29: memref<1x32xf32, #tpu.memory_space<vmem>>, %arg30: memref<96x32xbf16, #tpu.memory_space<vmem>>, %arg31: memref<1x32xf32, #tpu.memory_space<vmem>>, %arg32: memref<1x32xf32, #tpu.memory_space<vmem>>, %arg33: memref<1x32xf32, #tpu.memory_space<vmem>>, %arg34: memref<96x32xbf16, #tpu.memory_space<vmem>>, %arg35: memref<1x32xf32, #tpu.memory_space<vmem>>, %arg36: memref<1x32xf32, #tpu.memory_space<vmem>>, %arg37: memref<1x32xf32, #tpu.memory_space<vmem>>, %arg38: memref<32x1xbf16, #tpu.memory_space<vmem>>, %arg39: memref<1x1xf32, #tpu.memory_space<vmem>>, %arg40: memref<1x8x32xf32, #tpu.memory_space<vmem>>, %arg41: memref<1x8x1xf32, #tpu.memory_space<vmem>>) attributes {dimension_semantics = [#tpu.dimension_semantics<parallel>], iteration_bounds = array<i64: 2>, scalar_prefetch = 0 : i64, scratch_operands = 0 : i64, tpu.core_type = #tpu.core_type<tc>, window_params = [{transform_indices = @transform_0, window_bounds = array<i64: 1, 8, 32>}, {transform_indices = @transform_1, window_bounds = array<i64: 1, 1, 8>}, {transform_indices = @transform_2, window_bounds = array<i64: 1, 8, 1>}, {pipeline_mode = #tpu.pipeline_mode<synchronous>, transform_indices = @transform_3, window_bounds = array<i64: 1, 32>}, {pipeline_mode = #tpu.pipeline_mode<synchronous>, transform_indices = @transform_4, window_bounds = array<i64: 1, 32>}, {pipeline_mode = #tpu.pipeline_mode<synchronous>, transform_indices = @transform_5, window_bounds = array<i64: 32, 96>}, {pipeline_mode = #tpu.pipeline_mode<synchronous>, transform_indices = @transform_6, window_bounds = array<i64: 1, 96>}, {pipeline_mode = #tpu.pipeline_mode<synchronous>, transform_indices = @transform_7, window_bounds = array<i64: 32, 32>}, {pipeline_mode = #tpu.pipeline_mode<synchronous>, transform_indices = @transform_8, window_bounds = array<i64: 1, 32>}, {pipeline_mode = #tpu.pipeline_mode<synchronous>, transform_indices = @transform_9, window_bounds = array<i64: 1, 32>}, {pipeline_mode = #tpu.pipeline_mode<synchronous>, transform_indices = @transform_10, window_bounds = array<i64: 1, 32>}, {pipeline_mode = #tpu.pipeline_mode<synchronous>, transform_indices = @transform_11, window_bounds = array<i64: 288, 128>}, {pipeline_mode = #tpu.pipeline_mode<synchronous>, transform_indices = @transform_12, window_bounds = array<i64: 1, 128>}, {pipeline_mode = #tpu.pipeline_mode<synchronous>, transform_indices = @transform_13, window_bounds = array<i64: 128, 32>}, {pipeline_mode = #tpu.pipeline_mode<synchronous>, transform_indices = @transform_14, window_bounds = array<i64: 1, 32>}, {pipeline_mode = #tpu.pipeline_mode<synchronous>, transform_indices = @transform_15, window_bounds = array<i64: 1, 32>}, {pipeline_mode = #tpu.pipeline_mode<synchronous>, transform_indices = @transform_16, window_bounds = array<i64: 1, 32>}, {pipeline_mode = #tpu.pipeline_mode<synchronous>, transform_indices = @transform_17, window_bounds = array<i64: 32, 96>}, {pipeline_mode = #tpu.pipeline_mode<synchronous>, transform_indices = @transform_18, window_bounds = array<i64: 1, 96>}, {pipeline_mode = #tpu.pipeline_mode<synchronous>, transform_indices = @transform_19, window_bounds = array<i64: 32, 32>}, {pipeline_mode = #tpu.pipeline_mode<synchronous>, transform_indices = @transform_20, window_bounds = array<i64: 1, 32>}, {pipeline_mode = #tpu.pipeline_mode<synchronous>, transform_indices = @transform_21, window_bounds = array<i64: 1, 32>}, {pipeline_mode = #tpu.pipeline_mode<synchronous>, transform_indices = @transform_22, window_bounds = array<i64: 1, 32>}, {pipeline_mode = #tpu.pipeline_mode<synchronous>, transform_indices = @transform_23, window_bounds = array<i64: 288, 128>}, {pipeline_mode = #tpu.pipeline_mode<synchronous>, transform_indices = @transform_24, window_bounds = array<i64: 1, 128>}, {pipeline_mode = #tpu.pipeline_mode<synchronous>, transform_indices = @transform_25, window_bounds = array<i64: 128, 32>}, {pipeline_mode = #tpu.pipeline_mode<synchronous>, transform_indices = @transform_26, window_bounds = array<i64: 1, 32>}, {pipeline_mode = #tpu.pipeline_mode<synchronous>, transform_indices = @transform_27, window_bounds = array<i64: 1, 32>}, {pipeline_mode = #tpu.pipeline_mode<synchronous>, transform_indices = @transform_28, window_bounds = array<i64: 1, 32>}, {pipeline_mode = #tpu.pipeline_mode<synchronous>, transform_indices = @transform_29, window_bounds = array<i64: 96, 32>}, {pipeline_mode = #tpu.pipeline_mode<synchronous>, transform_indices = @transform_30, window_bounds = array<i64: 1, 32>}, {pipeline_mode = #tpu.pipeline_mode<synchronous>, transform_indices = @transform_31, window_bounds = array<i64: 1, 32>}, {pipeline_mode = #tpu.pipeline_mode<synchronous>, transform_indices = @transform_32, window_bounds = array<i64: 1, 32>}, {pipeline_mode = #tpu.pipeline_mode<synchronous>, transform_indices = @transform_33, window_bounds = array<i64: 96, 32>}, {pipeline_mode = #tpu.pipeline_mode<synchronous>, transform_indices = @transform_34, window_bounds = array<i64: 1, 32>}, {pipeline_mode = #tpu.pipeline_mode<synchronous>, transform_indices = @transform_35, window_bounds = array<i64: 1, 32>}, {pipeline_mode = #tpu.pipeline_mode<synchronous>, transform_indices = @transform_36, window_bounds = array<i64: 1, 32>}, {pipeline_mode = #tpu.pipeline_mode<synchronous>, transform_indices = @transform_37, window_bounds = array<i64: 32, 1>}, {pipeline_mode = #tpu.pipeline_mode<synchronous>, transform_indices = @transform_38, window_bounds = array<i64: 1, 1>}, {transform_indices = @transform_39, window_bounds = array<i64: 1, 8, 32>}, {transform_indices = @transform_40, window_bounds = array<i64: 1, 8, 1>}]} {
    %c0 = arith.constant 0 : index
    %c0_0 = arith.constant 0 : index
    %c0_1 = arith.constant 0 : index
    %0 = vector.load %arg3[%c0, %c0_0, %c0_1] : memref<1x8x1xf32, #tpu.memory_space<vmem>>, vector<1x8x1xf32>
    %1 = vector.shape_cast %0 : vector<1x8x1xf32> to vector<8x1xf32>
    %c0_2 = arith.constant 0 : index
    %c0_3 = arith.constant 0 : index
    %c0_4 = arith.constant 0 : index
    %2 = vector.load %arg2[%c0_2, %c0_3, %c0_4] : memref<1x1x8xf32, #tpu.memory_space<vmem>>, vector<1x1x8xf32>
    %3 = vector.shape_cast %2 : vector<1x1x8xf32> to vector<1x8xf32>
    %cst = arith.constant -1.000000e+09 : f32
    %4 = vector.broadcast %cst : f32 to vector<1x8xf32>
    %5 = arith.mulf %3, %4 : vector<1x8xf32>
    %c0_5 = arith.constant 0 : index
    %c0_6 = arith.constant 0 : index
    %c0_7 = arith.constant 0 : index
    %6 = vector.load %arg1[%c0_5, %c0_6, %c0_7] : memref<1x8x32xf32, #tpu.memory_space<vmem>>, vector<1x8x32xf32>
    %7 = vector.shape_cast %6 : vector<1x8x32xf32> to vector<8x32xf32>
    %8 = vector.broadcast %1 : vector<8x1xf32> to vector<8x32xf32>
    %9 = arith.mulf %7, %8 : vector<8x32xf32>
    %c0_8 = arith.constant 0 : index
    %c0_9 = arith.constant 0 : index
    %10 = vector.load %arg4[%c0_8, %c0_9] : memref<1x32xf32, #tpu.memory_space<vmem>>, vector<1x32xf32>
    %c0_10 = arith.constant 0 : index
    %c0_11 = arith.constant 0 : index
    %11 = vector.load %arg5[%c0_10, %c0_11] : memref<1x32xf32, #tpu.memory_space<vmem>>, vector<1x32xf32>
    %cst_12 = arith.constant dense<0.000000e+00> : vector<8xf32>
    %12 = vector.multi_reduction <add>, %9, %cst_12 [1] : vector<8x32xf32> to vector<8xf32>
    %13 = vector.shape_cast %12 : vector<8xf32> to vector<8x1xf32>
    %cst_13 = arith.constant 3.200000e+01 : f32
    %14 = vector.broadcast %cst_13 : f32 to vector<8x1xf32>
    %15 = arith.divf %13, %14 : vector<8x1xf32>
    %16 = vector.broadcast %15 : vector<8x1xf32> to vector<8x32xf32>
    %17 = arith.subf %9, %16 : vector<8x32xf32>
    %18 = arith.mulf %17, %17 : vector<8x32xf32>
    %cst_14 = arith.constant dense<0.000000e+00> : vector<8xf32>
    %19 = vector.multi_reduction <add>, %18, %cst_14 [1] : vector<8x32xf32> to vector<8xf32>
    %20 = vector.shape_cast %19 : vector<8xf32> to vector<8x1xf32>
    %cst_15 = arith.constant 3.200000e+01 : f32
    %21 = vector.broadcast %cst_15 : f32 to vector<8x1xf32>
    %22 = arith.divf %20, %21 : vector<8x1xf32>
    %23 = vector.broadcast %15 : vector<8x1xf32> to vector<8x32xf32>
    %24 = arith.subf %9, %23 : vector<8x32xf32>
    %cst_16 = arith.constant 9.99999996E-13 : f32
    %25 = vector.broadcast %cst_16 : f32 to vector<8x1xf32>
    %26 = arith.addf %22, %25 : vector<8x1xf32>
    %27 = math.rsqrt %26 : vector<8x1xf32>
    %28 = vector.broadcast %27 : vector<8x1xf32> to vector<8x32xf32>
    %29 = arith.mulf %24, %28 : vector<8x32xf32>
    %30 = vector.broadcast %10 : vector<1x32xf32> to vector<8x32xf32>
    %31 = arith.mulf %29, %30 : vector<8x32xf32>
    %32 = vector.broadcast %11 : vector<1x32xf32> to vector<8x32xf32>
    %33 = arith.addf %31, %32 : vector<8x32xf32>
    %34 = arith.truncf %33 : vector<8x32xf32> to vector<8x32xbf16>
    %c0_17 = arith.constant 0 : index
    %c0_18 = arith.constant 0 : index
    %35 = vector.load %arg6[%c0_17, %c0_18] : memref<32x96xbf16, #tpu.memory_space<vmem>>, vector<32x96xbf16>
    %cst_19 = arith.constant dense<0.000000e+00> : vector<8x96xf32>
    %36 = tpu.matmul %34, %35, %cst_19 {dimension_numbers = #tpu.dot_dimension_numbers<[1], [0], [0], [1], [0, 0, 1, 1], [], []>} : vector<8x32xbf16>, vector<32x96xbf16>, vector<8x96xf32> -> vector<8x96xf32>
    %c0_20 = arith.constant 0 : index
    %c0_21 = arith.constant 0 : index
    %37 = vector.load %arg7[%c0_20, %c0_21] : memref<1x96xf32, #tpu.memory_space<vmem>>, vector<1x96xf32>
    %38 = vector.broadcast %37 : vector<1x96xf32> to vector<8x96xf32>
    %39 = arith.addf %36, %38 : vector<8x96xf32>
    %40 = vector.extract_strided_slice %39 {offsets = [0, 0], sizes = [8, 16], strides = [1, 1]} : vector<8x96xf32> to vector<8x16xf32>
    %cst_22 = arith.constant 2.500000e-01 : f32
    %41 = vector.broadcast %cst_22 : f32 to vector<8x16xf32>
    %42 = arith.mulf %40, %41 : vector<8x16xf32>
    %43 = vector.extract_strided_slice %39 {offsets = [0, 32], sizes = [8, 16], strides = [1, 1]} : vector<8x96xf32> to vector<8x16xf32>
    %44 = vector.extract_strided_slice %39 {offsets = [0, 64], sizes = [8, 16], strides = [1, 1]} : vector<8x96xf32> to vector<8x16xf32>
    %45 = arith.truncf %42 : vector<8x16xf32> to vector<8x16xbf16>
    %46 = arith.truncf %43 : vector<8x16xf32> to vector<8x16xbf16>
    %cst_23 = arith.constant dense<0.000000e+00> : vector<8x8xf32>
    %47 = tpu.matmul %45, %46, %cst_23 {dimension_numbers = #tpu.dot_dimension_numbers<[1], [1], [0], [0], [0, 0, 1, 0], [], []>} : vector<8x16xbf16>, vector<8x16xbf16>, vector<8x8xf32> -> vector<8x8xf32>
    %48 = vector.broadcast %5 : vector<1x8xf32> to vector<8x8xf32>
    %49 = arith.addf %47, %48 : vector<8x8xf32>
    %cst_24 = arith.constant dense<0xFF800000> : vector<8xf32>
    %50 = vector.multi_reduction <maximumf>, %49, %cst_24 [1] : vector<8x8xf32> to vector<8xf32>
    %51 = vector.shape_cast %50 : vector<8xf32> to vector<8x1xf32>
    %52 = vector.broadcast %51 : vector<8x1xf32> to vector<8x8xf32>
    %53 = arith.subf %49, %52 : vector<8x8xf32>
    %54 = math.exp %53 : vector<8x8xf32>
    %cst_25 = arith.constant dense<0.000000e+00> : vector<8xf32>
    %55 = vector.multi_reduction <add>, %54, %cst_25 [1] : vector<8x8xf32> to vector<8xf32>
    %56 = vector.shape_cast %55 : vector<8xf32> to vector<8x1xf32>
    %57 = arith.truncf %54 : vector<8x8xf32> to vector<8x8xbf16>
    %58 = arith.truncf %44 : vector<8x16xf32> to vector<8x16xbf16>
    %cst_26 = arith.constant dense<0.000000e+00> : vector<8x16xf32>
    %59 = tpu.matmul %57, %58, %cst_26 {dimension_numbers = #tpu.dot_dimension_numbers<[1], [0], [0], [1], [0, 0, 1, 1], [], []>} : vector<8x8xbf16>, vector<8x16xbf16>, vector<8x16xf32> -> vector<8x16xf32>
    %60 = tpu.reciprocal %56 {approx = true} : vector<8x1xf32> -> vector<8x1xf32>
    %61 = vector.broadcast %60 : vector<8x1xf32> to vector<8x16xf32>
    %62 = arith.mulf %59, %61 : vector<8x16xf32>
    %63 = vector.extract_strided_slice %39 {offsets = [0, 16], sizes = [8, 16], strides = [1, 1]} : vector<8x96xf32> to vector<8x16xf32>
    %cst_27 = arith.constant 2.500000e-01 : f32
    %64 = vector.broadcast %cst_27 : f32 to vector<8x16xf32>
    %65 = arith.mulf %63, %64 : vector<8x16xf32>
    %66 = vector.extract_strided_slice %39 {offsets = [0, 48], sizes = [8, 16], strides = [1, 1]} : vector<8x96xf32> to vector<8x16xf32>
    %67 = vector.extract_strided_slice %39 {offsets = [0, 80], sizes = [8, 16], strides = [1, 1]} : vector<8x96xf32> to vector<8x16xf32>
    %68 = arith.truncf %65 : vector<8x16xf32> to vector<8x16xbf16>
    %69 = arith.truncf %66 : vector<8x16xf32> to vector<8x16xbf16>
    %cst_28 = arith.constant dense<0.000000e+00> : vector<8x8xf32>
    %70 = tpu.matmul %68, %69, %cst_28 {dimension_numbers = #tpu.dot_dimension_numbers<[1], [1], [0], [0], [0, 0, 1, 0], [], []>} : vector<8x16xbf16>, vector<8x16xbf16>, vector<8x8xf32> -> vector<8x8xf32>
    %71 = vector.broadcast %5 : vector<1x8xf32> to vector<8x8xf32>
    %72 = arith.addf %70, %71 : vector<8x8xf32>
    %cst_29 = arith.constant dense<0xFF800000> : vector<8xf32>
    %73 = vector.multi_reduction <maximumf>, %72, %cst_29 [1] : vector<8x8xf32> to vector<8xf32>
    %74 = vector.shape_cast %73 : vector<8xf32> to vector<8x1xf32>
    %75 = vector.broadcast %74 : vector<8x1xf32> to vector<8x8xf32>
    %76 = arith.subf %72, %75 : vector<8x8xf32>
    %77 = math.exp %76 : vector<8x8xf32>
    %cst_30 = arith.constant dense<0.000000e+00> : vector<8xf32>
    %78 = vector.multi_reduction <add>, %77, %cst_30 [1] : vector<8x8xf32> to vector<8xf32>
    %79 = vector.shape_cast %78 : vector<8xf32> to vector<8x1xf32>
    %80 = arith.truncf %77 : vector<8x8xf32> to vector<8x8xbf16>
    %81 = arith.truncf %67 : vector<8x16xf32> to vector<8x16xbf16>
    %cst_31 = arith.constant dense<0.000000e+00> : vector<8x16xf32>
    %82 = tpu.matmul %80, %81, %cst_31 {dimension_numbers = #tpu.dot_dimension_numbers<[1], [0], [0], [1], [0, 0, 1, 1], [], []>} : vector<8x8xbf16>, vector<8x16xbf16>, vector<8x16xf32> -> vector<8x16xf32>
    %83 = tpu.reciprocal %79 {approx = true} : vector<8x1xf32> -> vector<8x1xf32>
    %84 = vector.broadcast %83 : vector<8x1xf32> to vector<8x16xf32>
    %85 = arith.mulf %82, %84 : vector<8x16xf32>
    %86 = tpu.concatenate %62, %85 in 1 : vector<8x16xf32>, vector<8x16xf32> -> vector<8x32xf32>
    %87 = arith.truncf %86 : vector<8x32xf32> to vector<8x32xbf16>
    %c0_32 = arith.constant 0 : index
    %c0_33 = arith.constant 0 : index
    %88 = vector.load %arg8[%c0_32, %c0_33] : memref<32x32xbf16, #tpu.memory_space<vmem>>, vector<32x32xbf16>
    %cst_34 = arith.constant dense<0.000000e+00> : vector<8x32xf32>
    %89 = tpu.matmul %87, %88, %cst_34 {dimension_numbers = #tpu.dot_dimension_numbers<[1], [0], [0], [1], [0, 0, 1, 1], [], []>} : vector<8x32xbf16>, vector<32x32xbf16>, vector<8x32xf32> -> vector<8x32xf32>
    %c0_35 = arith.constant 0 : index
    %c0_36 = arith.constant 0 : index
    %90 = vector.load %arg9[%c0_35, %c0_36] : memref<1x32xf32, #tpu.memory_space<vmem>>, vector<1x32xf32>
    %91 = vector.broadcast %90 : vector<1x32xf32> to vector<8x32xf32>
    %92 = arith.addf %89, %91 : vector<8x32xf32>
    %93 = arith.addf %9, %92 : vector<8x32xf32>
    %94 = vector.broadcast %1 : vector<8x1xf32> to vector<8x32xf32>
    %95 = arith.mulf %93, %94 : vector<8x32xf32>
    %c0_37 = arith.constant 0 : index
    %c0_38 = arith.constant 0 : index
    %96 = vector.load %arg10[%c0_37, %c0_38] : memref<1x32xf32, #tpu.memory_space<vmem>>, vector<1x32xf32>
    %c0_39 = arith.constant 0 : index
    %c0_40 = arith.constant 0 : index
    %97 = vector.load %arg11[%c0_39, %c0_40] : memref<1x32xf32, #tpu.memory_space<vmem>>, vector<1x32xf32>
    %cst_41 = arith.constant dense<0.000000e+00> : vector<8xf32>
    %98 = vector.multi_reduction <add>, %95, %cst_41 [1] : vector<8x32xf32> to vector<8xf32>
    %99 = vector.shape_cast %98 : vector<8xf32> to vector<8x1xf32>
    %cst_42 = arith.constant 3.200000e+01 : f32
    %100 = vector.broadcast %cst_42 : f32 to vector<8x1xf32>
    %101 = arith.divf %99, %100 : vector<8x1xf32>
    %102 = vector.broadcast %101 : vector<8x1xf32> to vector<8x32xf32>
    %103 = arith.subf %95, %102 : vector<8x32xf32>
    %104 = arith.mulf %103, %103 : vector<8x32xf32>
    %cst_43 = arith.constant dense<0.000000e+00> : vector<8xf32>
    %105 = vector.multi_reduction <add>, %104, %cst_43 [1] : vector<8x32xf32> to vector<8xf32>
    %106 = vector.shape_cast %105 : vector<8xf32> to vector<8x1xf32>
    %cst_44 = arith.constant 3.200000e+01 : f32
    %107 = vector.broadcast %cst_44 : f32 to vector<8x1xf32>
    %108 = arith.divf %106, %107 : vector<8x1xf32>
    %109 = vector.broadcast %101 : vector<8x1xf32> to vector<8x32xf32>
    %110 = arith.subf %95, %109 : vector<8x32xf32>
    %cst_45 = arith.constant 9.99999996E-13 : f32
    %111 = vector.broadcast %cst_45 : f32 to vector<8x1xf32>
    %112 = arith.addf %108, %111 : vector<8x1xf32>
    %113 = math.rsqrt %112 : vector<8x1xf32>
    %114 = vector.broadcast %113 : vector<8x1xf32> to vector<8x32xf32>
    %115 = arith.mulf %110, %114 : vector<8x32xf32>
    %116 = vector.broadcast %96 : vector<1x32xf32> to vector<8x32xf32>
    %117 = arith.mulf %115, %116 : vector<8x32xf32>
    %118 = vector.broadcast %97 : vector<1x32xf32> to vector<8x32xf32>
    %119 = arith.addf %117, %118 : vector<8x32xf32>
    %cst_46 = arith.constant 0.000000e+00 : f32
    %120 = vector.broadcast %cst_46 : f32 to vector<4x32xf32>
    %cst_47 = arith.constant 0.000000e+00 : f32
    %121 = vector.broadcast %cst_47 : f32 to vector<4x32xf32>
    %122 = tpu.concatenate %120, %119, %121 in 0 : vector<4x32xf32>, vector<8x32xf32>, vector<4x32xf32> -> vector<16x32xf32>
    %123 = vector.extract_strided_slice %122 {offsets = [0, 0], sizes = [8, 32], strides = [1, 1]} : vector<16x32xf32> to vector<8x32xf32>
    %124 = vector.extract_strided_slice %122 {offsets = [1, 0], sizes = [8, 32], strides = [1, 1]} : vector<16x32xf32> to vector<8x32xf32>
    %125 = vector.extract_strided_slice %122 {offsets = [2, 0], sizes = [8, 32], strides = [1, 1]} : vector<16x32xf32> to vector<8x32xf32>
    %126 = vector.extract_strided_slice %122 {offsets = [3, 0], sizes = [8, 32], strides = [1, 1]} : vector<16x32xf32> to vector<8x32xf32>
    %127 = vector.extract_strided_slice %122 {offsets = [4, 0], sizes = [8, 32], strides = [1, 1]} : vector<16x32xf32> to vector<8x32xf32>
    %128 = vector.extract_strided_slice %122 {offsets = [5, 0], sizes = [8, 32], strides = [1, 1]} : vector<16x32xf32> to vector<8x32xf32>
    %129 = vector.extract_strided_slice %122 {offsets = [6, 0], sizes = [8, 32], strides = [1, 1]} : vector<16x32xf32> to vector<8x32xf32>
    %130 = vector.extract_strided_slice %122 {offsets = [7, 0], sizes = [8, 32], strides = [1, 1]} : vector<16x32xf32> to vector<8x32xf32>
    %131 = vector.extract_strided_slice %122 {offsets = [8, 0], sizes = [8, 32], strides = [1, 1]} : vector<16x32xf32> to vector<8x32xf32>
    %132 = tpu.concatenate %123, %124, %125, %126, %127, %128, %129, %130, %131 in 1 : vector<8x32xf32>, vector<8x32xf32>, vector<8x32xf32>, vector<8x32xf32>, vector<8x32xf32>, vector<8x32xf32>, vector<8x32xf32>, vector<8x32xf32>, vector<8x32xf32> -> vector<8x288xf32>
    %133 = arith.truncf %132 : vector<8x288xf32> to vector<8x288xbf16>
    %c0_48 = arith.constant 0 : index
    %c0_49 = arith.constant 0 : index
    %134 = vector.load %arg12[%c0_48, %c0_49] : memref<288x128xbf16, #tpu.memory_space<vmem>>, vector<288x128xbf16>
    %cst_50 = arith.constant dense<0.000000e+00> : vector<8x128xf32>
    %135 = tpu.matmul %133, %134, %cst_50 {dimension_numbers = #tpu.dot_dimension_numbers<[1], [0], [0], [1], [0, 0, 1, 1], [], []>} : vector<8x288xbf16>, vector<288x128xbf16>, vector<8x128xf32> -> vector<8x128xf32>
    %c0_51 = arith.constant 0 : index
    %c0_52 = arith.constant 0 : index
    %136 = vector.load %arg13[%c0_51, %c0_52] : memref<1x128xf32, #tpu.memory_space<vmem>>, vector<1x128xf32>
    %137 = vector.broadcast %136 : vector<1x128xf32> to vector<8x128xf32>
    %138 = arith.addf %135, %137 : vector<8x128xf32>
    %cst_53 = arith.constant 0.333333343 : f32
    %139 = vector.broadcast %cst_53 : f32 to vector<8x128xf32>
    %140 = arith.mulf %138, %139 : vector<8x128xf32>
    %141 = arith.mulf %140, %140 : vector<8x128xf32>
    %142 = arith.mulf %140, %141 : vector<8x128xf32>
    %cst_54 = arith.constant 4.471500e-02 : f32
    %143 = vector.broadcast %cst_54 : f32 to vector<8x128xf32>
    %144 = arith.mulf %143, %142 : vector<8x128xf32>
    %145 = arith.addf %140, %144 : vector<8x128xf32>
    %cst_55 = arith.constant 0.797884583 : f32
    %146 = vector.broadcast %cst_55 : f32 to vector<8x128xf32>
    %147 = arith.mulf %146, %145 : vector<8x128xf32>
    %148 = math.tanh %147 : vector<8x128xf32>
    %cst_56 = arith.constant 1.000000e+00 : f32
    %149 = vector.broadcast %cst_56 : f32 to vector<8x128xf32>
    %150 = arith.addf %149, %148 : vector<8x128xf32>
    %cst_57 = arith.constant 5.000000e-01 : f32
    %151 = vector.broadcast %cst_57 : f32 to vector<8x128xf32>
    %152 = arith.mulf %151, %150 : vector<8x128xf32>
    %153 = arith.mulf %140, %152 : vector<8x128xf32>
    %154 = arith.truncf %153 : vector<8x128xf32> to vector<8x128xbf16>
    %c0_58 = arith.constant 0 : index
    %c0_59 = arith.constant 0 : index
    %155 = vector.load %arg14[%c0_58, %c0_59] : memref<128x32xbf16, #tpu.memory_space<vmem>>, vector<128x32xbf16>
    %cst_60 = arith.constant dense<0.000000e+00> : vector<8x32xf32>
    %156 = tpu.matmul %154, %155, %cst_60 {dimension_numbers = #tpu.dot_dimension_numbers<[1], [0], [0], [1], [0, 0, 1, 1], [], []>} : vector<8x128xbf16>, vector<128x32xbf16>, vector<8x32xf32> -> vector<8x32xf32>
    %c0_61 = arith.constant 0 : index
    %c0_62 = arith.constant 0 : index
    %157 = vector.load %arg15[%c0_61, %c0_62] : memref<1x32xf32, #tpu.memory_space<vmem>>, vector<1x32xf32>
    %158 = vector.broadcast %157 : vector<1x32xf32> to vector<8x32xf32>
    %159 = arith.addf %156, %158 : vector<8x32xf32>
    %160 = arith.addf %95, %159 : vector<8x32xf32>
    %161 = vector.broadcast %1 : vector<8x1xf32> to vector<8x32xf32>
    %162 = arith.mulf %160, %161 : vector<8x32xf32>
    %c0_63 = arith.constant 0 : index
    %c0_64 = arith.constant 0 : index
    %163 = vector.load %arg16[%c0_63, %c0_64] : memref<1x32xf32, #tpu.memory_space<vmem>>, vector<1x32xf32>
    %c0_65 = arith.constant 0 : index
    %c0_66 = arith.constant 0 : index
    %164 = vector.load %arg17[%c0_65, %c0_66] : memref<1x32xf32, #tpu.memory_space<vmem>>, vector<1x32xf32>
    %cst_67 = arith.constant dense<0.000000e+00> : vector<8xf32>
    %165 = vector.multi_reduction <add>, %162, %cst_67 [1] : vector<8x32xf32> to vector<8xf32>
    %166 = vector.shape_cast %165 : vector<8xf32> to vector<8x1xf32>
    %cst_68 = arith.constant 3.200000e+01 : f32
    %167 = vector.broadcast %cst_68 : f32 to vector<8x1xf32>
    %168 = arith.divf %166, %167 : vector<8x1xf32>
    %169 = vector.broadcast %168 : vector<8x1xf32> to vector<8x32xf32>
    %170 = arith.subf %162, %169 : vector<8x32xf32>
    %171 = arith.mulf %170, %170 : vector<8x32xf32>
    %cst_69 = arith.constant dense<0.000000e+00> : vector<8xf32>
    %172 = vector.multi_reduction <add>, %171, %cst_69 [1] : vector<8x32xf32> to vector<8xf32>
    %173 = vector.shape_cast %172 : vector<8xf32> to vector<8x1xf32>
    %cst_70 = arith.constant 3.200000e+01 : f32
    %174 = vector.broadcast %cst_70 : f32 to vector<8x1xf32>
    %175 = arith.divf %173, %174 : vector<8x1xf32>
    %176 = vector.broadcast %168 : vector<8x1xf32> to vector<8x32xf32>
    %177 = arith.subf %162, %176 : vector<8x32xf32>
    %cst_71 = arith.constant 9.99999996E-13 : f32
    %178 = vector.broadcast %cst_71 : f32 to vector<8x1xf32>
    %179 = arith.addf %175, %178 : vector<8x1xf32>
    %180 = math.rsqrt %179 : vector<8x1xf32>
    %181 = vector.broadcast %180 : vector<8x1xf32> to vector<8x32xf32>
    %182 = arith.mulf %177, %181 : vector<8x32xf32>
    %183 = vector.broadcast %163 : vector<1x32xf32> to vector<8x32xf32>
    %184 = arith.mulf %182, %183 : vector<8x32xf32>
    %185 = vector.broadcast %164 : vector<1x32xf32> to vector<8x32xf32>
    %186 = arith.addf %184, %185 : vector<8x32xf32>
    %187 = arith.truncf %186 : vector<8x32xf32> to vector<8x32xbf16>
    %c0_72 = arith.constant 0 : index
    %c0_73 = arith.constant 0 : index
    %188 = vector.load %arg18[%c0_72, %c0_73] : memref<32x96xbf16, #tpu.memory_space<vmem>>, vector<32x96xbf16>
    %cst_74 = arith.constant dense<0.000000e+00> : vector<8x96xf32>
    %189 = tpu.matmul %187, %188, %cst_74 {dimension_numbers = #tpu.dot_dimension_numbers<[1], [0], [0], [1], [0, 0, 1, 1], [], []>} : vector<8x32xbf16>, vector<32x96xbf16>, vector<8x96xf32> -> vector<8x96xf32>
    %c0_75 = arith.constant 0 : index
    %c0_76 = arith.constant 0 : index
    %190 = vector.load %arg19[%c0_75, %c0_76] : memref<1x96xf32, #tpu.memory_space<vmem>>, vector<1x96xf32>
    %191 = vector.broadcast %190 : vector<1x96xf32> to vector<8x96xf32>
    %192 = arith.addf %189, %191 : vector<8x96xf32>
    %193 = vector.extract_strided_slice %192 {offsets = [0, 0], sizes = [8, 16], strides = [1, 1]} : vector<8x96xf32> to vector<8x16xf32>
    %cst_77 = arith.constant 2.500000e-01 : f32
    %194 = vector.broadcast %cst_77 : f32 to vector<8x16xf32>
    %195 = arith.mulf %193, %194 : vector<8x16xf32>
    %196 = vector.extract_strided_slice %192 {offsets = [0, 32], sizes = [8, 16], strides = [1, 1]} : vector<8x96xf32> to vector<8x16xf32>
    %197 = vector.extract_strided_slice %192 {offsets = [0, 64], sizes = [8, 16], strides = [1, 1]} : vector<8x96xf32> to vector<8x16xf32>
    %198 = arith.truncf %195 : vector<8x16xf32> to vector<8x16xbf16>
    %199 = arith.truncf %196 : vector<8x16xf32> to vector<8x16xbf16>
    %cst_78 = arith.constant dense<0.000000e+00> : vector<8x8xf32>
    %200 = tpu.matmul %198, %199, %cst_78 {dimension_numbers = #tpu.dot_dimension_numbers<[1], [1], [0], [0], [0, 0, 1, 0], [], []>} : vector<8x16xbf16>, vector<8x16xbf16>, vector<8x8xf32> -> vector<8x8xf32>
    %201 = vector.broadcast %5 : vector<1x8xf32> to vector<8x8xf32>
    %202 = arith.addf %200, %201 : vector<8x8xf32>
    %cst_79 = arith.constant dense<0xFF800000> : vector<8xf32>
    %203 = vector.multi_reduction <maximumf>, %202, %cst_79 [1] : vector<8x8xf32> to vector<8xf32>
    %204 = vector.shape_cast %203 : vector<8xf32> to vector<8x1xf32>
    %205 = vector.broadcast %204 : vector<8x1xf32> to vector<8x8xf32>
    %206 = arith.subf %202, %205 : vector<8x8xf32>
    %207 = math.exp %206 : vector<8x8xf32>
    %cst_80 = arith.constant dense<0.000000e+00> : vector<8xf32>
    %208 = vector.multi_reduction <add>, %207, %cst_80 [1] : vector<8x8xf32> to vector<8xf32>
    %209 = vector.shape_cast %208 : vector<8xf32> to vector<8x1xf32>
    %210 = arith.truncf %207 : vector<8x8xf32> to vector<8x8xbf16>
    %211 = arith.truncf %197 : vector<8x16xf32> to vector<8x16xbf16>
    %cst_81 = arith.constant dense<0.000000e+00> : vector<8x16xf32>
    %212 = tpu.matmul %210, %211, %cst_81 {dimension_numbers = #tpu.dot_dimension_numbers<[1], [0], [0], [1], [0, 0, 1, 1], [], []>} : vector<8x8xbf16>, vector<8x16xbf16>, vector<8x16xf32> -> vector<8x16xf32>
    %213 = tpu.reciprocal %209 {approx = true} : vector<8x1xf32> -> vector<8x1xf32>
    %214 = vector.broadcast %213 : vector<8x1xf32> to vector<8x16xf32>
    %215 = arith.mulf %212, %214 : vector<8x16xf32>
    %216 = vector.extract_strided_slice %192 {offsets = [0, 16], sizes = [8, 16], strides = [1, 1]} : vector<8x96xf32> to vector<8x16xf32>
    %cst_82 = arith.constant 2.500000e-01 : f32
    %217 = vector.broadcast %cst_82 : f32 to vector<8x16xf32>
    %218 = arith.mulf %216, %217 : vector<8x16xf32>
    %219 = vector.extract_strided_slice %192 {offsets = [0, 48], sizes = [8, 16], strides = [1, 1]} : vector<8x96xf32> to vector<8x16xf32>
    %220 = vector.extract_strided_slice %192 {offsets = [0, 80], sizes = [8, 16], strides = [1, 1]} : vector<8x96xf32> to vector<8x16xf32>
    %221 = arith.truncf %218 : vector<8x16xf32> to vector<8x16xbf16>
    %222 = arith.truncf %219 : vector<8x16xf32> to vector<8x16xbf16>
    %cst_83 = arith.constant dense<0.000000e+00> : vector<8x8xf32>
    %223 = tpu.matmul %221, %222, %cst_83 {dimension_numbers = #tpu.dot_dimension_numbers<[1], [1], [0], [0], [0, 0, 1, 0], [], []>} : vector<8x16xbf16>, vector<8x16xbf16>, vector<8x8xf32> -> vector<8x8xf32>
    %224 = vector.broadcast %5 : vector<1x8xf32> to vector<8x8xf32>
    %225 = arith.addf %223, %224 : vector<8x8xf32>
    %cst_84 = arith.constant dense<0xFF800000> : vector<8xf32>
    %226 = vector.multi_reduction <maximumf>, %225, %cst_84 [1] : vector<8x8xf32> to vector<8xf32>
    %227 = vector.shape_cast %226 : vector<8xf32> to vector<8x1xf32>
    %228 = vector.broadcast %227 : vector<8x1xf32> to vector<8x8xf32>
    %229 = arith.subf %225, %228 : vector<8x8xf32>
    %230 = math.exp %229 : vector<8x8xf32>
    %cst_85 = arith.constant dense<0.000000e+00> : vector<8xf32>
    %231 = vector.multi_reduction <add>, %230, %cst_85 [1] : vector<8x8xf32> to vector<8xf32>
    %232 = vector.shape_cast %231 : vector<8xf32> to vector<8x1xf32>
    %233 = arith.truncf %230 : vector<8x8xf32> to vector<8x8xbf16>
    %234 = arith.truncf %220 : vector<8x16xf32> to vector<8x16xbf16>
    %cst_86 = arith.constant dense<0.000000e+00> : vector<8x16xf32>
    %235 = tpu.matmul %233, %234, %cst_86 {dimension_numbers = #tpu.dot_dimension_numbers<[1], [0], [0], [1], [0, 0, 1, 1], [], []>} : vector<8x8xbf16>, vector<8x16xbf16>, vector<8x16xf32> -> vector<8x16xf32>
    %236 = tpu.reciprocal %232 {approx = true} : vector<8x1xf32> -> vector<8x1xf32>
    %237 = vector.broadcast %236 : vector<8x1xf32> to vector<8x16xf32>
    %238 = arith.mulf %235, %237 : vector<8x16xf32>
    %239 = tpu.concatenate %215, %238 in 1 : vector<8x16xf32>, vector<8x16xf32> -> vector<8x32xf32>
    %240 = arith.truncf %239 : vector<8x32xf32> to vector<8x32xbf16>
    %c0_87 = arith.constant 0 : index
    %c0_88 = arith.constant 0 : index
    %241 = vector.load %arg20[%c0_87, %c0_88] : memref<32x32xbf16, #tpu.memory_space<vmem>>, vector<32x32xbf16>
    %cst_89 = arith.constant dense<0.000000e+00> : vector<8x32xf32>
    %242 = tpu.matmul %240, %241, %cst_89 {dimension_numbers = #tpu.dot_dimension_numbers<[1], [0], [0], [1], [0, 0, 1, 1], [], []>} : vector<8x32xbf16>, vector<32x32xbf16>, vector<8x32xf32> -> vector<8x32xf32>
    %c0_90 = arith.constant 0 : index
    %c0_91 = arith.constant 0 : index
    %243 = vector.load %arg21[%c0_90, %c0_91] : memref<1x32xf32, #tpu.memory_space<vmem>>, vector<1x32xf32>
    %244 = vector.broadcast %243 : vector<1x32xf32> to vector<8x32xf32>
    %245 = arith.addf %242, %244 : vector<8x32xf32>
    %246 = arith.addf %162, %245 : vector<8x32xf32>
    %247 = vector.broadcast %1 : vector<8x1xf32> to vector<8x32xf32>
    %248 = arith.mulf %246, %247 : vector<8x32xf32>
    %c0_92 = arith.constant 0 : index
    %c0_93 = arith.constant 0 : index
    %249 = vector.load %arg22[%c0_92, %c0_93] : memref<1x32xf32, #tpu.memory_space<vmem>>, vector<1x32xf32>
    %c0_94 = arith.constant 0 : index
    %c0_95 = arith.constant 0 : index
    %250 = vector.load %arg23[%c0_94, %c0_95] : memref<1x32xf32, #tpu.memory_space<vmem>>, vector<1x32xf32>
    %cst_96 = arith.constant dense<0.000000e+00> : vector<8xf32>
    %251 = vector.multi_reduction <add>, %248, %cst_96 [1] : vector<8x32xf32> to vector<8xf32>
    %252 = vector.shape_cast %251 : vector<8xf32> to vector<8x1xf32>
    %cst_97 = arith.constant 3.200000e+01 : f32
    %253 = vector.broadcast %cst_97 : f32 to vector<8x1xf32>
    %254 = arith.divf %252, %253 : vector<8x1xf32>
    %255 = vector.broadcast %254 : vector<8x1xf32> to vector<8x32xf32>
    %256 = arith.subf %248, %255 : vector<8x32xf32>
    %257 = arith.mulf %256, %256 : vector<8x32xf32>
    %cst_98 = arith.constant dense<0.000000e+00> : vector<8xf32>
    %258 = vector.multi_reduction <add>, %257, %cst_98 [1] : vector<8x32xf32> to vector<8xf32>
    %259 = vector.shape_cast %258 : vector<8xf32> to vector<8x1xf32>
    %cst_99 = arith.constant 3.200000e+01 : f32
    %260 = vector.broadcast %cst_99 : f32 to vector<8x1xf32>
    %261 = arith.divf %259, %260 : vector<8x1xf32>
    %262 = vector.broadcast %254 : vector<8x1xf32> to vector<8x32xf32>
    %263 = arith.subf %248, %262 : vector<8x32xf32>
    %cst_100 = arith.constant 9.99999996E-13 : f32
    %264 = vector.broadcast %cst_100 : f32 to vector<8x1xf32>
    %265 = arith.addf %261, %264 : vector<8x1xf32>
    %266 = math.rsqrt %265 : vector<8x1xf32>
    %267 = vector.broadcast %266 : vector<8x1xf32> to vector<8x32xf32>
    %268 = arith.mulf %263, %267 : vector<8x32xf32>
    %269 = vector.broadcast %249 : vector<1x32xf32> to vector<8x32xf32>
    %270 = arith.mulf %268, %269 : vector<8x32xf32>
    %271 = vector.broadcast %250 : vector<1x32xf32> to vector<8x32xf32>
    %272 = arith.addf %270, %271 : vector<8x32xf32>
    %cst_101 = arith.constant 0.000000e+00 : f32
    %273 = vector.broadcast %cst_101 : f32 to vector<4x32xf32>
    %cst_102 = arith.constant 0.000000e+00 : f32
    %274 = vector.broadcast %cst_102 : f32 to vector<4x32xf32>
    %275 = tpu.concatenate %273, %272, %274 in 0 : vector<4x32xf32>, vector<8x32xf32>, vector<4x32xf32> -> vector<16x32xf32>
    %276 = vector.extract_strided_slice %275 {offsets = [0, 0], sizes = [8, 32], strides = [1, 1]} : vector<16x32xf32> to vector<8x32xf32>
    %277 = vector.extract_strided_slice %275 {offsets = [1, 0], sizes = [8, 32], strides = [1, 1]} : vector<16x32xf32> to vector<8x32xf32>
    %278 = vector.extract_strided_slice %275 {offsets = [2, 0], sizes = [8, 32], strides = [1, 1]} : vector<16x32xf32> to vector<8x32xf32>
    %279 = vector.extract_strided_slice %275 {offsets = [3, 0], sizes = [8, 32], strides = [1, 1]} : vector<16x32xf32> to vector<8x32xf32>
    %280 = vector.extract_strided_slice %275 {offsets = [4, 0], sizes = [8, 32], strides = [1, 1]} : vector<16x32xf32> to vector<8x32xf32>
    %281 = vector.extract_strided_slice %275 {offsets = [5, 0], sizes = [8, 32], strides = [1, 1]} : vector<16x32xf32> to vector<8x32xf32>
    %282 = vector.extract_strided_slice %275 {offsets = [6, 0], sizes = [8, 32], strides = [1, 1]} : vector<16x32xf32> to vector<8x32xf32>
    %283 = vector.extract_strided_slice %275 {offsets = [7, 0], sizes = [8, 32], strides = [1, 1]} : vector<16x32xf32> to vector<8x32xf32>
    %284 = vector.extract_strided_slice %275 {offsets = [8, 0], sizes = [8, 32], strides = [1, 1]} : vector<16x32xf32> to vector<8x32xf32>
    %285 = tpu.concatenate %276, %277, %278, %279, %280, %281, %282, %283, %284 in 1 : vector<8x32xf32>, vector<8x32xf32>, vector<8x32xf32>, vector<8x32xf32>, vector<8x32xf32>, vector<8x32xf32>, vector<8x32xf32>, vector<8x32xf32>, vector<8x32xf32> -> vector<8x288xf32>
    %286 = arith.truncf %285 : vector<8x288xf32> to vector<8x288xbf16>
    %c0_103 = arith.constant 0 : index
    %c0_104 = arith.constant 0 : index
    %287 = vector.load %arg24[%c0_103, %c0_104] : memref<288x128xbf16, #tpu.memory_space<vmem>>, vector<288x128xbf16>
    %cst_105 = arith.constant dense<0.000000e+00> : vector<8x128xf32>
    %288 = tpu.matmul %286, %287, %cst_105 {dimension_numbers = #tpu.dot_dimension_numbers<[1], [0], [0], [1], [0, 0, 1, 1], [], []>} : vector<8x288xbf16>, vector<288x128xbf16>, vector<8x128xf32> -> vector<8x128xf32>
    %c0_106 = arith.constant 0 : index
    %c0_107 = arith.constant 0 : index
    %289 = vector.load %arg25[%c0_106, %c0_107] : memref<1x128xf32, #tpu.memory_space<vmem>>, vector<1x128xf32>
    %290 = vector.broadcast %289 : vector<1x128xf32> to vector<8x128xf32>
    %291 = arith.addf %288, %290 : vector<8x128xf32>
    %cst_108 = arith.constant 0.333333343 : f32
    %292 = vector.broadcast %cst_108 : f32 to vector<8x128xf32>
    %293 = arith.mulf %291, %292 : vector<8x128xf32>
    %294 = arith.mulf %293, %293 : vector<8x128xf32>
    %295 = arith.mulf %293, %294 : vector<8x128xf32>
    %cst_109 = arith.constant 4.471500e-02 : f32
    %296 = vector.broadcast %cst_109 : f32 to vector<8x128xf32>
    %297 = arith.mulf %296, %295 : vector<8x128xf32>
    %298 = arith.addf %293, %297 : vector<8x128xf32>
    %cst_110 = arith.constant 0.797884583 : f32
    %299 = vector.broadcast %cst_110 : f32 to vector<8x128xf32>
    %300 = arith.mulf %299, %298 : vector<8x128xf32>
    %301 = math.tanh %300 : vector<8x128xf32>
    %cst_111 = arith.constant 1.000000e+00 : f32
    %302 = vector.broadcast %cst_111 : f32 to vector<8x128xf32>
    %303 = arith.addf %302, %301 : vector<8x128xf32>
    %cst_112 = arith.constant 5.000000e-01 : f32
    %304 = vector.broadcast %cst_112 : f32 to vector<8x128xf32>
    %305 = arith.mulf %304, %303 : vector<8x128xf32>
    %306 = arith.mulf %293, %305 : vector<8x128xf32>
    %307 = arith.truncf %306 : vector<8x128xf32> to vector<8x128xbf16>
    %c0_113 = arith.constant 0 : index
    %c0_114 = arith.constant 0 : index
    %308 = vector.load %arg26[%c0_113, %c0_114] : memref<128x32xbf16, #tpu.memory_space<vmem>>, vector<128x32xbf16>
    %cst_115 = arith.constant dense<0.000000e+00> : vector<8x32xf32>
    %309 = tpu.matmul %307, %308, %cst_115 {dimension_numbers = #tpu.dot_dimension_numbers<[1], [0], [0], [1], [0, 0, 1, 1], [], []>} : vector<8x128xbf16>, vector<128x32xbf16>, vector<8x32xf32> -> vector<8x32xf32>
    %c0_116 = arith.constant 0 : index
    %c0_117 = arith.constant 0 : index
    %310 = vector.load %arg27[%c0_116, %c0_117] : memref<1x32xf32, #tpu.memory_space<vmem>>, vector<1x32xf32>
    %311 = vector.broadcast %310 : vector<1x32xf32> to vector<8x32xf32>
    %312 = arith.addf %309, %311 : vector<8x32xf32>
    %313 = arith.addf %248, %312 : vector<8x32xf32>
    %314 = vector.broadcast %1 : vector<8x1xf32> to vector<8x32xf32>
    %315 = arith.mulf %313, %314 : vector<8x32xf32>
    %c0_118 = arith.constant 0 : index
    %c0_119 = arith.constant 0 : index
    %316 = vector.load %arg28[%c0_118, %c0_119] : memref<1x32xf32, #tpu.memory_space<vmem>>, vector<1x32xf32>
    %c0_120 = arith.constant 0 : index
    %c0_121 = arith.constant 0 : index
    %317 = vector.load %arg29[%c0_120, %c0_121] : memref<1x32xf32, #tpu.memory_space<vmem>>, vector<1x32xf32>
    %cst_122 = arith.constant dense<0.000000e+00> : vector<8xf32>
    %318 = vector.multi_reduction <add>, %315, %cst_122 [1] : vector<8x32xf32> to vector<8xf32>
    %319 = vector.shape_cast %318 : vector<8xf32> to vector<8x1xf32>
    %cst_123 = arith.constant 3.200000e+01 : f32
    %320 = vector.broadcast %cst_123 : f32 to vector<8x1xf32>
    %321 = arith.divf %319, %320 : vector<8x1xf32>
    %322 = vector.broadcast %321 : vector<8x1xf32> to vector<8x32xf32>
    %323 = arith.subf %315, %322 : vector<8x32xf32>
    %324 = arith.mulf %323, %323 : vector<8x32xf32>
    %cst_124 = arith.constant dense<0.000000e+00> : vector<8xf32>
    %325 = vector.multi_reduction <add>, %324, %cst_124 [1] : vector<8x32xf32> to vector<8xf32>
    %326 = vector.shape_cast %325 : vector<8xf32> to vector<8x1xf32>
    %cst_125 = arith.constant 3.200000e+01 : f32
    %327 = vector.broadcast %cst_125 : f32 to vector<8x1xf32>
    %328 = arith.divf %326, %327 : vector<8x1xf32>
    %329 = vector.broadcast %321 : vector<8x1xf32> to vector<8x32xf32>
    %330 = arith.subf %315, %329 : vector<8x32xf32>
    %cst_126 = arith.constant 9.99999974E-6 : f32
    %331 = vector.broadcast %cst_126 : f32 to vector<8x1xf32>
    %332 = arith.addf %328, %331 : vector<8x1xf32>
    %333 = math.rsqrt %332 : vector<8x1xf32>
    %334 = vector.broadcast %333 : vector<8x1xf32> to vector<8x32xf32>
    %335 = arith.mulf %330, %334 : vector<8x32xf32>
    %336 = vector.broadcast %316 : vector<1x32xf32> to vector<8x32xf32>
    %337 = arith.mulf %335, %336 : vector<8x32xf32>
    %338 = vector.broadcast %317 : vector<1x32xf32> to vector<8x32xf32>
    %339 = arith.addf %337, %338 : vector<8x32xf32>
    %340 = vector.broadcast %1 : vector<8x1xf32> to vector<8x32xf32>
    %341 = arith.mulf %339, %340 : vector<8x32xf32>
    %c0_127 = arith.constant 0 : index
    %c0_128 = arith.constant 0 : index
    %c0_129 = arith.constant 0 : index
    %342 = vector.load %arg40[%c0_127, %c0_128, %c0_129] : memref<1x8x32xf32, #tpu.memory_space<vmem>>, vector<1x8x32xf32>
    %343 = vector.shape_cast %342 : vector<1x8x32xf32> to vector<8x32xf32>
    %344 = vector.shape_cast %341 : vector<8x32xf32> to vector<1x8x32xf32>
    tpu.vector_store %arg40[%c0_127, %c0_128, %c0_129], %344 {strides = array<i32>} : memref<1x8x32xf32, #tpu.memory_space<vmem>>, vector<1x8x32xf32>,
    %cst_130 = arith.constant 0.000000e+00 : f32
    %345 = vector.broadcast %cst_130 : f32 to vector<1x32xf32>
    %cst_131 = arith.constant 0.000000e+00 : f32
    %346 = vector.broadcast %cst_131 : f32 to vector<1x32xf32>
    %347 = tpu.concatenate %345, %341, %346 in 0 : vector<1x32xf32>, vector<8x32xf32>, vector<1x32xf32> -> vector<10x32xf32>
    %348 = vector.extract_strided_slice %347 {offsets = [0, 0], sizes = [8, 32], strides = [1, 1]} : vector<10x32xf32> to vector<8x32xf32>
    %349 = vector.extract_strided_slice %347 {offsets = [1, 0], sizes = [8, 32], strides = [1, 1]} : vector<10x32xf32> to vector<8x32xf32>
    %350 = vector.extract_strided_slice %347 {offsets = [2, 0], sizes = [8, 32], strides = [1, 1]} : vector<10x32xf32> to vector<8x32xf32>
    %351 = tpu.concatenate %348, %349, %350 in 1 : vector<8x32xf32>, vector<8x32xf32>, vector<8x32xf32> -> vector<8x96xf32>
    %352 = arith.truncf %351 : vector<8x96xf32> to vector<8x96xbf16>
    %c0_132 = arith.constant 0 : index
    %c0_133 = arith.constant 0 : index
    %353 = vector.load %arg30[%c0_132, %c0_133] : memref<96x32xbf16, #tpu.memory_space<vmem>>, vector<96x32xbf16>
    %cst_134 = arith.constant dense<0.000000e+00> : vector<8x32xf32>
    %354 = tpu.matmul %352, %353, %cst_134 {dimension_numbers = #tpu.dot_dimension_numbers<[1], [0], [0], [1], [0, 0, 1, 1], [], []>} : vector<8x96xbf16>, vector<96x32xbf16>, vector<8x32xf32> -> vector<8x32xf32>
    %c0_135 = arith.constant 0 : index
    %c0_136 = arith.constant 0 : index
    %355 = vector.load %arg31[%c0_135, %c0_136] : memref<1x32xf32, #tpu.memory_space<vmem>>, vector<1x32xf32>
    %356 = vector.broadcast %355 : vector<1x32xf32> to vector<8x32xf32>
    %357 = arith.addf %354, %356 : vector<8x32xf32>
    %cst_137 = arith.constant 0.000000e+00 : f32
    %358 = vector.broadcast %cst_137 : f32 to vector<8x32xf32>
    %359 = arith.maximumf %357, %358 : vector<8x32xf32>
    %c0_138 = arith.constant 0 : index
    %c0_139 = arith.constant 0 : index
    %360 = vector.load %arg32[%c0_138, %c0_139] : memref<1x32xf32, #tpu.memory_space<vmem>>, vector<1x32xf32>
    %c0_140 = arith.constant 0 : index
    %c0_141 = arith.constant 0 : index
    %361 = vector.load %arg33[%c0_140, %c0_141] : memref<1x32xf32, #tpu.memory_space<vmem>>, vector<1x32xf32>
    %cst_142 = arith.constant dense<0.000000e+00> : vector<8xf32>
    %362 = vector.multi_reduction <add>, %359, %cst_142 [1] : vector<8x32xf32> to vector<8xf32>
    %363 = vector.shape_cast %362 : vector<8xf32> to vector<8x1xf32>
    %cst_143 = arith.constant 3.200000e+01 : f32
    %364 = vector.broadcast %cst_143 : f32 to vector<8x1xf32>
    %365 = arith.divf %363, %364 : vector<8x1xf32>
    %366 = vector.broadcast %365 : vector<8x1xf32> to vector<8x32xf32>
    %367 = arith.subf %359, %366 : vector<8x32xf32>
    %368 = arith.mulf %367, %367 : vector<8x32xf32>
    %cst_144 = arith.constant dense<0.000000e+00> : vector<8xf32>
    %369 = vector.multi_reduction <add>, %368, %cst_144 [1] : vector<8x32xf32> to vector<8xf32>
    %370 = vector.shape_cast %369 : vector<8xf32> to vector<8x1xf32>
    %cst_145 = arith.constant 3.200000e+01 : f32
    %371 = vector.broadcast %cst_145 : f32 to vector<8x1xf32>
    %372 = arith.divf %370, %371 : vector<8x1xf32>
    %373 = vector.broadcast %365 : vector<8x1xf32> to vector<8x32xf32>
    %374 = arith.subf %359, %373 : vector<8x32xf32>
    %cst_146 = arith.constant 9.99999996E-13 : f32
    %375 = vector.broadcast %cst_146 : f32 to vector<8x1xf32>
    %376 = arith.addf %372, %375 : vector<8x1xf32>
    %377 = math.rsqrt %376 : vector<8x1xf32>
    %378 = vector.broadcast %377 : vector<8x1xf32> to vector<8x32xf32>
    %379 = arith.mulf %374, %378 : vector<8x32xf32>
    %380 = vector.broadcast %360 : vector<1x32xf32> to vector<8x32xf32>
    %381 = arith.mulf %379, %380 : vector<8x32xf32>
    %382 = vector.broadcast %361 : vector<1x32xf32> to vector<8x32xf32>
    %383 = arith.addf %381, %382 : vector<8x32xf32>
    %384 = vector.broadcast %1 : vector<8x1xf32> to vector<8x32xf32>
    %385 = arith.mulf %383, %384 : vector<8x32xf32>
    %cst_147 = arith.constant 0.000000e+00 : f32
    %386 = vector.broadcast %cst_147 : f32 to vector<1x32xf32>
    %cst_148 = arith.constant 0.000000e+00 : f32
    %387 = vector.broadcast %cst_148 : f32 to vector<1x32xf32>
    %388 = tpu.concatenate %386, %385, %387 in 0 : vector<1x32xf32>, vector<8x32xf32>, vector<1x32xf32> -> vector<10x32xf32>
    %389 = vector.extract_strided_slice %388 {offsets = [0, 0], sizes = [8, 32], strides = [1, 1]} : vector<10x32xf32> to vector<8x32xf32>
    %390 = vector.extract_strided_slice %388 {offsets = [1, 0], sizes = [8, 32], strides = [1, 1]} : vector<10x32xf32> to vector<8x32xf32>
    %391 = vector.extract_strided_slice %388 {offsets = [2, 0], sizes = [8, 32], strides = [1, 1]} : vector<10x32xf32> to vector<8x32xf32>
    %392 = tpu.concatenate %389, %390, %391 in 1 : vector<8x32xf32>, vector<8x32xf32>, vector<8x32xf32> -> vector<8x96xf32>
    %393 = arith.truncf %392 : vector<8x96xf32> to vector<8x96xbf16>
    %c0_149 = arith.constant 0 : index
    %c0_150 = arith.constant 0 : index
    %394 = vector.load %arg34[%c0_149, %c0_150] : memref<96x32xbf16, #tpu.memory_space<vmem>>, vector<96x32xbf16>
    %cst_151 = arith.constant dense<0.000000e+00> : vector<8x32xf32>
    %395 = tpu.matmul %393, %394, %cst_151 {dimension_numbers = #tpu.dot_dimension_numbers<[1], [0], [0], [1], [0, 0, 1, 1], [], []>} : vector<8x96xbf16>, vector<96x32xbf16>, vector<8x32xf32> -> vector<8x32xf32>
    %c0_152 = arith.constant 0 : index
    %c0_153 = arith.constant 0 : index
    %396 = vector.load %arg35[%c0_152, %c0_153] : memref<1x32xf32, #tpu.memory_space<vmem>>, vector<1x32xf32>
    %397 = vector.broadcast %396 : vector<1x32xf32> to vector<8x32xf32>
    %398 = arith.addf %395, %397 : vector<8x32xf32>
    %cst_154 = arith.constant 0.000000e+00 : f32
    %399 = vector.broadcast %cst_154 : f32 to vector<8x32xf32>
    %400 = arith.maximumf %398, %399 : vector<8x32xf32>
    %c0_155 = arith.constant 0 : index
    %c0_156 = arith.constant 0 : index
    %401 = vector.load %arg36[%c0_155, %c0_156] : memref<1x32xf32, #tpu.memory_space<vmem>>, vector<1x32xf32>
    %c0_157 = arith.constant 0 : index
    %c0_158 = arith.constant 0 : index
    %402 = vector.load %arg37[%c0_157, %c0_158] : memref<1x32xf32, #tpu.memory_space<vmem>>, vector<1x32xf32>
    %cst_159 = arith.constant dense<0.000000e+00> : vector<8xf32>
    %403 = vector.multi_reduction <add>, %400, %cst_159 [1] : vector<8x32xf32> to vector<8xf32>
    %404 = vector.shape_cast %403 : vector<8xf32> to vector<8x1xf32>
    %cst_160 = arith.constant 3.200000e+01 : f32
    %405 = vector.broadcast %cst_160 : f32 to vector<8x1xf32>
    %406 = arith.divf %404, %405 : vector<8x1xf32>
    %407 = vector.broadcast %406 : vector<8x1xf32> to vector<8x32xf32>
    %408 = arith.subf %400, %407 : vector<8x32xf32>
    %409 = arith.mulf %408, %408 : vector<8x32xf32>
    %cst_161 = arith.constant dense<0.000000e+00> : vector<8xf32>
    %410 = vector.multi_reduction <add>, %409, %cst_161 [1] : vector<8x32xf32> to vector<8xf32>
    %411 = vector.shape_cast %410 : vector<8xf32> to vector<8x1xf32>
    %cst_162 = arith.constant 3.200000e+01 : f32
    %412 = vector.broadcast %cst_162 : f32 to vector<8x1xf32>
    %413 = arith.divf %411, %412 : vector<8x1xf32>
    %414 = vector.broadcast %406 : vector<8x1xf32> to vector<8x32xf32>
    %415 = arith.subf %400, %414 : vector<8x32xf32>
    %cst_163 = arith.constant 9.99999996E-13 : f32
    %416 = vector.broadcast %cst_163 : f32 to vector<8x1xf32>
    %417 = arith.addf %413, %416 : vector<8x1xf32>
    %418 = math.rsqrt %417 : vector<8x1xf32>
    %419 = vector.broadcast %418 : vector<8x1xf32> to vector<8x32xf32>
    %420 = arith.mulf %415, %419 : vector<8x32xf32>
    %421 = vector.broadcast %401 : vector<1x32xf32> to vector<8x32xf32>
    %422 = arith.mulf %420, %421 : vector<8x32xf32>
    %423 = vector.broadcast %402 : vector<1x32xf32> to vector<8x32xf32>
    %424 = arith.addf %422, %423 : vector<8x32xf32>
    %425 = vector.broadcast %1 : vector<8x1xf32> to vector<8x32xf32>
    %426 = arith.mulf %424, %425 : vector<8x32xf32>
    %427 = arith.truncf %426 : vector<8x32xf32> to vector<8x32xbf16>
    %c0_164 = arith.constant 0 : index
    %c0_165 = arith.constant 0 : index
    %428 = vector.load %arg38[%c0_164, %c0_165] : memref<32x1xbf16, #tpu.memory_space<vmem>>, vector<32x1xbf16>
    %cst_166 = arith.constant dense<0.000000e+00> : vector<8x1xf32>
    %429 = tpu.matmul %427, %428, %cst_166 {dimension_numbers = #tpu.dot_dimension_numbers<[1], [0], [0], [1], [0, 0, 1, 1], [], []>} : vector<8x32xbf16>, vector<32x1xbf16>, vector<8x1xf32> -> vector<8x1xf32>
    %c0_167 = arith.constant 0 : index
    %c0_168 = arith.constant 0 : index
    %430 = vector.load %arg39[%c0_167, %c0_168] : memref<1x1xf32, #tpu.memory_space<vmem>>, vector<1x1xf32>
    %431 = vector.broadcast %430 : vector<1x1xf32> to vector<8x1xf32>
    %432 = arith.addf %429, %431 : vector<8x1xf32>
    %cst_169 = arith.constant 0.000000e+00 : f32
    %433 = vector.broadcast %cst_169 : f32 to vector<8x1xf32>
    %434 = arith.maximumf %432, %433 : vector<8x1xf32>
    %435 = math.absf %432 : vector<8x1xf32>
    %cst_170 = arith.constant 0.000000e+00 : f32
    %436 = vector.broadcast %cst_170 : f32 to vector<8x1xf32>
    %437 = arith.subf %436, %435 : vector<8x1xf32>
    %438 = math.exp %437 : vector<8x1xf32>
    %cst_171 = arith.constant 1.000000e+00 : f32
    %439 = vector.broadcast %cst_171 : f32 to vector<8x1xf32>
    %440 = arith.addf %439, %438 : vector<8x1xf32>
    %441 = math.log %440 : vector<8x1xf32>
    %442 = arith.addf %434, %441 : vector<8x1xf32>
    %443 = arith.mulf %442, %1 : vector<8x1xf32>
    %c0_172 = arith.constant 0 : index
    %c0_173 = arith.constant 0 : index
    %c0_174 = arith.constant 0 : index
    %444 = vector.load %arg41[%c0_172, %c0_173, %c0_174] : memref<1x8x1xf32, #tpu.memory_space<vmem>>, vector<1x8x1xf32>
    %445 = vector.shape_cast %444 : vector<1x8x1xf32> to vector<8x1xf32>
    %446 = vector.shape_cast %443 : vector<8x1xf32> to vector<1x8x1xf32>
    tpu.vector_store %arg41[%c0_172, %c0_173, %c0_174], %446 {strides = array<i32>} : memref<1x8x1xf32, #tpu.memory_space<vmem>>, vector<1x8x1xf32>,
    return
  }
  func.func @transform_0(%arg0: i32) -> (i32, i32, i32) {
    %c0_i32 = arith.constant 0 : i32
    %c0_i32_0 = arith.constant 0 : i32
    %c0_i32_1 = arith.constant 0 : i32
    return %arg0, %c0_i32, %c0_i32_0 : i32, i32, i32
  }
  func.func @transform_1(%arg0: i32) -> (i32, i32, i32) {
    %c0_i32 = arith.constant 0 : i32
    %c0_i32_0 = arith.constant 0 : i32
    %c0_i32_1 = arith.constant 0 : i32
    return %arg0, %c0_i32, %c0_i32_0 : i32, i32, i32
  }
  func.func @transform_2(%arg0: i32) -> (i32, i32, i32) {
    %c0_i32 = arith.constant 0 : i32
    %c0_i32_0 = arith.constant 0 : i32
    %c0_i32_1 = arith.constant 0 : i32
    return %arg0, %c0_i32, %c0_i32_0 : i32, i32, i32
  }
  func.func @transform_3(%arg0: i32) -> (i32, i32) {
    %c0_i32 = arith.constant 0 : i32
    %c0_i32_0 = arith.constant 0 : i32
    %c0_i32_1 = arith.constant 0 : i32
    return %c0_i32, %c0_i32_0 : i32, i32
  }
  func.func @transform_4(%arg0: i32) -> (i32, i32) {
    %c0_i32 = arith.constant 0 : i32
    %c0_i32_0 = arith.constant 0 : i32
    %c0_i32_1 = arith.constant 0 : i32
    return %c0_i32, %c0_i32_0 : i32, i32
  }
  func.func @transform_5(%arg0: i32) -> (i32, i32) {
    %c0_i32 = arith.constant 0 : i32
    %c0_i32_0 = arith.constant 0 : i32
    %c0_i32_1 = arith.constant 0 : i32
    return %c0_i32, %c0_i32_0 : i32, i32
  }
  func.func @transform_6(%arg0: i32) -> (i32, i32) {
    %c0_i32 = arith.constant 0 : i32
    %c0_i32_0 = arith.constant 0 : i32
    %c0_i32_1 = arith.constant 0 : i32
    return %c0_i32, %c0_i32_0 : i32, i32
  }
  func.func @transform_7(%arg0: i32) -> (i32, i32) {
    %c0_i32 = arith.constant 0 : i32
    %c0_i32_0 = arith.constant 0 : i32
    %c0_i32_1 = arith.constant 0 : i32
    return %c0_i32, %c0_i32_0 : i32, i32
  }
  func.func @transform_8(%arg0: i32) -> (i32, i32) {
    %c0_i32 = arith.constant 0 : i32
    %c0_i32_0 = arith.constant 0 : i32
    %c0_i32_1 = arith.constant 0 : i32
    return %c0_i32, %c0_i32_0 : i32, i32
  }
  func.func @transform_9(%arg0: i32) -> (i32, i32) {
    %c0_i32 = arith.constant 0 : i32
    %c0_i32_0 = arith.constant 0 : i32
    %c0_i32_1 = arith.constant 0 : i32
    return %c0_i32, %c0_i32_0 : i32, i32
  }
  func.func @transform_10(%arg0: i32) -> (i32, i32) {
    %c0_i32 = arith.constant 0 : i32
    %c0_i32_0 = arith.constant 0 : i32
    %c0_i32_1 = arith.constant 0 : i32
    return %c0_i32, %c0_i32_0 : i32, i32
  }
  func.func @transform_11(%arg0: i32) -> (i32, i32) {
    %c0_i32 = arith.constant 0 : i32
    %c0_i32_0 = arith.constant 0 : i32
    %c0_i32_1 = arith.constant 0 : i32
    return %c0_i32, %c0_i32_0 : i32, i32
  }
  func.func @transform_12(%arg0: i32) -> (i32, i32) {
    %c0_i32 = arith.constant 0 : i32
    %c0_i32_0 = arith.constant 0 : i32
    %c0_i32_1 = arith.constant 0 : i32
    return %c0_i32, %c0_i32_0 : i32, i32
  }
  func.func @transform_13(%arg0: i32) -> (i32, i32) {
    %c0_i32 = arith.constant 0 : i32
    %c0_i32_0 = arith.constant 0 : i32
    %c0_i32_1 = arith.constant 0 : i32
    return %c0_i32, %c0_i32_0 : i32, i32
  }
  func.func @transform_14(%arg0: i32) -> (i32, i32) {
    %c0_i32 = arith.constant 0 : i32
    %c0_i32_0 = arith.constant 0 : i32
    %c0_i32_1 = arith.constant 0 : i32
    return %c0_i32, %c0_i32_0 : i32, i32
  }
  func.func @transform_15(%arg0: i32) -> (i32, i32) {
    %c0_i32 = arith.constant 0 : i32
    %c0_i32_0 = arith.constant 0 : i32
    %c0_i32_1 = arith.constant 0 : i32
    return %c0_i32, %c0_i32_0 : i32, i32
  }
  func.func @transform_16(%arg0: i32) -> (i32, i32) {
    %c0_i32 = arith.constant 0 : i32
    %c0_i32_0 = arith.constant 0 : i32
    %c0_i32_1 = arith.constant 0 : i32
    return %c0_i32, %c0_i32_0 : i32, i32
  }
  func.func @transform_17(%arg0: i32) -> (i32, i32) {
    %c0_i32 = arith.constant 0 : i32
    %c0_i32_0 = arith.constant 0 : i32
    %c0_i32_1 = arith.constant 0 : i32
    return %c0_i32, %c0_i32_0 : i32, i32
  }
  func.func @transform_18(%arg0: i32) -> (i32, i32) {
    %c0_i32 = arith.constant 0 : i32
    %c0_i32_0 = arith.constant 0 : i32
    %c0_i32_1 = arith.constant 0 : i32
    return %c0_i32, %c0_i32_0 : i32, i32
  }
  func.func @transform_19(%arg0: i32) -> (i32, i32) {
    %c0_i32 = arith.constant 0 : i32
    %c0_i32_0 = arith.constant 0 : i32
    %c0_i32_1 = arith.constant 0 : i32
    return %c0_i32, %c0_i32_0 : i32, i32
  }
  func.func @transform_20(%arg0: i32) -> (i32, i32) {
    %c0_i32 = arith.constant 0 : i32
    %c0_i32_0 = arith.constant 0 : i32
    %c0_i32_1 = arith.constant 0 : i32
    return %c0_i32, %c0_i32_0 : i32, i32
  }
  func.func @transform_21(%arg0: i32) -> (i32, i32) {
    %c0_i32 = arith.constant 0 : i32
    %c0_i32_0 = arith.constant 0 : i32
    %c0_i32_1 = arith.constant 0 : i32
    return %c0_i32, %c0_i32_0 : i32, i32
  }
  func.func @transform_22(%arg0: i32) -> (i32, i32) {
    %c0_i32 = arith.constant 0 : i32
    %c0_i32_0 = arith.constant 0 : i32
    %c0_i32_1 = arith.constant 0 : i32
    return %c0_i32, %c0_i32_0 : i32, i32
  }
  func.func @transform_23(%arg0: i32) -> (i32, i32) {
    %c0_i32 = arith.constant 0 : i32
    %c0_i32_0 = arith.constant 0 : i32
    %c0_i32_1 = arith.constant 0 : i32
    return %c0_i32, %c0_i32_0 : i32, i32
  }
  func.func @transform_24(%arg0: i32) -> (i32, i32) {
    %c0_i32 = arith.constant 0 : i32
    %c0_i32_0 = arith.constant 0 : i32
    %c0_i32_1 = arith.constant 0 : i32
    return %c0_i32, %c0_i32_0 : i32, i32
  }
  func.func @transform_25(%arg0: i32) -> (i32, i32) {
    %c0_i32 = arith.constant 0 : i32
    %c0_i32_0 = arith.constant 0 : i32
    %c0_i32_1 = arith.constant 0 : i32
    return %c0_i32, %c0_i32_0 : i32, i32
  }
  func.func @transform_26(%arg0: i32) -> (i32, i32) {
    %c0_i32 = arith.constant 0 : i32
    %c0_i32_0 = arith.constant 0 : i32
    %c0_i32_1 = arith.constant 0 : i32
    return %c0_i32, %c0_i32_0 : i32, i32
  }
  func.func @transform_27(%arg0: i32) -> (i32, i32) {
    %c0_i32 = arith.constant 0 : i32
    %c0_i32_0 = arith.constant 0 : i32
    %c0_i32_1 = arith.constant 0 : i32
    return %c0_i32, %c0_i32_0 : i32, i32
  }
  func.func @transform_28(%arg0: i32) -> (i32, i32) {
    %c0_i32 = arith.constant 0 : i32
    %c0_i32_0 = arith.constant 0 : i32
    %c0_i32_1 = arith.constant 0 : i32
    return %c0_i32, %c0_i32_0 : i32, i32
  }
  func.func @transform_29(%arg0: i32) -> (i32, i32) {
    %c0_i32 = arith.constant 0 : i32
    %c0_i32_0 = arith.constant 0 : i32
    %c0_i32_1 = arith.constant 0 : i32
    return %c0_i32, %c0_i32_0 : i32, i32
  }
  func.func @transform_30(%arg0: i32) -> (i32, i32) {
    %c0_i32 = arith.constant 0 : i32
    %c0_i32_0 = arith.constant 0 : i32
    %c0_i32_1 = arith.constant 0 : i32
    return %c0_i32, %c0_i32_0 : i32, i32
  }
  func.func @transform_31(%arg0: i32) -> (i32, i32) {
    %c0_i32 = arith.constant 0 : i32
    %c0_i32_0 = arith.constant 0 : i32
    %c0_i32_1 = arith.constant 0 : i32
    return %c0_i32, %c0_i32_0 : i32, i32
  }
  func.func @transform_32(%arg0: i32) -> (i32, i32) {
    %c0_i32 = arith.constant 0 : i32
    %c0_i32_0 = arith.constant 0 : i32
    %c0_i32_1 = arith.constant 0 : i32
    return %c0_i32, %c0_i32_0 : i32, i32
  }
  func.func @transform_33(%arg0: i32) -> (i32, i32) {
    %c0_i32 = arith.constant 0 : i32
    %c0_i32_0 = arith.constant 0 : i32
    %c0_i32_1 = arith.constant 0 : i32
    return %c0_i32, %c0_i32_0 : i32, i32
  }
  func.func @transform_34(%arg0: i32) -> (i32, i32) {
    %c0_i32 = arith.constant 0 : i32
    %c0_i32_0 = arith.constant 0 : i32
    %c0_i32_1 = arith.constant 0 : i32
    return %c0_i32, %c0_i32_0 : i32, i32
  }
  func.func @transform_35(%arg0: i32) -> (i32, i32) {
    %c0_i32 = arith.constant 0 : i32
    %c0_i32_0 = arith.constant 0 : i32
    %c0_i32_1 = arith.constant 0 : i32
    return %c0_i32, %c0_i32_0 : i32, i32
  }
  func.func @transform_36(%arg0: i32) -> (i32, i32) {
    %c0_i32 = arith.constant 0 : i32
    %c0_i32_0 = arith.constant 0 : i32
    %c0_i32_1 = arith.constant 0 : i32
    return %c0_i32, %c0_i32_0 : i32, i32
  }
  func.func @transform_37(%arg0: i32) -> (i32, i32) {
    %c0_i32 = arith.constant 0 : i32
    %c0_i32_0 = arith.constant 0 : i32
    %c0_i32_1 = arith.constant 0 : i32
    return %c0_i32, %c0_i32_0 : i32, i32
  }
  func.func @transform_38(%arg0: i32) -> (i32, i32) {
    %c0_i32 = arith.constant 0 : i32
    %c0_i32_0 = arith.constant 0 : i32
    %c0_i32_1 = arith.constant 0 : i32
    return %c0_i32, %c0_i32_0 : i32, i32
  }
  func.func @transform_39(%arg0: i32) -> (i32, i32, i32) {
    %c0_i32 = arith.constant 0 : i32
    %c0_i32_0 = arith.constant 0 : i32
    %c0_i32_1 = arith.constant 0 : i32
    return %arg0, %c0_i32, %c0_i32_0 : i32, i32, i32
  }
  func.func @transform_40(%arg0: i32) -> (i32, i32, i32) {
    %c0_i32 = arith.constant 0 : i32
    %c0_i32_0 = arith.constant 0 : i32
    %c0_i32_1 = arith.constant 0 : i32
    return %arg0, %c0_i32, %c0_i32_0 : i32, i32, i32
  }
}

module attributes {stable_mosaic.version = 11 : i64} {
  func.func @kernel(%arg0: i32, %arg1: memref<1x16x32xf32, #tpu.memory_space<vmem>>, %arg2: memref<1x16x32xf32, #tpu.memory_space<vmem>>, %arg3: memref<1x1x16xf32, #tpu.memory_space<vmem>>, %arg4: memref<1x16x1xf32, #tpu.memory_space<vmem>>, %arg5: memref<1x32xf32, #tpu.memory_space<vmem>>, %arg6: memref<1x32xf32, #tpu.memory_space<vmem>>, %arg7: memref<32x96xbf16, #tpu.memory_space<vmem>>, %arg8: memref<1x96xf32, #tpu.memory_space<vmem>>, %arg9: memref<32x32xbf16, #tpu.memory_space<vmem>>, %arg10: memref<1x32xf32, #tpu.memory_space<vmem>>, %arg11: memref<1x32xf32, #tpu.memory_space<vmem>>, %arg12: memref<1x32xf32, #tpu.memory_space<vmem>>, %arg13: memref<288x128xbf16, #tpu.memory_space<vmem>>, %arg14: memref<1x128xf32, #tpu.memory_space<vmem>>, %arg15: memref<128x32xbf16, #tpu.memory_space<vmem>>, %arg16: memref<1x32xf32, #tpu.memory_space<vmem>>, %arg17: memref<1x32xf32, #tpu.memory_space<vmem>>, %arg18: memref<1x32xf32, #tpu.memory_space<vmem>>, %arg19: memref<32x96xbf16, #tpu.memory_space<vmem>>, %arg20: memref<1x96xf32, #tpu.memory_space<vmem>>, %arg21: memref<32x32xbf16, #tpu.memory_space<vmem>>, %arg22: memref<1x32xf32, #tpu.memory_space<vmem>>, %arg23: memref<1x32xf32, #tpu.memory_space<vmem>>, %arg24: memref<1x32xf32, #tpu.memory_space<vmem>>, %arg25: memref<288x128xbf16, #tpu.memory_space<vmem>>, %arg26: memref<1x128xf32, #tpu.memory_space<vmem>>, %arg27: memref<128x32xbf16, #tpu.memory_space<vmem>>, %arg28: memref<1x32xf32, #tpu.memory_space<vmem>>, %arg29: memref<1x32xf32, #tpu.memory_space<vmem>>, %arg30: memref<1x32xf32, #tpu.memory_space<vmem>>, %arg31: memref<32x20xbf16, #tpu.memory_space<vmem>>, %arg32: memref<1x20xf32, #tpu.memory_space<vmem>>, %arg33: memref<1x16x1xf32, #tpu.memory_space<vmem>>, %arg34: memref<1x16x20xf32, #tpu.memory_space<vmem>>) attributes {dimension_semantics = [#tpu.dimension_semantics<parallel>], iteration_bounds = array<i64: 2>, scalar_prefetch = 0 : i64, scratch_operands = 0 : i64, tpu.core_type = #tpu.core_type<tc>, window_params = [{transform_indices = @transform_0, window_bounds = array<i64: 1, 16, 32>}, {transform_indices = @transform_1, window_bounds = array<i64: 1, 16, 32>}, {transform_indices = @transform_2, window_bounds = array<i64: 1, 1, 16>}, {transform_indices = @transform_3, window_bounds = array<i64: 1, 16, 1>}, {pipeline_mode = #tpu.pipeline_mode<synchronous>, transform_indices = @transform_4, window_bounds = array<i64: 1, 32>}, {pipeline_mode = #tpu.pipeline_mode<synchronous>, transform_indices = @transform_5, window_bounds = array<i64: 1, 32>}, {pipeline_mode = #tpu.pipeline_mode<synchronous>, transform_indices = @transform_6, window_bounds = array<i64: 32, 96>}, {pipeline_mode = #tpu.pipeline_mode<synchronous>, transform_indices = @transform_7, window_bounds = array<i64: 1, 96>}, {pipeline_mode = #tpu.pipeline_mode<synchronous>, transform_indices = @transform_8, window_bounds = array<i64: 32, 32>}, {pipeline_mode = #tpu.pipeline_mode<synchronous>, transform_indices = @transform_9, window_bounds = array<i64: 1, 32>}, {pipeline_mode = #tpu.pipeline_mode<synchronous>, transform_indices = @transform_10, window_bounds = array<i64: 1, 32>}, {pipeline_mode = #tpu.pipeline_mode<synchronous>, transform_indices = @transform_11, window_bounds = array<i64: 1, 32>}, {pipeline_mode = #tpu.pipeline_mode<synchronous>, transform_indices = @transform_12, window_bounds = array<i64: 288, 128>}, {pipeline_mode = #tpu.pipeline_mode<synchronous>, transform_indices = @transform_13, window_bounds = array<i64: 1, 128>}, {pipeline_mode = #tpu.pipeline_mode<synchronous>, transform_indices = @transform_14, window_bounds = array<i64: 128, 32>}, {pipeline_mode = #tpu.pipeline_mode<synchronous>, transform_indices = @transform_15, window_bounds = array<i64: 1, 32>}, {pipeline_mode = #tpu.pipeline_mode<synchronous>, transform_indices = @transform_16, window_bounds = array<i64: 1, 32>}, {pipeline_mode = #tpu.pipeline_mode<synchronous>, transform_indices = @transform_17, window_bounds = array<i64: 1, 32>}, {pipeline_mode = #tpu.pipeline_mode<synchronous>, transform_indices = @transform_18, window_bounds = array<i64: 32, 96>}, {pipeline_mode = #tpu.pipeline_mode<synchronous>, transform_indices = @transform_19, window_bounds = array<i64: 1, 96>}, {pipeline_mode = #tpu.pipeline_mode<synchronous>, transform_indices = @transform_20, window_bounds = array<i64: 32, 32>}, {pipeline_mode = #tpu.pipeline_mode<synchronous>, transform_indices = @transform_21, window_bounds = array<i64: 1, 32>}, {pipeline_mode = #tpu.pipeline_mode<synchronous>, transform_indices = @transform_22, window_bounds = array<i64: 1, 32>}, {pipeline_mode = #tpu.pipeline_mode<synchronous>, transform_indices = @transform_23, window_bounds = array<i64: 1, 32>}, {pipeline_mode = #tpu.pipeline_mode<synchronous>, transform_indices = @transform_24, window_bounds = array<i64: 288, 128>}, {pipeline_mode = #tpu.pipeline_mode<synchronous>, transform_indices = @transform_25, window_bounds = array<i64: 1, 128>}, {pipeline_mode = #tpu.pipeline_mode<synchronous>, transform_indices = @transform_26, window_bounds = array<i64: 128, 32>}, {pipeline_mode = #tpu.pipeline_mode<synchronous>, transform_indices = @transform_27, window_bounds = array<i64: 1, 32>}, {pipeline_mode = #tpu.pipeline_mode<synchronous>, transform_indices = @transform_28, window_bounds = array<i64: 1, 32>}, {pipeline_mode = #tpu.pipeline_mode<synchronous>, transform_indices = @transform_29, window_bounds = array<i64: 1, 32>}, {pipeline_mode = #tpu.pipeline_mode<synchronous>, transform_indices = @transform_30, window_bounds = array<i64: 32, 20>}, {pipeline_mode = #tpu.pipeline_mode<synchronous>, transform_indices = @transform_31, window_bounds = array<i64: 1, 20>}, {transform_indices = @transform_32, window_bounds = array<i64: 1, 16, 1>}, {transform_indices = @transform_33, window_bounds = array<i64: 1, 16, 20>}]} {
    %c0 = arith.constant 0 : index
    %c0_0 = arith.constant 0 : index
    %c0_1 = arith.constant 0 : index
    %0 = vector.load %arg4[%c0, %c0_0, %c0_1] : memref<1x16x1xf32, #tpu.memory_space<vmem>>, vector<1x16x1xf32>
    %1 = vector.shape_cast %0 : vector<1x16x1xf32> to vector<16x1xf32>
    %c0_2 = arith.constant 0 : index
    %c0_3 = arith.constant 0 : index
    %c0_4 = arith.constant 0 : index
    %2 = vector.load %arg3[%c0_2, %c0_3, %c0_4] : memref<1x1x16xf32, #tpu.memory_space<vmem>>, vector<1x1x16xf32>
    %3 = vector.shape_cast %2 : vector<1x1x16xf32> to vector<1x16xf32>
    %cst = arith.constant -1.000000e+09 : f32
    %4 = vector.broadcast %cst : f32 to vector<1x16xf32>
    %5 = arith.mulf %3, %4 : vector<1x16xf32>
    %c0_5 = arith.constant 0 : index
    %c0_6 = arith.constant 0 : index
    %c0_7 = arith.constant 0 : index
    %6 = vector.load %arg1[%c0_5, %c0_6, %c0_7] : memref<1x16x32xf32, #tpu.memory_space<vmem>>, vector<1x16x32xf32>
    %7 = vector.shape_cast %6 : vector<1x16x32xf32> to vector<16x32xf32>
    %c0_8 = arith.constant 0 : index
    %c0_9 = arith.constant 0 : index
    %c0_10 = arith.constant 0 : index
    %8 = vector.load %arg2[%c0_8, %c0_9, %c0_10] : memref<1x16x32xf32, #tpu.memory_space<vmem>>, vector<1x16x32xf32>
    %9 = vector.shape_cast %8 : vector<1x16x32xf32> to vector<16x32xf32>
    %10 = arith.addf %7, %9 : vector<16x32xf32>
    %11 = vector.broadcast %1 : vector<16x1xf32> to vector<16x32xf32>
    %12 = arith.mulf %10, %11 : vector<16x32xf32>
    %c0_11 = arith.constant 0 : index
    %c0_12 = arith.constant 0 : index
    %13 = vector.load %arg5[%c0_11, %c0_12] : memref<1x32xf32, #tpu.memory_space<vmem>>, vector<1x32xf32>
    %c0_13 = arith.constant 0 : index
    %c0_14 = arith.constant 0 : index
    %14 = vector.load %arg6[%c0_13, %c0_14] : memref<1x32xf32, #tpu.memory_space<vmem>>, vector<1x32xf32>
    %cst_15 = arith.constant dense<0.000000e+00> : vector<16xf32>
    %15 = vector.multi_reduction <add>, %12, %cst_15 [1] : vector<16x32xf32> to vector<16xf32>
    %16 = vector.shape_cast %15 : vector<16xf32> to vector<16x1xf32>
    %cst_16 = arith.constant 3.200000e+01 : f32
    %17 = vector.broadcast %cst_16 : f32 to vector<16x1xf32>
    %18 = arith.divf %16, %17 : vector<16x1xf32>
    %19 = vector.broadcast %18 : vector<16x1xf32> to vector<16x32xf32>
    %20 = arith.subf %12, %19 : vector<16x32xf32>
    %21 = arith.mulf %20, %20 : vector<16x32xf32>
    %cst_17 = arith.constant dense<0.000000e+00> : vector<16xf32>
    %22 = vector.multi_reduction <add>, %21, %cst_17 [1] : vector<16x32xf32> to vector<16xf32>
    %23 = vector.shape_cast %22 : vector<16xf32> to vector<16x1xf32>
    %cst_18 = arith.constant 3.200000e+01 : f32
    %24 = vector.broadcast %cst_18 : f32 to vector<16x1xf32>
    %25 = arith.divf %23, %24 : vector<16x1xf32>
    %26 = vector.broadcast %18 : vector<16x1xf32> to vector<16x32xf32>
    %27 = arith.subf %12, %26 : vector<16x32xf32>
    %cst_19 = arith.constant 9.99999996E-13 : f32
    %28 = vector.broadcast %cst_19 : f32 to vector<16x1xf32>
    %29 = arith.addf %25, %28 : vector<16x1xf32>
    %30 = math.rsqrt %29 : vector<16x1xf32>
    %31 = vector.broadcast %30 : vector<16x1xf32> to vector<16x32xf32>
    %32 = arith.mulf %27, %31 : vector<16x32xf32>
    %33 = vector.broadcast %13 : vector<1x32xf32> to vector<16x32xf32>
    %34 = arith.mulf %32, %33 : vector<16x32xf32>
    %35 = vector.broadcast %14 : vector<1x32xf32> to vector<16x32xf32>
    %36 = arith.addf %34, %35 : vector<16x32xf32>
    %37 = arith.truncf %36 : vector<16x32xf32> to vector<16x32xbf16>
    %c0_20 = arith.constant 0 : index
    %c0_21 = arith.constant 0 : index
    %38 = vector.load %arg7[%c0_20, %c0_21] : memref<32x96xbf16, #tpu.memory_space<vmem>>, vector<32x96xbf16>
    %cst_22 = arith.constant dense<0.000000e+00> : vector<16x96xf32>
    %39 = tpu.matmul %37, %38, %cst_22 {dimension_numbers = #tpu.dot_dimension_numbers<[1], [0], [0], [1], [0, 0, 1, 1], [], []>} : vector<16x32xbf16>, vector<32x96xbf16>, vector<16x96xf32> -> vector<16x96xf32>
    %c0_23 = arith.constant 0 : index
    %c0_24 = arith.constant 0 : index
    %40 = vector.load %arg8[%c0_23, %c0_24] : memref<1x96xf32, #tpu.memory_space<vmem>>, vector<1x96xf32>
    %41 = vector.broadcast %40 : vector<1x96xf32> to vector<16x96xf32>
    %42 = arith.addf %39, %41 : vector<16x96xf32>
    %43 = vector.extract_strided_slice %42 {offsets = [0, 0], sizes = [16, 16], strides = [1, 1]} : vector<16x96xf32> to vector<16x16xf32>
    %cst_25 = arith.constant 2.500000e-01 : f32
    %44 = vector.broadcast %cst_25 : f32 to vector<16x16xf32>
    %45 = arith.mulf %43, %44 : vector<16x16xf32>
    %46 = vector.extract_strided_slice %42 {offsets = [0, 32], sizes = [16, 16], strides = [1, 1]} : vector<16x96xf32> to vector<16x16xf32>
    %47 = vector.extract_strided_slice %42 {offsets = [0, 64], sizes = [16, 16], strides = [1, 1]} : vector<16x96xf32> to vector<16x16xf32>
    %48 = arith.truncf %45 : vector<16x16xf32> to vector<16x16xbf16>
    %49 = arith.truncf %46 : vector<16x16xf32> to vector<16x16xbf16>
    %cst_26 = arith.constant dense<0.000000e+00> : vector<16x16xf32>
    %50 = tpu.matmul %48, %49, %cst_26 {dimension_numbers = #tpu.dot_dimension_numbers<[1], [1], [0], [0], [0, 0, 1, 0], [], []>} : vector<16x16xbf16>, vector<16x16xbf16>, vector<16x16xf32> -> vector<16x16xf32>
    %51 = vector.broadcast %5 : vector<1x16xf32> to vector<16x16xf32>
    %52 = arith.addf %50, %51 : vector<16x16xf32>
    %cst_27 = arith.constant dense<0xFF800000> : vector<16xf32>
    %53 = vector.multi_reduction <maximumf>, %52, %cst_27 [1] : vector<16x16xf32> to vector<16xf32>
    %54 = vector.shape_cast %53 : vector<16xf32> to vector<16x1xf32>
    %55 = vector.broadcast %54 : vector<16x1xf32> to vector<16x16xf32>
    %56 = arith.subf %52, %55 : vector<16x16xf32>
    %57 = math.exp %56 : vector<16x16xf32>
    %cst_28 = arith.constant dense<0.000000e+00> : vector<16xf32>
    %58 = vector.multi_reduction <add>, %57, %cst_28 [1] : vector<16x16xf32> to vector<16xf32>
    %59 = vector.shape_cast %58 : vector<16xf32> to vector<16x1xf32>
    %60 = arith.truncf %57 : vector<16x16xf32> to vector<16x16xbf16>
    %61 = arith.truncf %47 : vector<16x16xf32> to vector<16x16xbf16>
    %cst_29 = arith.constant dense<0.000000e+00> : vector<16x16xf32>
    %62 = tpu.matmul %60, %61, %cst_29 {dimension_numbers = #tpu.dot_dimension_numbers<[1], [0], [0], [1], [0, 0, 1, 1], [], []>} : vector<16x16xbf16>, vector<16x16xbf16>, vector<16x16xf32> -> vector<16x16xf32>
    %63 = tpu.reciprocal %59 {approx = true} : vector<16x1xf32> -> vector<16x1xf32>
    %64 = vector.broadcast %63 : vector<16x1xf32> to vector<16x16xf32>
    %65 = arith.mulf %62, %64 : vector<16x16xf32>
    %66 = vector.extract_strided_slice %42 {offsets = [0, 16], sizes = [16, 16], strides = [1, 1]} : vector<16x96xf32> to vector<16x16xf32>
    %cst_30 = arith.constant 2.500000e-01 : f32
    %67 = vector.broadcast %cst_30 : f32 to vector<16x16xf32>
    %68 = arith.mulf %66, %67 : vector<16x16xf32>
    %69 = vector.extract_strided_slice %42 {offsets = [0, 48], sizes = [16, 16], strides = [1, 1]} : vector<16x96xf32> to vector<16x16xf32>
    %70 = vector.extract_strided_slice %42 {offsets = [0, 80], sizes = [16, 16], strides = [1, 1]} : vector<16x96xf32> to vector<16x16xf32>
    %71 = arith.truncf %68 : vector<16x16xf32> to vector<16x16xbf16>
    %72 = arith.truncf %69 : vector<16x16xf32> to vector<16x16xbf16>
    %cst_31 = arith.constant dense<0.000000e+00> : vector<16x16xf32>
    %73 = tpu.matmul %71, %72, %cst_31 {dimension_numbers = #tpu.dot_dimension_numbers<[1], [1], [0], [0], [0, 0, 1, 0], [], []>} : vector<16x16xbf16>, vector<16x16xbf16>, vector<16x16xf32> -> vector<16x16xf32>
    %74 = vector.broadcast %5 : vector<1x16xf32> to vector<16x16xf32>
    %75 = arith.addf %73, %74 : vector<16x16xf32>
    %cst_32 = arith.constant dense<0xFF800000> : vector<16xf32>
    %76 = vector.multi_reduction <maximumf>, %75, %cst_32 [1] : vector<16x16xf32> to vector<16xf32>
    %77 = vector.shape_cast %76 : vector<16xf32> to vector<16x1xf32>
    %78 = vector.broadcast %77 : vector<16x1xf32> to vector<16x16xf32>
    %79 = arith.subf %75, %78 : vector<16x16xf32>
    %80 = math.exp %79 : vector<16x16xf32>
    %cst_33 = arith.constant dense<0.000000e+00> : vector<16xf32>
    %81 = vector.multi_reduction <add>, %80, %cst_33 [1] : vector<16x16xf32> to vector<16xf32>
    %82 = vector.shape_cast %81 : vector<16xf32> to vector<16x1xf32>
    %83 = arith.truncf %80 : vector<16x16xf32> to vector<16x16xbf16>
    %84 = arith.truncf %70 : vector<16x16xf32> to vector<16x16xbf16>
    %cst_34 = arith.constant dense<0.000000e+00> : vector<16x16xf32>
    %85 = tpu.matmul %83, %84, %cst_34 {dimension_numbers = #tpu.dot_dimension_numbers<[1], [0], [0], [1], [0, 0, 1, 1], [], []>} : vector<16x16xbf16>, vector<16x16xbf16>, vector<16x16xf32> -> vector<16x16xf32>
    %86 = tpu.reciprocal %82 {approx = true} : vector<16x1xf32> -> vector<16x1xf32>
    %87 = vector.broadcast %86 : vector<16x1xf32> to vector<16x16xf32>
    %88 = arith.mulf %85, %87 : vector<16x16xf32>
    %89 = tpu.concatenate %65, %88 in 1 : vector<16x16xf32>, vector<16x16xf32> -> vector<16x32xf32>
    %90 = arith.truncf %89 : vector<16x32xf32> to vector<16x32xbf16>
    %c0_35 = arith.constant 0 : index
    %c0_36 = arith.constant 0 : index
    %91 = vector.load %arg9[%c0_35, %c0_36] : memref<32x32xbf16, #tpu.memory_space<vmem>>, vector<32x32xbf16>
    %cst_37 = arith.constant dense<0.000000e+00> : vector<16x32xf32>
    %92 = tpu.matmul %90, %91, %cst_37 {dimension_numbers = #tpu.dot_dimension_numbers<[1], [0], [0], [1], [0, 0, 1, 1], [], []>} : vector<16x32xbf16>, vector<32x32xbf16>, vector<16x32xf32> -> vector<16x32xf32>
    %c0_38 = arith.constant 0 : index
    %c0_39 = arith.constant 0 : index
    %93 = vector.load %arg10[%c0_38, %c0_39] : memref<1x32xf32, #tpu.memory_space<vmem>>, vector<1x32xf32>
    %94 = vector.broadcast %93 : vector<1x32xf32> to vector<16x32xf32>
    %95 = arith.addf %92, %94 : vector<16x32xf32>
    %96 = arith.addf %12, %95 : vector<16x32xf32>
    %97 = vector.broadcast %1 : vector<16x1xf32> to vector<16x32xf32>
    %98 = arith.mulf %96, %97 : vector<16x32xf32>
    %c0_40 = arith.constant 0 : index
    %c0_41 = arith.constant 0 : index
    %99 = vector.load %arg11[%c0_40, %c0_41] : memref<1x32xf32, #tpu.memory_space<vmem>>, vector<1x32xf32>
    %c0_42 = arith.constant 0 : index
    %c0_43 = arith.constant 0 : index
    %100 = vector.load %arg12[%c0_42, %c0_43] : memref<1x32xf32, #tpu.memory_space<vmem>>, vector<1x32xf32>
    %cst_44 = arith.constant dense<0.000000e+00> : vector<16xf32>
    %101 = vector.multi_reduction <add>, %98, %cst_44 [1] : vector<16x32xf32> to vector<16xf32>
    %102 = vector.shape_cast %101 : vector<16xf32> to vector<16x1xf32>
    %cst_45 = arith.constant 3.200000e+01 : f32
    %103 = vector.broadcast %cst_45 : f32 to vector<16x1xf32>
    %104 = arith.divf %102, %103 : vector<16x1xf32>
    %105 = vector.broadcast %104 : vector<16x1xf32> to vector<16x32xf32>
    %106 = arith.subf %98, %105 : vector<16x32xf32>
    %107 = arith.mulf %106, %106 : vector<16x32xf32>
    %cst_46 = arith.constant dense<0.000000e+00> : vector<16xf32>
    %108 = vector.multi_reduction <add>, %107, %cst_46 [1] : vector<16x32xf32> to vector<16xf32>
    %109 = vector.shape_cast %108 : vector<16xf32> to vector<16x1xf32>
    %cst_47 = arith.constant 3.200000e+01 : f32
    %110 = vector.broadcast %cst_47 : f32 to vector<16x1xf32>
    %111 = arith.divf %109, %110 : vector<16x1xf32>
    %112 = vector.broadcast %104 : vector<16x1xf32> to vector<16x32xf32>
    %113 = arith.subf %98, %112 : vector<16x32xf32>
    %cst_48 = arith.constant 9.99999996E-13 : f32
    %114 = vector.broadcast %cst_48 : f32 to vector<16x1xf32>
    %115 = arith.addf %111, %114 : vector<16x1xf32>
    %116 = math.rsqrt %115 : vector<16x1xf32>
    %117 = vector.broadcast %116 : vector<16x1xf32> to vector<16x32xf32>
    %118 = arith.mulf %113, %117 : vector<16x32xf32>
    %119 = vector.broadcast %99 : vector<1x32xf32> to vector<16x32xf32>
    %120 = arith.mulf %118, %119 : vector<16x32xf32>
    %121 = vector.broadcast %100 : vector<1x32xf32> to vector<16x32xf32>
    %122 = arith.addf %120, %121 : vector<16x32xf32>
    %cst_49 = arith.constant 0.000000e+00 : f32
    %123 = vector.broadcast %cst_49 : f32 to vector<4x32xf32>
    %cst_50 = arith.constant 0.000000e+00 : f32
    %124 = vector.broadcast %cst_50 : f32 to vector<4x32xf32>
    %125 = tpu.concatenate %123, %122, %124 in 0 : vector<4x32xf32>, vector<16x32xf32>, vector<4x32xf32> -> vector<24x32xf32>
    %126 = vector.extract_strided_slice %125 {offsets = [0, 0], sizes = [16, 32], strides = [1, 1]} : vector<24x32xf32> to vector<16x32xf32>
    %127 = vector.extract_strided_slice %125 {offsets = [1, 0], sizes = [16, 32], strides = [1, 1]} : vector<24x32xf32> to vector<16x32xf32>
    %128 = vector.extract_strided_slice %125 {offsets = [2, 0], sizes = [16, 32], strides = [1, 1]} : vector<24x32xf32> to vector<16x32xf32>
    %129 = vector.extract_strided_slice %125 {offsets = [3, 0], sizes = [16, 32], strides = [1, 1]} : vector<24x32xf32> to vector<16x32xf32>
    %130 = vector.extract_strided_slice %125 {offsets = [4, 0], sizes = [16, 32], strides = [1, 1]} : vector<24x32xf32> to vector<16x32xf32>
    %131 = vector.extract_strided_slice %125 {offsets = [5, 0], sizes = [16, 32], strides = [1, 1]} : vector<24x32xf32> to vector<16x32xf32>
    %132 = vector.extract_strided_slice %125 {offsets = [6, 0], sizes = [16, 32], strides = [1, 1]} : vector<24x32xf32> to vector<16x32xf32>
    %133 = vector.extract_strided_slice %125 {offsets = [7, 0], sizes = [16, 32], strides = [1, 1]} : vector<24x32xf32> to vector<16x32xf32>
    %134 = vector.extract_strided_slice %125 {offsets = [8, 0], sizes = [16, 32], strides = [1, 1]} : vector<24x32xf32> to vector<16x32xf32>
    %135 = tpu.concatenate %126, %127, %128, %129, %130, %131, %132, %133, %134 in 1 : vector<16x32xf32>, vector<16x32xf32>, vector<16x32xf32>, vector<16x32xf32>, vector<16x32xf32>, vector<16x32xf32>, vector<16x32xf32>, vector<16x32xf32>, vector<16x32xf32> -> vector<16x288xf32>
    %136 = arith.truncf %135 : vector<16x288xf32> to vector<16x288xbf16>
    %c0_51 = arith.constant 0 : index
    %c0_52 = arith.constant 0 : index
    %137 = vector.load %arg13[%c0_51, %c0_52] : memref<288x128xbf16, #tpu.memory_space<vmem>>, vector<288x128xbf16>
    %cst_53 = arith.constant dense<0.000000e+00> : vector<16x128xf32>
    %138 = tpu.matmul %136, %137, %cst_53 {dimension_numbers = #tpu.dot_dimension_numbers<[1], [0], [0], [1], [0, 0, 1, 1], [], []>} : vector<16x288xbf16>, vector<288x128xbf16>, vector<16x128xf32> -> vector<16x128xf32>
    %c0_54 = arith.constant 0 : index
    %c0_55 = arith.constant 0 : index
    %139 = vector.load %arg14[%c0_54, %c0_55] : memref<1x128xf32, #tpu.memory_space<vmem>>, vector<1x128xf32>
    %140 = vector.broadcast %139 : vector<1x128xf32> to vector<16x128xf32>
    %141 = arith.addf %138, %140 : vector<16x128xf32>
    %cst_56 = arith.constant 0.333333343 : f32
    %142 = vector.broadcast %cst_56 : f32 to vector<16x128xf32>
    %143 = arith.mulf %141, %142 : vector<16x128xf32>
    %144 = arith.mulf %143, %143 : vector<16x128xf32>
    %145 = arith.mulf %143, %144 : vector<16x128xf32>
    %cst_57 = arith.constant 4.471500e-02 : f32
    %146 = vector.broadcast %cst_57 : f32 to vector<16x128xf32>
    %147 = arith.mulf %146, %145 : vector<16x128xf32>
    %148 = arith.addf %143, %147 : vector<16x128xf32>
    %cst_58 = arith.constant 0.797884583 : f32
    %149 = vector.broadcast %cst_58 : f32 to vector<16x128xf32>
    %150 = arith.mulf %149, %148 : vector<16x128xf32>
    %151 = math.tanh %150 : vector<16x128xf32>
    %cst_59 = arith.constant 1.000000e+00 : f32
    %152 = vector.broadcast %cst_59 : f32 to vector<16x128xf32>
    %153 = arith.addf %152, %151 : vector<16x128xf32>
    %cst_60 = arith.constant 5.000000e-01 : f32
    %154 = vector.broadcast %cst_60 : f32 to vector<16x128xf32>
    %155 = arith.mulf %154, %153 : vector<16x128xf32>
    %156 = arith.mulf %143, %155 : vector<16x128xf32>
    %157 = arith.truncf %156 : vector<16x128xf32> to vector<16x128xbf16>
    %c0_61 = arith.constant 0 : index
    %c0_62 = arith.constant 0 : index
    %158 = vector.load %arg15[%c0_61, %c0_62] : memref<128x32xbf16, #tpu.memory_space<vmem>>, vector<128x32xbf16>
    %cst_63 = arith.constant dense<0.000000e+00> : vector<16x32xf32>
    %159 = tpu.matmul %157, %158, %cst_63 {dimension_numbers = #tpu.dot_dimension_numbers<[1], [0], [0], [1], [0, 0, 1, 1], [], []>} : vector<16x128xbf16>, vector<128x32xbf16>, vector<16x32xf32> -> vector<16x32xf32>
    %c0_64 = arith.constant 0 : index
    %c0_65 = arith.constant 0 : index
    %160 = vector.load %arg16[%c0_64, %c0_65] : memref<1x32xf32, #tpu.memory_space<vmem>>, vector<1x32xf32>
    %161 = vector.broadcast %160 : vector<1x32xf32> to vector<16x32xf32>
    %162 = arith.addf %159, %161 : vector<16x32xf32>
    %163 = arith.addf %98, %162 : vector<16x32xf32>
    %164 = vector.broadcast %1 : vector<16x1xf32> to vector<16x32xf32>
    %165 = arith.mulf %163, %164 : vector<16x32xf32>
    %c0_66 = arith.constant 0 : index
    %c0_67 = arith.constant 0 : index
    %166 = vector.load %arg17[%c0_66, %c0_67] : memref<1x32xf32, #tpu.memory_space<vmem>>, vector<1x32xf32>
    %c0_68 = arith.constant 0 : index
    %c0_69 = arith.constant 0 : index
    %167 = vector.load %arg18[%c0_68, %c0_69] : memref<1x32xf32, #tpu.memory_space<vmem>>, vector<1x32xf32>
    %cst_70 = arith.constant dense<0.000000e+00> : vector<16xf32>
    %168 = vector.multi_reduction <add>, %165, %cst_70 [1] : vector<16x32xf32> to vector<16xf32>
    %169 = vector.shape_cast %168 : vector<16xf32> to vector<16x1xf32>
    %cst_71 = arith.constant 3.200000e+01 : f32
    %170 = vector.broadcast %cst_71 : f32 to vector<16x1xf32>
    %171 = arith.divf %169, %170 : vector<16x1xf32>
    %172 = vector.broadcast %171 : vector<16x1xf32> to vector<16x32xf32>
    %173 = arith.subf %165, %172 : vector<16x32xf32>
    %174 = arith.mulf %173, %173 : vector<16x32xf32>
    %cst_72 = arith.constant dense<0.000000e+00> : vector<16xf32>
    %175 = vector.multi_reduction <add>, %174, %cst_72 [1] : vector<16x32xf32> to vector<16xf32>
    %176 = vector.shape_cast %175 : vector<16xf32> to vector<16x1xf32>
    %cst_73 = arith.constant 3.200000e+01 : f32
    %177 = vector.broadcast %cst_73 : f32 to vector<16x1xf32>
    %178 = arith.divf %176, %177 : vector<16x1xf32>
    %179 = vector.broadcast %171 : vector<16x1xf32> to vector<16x32xf32>
    %180 = arith.subf %165, %179 : vector<16x32xf32>
    %cst_74 = arith.constant 9.99999996E-13 : f32
    %181 = vector.broadcast %cst_74 : f32 to vector<16x1xf32>
    %182 = arith.addf %178, %181 : vector<16x1xf32>
    %183 = math.rsqrt %182 : vector<16x1xf32>
    %184 = vector.broadcast %183 : vector<16x1xf32> to vector<16x32xf32>
    %185 = arith.mulf %180, %184 : vector<16x32xf32>
    %186 = vector.broadcast %166 : vector<1x32xf32> to vector<16x32xf32>
    %187 = arith.mulf %185, %186 : vector<16x32xf32>
    %188 = vector.broadcast %167 : vector<1x32xf32> to vector<16x32xf32>
    %189 = arith.addf %187, %188 : vector<16x32xf32>
    %190 = arith.truncf %189 : vector<16x32xf32> to vector<16x32xbf16>
    %c0_75 = arith.constant 0 : index
    %c0_76 = arith.constant 0 : index
    %191 = vector.load %arg19[%c0_75, %c0_76] : memref<32x96xbf16, #tpu.memory_space<vmem>>, vector<32x96xbf16>
    %cst_77 = arith.constant dense<0.000000e+00> : vector<16x96xf32>
    %192 = tpu.matmul %190, %191, %cst_77 {dimension_numbers = #tpu.dot_dimension_numbers<[1], [0], [0], [1], [0, 0, 1, 1], [], []>} : vector<16x32xbf16>, vector<32x96xbf16>, vector<16x96xf32> -> vector<16x96xf32>
    %c0_78 = arith.constant 0 : index
    %c0_79 = arith.constant 0 : index
    %193 = vector.load %arg20[%c0_78, %c0_79] : memref<1x96xf32, #tpu.memory_space<vmem>>, vector<1x96xf32>
    %194 = vector.broadcast %193 : vector<1x96xf32> to vector<16x96xf32>
    %195 = arith.addf %192, %194 : vector<16x96xf32>
    %196 = vector.extract_strided_slice %195 {offsets = [0, 0], sizes = [16, 16], strides = [1, 1]} : vector<16x96xf32> to vector<16x16xf32>
    %cst_80 = arith.constant 2.500000e-01 : f32
    %197 = vector.broadcast %cst_80 : f32 to vector<16x16xf32>
    %198 = arith.mulf %196, %197 : vector<16x16xf32>
    %199 = vector.extract_strided_slice %195 {offsets = [0, 32], sizes = [16, 16], strides = [1, 1]} : vector<16x96xf32> to vector<16x16xf32>
    %200 = vector.extract_strided_slice %195 {offsets = [0, 64], sizes = [16, 16], strides = [1, 1]} : vector<16x96xf32> to vector<16x16xf32>
    %201 = arith.truncf %198 : vector<16x16xf32> to vector<16x16xbf16>
    %202 = arith.truncf %199 : vector<16x16xf32> to vector<16x16xbf16>
    %cst_81 = arith.constant dense<0.000000e+00> : vector<16x16xf32>
    %203 = tpu.matmul %201, %202, %cst_81 {dimension_numbers = #tpu.dot_dimension_numbers<[1], [1], [0], [0], [0, 0, 1, 0], [], []>} : vector<16x16xbf16>, vector<16x16xbf16>, vector<16x16xf32> -> vector<16x16xf32>
    %204 = vector.broadcast %5 : vector<1x16xf32> to vector<16x16xf32>
    %205 = arith.addf %203, %204 : vector<16x16xf32>
    %cst_82 = arith.constant dense<0xFF800000> : vector<16xf32>
    %206 = vector.multi_reduction <maximumf>, %205, %cst_82 [1] : vector<16x16xf32> to vector<16xf32>
    %207 = vector.shape_cast %206 : vector<16xf32> to vector<16x1xf32>
    %208 = vector.broadcast %207 : vector<16x1xf32> to vector<16x16xf32>
    %209 = arith.subf %205, %208 : vector<16x16xf32>
    %210 = math.exp %209 : vector<16x16xf32>
    %cst_83 = arith.constant dense<0.000000e+00> : vector<16xf32>
    %211 = vector.multi_reduction <add>, %210, %cst_83 [1] : vector<16x16xf32> to vector<16xf32>
    %212 = vector.shape_cast %211 : vector<16xf32> to vector<16x1xf32>
    %213 = arith.truncf %210 : vector<16x16xf32> to vector<16x16xbf16>
    %214 = arith.truncf %200 : vector<16x16xf32> to vector<16x16xbf16>
    %cst_84 = arith.constant dense<0.000000e+00> : vector<16x16xf32>
    %215 = tpu.matmul %213, %214, %cst_84 {dimension_numbers = #tpu.dot_dimension_numbers<[1], [0], [0], [1], [0, 0, 1, 1], [], []>} : vector<16x16xbf16>, vector<16x16xbf16>, vector<16x16xf32> -> vector<16x16xf32>
    %216 = tpu.reciprocal %212 {approx = true} : vector<16x1xf32> -> vector<16x1xf32>
    %217 = vector.broadcast %216 : vector<16x1xf32> to vector<16x16xf32>
    %218 = arith.mulf %215, %217 : vector<16x16xf32>
    %219 = vector.extract_strided_slice %195 {offsets = [0, 16], sizes = [16, 16], strides = [1, 1]} : vector<16x96xf32> to vector<16x16xf32>
    %cst_85 = arith.constant 2.500000e-01 : f32
    %220 = vector.broadcast %cst_85 : f32 to vector<16x16xf32>
    %221 = arith.mulf %219, %220 : vector<16x16xf32>
    %222 = vector.extract_strided_slice %195 {offsets = [0, 48], sizes = [16, 16], strides = [1, 1]} : vector<16x96xf32> to vector<16x16xf32>
    %223 = vector.extract_strided_slice %195 {offsets = [0, 80], sizes = [16, 16], strides = [1, 1]} : vector<16x96xf32> to vector<16x16xf32>
    %224 = arith.truncf %221 : vector<16x16xf32> to vector<16x16xbf16>
    %225 = arith.truncf %222 : vector<16x16xf32> to vector<16x16xbf16>
    %cst_86 = arith.constant dense<0.000000e+00> : vector<16x16xf32>
    %226 = tpu.matmul %224, %225, %cst_86 {dimension_numbers = #tpu.dot_dimension_numbers<[1], [1], [0], [0], [0, 0, 1, 0], [], []>} : vector<16x16xbf16>, vector<16x16xbf16>, vector<16x16xf32> -> vector<16x16xf32>
    %227 = vector.broadcast %5 : vector<1x16xf32> to vector<16x16xf32>
    %228 = arith.addf %226, %227 : vector<16x16xf32>
    %cst_87 = arith.constant dense<0xFF800000> : vector<16xf32>
    %229 = vector.multi_reduction <maximumf>, %228, %cst_87 [1] : vector<16x16xf32> to vector<16xf32>
    %230 = vector.shape_cast %229 : vector<16xf32> to vector<16x1xf32>
    %231 = vector.broadcast %230 : vector<16x1xf32> to vector<16x16xf32>
    %232 = arith.subf %228, %231 : vector<16x16xf32>
    %233 = math.exp %232 : vector<16x16xf32>
    %cst_88 = arith.constant dense<0.000000e+00> : vector<16xf32>
    %234 = vector.multi_reduction <add>, %233, %cst_88 [1] : vector<16x16xf32> to vector<16xf32>
    %235 = vector.shape_cast %234 : vector<16xf32> to vector<16x1xf32>
    %236 = arith.truncf %233 : vector<16x16xf32> to vector<16x16xbf16>
    %237 = arith.truncf %223 : vector<16x16xf32> to vector<16x16xbf16>
    %cst_89 = arith.constant dense<0.000000e+00> : vector<16x16xf32>
    %238 = tpu.matmul %236, %237, %cst_89 {dimension_numbers = #tpu.dot_dimension_numbers<[1], [0], [0], [1], [0, 0, 1, 1], [], []>} : vector<16x16xbf16>, vector<16x16xbf16>, vector<16x16xf32> -> vector<16x16xf32>
    %239 = tpu.reciprocal %235 {approx = true} : vector<16x1xf32> -> vector<16x1xf32>
    %240 = vector.broadcast %239 : vector<16x1xf32> to vector<16x16xf32>
    %241 = arith.mulf %238, %240 : vector<16x16xf32>
    %242 = tpu.concatenate %218, %241 in 1 : vector<16x16xf32>, vector<16x16xf32> -> vector<16x32xf32>
    %243 = arith.truncf %242 : vector<16x32xf32> to vector<16x32xbf16>
    %c0_90 = arith.constant 0 : index
    %c0_91 = arith.constant 0 : index
    %244 = vector.load %arg21[%c0_90, %c0_91] : memref<32x32xbf16, #tpu.memory_space<vmem>>, vector<32x32xbf16>
    %cst_92 = arith.constant dense<0.000000e+00> : vector<16x32xf32>
    %245 = tpu.matmul %243, %244, %cst_92 {dimension_numbers = #tpu.dot_dimension_numbers<[1], [0], [0], [1], [0, 0, 1, 1], [], []>} : vector<16x32xbf16>, vector<32x32xbf16>, vector<16x32xf32> -> vector<16x32xf32>
    %c0_93 = arith.constant 0 : index
    %c0_94 = arith.constant 0 : index
    %246 = vector.load %arg22[%c0_93, %c0_94] : memref<1x32xf32, #tpu.memory_space<vmem>>, vector<1x32xf32>
    %247 = vector.broadcast %246 : vector<1x32xf32> to vector<16x32xf32>
    %248 = arith.addf %245, %247 : vector<16x32xf32>
    %249 = arith.addf %165, %248 : vector<16x32xf32>
    %250 = vector.broadcast %1 : vector<16x1xf32> to vector<16x32xf32>
    %251 = arith.mulf %249, %250 : vector<16x32xf32>
    %c0_95 = arith.constant 0 : index
    %c0_96 = arith.constant 0 : index
    %252 = vector.load %arg23[%c0_95, %c0_96] : memref<1x32xf32, #tpu.memory_space<vmem>>, vector<1x32xf32>
    %c0_97 = arith.constant 0 : index
    %c0_98 = arith.constant 0 : index
    %253 = vector.load %arg24[%c0_97, %c0_98] : memref<1x32xf32, #tpu.memory_space<vmem>>, vector<1x32xf32>
    %cst_99 = arith.constant dense<0.000000e+00> : vector<16xf32>
    %254 = vector.multi_reduction <add>, %251, %cst_99 [1] : vector<16x32xf32> to vector<16xf32>
    %255 = vector.shape_cast %254 : vector<16xf32> to vector<16x1xf32>
    %cst_100 = arith.constant 3.200000e+01 : f32
    %256 = vector.broadcast %cst_100 : f32 to vector<16x1xf32>
    %257 = arith.divf %255, %256 : vector<16x1xf32>
    %258 = vector.broadcast %257 : vector<16x1xf32> to vector<16x32xf32>
    %259 = arith.subf %251, %258 : vector<16x32xf32>
    %260 = arith.mulf %259, %259 : vector<16x32xf32>
    %cst_101 = arith.constant dense<0.000000e+00> : vector<16xf32>
    %261 = vector.multi_reduction <add>, %260, %cst_101 [1] : vector<16x32xf32> to vector<16xf32>
    %262 = vector.shape_cast %261 : vector<16xf32> to vector<16x1xf32>
    %cst_102 = arith.constant 3.200000e+01 : f32
    %263 = vector.broadcast %cst_102 : f32 to vector<16x1xf32>
    %264 = arith.divf %262, %263 : vector<16x1xf32>
    %265 = vector.broadcast %257 : vector<16x1xf32> to vector<16x32xf32>
    %266 = arith.subf %251, %265 : vector<16x32xf32>
    %cst_103 = arith.constant 9.99999996E-13 : f32
    %267 = vector.broadcast %cst_103 : f32 to vector<16x1xf32>
    %268 = arith.addf %264, %267 : vector<16x1xf32>
    %269 = math.rsqrt %268 : vector<16x1xf32>
    %270 = vector.broadcast %269 : vector<16x1xf32> to vector<16x32xf32>
    %271 = arith.mulf %266, %270 : vector<16x32xf32>
    %272 = vector.broadcast %252 : vector<1x32xf32> to vector<16x32xf32>
    %273 = arith.mulf %271, %272 : vector<16x32xf32>
    %274 = vector.broadcast %253 : vector<1x32xf32> to vector<16x32xf32>
    %275 = arith.addf %273, %274 : vector<16x32xf32>
    %cst_104 = arith.constant 0.000000e+00 : f32
    %276 = vector.broadcast %cst_104 : f32 to vector<4x32xf32>
    %cst_105 = arith.constant 0.000000e+00 : f32
    %277 = vector.broadcast %cst_105 : f32 to vector<4x32xf32>
    %278 = tpu.concatenate %276, %275, %277 in 0 : vector<4x32xf32>, vector<16x32xf32>, vector<4x32xf32> -> vector<24x32xf32>
    %279 = vector.extract_strided_slice %278 {offsets = [0, 0], sizes = [16, 32], strides = [1, 1]} : vector<24x32xf32> to vector<16x32xf32>
    %280 = vector.extract_strided_slice %278 {offsets = [1, 0], sizes = [16, 32], strides = [1, 1]} : vector<24x32xf32> to vector<16x32xf32>
    %281 = vector.extract_strided_slice %278 {offsets = [2, 0], sizes = [16, 32], strides = [1, 1]} : vector<24x32xf32> to vector<16x32xf32>
    %282 = vector.extract_strided_slice %278 {offsets = [3, 0], sizes = [16, 32], strides = [1, 1]} : vector<24x32xf32> to vector<16x32xf32>
    %283 = vector.extract_strided_slice %278 {offsets = [4, 0], sizes = [16, 32], strides = [1, 1]} : vector<24x32xf32> to vector<16x32xf32>
    %284 = vector.extract_strided_slice %278 {offsets = [5, 0], sizes = [16, 32], strides = [1, 1]} : vector<24x32xf32> to vector<16x32xf32>
    %285 = vector.extract_strided_slice %278 {offsets = [6, 0], sizes = [16, 32], strides = [1, 1]} : vector<24x32xf32> to vector<16x32xf32>
    %286 = vector.extract_strided_slice %278 {offsets = [7, 0], sizes = [16, 32], strides = [1, 1]} : vector<24x32xf32> to vector<16x32xf32>
    %287 = vector.extract_strided_slice %278 {offsets = [8, 0], sizes = [16, 32], strides = [1, 1]} : vector<24x32xf32> to vector<16x32xf32>
    %288 = tpu.concatenate %279, %280, %281, %282, %283, %284, %285, %286, %287 in 1 : vector<16x32xf32>, vector<16x32xf32>, vector<16x32xf32>, vector<16x32xf32>, vector<16x32xf32>, vector<16x32xf32>, vector<16x32xf32>, vector<16x32xf32>, vector<16x32xf32> -> vector<16x288xf32>
    %289 = arith.truncf %288 : vector<16x288xf32> to vector<16x288xbf16>
    %c0_106 = arith.constant 0 : index
    %c0_107 = arith.constant 0 : index
    %290 = vector.load %arg25[%c0_106, %c0_107] : memref<288x128xbf16, #tpu.memory_space<vmem>>, vector<288x128xbf16>
    %cst_108 = arith.constant dense<0.000000e+00> : vector<16x128xf32>
    %291 = tpu.matmul %289, %290, %cst_108 {dimension_numbers = #tpu.dot_dimension_numbers<[1], [0], [0], [1], [0, 0, 1, 1], [], []>} : vector<16x288xbf16>, vector<288x128xbf16>, vector<16x128xf32> -> vector<16x128xf32>
    %c0_109 = arith.constant 0 : index
    %c0_110 = arith.constant 0 : index
    %292 = vector.load %arg26[%c0_109, %c0_110] : memref<1x128xf32, #tpu.memory_space<vmem>>, vector<1x128xf32>
    %293 = vector.broadcast %292 : vector<1x128xf32> to vector<16x128xf32>
    %294 = arith.addf %291, %293 : vector<16x128xf32>
    %cst_111 = arith.constant 0.333333343 : f32
    %295 = vector.broadcast %cst_111 : f32 to vector<16x128xf32>
    %296 = arith.mulf %294, %295 : vector<16x128xf32>
    %297 = arith.mulf %296, %296 : vector<16x128xf32>
    %298 = arith.mulf %296, %297 : vector<16x128xf32>
    %cst_112 = arith.constant 4.471500e-02 : f32
    %299 = vector.broadcast %cst_112 : f32 to vector<16x128xf32>
    %300 = arith.mulf %299, %298 : vector<16x128xf32>
    %301 = arith.addf %296, %300 : vector<16x128xf32>
    %cst_113 = arith.constant 0.797884583 : f32
    %302 = vector.broadcast %cst_113 : f32 to vector<16x128xf32>
    %303 = arith.mulf %302, %301 : vector<16x128xf32>
    %304 = math.tanh %303 : vector<16x128xf32>
    %cst_114 = arith.constant 1.000000e+00 : f32
    %305 = vector.broadcast %cst_114 : f32 to vector<16x128xf32>
    %306 = arith.addf %305, %304 : vector<16x128xf32>
    %cst_115 = arith.constant 5.000000e-01 : f32
    %307 = vector.broadcast %cst_115 : f32 to vector<16x128xf32>
    %308 = arith.mulf %307, %306 : vector<16x128xf32>
    %309 = arith.mulf %296, %308 : vector<16x128xf32>
    %310 = arith.truncf %309 : vector<16x128xf32> to vector<16x128xbf16>
    %c0_116 = arith.constant 0 : index
    %c0_117 = arith.constant 0 : index
    %311 = vector.load %arg27[%c0_116, %c0_117] : memref<128x32xbf16, #tpu.memory_space<vmem>>, vector<128x32xbf16>
    %cst_118 = arith.constant dense<0.000000e+00> : vector<16x32xf32>
    %312 = tpu.matmul %310, %311, %cst_118 {dimension_numbers = #tpu.dot_dimension_numbers<[1], [0], [0], [1], [0, 0, 1, 1], [], []>} : vector<16x128xbf16>, vector<128x32xbf16>, vector<16x32xf32> -> vector<16x32xf32>
    %c0_119 = arith.constant 0 : index
    %c0_120 = arith.constant 0 : index
    %313 = vector.load %arg28[%c0_119, %c0_120] : memref<1x32xf32, #tpu.memory_space<vmem>>, vector<1x32xf32>
    %314 = vector.broadcast %313 : vector<1x32xf32> to vector<16x32xf32>
    %315 = arith.addf %312, %314 : vector<16x32xf32>
    %316 = arith.addf %251, %315 : vector<16x32xf32>
    %317 = vector.broadcast %1 : vector<16x1xf32> to vector<16x32xf32>
    %318 = arith.mulf %316, %317 : vector<16x32xf32>
    %c0_121 = arith.constant 0 : index
    %c0_122 = arith.constant 0 : index
    %319 = vector.load %arg29[%c0_121, %c0_122] : memref<1x32xf32, #tpu.memory_space<vmem>>, vector<1x32xf32>
    %c0_123 = arith.constant 0 : index
    %c0_124 = arith.constant 0 : index
    %320 = vector.load %arg30[%c0_123, %c0_124] : memref<1x32xf32, #tpu.memory_space<vmem>>, vector<1x32xf32>
    %cst_125 = arith.constant dense<0.000000e+00> : vector<16xf32>
    %321 = vector.multi_reduction <add>, %318, %cst_125 [1] : vector<16x32xf32> to vector<16xf32>
    %322 = vector.shape_cast %321 : vector<16xf32> to vector<16x1xf32>
    %cst_126 = arith.constant 3.200000e+01 : f32
    %323 = vector.broadcast %cst_126 : f32 to vector<16x1xf32>
    %324 = arith.divf %322, %323 : vector<16x1xf32>
    %325 = vector.broadcast %324 : vector<16x1xf32> to vector<16x32xf32>
    %326 = arith.subf %318, %325 : vector<16x32xf32>
    %327 = arith.mulf %326, %326 : vector<16x32xf32>
    %cst_127 = arith.constant dense<0.000000e+00> : vector<16xf32>
    %328 = vector.multi_reduction <add>, %327, %cst_127 [1] : vector<16x32xf32> to vector<16xf32>
    %329 = vector.shape_cast %328 : vector<16xf32> to vector<16x1xf32>
    %cst_128 = arith.constant 3.200000e+01 : f32
    %330 = vector.broadcast %cst_128 : f32 to vector<16x1xf32>
    %331 = arith.divf %329, %330 : vector<16x1xf32>
    %332 = vector.broadcast %324 : vector<16x1xf32> to vector<16x32xf32>
    %333 = arith.subf %318, %332 : vector<16x32xf32>
    %cst_129 = arith.constant 9.99999974E-6 : f32
    %334 = vector.broadcast %cst_129 : f32 to vector<16x1xf32>
    %335 = arith.addf %331, %334 : vector<16x1xf32>
    %336 = math.rsqrt %335 : vector<16x1xf32>
    %337 = vector.broadcast %336 : vector<16x1xf32> to vector<16x32xf32>
    %338 = arith.mulf %333, %337 : vector<16x32xf32>
    %339 = vector.broadcast %319 : vector<1x32xf32> to vector<16x32xf32>
    %340 = arith.mulf %338, %339 : vector<16x32xf32>
    %341 = vector.broadcast %320 : vector<1x32xf32> to vector<16x32xf32>
    %342 = arith.addf %340, %341 : vector<16x32xf32>
    %343 = vector.broadcast %1 : vector<16x1xf32> to vector<16x32xf32>
    %344 = arith.mulf %342, %343 : vector<16x32xf32>
    %345 = arith.truncf %344 : vector<16x32xf32> to vector<16x32xbf16>
    %c0_130 = arith.constant 0 : index
    %c0_131 = arith.constant 0 : index
    %346 = vector.load %arg31[%c0_130, %c0_131] : memref<32x20xbf16, #tpu.memory_space<vmem>>, vector<32x20xbf16>
    %cst_132 = arith.constant dense<0.000000e+00> : vector<16x20xf32>
    %347 = tpu.matmul %345, %346, %cst_132 {dimension_numbers = #tpu.dot_dimension_numbers<[1], [0], [0], [1], [0, 0, 1, 1], [], []>} : vector<16x32xbf16>, vector<32x20xbf16>, vector<16x20xf32> -> vector<16x20xf32>
    %c0_133 = arith.constant 0 : index
    %c0_134 = arith.constant 0 : index
    %348 = vector.load %arg32[%c0_133, %c0_134] : memref<1x20xf32, #tpu.memory_space<vmem>>, vector<1x20xf32>
    %349 = vector.broadcast %348 : vector<1x20xf32> to vector<16x20xf32>
    %350 = arith.addf %347, %349 : vector<16x20xf32>
    %c0_135 = arith.constant 0 : index
    %c0_136 = arith.constant 0 : index
    %c0_137 = arith.constant 0 : index
    %351 = vector.load %arg33[%c0_135, %c0_136, %c0_137] : memref<1x16x1xf32, #tpu.memory_space<vmem>>, vector<1x16x1xf32>
    %352 = vector.shape_cast %351 : vector<1x16x1xf32> to vector<16x1xf32>
    %353 = vector.broadcast %352 : vector<16x1xf32> to vector<16x20xf32>
    %354 = arith.mulf %350, %353 : vector<16x20xf32>
    %c0_138 = arith.constant 0 : index
    %c0_139 = arith.constant 0 : index
    %c0_140 = arith.constant 0 : index
    %355 = vector.load %arg34[%c0_138, %c0_139, %c0_140] : memref<1x16x20xf32, #tpu.memory_space<vmem>>, vector<1x16x20xf32>
    %356 = vector.shape_cast %355 : vector<1x16x20xf32> to vector<16x20xf32>
    %357 = vector.shape_cast %354 : vector<16x20xf32> to vector<1x16x20xf32>
    tpu.vector_store %arg34[%c0_138, %c0_139, %c0_140], %357 {strides = array<i32>} : memref<1x16x20xf32, #tpu.memory_space<vmem>>, vector<1x16x20xf32>,
    return
  }
  func.func @transform_0(%arg0: i32) -> (i32, i32, i32) {
    %c0_i32 = arith.constant 0 : i32
    %c0_i32_0 = arith.constant 0 : i32
    %c0_i32_1 = arith.constant 0 : i32
    return %arg0, %c0_i32, %c0_i32_0 : i32, i32, i32
  }
  func.func @transform_1(%arg0: i32) -> (i32, i32, i32) {
    %c0_i32 = arith.constant 0 : i32
    %c0_i32_0 = arith.constant 0 : i32
    %c0_i32_1 = arith.constant 0 : i32
    return %arg0, %c0_i32, %c0_i32_0 : i32, i32, i32
  }
  func.func @transform_2(%arg0: i32) -> (i32, i32, i32) {
    %c0_i32 = arith.constant 0 : i32
    %c0_i32_0 = arith.constant 0 : i32
    %c0_i32_1 = arith.constant 0 : i32
    return %arg0, %c0_i32, %c0_i32_0 : i32, i32, i32
  }
  func.func @transform_3(%arg0: i32) -> (i32, i32, i32) {
    %c0_i32 = arith.constant 0 : i32
    %c0_i32_0 = arith.constant 0 : i32
    %c0_i32_1 = arith.constant 0 : i32
    return %arg0, %c0_i32, %c0_i32_0 : i32, i32, i32
  }
  func.func @transform_4(%arg0: i32) -> (i32, i32) {
    %c0_i32 = arith.constant 0 : i32
    %c0_i32_0 = arith.constant 0 : i32
    %c0_i32_1 = arith.constant 0 : i32
    return %c0_i32, %c0_i32_0 : i32, i32
  }
  func.func @transform_5(%arg0: i32) -> (i32, i32) {
    %c0_i32 = arith.constant 0 : i32
    %c0_i32_0 = arith.constant 0 : i32
    %c0_i32_1 = arith.constant 0 : i32
    return %c0_i32, %c0_i32_0 : i32, i32
  }
  func.func @transform_6(%arg0: i32) -> (i32, i32) {
    %c0_i32 = arith.constant 0 : i32
    %c0_i32_0 = arith.constant 0 : i32
    %c0_i32_1 = arith.constant 0 : i32
    return %c0_i32, %c0_i32_0 : i32, i32
  }
  func.func @transform_7(%arg0: i32) -> (i32, i32) {
    %c0_i32 = arith.constant 0 : i32
    %c0_i32_0 = arith.constant 0 : i32
    %c0_i32_1 = arith.constant 0 : i32
    return %c0_i32, %c0_i32_0 : i32, i32
  }
  func.func @transform_8(%arg0: i32) -> (i32, i32) {
    %c0_i32 = arith.constant 0 : i32
    %c0_i32_0 = arith.constant 0 : i32
    %c0_i32_1 = arith.constant 0 : i32
    return %c0_i32, %c0_i32_0 : i32, i32
  }
  func.func @transform_9(%arg0: i32) -> (i32, i32) {
    %c0_i32 = arith.constant 0 : i32
    %c0_i32_0 = arith.constant 0 : i32
    %c0_i32_1 = arith.constant 0 : i32
    return %c0_i32, %c0_i32_0 : i32, i32
  }
  func.func @transform_10(%arg0: i32) -> (i32, i32) {
    %c0_i32 = arith.constant 0 : i32
    %c0_i32_0 = arith.constant 0 : i32
    %c0_i32_1 = arith.constant 0 : i32
    return %c0_i32, %c0_i32_0 : i32, i32
  }
  func.func @transform_11(%arg0: i32) -> (i32, i32) {
    %c0_i32 = arith.constant 0 : i32
    %c0_i32_0 = arith.constant 0 : i32
    %c0_i32_1 = arith.constant 0 : i32
    return %c0_i32, %c0_i32_0 : i32, i32
  }
  func.func @transform_12(%arg0: i32) -> (i32, i32) {
    %c0_i32 = arith.constant 0 : i32
    %c0_i32_0 = arith.constant 0 : i32
    %c0_i32_1 = arith.constant 0 : i32
    return %c0_i32, %c0_i32_0 : i32, i32
  }
  func.func @transform_13(%arg0: i32) -> (i32, i32) {
    %c0_i32 = arith.constant 0 : i32
    %c0_i32_0 = arith.constant 0 : i32
    %c0_i32_1 = arith.constant 0 : i32
    return %c0_i32, %c0_i32_0 : i32, i32
  }
  func.func @transform_14(%arg0: i32) -> (i32, i32) {
    %c0_i32 = arith.constant 0 : i32
    %c0_i32_0 = arith.constant 0 : i32
    %c0_i32_1 = arith.constant 0 : i32
    return %c0_i32, %c0_i32_0 : i32, i32
  }
  func.func @transform_15(%arg0: i32) -> (i32, i32) {
    %c0_i32 = arith.constant 0 : i32
    %c0_i32_0 = arith.constant 0 : i32
    %c0_i32_1 = arith.constant 0 : i32
    return %c0_i32, %c0_i32_0 : i32, i32
  }
  func.func @transform_16(%arg0: i32) -> (i32, i32) {
    %c0_i32 = arith.constant 0 : i32
    %c0_i32_0 = arith.constant 0 : i32
    %c0_i32_1 = arith.constant 0 : i32
    return %c0_i32, %c0_i32_0 : i32, i32
  }
  func.func @transform_17(%arg0: i32) -> (i32, i32) {
    %c0_i32 = arith.constant 0 : i32
    %c0_i32_0 = arith.constant 0 : i32
    %c0_i32_1 = arith.constant 0 : i32
    return %c0_i32, %c0_i32_0 : i32, i32
  }
  func.func @transform_18(%arg0: i32) -> (i32, i32) {
    %c0_i32 = arith.constant 0 : i32
    %c0_i32_0 = arith.constant 0 : i32
    %c0_i32_1 = arith.constant 0 : i32
    return %c0_i32, %c0_i32_0 : i32, i32
  }
  func.func @transform_19(%arg0: i32) -> (i32, i32) {
    %c0_i32 = arith.constant 0 : i32
    %c0_i32_0 = arith.constant 0 : i32
    %c0_i32_1 = arith.constant 0 : i32
    return %c0_i32, %c0_i32_0 : i32, i32
  }
  func.func @transform_20(%arg0: i32) -> (i32, i32) {
    %c0_i32 = arith.constant 0 : i32
    %c0_i32_0 = arith.constant 0 : i32
    %c0_i32_1 = arith.constant 0 : i32
    return %c0_i32, %c0_i32_0 : i32, i32
  }
  func.func @transform_21(%arg0: i32) -> (i32, i32) {
    %c0_i32 = arith.constant 0 : i32
    %c0_i32_0 = arith.constant 0 : i32
    %c0_i32_1 = arith.constant 0 : i32
    return %c0_i32, %c0_i32_0 : i32, i32
  }
  func.func @transform_22(%arg0: i32) -> (i32, i32) {
    %c0_i32 = arith.constant 0 : i32
    %c0_i32_0 = arith.constant 0 : i32
    %c0_i32_1 = arith.constant 0 : i32
    return %c0_i32, %c0_i32_0 : i32, i32
  }
  func.func @transform_23(%arg0: i32) -> (i32, i32) {
    %c0_i32 = arith.constant 0 : i32
    %c0_i32_0 = arith.constant 0 : i32
    %c0_i32_1 = arith.constant 0 : i32
    return %c0_i32, %c0_i32_0 : i32, i32
  }
  func.func @transform_24(%arg0: i32) -> (i32, i32) {
    %c0_i32 = arith.constant 0 : i32
    %c0_i32_0 = arith.constant 0 : i32
    %c0_i32_1 = arith.constant 0 : i32
    return %c0_i32, %c0_i32_0 : i32, i32
  }
  func.func @transform_25(%arg0: i32) -> (i32, i32) {
    %c0_i32 = arith.constant 0 : i32
    %c0_i32_0 = arith.constant 0 : i32
    %c0_i32_1 = arith.constant 0 : i32
    return %c0_i32, %c0_i32_0 : i32, i32
  }
  func.func @transform_26(%arg0: i32) -> (i32, i32) {
    %c0_i32 = arith.constant 0 : i32
    %c0_i32_0 = arith.constant 0 : i32
    %c0_i32_1 = arith.constant 0 : i32
    return %c0_i32, %c0_i32_0 : i32, i32
  }
  func.func @transform_27(%arg0: i32) -> (i32, i32) {
    %c0_i32 = arith.constant 0 : i32
    %c0_i32_0 = arith.constant 0 : i32
    %c0_i32_1 = arith.constant 0 : i32
    return %c0_i32, %c0_i32_0 : i32, i32
  }
  func.func @transform_28(%arg0: i32) -> (i32, i32) {
    %c0_i32 = arith.constant 0 : i32
    %c0_i32_0 = arith.constant 0 : i32
    %c0_i32_1 = arith.constant 0 : i32
    return %c0_i32, %c0_i32_0 : i32, i32
  }
  func.func @transform_29(%arg0: i32) -> (i32, i32) {
    %c0_i32 = arith.constant 0 : i32
    %c0_i32_0 = arith.constant 0 : i32
    %c0_i32_1 = arith.constant 0 : i32
    return %c0_i32, %c0_i32_0 : i32, i32
  }
  func.func @transform_30(%arg0: i32) -> (i32, i32) {
    %c0_i32 = arith.constant 0 : i32
    %c0_i32_0 = arith.constant 0 : i32
    %c0_i32_1 = arith.constant 0 : i32
    return %c0_i32, %c0_i32_0 : i32, i32
  }
  func.func @transform_31(%arg0: i32) -> (i32, i32) {
    %c0_i32 = arith.constant 0 : i32
    %c0_i32_0 = arith.constant 0 : i32
    %c0_i32_1 = arith.constant 0 : i32
    return %c0_i32, %c0_i32_0 : i32, i32
  }
  func.func @transform_32(%arg0: i32) -> (i32, i32, i32) {
    %c0_i32 = arith.constant 0 : i32
    %c0_i32_0 = arith.constant 0 : i32
    %c0_i32_1 = arith.constant 0 : i32
    return %arg0, %c0_i32, %c0_i32_0 : i32, i32, i32
  }
  func.func @transform_33(%arg0: i32) -> (i32, i32, i32) {
    %c0_i32 = arith.constant 0 : i32
    %c0_i32_0 = arith.constant 0 : i32
    %c0_i32_1 = arith.constant 0 : i32
    return %arg0, %c0_i32, %c0_i32_0 : i32, i32, i32
  }
}

</mosaic_0001>

<llo_original>
// kernel: _lambda_.2
$region0: #{_lambda_.2}
  #allocation0 [shape = 'u32[]', space=smem, size = 0x4, offset = 0x4, fixed_abs, tag = 'smem constant byte address 0x4 - core index']
  #allocation1 [shape = 'u32[72,128]{1,0:T(1,128)}', space=vmem, size = 0x9000, scoped, tag = 'internal scratch']
  #allocation2 [shape = 'f32[1,1]{1,0:T(1,128)S(1)}', space=vmem, size = 0x200, scoped, tag = 'scoped memory for _lambda_.2']
  %s0 = inlined_call_operand.smem [shape: u32[41], index: -1, kind: input, shape index: {}]
  %s1 = sld [smem:[%s0]]
  %s2 = scalar_lea.smem %s0, 1
  %s3 = sld [smem:[%s2]]
  %s4 = scalar_lea.smem %s0, 2
  %s5 = sld [smem:[%s4]]
  %s6 = scalar_lea.smem %s0, 3
  %s7 = sld [smem:[%s6]]
  %s8 = scalar_lea.smem %s0, 4
  %s9 = sld [smem:[%s8]]
  %s10 = scalar_lea.smem %s0, 5
  %s11 = sld [smem:[%s10]]
  %s12 = scalar_lea.smem %s0, 6
  %s13 = sld [smem:[%s12]]
  %s14 = scalar_lea.smem %s0, 7
  %s15 = sld [smem:[%s14]]
  %s16 = scalar_lea.smem %s0, 8
  %s17 = sld [smem:[%s16]]
  %s18 = scalar_lea.smem %s0, 9
  %s19 = sld [smem:[%s18]]
  %s20 = scalar_lea.smem %s0, 10
  %s21 = sld [smem:[%s20]]
  %s22 = scalar_lea.smem %s0, 11
  %s23 = sld [smem:[%s22]]
  %s24 = scalar_lea.smem %s0, 12
  %s25 = sld [smem:[%s24]]
  %s26 = scalar_lea.smem %s0, 13
  %s27 = sld [smem:[%s26]]
  %s28 = scalar_lea.smem %s0, 14
  %s29 = sld [smem:[%s28]]
  %s30 = scalar_lea.smem %s0, 15
  %s31 = sld [smem:[%s30]]
  %s32 = scalar_lea.smem %s0, 16
  %s33 = sld [smem:[%s32]]
  %s34 = scalar_lea.smem %s0, 17
  %s35 = sld [smem:[%s34]]
  %s36 = scalar_lea.smem %s0, 18
  %s37 = sld [smem:[%s36]]
  %s38 = scalar_lea.smem %s0, 19
  %s39 = sld [smem:[%s38]]
  %s40 = scalar_lea.smem %s0, 20
  %s41 = sld [smem:[%s40]]
  %s42 = scalar_lea.smem %s0, 21
  %s43 = sld [smem:[%s42]]
  %s44 = scalar_lea.smem %s0, 22
  %s45 = sld [smem:[%s44]]
  %s46 = scalar_lea.smem %s0, 23
  %s47 = sld [smem:[%s46]]
  %s48 = scalar_lea.smem %s0, 24
  %s49 = sld [smem:[%s48]]
  %s50 = scalar_lea.smem %s0, 25
  %s51 = sld [smem:[%s50]]
  %s52 = scalar_lea.smem %s0, 26
  %s53 = sld [smem:[%s52]]
  %s54 = scalar_lea.smem %s0, 27
  %s55 = sld [smem:[%s54]]
  %s56 = scalar_lea.smem %s0, 28
  %s57 = sld [smem:[%s56]]
  %s58 = scalar_lea.smem %s0, 29
  %s59 = sld [smem:[%s58]]
  %s60 = scalar_lea.smem %s0, 30
  %s61 = sld [smem:[%s60]]
  %s62 = scalar_lea.smem %s0, 31
  %s63 = sld [smem:[%s62]]
  %s64 = scalar_lea.smem %s0, 32
  %s65 = sld [smem:[%s64]]
  %s66 = scalar_lea.smem %s0, 33
  %s67 = sld [smem:[%s66]]
  %s68 = scalar_lea.smem %s0, 34
  %s69 = sld [smem:[%s68]]
  %s70 = scalar_lea.smem %s0, 35
  %s71 = sld [smem:[%s70]]
  %s72 = scalar_lea.smem %s0, 36
  %s73 = sld [smem:[%s72]]
  %s74 = scalar_lea.smem %s0, 37
  %s75 = sld [smem:[%s74]]
  %s76 = scalar_lea.smem %s0, 38
  %s77 = sld [smem:[%s76]]
  %s78 = scalar_lea.smem %s0, 39
  %s79 = sld [smem:[%s78]]
  %s80 = scalar_lea.smem %s0, 40
  %s81 = sld [smem:[%s80]]
  %82 = xla_tuple %s79, %s81
  %s83 = sld [smem:[#allocation0]]
  $region197: #{_lambda_.2} parent=0
    _
  %s85 = ssub.s32 1, %s83
  %s86 = scalar_select 0, %s85, %s83
  %v87 = vstv %s77
  %88 = vst [vmem:[#allocation2] sm:$0x1] %v87
  loop: start=0, step=1, limit=4
  $region2: #{_lambda_.2} parent=0 // loop_pre_header
    _
  $region3: #{_lambda_.2} parent=0 // loop_header
    %s90 = sphi 0, %s94
    %p91 = scmp.ge.s32.totalorder %s90, 4
    %s100 = sphi 0, %s102
    %s103 = sphi 0, %s100
    %s104 = sphi 0, %s103
    %s120 = sphi 0, %s104
    %s126 = sphi 0, %s128
    %s129 = sphi 0, %s126
    %s130 = sphi 0, %s129
    %s146 = sphi 0, %s130
    %s152 = sphi 0, %s154
    %s155 = sphi 0, %s152
    %s156 = sphi 0, %s155
    %s172 = sphi 0, %s156
    %s176 = sphi 0, %s176
    %s178 = sphi 0, %s176
    %s179 = sphi 0, %s178
    %s193 = sphi 0, %s179
    %s197 = sphi 0, %s197
    %s199 = sphi 0, %s197
    %s200 = sphi 0, %s199
    %s214 = sphi 0, %s200
    %s218 = sphi 0, %s218
    %s220 = sphi 0, %s218
    %s221 = sphi 0, %s220
    %s235 = sphi 0, %s221
    %s239 = sphi 0, %s239
    %s241 = sphi 0, %s239
    %s242 = sphi 0, %s241
    %s256 = sphi 0, %s242
    %s260 = sphi 0, %s260
    %s262 = sphi 0, %s260
    %s263 = sphi 0, %s262
    %s277 = sphi 0, %s263
    %s281 = sphi 0, %s281
    %s283 = sphi 0, %s281
    %s284 = sphi 0, %s283
    %s298 = sphi 0, %s284
    %s302 = sphi 0, %s302
    %s304 = sphi 0, %s302
    %s305 = sphi 0, %s304
    %s319 = sphi 0, %s305
    %s323 = sphi 0, %s323
    %s325 = sphi 0, %s323
    %s326 = sphi 0, %s325
    %s340 = sphi 0, %s326
    %s344 = sphi 0, %s344
    %s346 = sphi 0, %s344
    %s347 = sphi 0, %s346
    %s361 = sphi 0, %s347
    %s365 = sphi 0, %s365
    %s367 = sphi 0, %s365
    %s368 = sphi 0, %s367
    %s382 = sphi 0, %s368
    %s386 = sphi 0, %s386
    %s388 = sphi 0, %s386
    %s389 = sphi 0, %s388
    %s403 = sphi 0, %s389
    %s407 = sphi 0, %s407
    %s409 = sphi 0, %s407
    %s410 = sphi 0, %s409
    %s424 = sphi 0, %s410
    %s428 = sphi 0, %s428
    %s430 = sphi 0, %s428
    %s431 = sphi 0, %s430
    %s445 = sphi 0, %s431
    %s449 = sphi 0, %s449
    %s451 = sphi 0, %s449
    %s452 = sphi 0, %s451
    %s466 = sphi 0, %s452
    %s470 = sphi 0, %s470
    %s472 = sphi 0, %s470
    %s473 = sphi 0, %s472
    %s487 = sphi 0, %s473
    %s491 = sphi 0, %s491
    %s493 = sphi 0, %s491
    %s494 = sphi 0, %s493
    %s508 = sphi 0, %s494
    %s512 = sphi 0, %s512
    %s514 = sphi 0, %s512
    %s515 = sphi 0, %s514
    %s529 = sphi 0, %s515
    %s533 = sphi 0, %s533
    %s535 = sphi 0, %s533
    %s536 = sphi 0, %s535
    %s550 = sphi 0, %s536
    %s554 = sphi 0, %s554
    %s556 = sphi 0, %s554
    %s557 = sphi 0, %s556
    %s571 = sphi 0, %s557
    %s575 = sphi 0, %s575
    %s577 = sphi 0, %s575
    %s578 = sphi 0, %s577
    %s592 = sphi 0, %s578
    %s596 = sphi 0, %s596
    %s598 = sphi 0, %s596
    %s599 = sphi 0, %s598
    %s613 = sphi 0, %s599
    %s617 = sphi 0, %s617
    %s619 = sphi 0, %s617
    %s620 = sphi 0, %s619
    %s634 = sphi 0, %s620
    %s638 = sphi 0, %s638
    %s640 = sphi 0, %s638
    %s641 = sphi 0, %s640
    %s655 = sphi 0, %s641
    %s659 = sphi 0, %s659
    %s661 = sphi 0, %s659
    %s662 = sphi 0, %s661
    %s676 = sphi 0, %s662
    %s680 = sphi 0, %s680
    %s682 = sphi 0, %s680
    %s683 = sphi 0, %s682
    %s697 = sphi 0, %s683
    %s701 = sphi 0, %s701
    %s703 = sphi 0, %s701
    %s704 = sphi 0, %s703
    %s718 = sphi 0, %s704
    %s722 = sphi 0, %s722
    %s724 = sphi 0, %s722
    %s725 = sphi 0, %s724
    %s739 = sphi 0, %s725
    %s743 = sphi 0, %s743
    %s745 = sphi 0, %s743
    %s746 = sphi 0, %s745
    %s760 = sphi 0, %s746
    %s764 = sphi 0, %s764
    %s766 = sphi 0, %s764
    %s767 = sphi 0, %s766
    %s781 = sphi 0, %s767
    %s785 = sphi 0, %s785
    %s787 = sphi 0, %s785
    %s788 = sphi 0, %s787
    %s802 = sphi 0, %s788
    %s806 = sphi 0, %s806
    %s808 = sphi 0, %s806
    %s809 = sphi 0, %s808
    %s823 = sphi 0, %s809
    %s827 = sphi 0, %s827
    %s829 = sphi 0, %s827
    %s830 = sphi 0, %s829
    %s844 = sphi 0, %s830
    %s848 = sphi 0, %s848
    %s850 = sphi 0, %s848
    %s851 = sphi 0, %s850
    %s865 = sphi 0, %s851
    %s869 = sphi 0, %s869
    %s871 = sphi 0, %s869
    %s872 = sphi 0, %s871
    %s886 = sphi 0, %s872
    %s890 = sphi 0, %s890
    %s892 = sphi 0, %s890
    %s893 = sphi 0, %s892
    %s907 = sphi 0, %s893
    %s911 = sphi 0, %s911
    %s913 = sphi 0, %s911
    %s914 = sphi 0, %s913
    %s928 = sphi 0, %s914
    %s934 = sphi 0, %s936
    %s937 = sphi 0, %s934
    %s938 = sphi 0, %s937
    %s954 = sphi 0, %s938
    %s960 = sphi 0, %s962
    %s963 = sphi 0, %s960
    %s964 = sphi 0, %s963
    %s980 = sphi 0, %s964
  $region4: #{_lambda_.2} parent=0 // loop_header_branch
    %93 = sbr.rel (%p91) target = $region8
  $region5: #{_lambda_.2} parent=0 // loop_body
    %s95 = ssub.s32 %s90, 1
    %s96 = ssub.s32 %s90, 2
    %s97 = sadd.s32 %s90, 1
    %s98 = ssub.s32 %s90, %s97
    %p99 = scmp.eq.s32.totalorder %s98, 0
    %s101 = sadd.s32 %s100, 1
    %s102 = scalar_select %p99, %s100, %s101
    %p105 = pneg %p99
    %p106 = scmp.eq.s32.totalorder %s90, 1
    %p107 = por %p105, %p106
    %p108 = scmp.ne.s32.totalorder %s100, %s103
    %p109 = scmp.eq.s32.totalorder %s90, 0
    %p110 = por %p108, %p109
    %p111 = scmp.ne.s32.totalorder %s100, %s103
    %p112 = scmp.eq.s32.totalorder %s95, 1
    %p113 = por %p111, %p112
    %p114 = scmp.ne.s32.totalorder %s103, %s104
    %p115 = scmp.eq.s32.totalorder %s95, 0
    %p116 = por %p114, %p115
    %p117 = scmp.ne.s32.totalorder %s103, %s104
    %p118 = scmp.eq.s32.totalorder %s96, 1
    %p119 = por %p117, %p118
    %p121 = scmp.ne.s32.totalorder %s104, %s120
    %p122 = scmp.eq.s32.totalorder %s96, 0
    %p123 = por %p121, %p122
    %s124 = ssub.s32 %s90, %s97
    %p125 = scmp.eq.s32.totalorder %s124, 0
    %s127 = sadd.s32 %s126, 1
    %s128 = scalar_select %p125, %s126, %s127
    %p131 = pneg %p125
    %p132 = scmp.eq.s32.totalorder %s90, 1
    %p133 = por %p131, %p132
    %p134 = scmp.ne.s32.totalorder %s126, %s129
    %p135 = scmp.eq.s32.totalorder %s90, 0
    %p136 = por %p134, %p135
    %p137 = scmp.ne.s32.totalorder %s126, %s129
    %p138 = scmp.eq.s32.totalorder %s95, 1
    %p139 = por %p137, %p138
    %p140 = scmp.ne.s32.totalorder %s129, %s130
    %p141 = scmp.eq.s32.totalorder %s95, 0
    %p142 = por %p140, %p141
    %p143 = scmp.ne.s32.totalorder %s129, %s130
    %p144 = scmp.eq.s32.totalorder %s96, 1
    %p145 = por %p143, %p144
    %p147 = scmp.ne.s32.totalorder %s130, %s146
    %p148 = scmp.eq.s32.totalorder %s96, 0
    %p149 = por %p147, %p148
    %s150 = ssub.s32 %s90, %s97
    %p151 = scmp.eq.s32.totalorder %s150, 0
    %s153 = sadd.s32 %s152, 1
    %s154 = scalar_select %p151, %s152, %s153
    %p157 = pneg %p151
    %p158 = scmp.eq.s32.totalorder %s90, 1
    %p159 = por %p157, %p158
    %p160 = scmp.ne.s32.totalorder %s152, %s155
    %p161 = scmp.eq.s32.totalorder %s90, 0
    %p162 = por %p160, %p161
    %p163 = scmp.ne.s32.totalorder %s152, %s155
    %p164 = scmp.eq.s32.totalorder %s95, 1
    %p165 = por %p163, %p164
    %p166 = scmp.ne.s32.totalorder %s155, %s156
    %p167 = scmp.eq.s32.totalorder %s95, 0
    %p168 = por %p166, %p167
    %p169 = scmp.ne.s32.totalorder %s155, %s156
    %p170 = scmp.eq.s32.totalorder %s96, 1
    %p171 = por %p169, %p170
    %p173 = scmp.ne.s32.totalorder %s156, %s172
    %p174 = scmp.eq.s32.totalorder %s96, 0
    %p175 = por %p173, %p174
    %s177 = sadd.s32 %s176, 1
    %p180 = scmp.eq.s32.totalorder %s90, 1
    %p181 = scmp.ne.s32.totalorder %s176, %s178
    %p182 = scmp.eq.s32.totalorder %s90, 0
    %p183 = por %p181, %p182
    %p184 = scmp.ne.s32.totalorder %s176, %s178
    %p185 = scmp.eq.s32.totalorder %s95, 1
    %p186 = por %p184, %p185
    %p187 = scmp.ne.s32.totalorder %s178, %s179
    %p188 = scmp.eq.s32.totalorder %s95, 0
    %p189 = por %p187, %p188
    %p190 = scmp.ne.s32.totalorder %s178, %s179
    %p191 = scmp.eq.s32.totalorder %s96, 1
    %p192 = por %p190, %p191
    %p194 = scmp.ne.s32.totalorder %s179, %s193
    %p195 = scmp.eq.s32.totalorder %s96, 0
    %p196 = por %p194, %p195
    %s198 = sadd.s32 %s197, 1
    %p201 = scmp.eq.s32.totalorder %s90, 1
    %p202 = scmp.ne.s32.totalorder %s197, %s199
    %p203 = scmp.eq.s32.totalorder %s90, 0
    %p204 = por %p202, %p203
    %p205 = scmp.ne.s32.totalorder %s197, %s199
    %p206 = scmp.eq.s32.totalorder %s95, 1
    %p207 = por %p205, %p206
    %p208 = scmp.ne.s32.totalorder %s199, %s200
    %p209 = scmp.eq.s32.totalorder %s95, 0
    %p210 = por %p208, %p209
    %p211 = scmp.ne.s32.totalorder %s199, %s200
    %p212 = scmp.eq.s32.totalorder %s96, 1
    %p213 = por %p211, %p212
    %p215 = scmp.ne.s32.totalorder %s200, %s214
    %p216 = scmp.eq.s32.totalorder %s96, 0
    %p217 = por %p215, %p216
    %s219 = sadd.s32 %s218, 1
    %p222 = scmp.eq.s32.totalorder %s90, 1
    %p223 = scmp.ne.s32.totalorder %s218, %s220
    %p224 = scmp.eq.s32.totalorder %s90, 0
    %p225 = por %p223, %p224
    %p226 = scmp.ne.s32.totalorder %s218, %s220
    %p227 = scmp.eq.s32.totalorder %s95, 1
    %p228 = por %p226, %p227
    %p229 = scmp.ne.s32.totalorder %s220, %s221
    %p230 = scmp.eq.s32.totalorder %s95, 0
    %p231 = por %p229, %p230
    %p232 = scmp.ne.s32.totalorder %s220, %s221
    %p233 = scmp.eq.s32.totalorder %s96, 1
    %p234 = por %p232, %p233
    %p236 = scmp.ne.s32.totalorder %s221, %s235
    %p237 = scmp.eq.s32.totalorder %s96, 0
    %p238 = por %p236, %p237
    %s240 = sadd.s32 %s239, 1
    %p243 = scmp.eq.s32.totalorder %s90, 1
    %p244 = scmp.ne.s32.totalorder %s239, %s241
    %p245 = scmp.eq.s32.totalorder %s90, 0
    %p246 = por %p244, %p245
    %p247 = scmp.ne.s32.totalorder %s239, %s241
    %p248 = scmp.eq.s32.totalorder %s95, 1
    %p249 = por %p247, %p248
    %p250 = scmp.ne.s32.totalorder %s241, %s242
    %p251 = scmp.eq.s32.totalorder %s95, 0
    %p252 = por %p250, %p251
    %p253 = scmp.ne.s32.totalorder %s241, %s242
    %p254 = scmp.eq.s32.totalorder %s96, 1
    %p255 = por %p253, %p254
    %p257 = scmp.ne.s32.totalorder %s242, %s256
    %p258 = scmp.eq.s32.totalorder %s96, 0
    %p259 = por %p257, %p258
    %s261 = sadd.s32 %s260, 1
    %p264 = scmp.eq.s32.totalorder %s90, 1
    %p265 = scmp.ne.s32.totalorder %s260, %s262
    %p266 = scmp.eq.s32.totalorder %s90, 0
    %p267 = por %p265, %p266
    %p268 = scmp.ne.s32.totalorder %s260, %s262
    %p269 = scmp.eq.s32.totalorder %s95, 1
    %p270 = por %p268, %p269
    %p271 = scmp.ne.s32.totalorder %s262, %s263
    %p272 = scmp.eq.s32.totalorder %s95, 0
    %p273 = por %p271, %p272
    %p274 = scmp.ne.s32.totalorder %s262, %s263
    %p275 = scmp.eq.s32.totalorder %s96, 1
    %p276 = por %p274, %p275
    %p278 = scmp.ne.s32.totalorder %s263, %s277
    %p279 = scmp.eq.s32.totalorder %s96, 0
    %p280 = por %p278, %p279
    %s282 = sadd.s32 %s281, 1
    %p285 = scmp.eq.s32.totalorder %s90, 1
    %p286 = scmp.ne.s32.totalorder %s281, %s283
    %p287 = scmp.eq.s32.totalorder %s90, 0
    %p288 = por %p286, %p287
    %p289 = scmp.ne.s32.totalorder %s281, %s283
    %p290 = scmp.eq.s32.totalorder %s95, 1
    %p291 = por %p289, %p290
    %p292 = scmp.ne.s32.totalorder %s283, %s284
    %p293 = scmp.eq.s32.totalorder %s95, 0
    %p294 = por %p292, %p293
    %p295 = scmp.ne.s32.totalorder %s283, %s284
    %p296 = scmp.eq.s32.totalorder %s96, 1
    %p297 = por %p295, %p296
    %p299 = scmp.ne.s32.totalorder %s284, %s298
    %p300 = scmp.eq.s32.totalorder %s96, 0
    %p301 = por %p299, %p300
    %s303 = sadd.s32 %s302, 1
    %p306 = scmp.eq.s32.totalorder %s90, 1
    %p307 = scmp.ne.s32.totalorder %s302, %s304
    %p308 = scmp.eq.s32.totalorder %s90, 0
    %p309 = por %p307, %p308
    %p310 = scmp.ne.s32.totalorder %s302, %s304
    %p311 = scmp.eq.s32.totalorder %s95, 1
    %p312 = por %p310, %p311
    %p313 = scmp.ne.s32.totalorder %s304, %s305
    %p314 = scmp.eq.s32.totalorder %s95, 0
    %p315 = por %p313, %p314
    %p316 = scmp.ne.s32.totalorder %s304, %s305
    %p317 = scmp.eq.s32.totalorder %s96, 1
    %p318 = por %p316, %p317
    %p320 = scmp.ne.s32.totalorder %s305, %s319
    %p321 = scmp.eq.s32.totalorder %s96, 0
    %p322 = por %p320, %p321
    %s324 = sadd.s32 %s323, 1
    %p327 = scmp.eq.s32.totalorder %s90, 1
    %p328 = scmp.ne.s32.totalorder %s323, %s325
    %p329 = scmp.eq.s32.totalorder %s90, 0
    %p330 = por %p328, %p329
    %p331 = scmp.ne.s32.totalorder %s323, %s325
    %p332 = scmp.eq.s32.totalorder %s95, 1
    %p333 = por %p331, %p332
    %p334 = scmp.ne.s32.totalorder %s325, %s326
    %p335 = scmp.eq.s32.totalorder %s95, 0
    %p336 = por %p334, %p335
    %p337 = scmp.ne.s32.totalorder %s325, %s326
    %p338 = scmp.eq.s32.totalorder %s96, 1
    %p339 = por %p337, %p338
    %p341 = scmp.ne.s32.totalorder %s326, %s340
    %p342 = scmp.eq.s32.totalorder %s96, 0
    %p343 = por %p341, %p342
    %s345 = sadd.s32 %s344, 1
    %p348 = scmp.eq.s32.totalorder %s90, 1
    %p349 = scmp.ne.s32.totalorder %s344, %s346
    %p350 = scmp.eq.s32.totalorder %s90, 0
    %p351 = por %p349, %p350
    %p352 = scmp.ne.s32.totalorder %s344, %s346
    %p353 = scmp.eq.s32.totalorder %s95, 1
    %p354 = por %p352, %p353
    %p355 = scmp.ne.s32.totalorder %s346, %s347
    %p356 = scmp.eq.s32.totalorder %s95, 0
    %p357 = por %p355, %p356
    %p358 = scmp.ne.s32.totalorder %s346, %s347
    %p359 = scmp.eq.s32.totalorder %s96, 1
    %p360 = por %p358, %p359
    %p362 = scmp.ne.s32.totalorder %s347, %s361
    %p363 = scmp.eq.s32.totalorder %s96, 0
    %p364 = por %p362, %p363
    %s366 = sadd.s32 %s365, 1
    %p369 = scmp.eq.s32.totalorder %s90, 1
    %p370 = scmp.ne.s32.totalorder %s365, %s367
    %p371 = scmp.eq.s32.totalorder %s90, 0
    %p372 = por %p370, %p371
    %p373 = scmp.ne.s32.totalorder %s365, %s367
    %p374 = scmp.eq.s32.totalorder %s95, 1
    %p375 = por %p373, %p374
    %p376 = scmp.ne.s32.totalorder %s367, %s368
    %p377 = scmp.eq.s32.totalorder %s95, 0
    %p378 = por %p376, %p377
    %p379 = scmp.ne.s32.totalorder %s367, %s368
    %p380 = scmp.eq.s32.totalorder %s96, 1
    %p381 = por %p379, %p380
    %p383 = scmp.ne.s32.totalorder %s368, %s382
    %p384 = scmp.eq.s32.totalorder %s96, 0
    %p385 = por %p383, %p384
    %s387 = sadd.s32 %s386, 1
    %p390 = scmp.eq.s32.totalorder %s90, 1
    %p391 = scmp.ne.s32.totalorder %s386, %s388
    %p392 = scmp.eq.s32.totalorder %s90, 0
    %p393 = por %p391, %p392
    %p394 = scmp.ne.s32.totalorder %s386, %s388
    %p395 = scmp.eq.s32.totalorder %s95, 1
    %p396 = por %p394, %p395
    %p397 = scmp.ne.s32.totalorder %s388, %s389
    %p398 = scmp.eq.s32.totalorder %s95, 0
    %p399 = por %p397, %p398
    %p400 = scmp.ne.s32.totalorder %s388, %s389
    %p401 = scmp.eq.s32.totalorder %s96, 1
    %p402 = por %p400, %p401
    %p404 = scmp.ne.s32.totalorder %s389, %s403
    %p405 = scmp.eq.s32.totalorder %s96, 0
    %p406 = por %p404, %p405
    %s408 = sadd.s32 %s407, 1
    %p411 = scmp.eq.s32.totalorder %s90, 1
    %p412 = scmp.ne.s32.totalorder %s407, %s409
    %p413 = scmp.eq.s32.totalorder %s90, 0
    %p414 = por %p412, %p413
    %p415 = scmp.ne.s32.totalorder %s407, %s409
    %p416 = scmp.eq.s32.totalorder %s95, 1
    %p417 = por %p415, %p416
    %p418 = scmp.ne.s32.totalorder %s409, %s410
    %p419 = scmp.eq.s32.totalorder %s95, 0
    %p420 = por %p418, %p419
    %p421 = scmp.ne.s32.totalorder %s409, %s410
    %p422 = scmp.eq.s32.totalorder %s96, 1
    %p423 = por %p421, %p422
    %p425 = scmp.ne.s32.totalorder %s410, %s424
    %p426 = scmp.eq.s32.totalorder %s96, 0
    %p427 = por %p425, %p426
    %s429 = sadd.s32 %s428, 1
    %p432 = scmp.eq.s32.totalorder %s90, 1
    %p433 = scmp.ne.s32.totalorder %s428, %s430
    %p434 = scmp.eq.s32.totalorder %s90, 0
    %p435 = por %p433, %p434
    %p436 = scmp.ne.s32.totalorder %s428, %s430
    %p437 = scmp.eq.s32.totalorder %s95, 1
    %p438 = por %p436, %p437
    %p439 = scmp.ne.s32.totalorder %s430, %s431
    %p440 = scmp.eq.s32.totalorder %s95, 0
    %p441 = por %p439, %p440
    %p442 = scmp.ne.s32.totalorder %s430, %s431
    %p443 = scmp.eq.s32.totalorder %s96, 1
    %p444 = por %p442, %p443
    %p446 = scmp.ne.s32.totalorder %s431, %s445
    %p447 = scmp.eq.s32.totalorder %s96, 0
    %p448 = por %p446, %p447
    %s450 = sadd.s32 %s449, 1
    %p453 = scmp.eq.s32.totalorder %s90, 1
    %p454 = scmp.ne.s32.totalorder %s449, %s451
    %p455 = scmp.eq.s32.totalorder %s90, 0
    %p456 = por %p454, %p455
    %p457 = scmp.ne.s32.totalorder %s449, %s451
    %p458 = scmp.eq.s32.totalorder %s95, 1
    %p459 = por %p457, %p458
    %p460 = scmp.ne.s32.totalorder %s451, %s452
    %p461 = scmp.eq.s32.totalorder %s95, 0
    %p462 = por %p460, %p461
    %p463 = scmp.ne.s32.totalorder %s451, %s452
    %p464 = scmp.eq.s32.totalorder %s96, 1
    %p465 = por %p463, %p464
    %p467 = scmp.ne.s32.totalorder %s452, %s466
    %p468 = scmp.eq.s32.totalorder %s96, 0
    %p469 = por %p467, %p468
    %s471 = sadd.s32 %s470, 1
    %p474 = scmp.eq.s32.totalorder %s90, 1
    %p475 = scmp.ne.s32.totalorder %s470, %s472
    %p476 = scmp.eq.s32.totalorder %s90, 0
    %p477 = por %p475, %p476
    %p478 = scmp.ne.s32.totalorder %s470, %s472
    %p479 = scmp.eq.s32.totalorder %s95, 1
    %p480 = por %p478, %p479
    %p481 = scmp.ne.s32.totalorder %s472, %s473
    %p482 = scmp.eq.s32.totalorder %s95, 0
    %p483 = por %p481, %p482
    %p484 = scmp.ne.s32.totalorder %s472, %s473
    %p485 = scmp.eq.s32.totalorder %s96, 1
    %p486 = por %p484, %p485
    %p488 = scmp.ne.s32.totalorder %s473, %s487
    %p489 = scmp.eq.s32.totalorder %s96, 0
    %p490 = por %p488, %p489
    %s492 = sadd.s32 %s491, 1
    %p495 = scmp.eq.s32.totalorder %s90, 1
    %p496 = scmp.ne.s32.totalorder %s491, %s493
    %p497 = scmp.eq.s32.totalorder %s90, 0
    %p498 = por %p496, %p497
    %p499 = scmp.ne.s32.totalorder %s491, %s493
    %p500 = scmp.eq.s32.totalorder %s95, 1
    %p501 = por %p499, %p500
    %p502 = scmp.ne.s32.totalorder %s493, %s494
    %p503 = scmp.eq.s32.totalorder %s95, 0
    %p504 = por %p502, %p503
    %p505 = scmp.ne.s32.totalorder %s493, %s494
    %p506 = scmp.eq.s32.totalorder %s96, 1
    %p507 = por %p505, %p506
    %p509 = scmp.ne.s32.totalorder %s494, %s508
    %p510 = scmp.eq.s32.totalorder %s96, 0
    %p511 = por %p509, %p510
    %s513 = sadd.s32 %s512, 1
    %p516 = scmp.eq.s32.totalorder %s90, 1
    %p517 = scmp.ne.s32.totalorder %s512, %s514
    %p518 = scmp.eq.s32.totalorder %s90, 0
    %p519 = por %p517, %p518
    %p520 = scmp.ne.s32.totalorder %s512, %s514
    %p521 = scmp.eq.s32.totalorder %s95, 1
    %p522 = por %p520, %p521
    %p523 = scmp.ne.s32.totalorder %s514, %s515
    %p524 = scmp.eq.s32.totalorder %s95, 0
    %p525 = por %p523, %p524
    %p526 = scmp.ne.s32.totalorder %s514, %s515
    %p527 = scmp.eq.s32.totalorder %s96, 1
    %p528 = por %p526, %p527
    %p530 = scmp.ne.s32.totalorder %s515, %s529
    %p531 = scmp.eq.s32.totalorder %s96, 0
    %p532 = por %p530, %p531
    %s534 = sadd.s32 %s533, 1
    %p537 = scmp.eq.s32.totalorder %s90, 1
    %p538 = scmp.ne.s32.totalorder %s533, %s535
    %p539 = scmp.eq.s32.totalorder %s90, 0
    %p540 = por %p538, %p539
    %p541 = scmp.ne.s32.totalorder %s533, %s535
    %p542 = scmp.eq.s32.totalorder %s95, 1
    %p543 = por %p541, %p542
    %p544 = scmp.ne.s32.totalorder %s535, %s536
    %p545 = scmp.eq.s32.totalorder %s95, 0
    %p546 = por %p544, %p545
    %p547 = scmp.ne.s32.totalorder %s535, %s536
    %p548 = scmp.eq.s32.totalorder %s96, 1
    %p549 = por %p547, %p548
    %p551 = scmp.ne.s32.totalorder %s536, %s550
    %p552 = scmp.eq.s32.totalorder %s96, 0
    %p553 = por %p551, %p552
    %s555 = sadd.s32 %s554, 1
    %p558 = scmp.eq.s32.totalorder %s90, 1
    %p559 = scmp.ne.s32.totalorder %s554, %s556
    %p560 = scmp.eq.s32.totalorder %s90, 0
    %p561 = por %p559, %p560
    %p562 = scmp.ne.s32.totalorder %s554, %s556
    %p563 = scmp.eq.s32.totalorder %s95, 1
    %p564 = por %p562, %p563
    %p565 = scmp.ne.s32.totalorder %s556, %s557
    %p566 = scmp.eq.s32.totalorder %s95, 0
    %p567 = por %p565, %p566
    %p568 = scmp.ne.s32.totalorder %s556, %s557
    %p569 = scmp.eq.s32.totalorder %s96, 1
    %p570 = por %p568, %p569
    %p572 = scmp.ne.s32.totalorder %s557, %s571
    %p573 = scmp.eq.s32.totalorder %s96, 0
    %p574 = por %p572, %p573
    %s576 = sadd.s32 %s575, 1
    %p579 = scmp.eq.s32.totalorder %s90, 1
    %p580 = scmp.ne.s32.totalorder %s575, %s577
    %p581 = scmp.eq.s32.totalorder %s90, 0
    %p582 = por %p580, %p581
    %p583 = scmp.ne.s32.totalorder %s575, %s577
    %p584 = scmp.eq.s32.totalorder %s95, 1
    %p585 = por %p583, %p584
    %p586 = scmp.ne.s32.totalorder %s577, %s578
    %p587 = scmp.eq.s32.totalorder %s95, 0
    %p588 = por %p586, %p587
    %p589 = scmp.ne.s32.totalorder %s577, %s578
    %p590 = scmp.eq.s32.totalorder %s96, 1
    %p591 = por %p589, %p590
    %p593 = scmp.ne.s32.totalorder %s578, %s592
    %p594 = scmp.eq.s32.totalorder %s96, 0
    %p595 = por %p593, %p594
    %s597 = sadd.s32 %s596, 1
    %p600 = scmp.eq.s32.totalorder %s90, 1
    %p601 = scmp.ne.s32.totalorder %s596, %s598
    %p602 = scmp.eq.s32.totalorder %s90, 0
    %p603 = por %p601, %p602
    %p604 = scmp.ne.s32.totalorder %s596, %s598
    %p605 = scmp.eq.s32.totalorder %s95, 1
    %p606 = por %p604, %p605
    %p607 = scmp.ne.s32.totalorder %s598, %s599
    %p608 = scmp.eq.s32.totalorder %s95, 0
    %p609 = por %p607, %p608
    %p610 = scmp.ne.s32.totalorder %s598, %s599
    %p611 = scmp.eq.s32.totalorder %s96, 1
    %p612 = por %p610, %p611
    %p614 = scmp.ne.s32.totalorder %s599, %s613
    %p615 = scmp.eq.s32.totalorder %s96, 0
    %p616 = por %p614, %p615
    %s618 = sadd.s32 %s617, 1
    %p621 = scmp.eq.s32.totalorder %s90, 1
    %p622 = scmp.ne.s32.totalorder %s617, %s619
    %p623 = scmp.eq.s32.totalorder %s90, 0
    %p624 = por %p622, %p623
    %p625 = scmp.ne.s32.totalorder %s617, %s619
    %p626 = scmp.eq.s32.totalorder %s95, 1
    %p627 = por %p625, %p626
    %p628 = scmp.ne.s32.totalorder %s619, %s620
    %p629 = scmp.eq.s32.totalorder %s95, 0
    %p630 = por %p628, %p629
    %p631 = scmp.ne.s32.totalorder %s619, %s620
    %p632 = scmp.eq.s32.totalorder %s96, 1
    %p633 = por %p631, %p632
    %p635 = scmp.ne.s32.totalorder %s620, %s634
    %p636 = scmp.eq.s32.totalorder %s96, 0
    %p637 = por %p635, %p636
    %s639 = sadd.s32 %s638, 1
    %p642 = scmp.eq.s32.totalorder %s90, 1
    %p643 = scmp.ne.s32.totalorder %s638, %s640
    %p644 = scmp.eq.s32.totalorder %s90, 0
    %p645 = por %p643, %p644
    %p646 = scmp.ne.s32.totalorder %s638, %s640
    %p647 = scmp.eq.s32.totalorder %s95, 1
    %p648 = por %p646, %p647
    %p649 = scmp.ne.s32.totalorder %s640, %s641
    %p650 = scmp.eq.s32.totalorder %s95, 0
    %p651 = por %p649, %p650
    %p652 = scmp.ne.s32.totalorder %s640, %s641
    %p653 = scmp.eq.s32.totalorder %s96, 1
    %p654 = por %p652, %p653
    %p656 = scmp.ne.s32.totalorder %s641, %s655
    %p657 = scmp.eq.s32.totalorder %s96, 0
    %p658 = por %p656, %p657
    %s660 = sadd.s32 %s659, 1
    %p663 = scmp.eq.s32.totalorder %s90, 1
    %p664 = scmp.ne.s32.totalorder %s659, %s661
    %p665 = scmp.eq.s32.totalorder %s90, 0
    %p666 = por %p664, %p665
    %p667 = scmp.ne.s32.totalorder %s659, %s661
    %p668 = scmp.eq.s32.totalorder %s95, 1
    %p669 = por %p667, %p668
    %p670 = scmp.ne.s32.totalorder %s661, %s662
    %p671 = scmp.eq.s32.totalorder %s95, 0
    %p672 = por %p670, %p671
    %p673 = scmp.ne.s32.totalorder %s661, %s662
    %p674 = scmp.eq.s32.totalorder %s96, 1
    %p675 = por %p673, %p674
    %p677 = scmp.ne.s32.totalorder %s662, %s676
    %p678 = scmp.eq.s32.totalorder %s96, 0
    %p679 = por %p677, %p678
    %s681 = sadd.s32 %s680, 1
    %p684 = scmp.eq.s32.totalorder %s90, 1
    %p685 = scmp.ne.s32.totalorder %s680, %s682
    %p686 = scmp.eq.s32.totalorder %s90, 0
    %p687 = por %p685, %p686
    %p688 = scmp.ne.s32.totalorder %s680, %s682
    %p689 = scmp.eq.s32.totalorder %s95, 1
    %p690 = por %p688, %p689
    %p691 = scmp.ne.s32.totalorder %s682, %s683
    %p692 = scmp.eq.s32.totalorder %s95, 0
    %p693 = por %p691, %p692
    %p694 = scmp.ne.s32.totalorder %s682, %s683
    %p695 = scmp.eq.s32.totalorder %s96, 1
    %p696 = por %p694, %p695
    %p698 = scmp.ne.s32.totalorder %s683, %s697
    %p699 = scmp.eq.s32.totalorder %s96, 0
    %p700 = por %p698, %p699
    %s702 = sadd.s32 %s701, 1
    %p705 = scmp.eq.s32.totalorder %s90, 1
    %p706 = scmp.ne.s32.totalorder %s701, %s703
    %p707 = scmp.eq.s32.totalorder %s90, 0
    %p708 = por %p706, %p707
    %p709 = scmp.ne.s32.totalorder %s701, %s703
    %p710 = scmp.eq.s32.totalorder %s95, 1
    %p711 = por %p709, %p710
    %p712 = scmp.ne.s32.totalorder %s703, %s704
    %p713 = scmp.eq.s32.totalorder %s95, 0
    %p714 = por %p712, %p713
    %p715 = scmp.ne.s32.totalorder %s703, %s704
    %p716 = scmp.eq.s32.totalorder %s96, 1
    %p717 = por %p715, %p716
    %p719 = scmp.ne.s32.totalorder %s704, %s718
    %p720 = scmp.eq.s32.totalorder %s96, 0
    %p721 = por %p719, %p720
    %s723 = sadd.s32 %s722, 1
    %p726 = scmp.eq.s32.totalorder %s90, 1
    %p727 = scmp.ne.s32.totalorder %s722, %s724
    %p728 = scmp.eq.s32.totalorder %s90, 0
    %p729 = por %p727, %p728
    %p730 = scmp.ne.s32.totalorder %s722, %s724
    %p731 = scmp.eq.s32.totalorder %s95, 1
    %p732 = por %p730, %p731
    %p733 = scmp.ne.s32.totalorder %s724, %s725
    %p734 = scmp.eq.s32.totalorder %s95, 0
    %p735 = por %p733, %p734
    %p736 = scmp.ne.s32.totalorder %s724, %s725
    %p737 = scmp.eq.s32.totalorder %s96, 1
    %p738 = por %p736, %p737
    %p740 = scmp.ne.s32.totalorder %s725, %s739
    %p741 = scmp.eq.s32.totalorder %s96, 0
    %p742 = por %p740, %p741
    %s744 = sadd.s32 %s743, 1
    %p747 = scmp.eq.s32.totalorder %s90, 1
    %p748 = scmp.ne.s32.totalorder %s743, %s745
    %p749 = scmp.eq.s32.totalorder %s90, 0
    %p750 = por %p748, %p749
    %p751 = scmp.ne.s32.totalorder %s743, %s745
    %p752 = scmp.eq.s32.totalorder %s95, 1
    %p753 = por %p751, %p752
    %p754 = scmp.ne.s32.totalorder %s745, %s746
    %p755 = scmp.eq.s32.totalorder %s95, 0
    %p756 = por %p754, %p755
    %p757 = scmp.ne.s32.totalorder %s745, %s746
    %p758 = scmp.eq.s32.totalorder %s96, 1
    %p759 = por %p757, %p758
    %p761 = scmp.ne.s32.totalorder %s746, %s760
    %p762 = scmp.eq.s32.totalorder %s96, 0
    %p763 = por %p761, %p762
    %s765 = sadd.s32 %s764, 1
    %p768 = scmp.eq.s32.totalorder %s90, 1
    %p769 = scmp.ne.s32.totalorder %s764, %s766
    %p770 = scmp.eq.s32.totalorder %s90, 0
    %p771 = por %p769, %p770
    %p772 = scmp.ne.s32.totalorder %s764, %s766
    %p773 = scmp.eq.s32.totalorder %s95, 1
    %p774 = por %p772, %p773
    %p775 = scmp.ne.s32.totalorder %s766, %s767
    %p776 = scmp.eq.s32.totalorder %s95, 0
    %p777 = por %p775, %p776
    %p778 = scmp.ne.s32.totalorder %s766, %s767
    %p779 = scmp.eq.s32.totalorder %s96, 1
    %p780 = por %p778, %p779
    %p782 = scmp.ne.s32.totalorder %s767, %s781
    %p783 = scmp.eq.s32.totalorder %s96, 0
    %p784 = por %p782, %p783
    %s786 = sadd.s32 %s785, 1
    %p789 = scmp.eq.s32.totalorder %s90, 1
    %p790 = scmp.ne.s32.totalorder %s785, %s787
    %p791 = scmp.eq.s32.totalorder %s90, 0
    %p792 = por %p790, %p791
    %p793 = scmp.ne.s32.totalorder %s785, %s787
    %p794 = scmp.eq.s32.totalorder %s95, 1
    %p795 = por %p793, %p794
    %p796 = scmp.ne.s32.totalorder %s787, %s788
    %p797 = scmp.eq.s32.totalorder %s95, 0
    %p798 = por %p796, %p797
    %p799 = scmp.ne.s32.totalorder %s787, %s788
    %p800 = scmp.eq.s32.totalorder %s96, 1
    %p801 = por %p799, %p800
    %p803 = scmp.ne.s32.totalorder %s788, %s802
    %p804 = scmp.eq.s32.totalorder %s96, 0
    %p805 = por %p803, %p804
    %s807 = sadd.s32 %s806, 1
    %p810 = scmp.eq.s32.totalorder %s90, 1
    %p811 = scmp.ne.s32.totalorder %s806, %s808
    %p812 = scmp.eq.s32.totalorder %s90, 0
    %p813 = por %p811, %p812
    %p814 = scmp.ne.s32.totalorder %s806, %s808
    %p815 = scmp.eq.s32.totalorder %s95, 1
    %p816 = por %p814, %p815
    %p817 = scmp.ne.s32.totalorder %s808, %s809
    %p818 = scmp.eq.s32.totalorder %s95, 0
    %p819 = por %p817, %p818
    %p820 = scmp.ne.s32.totalorder %s808, %s809
    %p821 = scmp.eq.s32.totalorder %s96, 1
    %p822 = por %p820, %p821
    %p824 = scmp.ne.s32.totalorder %s809, %s823
    %p825 = scmp.eq.s32.totalorder %s96, 0
    %p826 = por %p824, %p825
    %s828 = sadd.s32 %s827, 1
    %p831 = scmp.eq.s32.totalorder %s90, 1
    %p832 = scmp.ne.s32.totalorder %s827, %s829
    %p833 = scmp.eq.s32.totalorder %s90, 0
    %p834 = por %p832, %p833
    %p835 = scmp.ne.s32.totalorder %s827, %s829
    %p836 = scmp.eq.s32.totalorder %s95, 1
    %p837 = por %p835, %p836
    %p838 = scmp.ne.s32.totalorder %s829, %s830
    %p839 = scmp.eq.s32.totalorder %s95, 0
    %p840 = por %p838, %p839
    %p841 = scmp.ne.s32.totalorder %s829, %s830
    %p842 = scmp.eq.s32.totalorder %s96, 1
    %p843 = por %p841, %p842
    %p845 = scmp.ne.s32.totalorder %s830, %s844
    %p846 = scmp.eq.s32.totalorder %s96, 0
    %p847 = por %p845, %p846
    %s849 = sadd.s32 %s848, 1
    %p852 = scmp.eq.s32.totalorder %s90, 1
    %p853 = scmp.ne.s32.totalorder %s848, %s850
    %p854 = scmp.eq.s32.totalorder %s90, 0
    %p855 = por %p853, %p854
    %p856 = scmp.ne.s32.totalorder %s848, %s850
    %p857 = scmp.eq.s32.totalorder %s95, 1
    %p858 = por %p856, %p857
    %p859 = scmp.ne.s32.totalorder %s850, %s851
    %p860 = scmp.eq.s32.totalorder %s95, 0
    %p861 = por %p859, %p860
    %p862 = scmp.ne.s32.totalorder %s850, %s851
    %p863 = scmp.eq.s32.totalorder %s96, 1
    %p864 = por %p862, %p863
    %p866 = scmp.ne.s32.totalorder %s851, %s865
    %p867 = scmp.eq.s32.totalorder %s96, 0
    %p868 = por %p866, %p867
    %s870 = sadd.s32 %s869, 1
    %p873 = scmp.eq.s32.totalorder %s90, 1
    %p874 = scmp.ne.s32.totalorder %s869, %s871
    %p875 = scmp.eq.s32.totalorder %s90, 0
    %p876 = por %p874, %p875
    %p877 = scmp.ne.s32.totalorder %s869, %s871
    %p878 = scmp.eq.s32.totalorder %s95, 1
    %p879 = por %p877, %p878
    %p880 = scmp.ne.s32.totalorder %s871, %s872
    %p881 = scmp.eq.s32.totalorder %s95, 0
    %p882 = por %p880, %p881
    %p883 = scmp.ne.s32.totalorder %s871, %s872
    %p884 = scmp.eq.s32.totalorder %s96, 1
    %p885 = por %p883, %p884
    %p887 = scmp.ne.s32.totalorder %s872, %s886
    %p888 = scmp.eq.s32.totalorder %s96, 0
    %p889 = por %p887, %p888
    %s891 = sadd.s32 %s890, 1
    %p894 = scmp.eq.s32.totalorder %s90, 1
    %p895 = scmp.ne.s32.totalorder %s890, %s892
    %p896 = scmp.eq.s32.totalorder %s90, 0
    %p897 = por %p895, %p896
    %p898 = scmp.ne.s32.totalorder %s890, %s892
    %p899 = scmp.eq.s32.totalorder %s95, 1
    %p900 = por %p898, %p899
    %p901 = scmp.ne.s32.totalorder %s892, %s893
    %p902 = scmp.eq.s32.totalorder %s95, 0
    %p903 = por %p901, %p902
    %p904 = scmp.ne.s32.totalorder %s892, %s893
    %p905 = scmp.eq.s32.totalorder %s96, 1
    %p906 = por %p904, %p905
    %p908 = scmp.ne.s32.totalorder %s893, %s907
    %p909 = scmp.eq.s32.totalorder %s96, 0
    %p910 = por %p908, %p909
    %s912 = sadd.s32 %s911, 1
    %p915 = scmp.eq.s32.totalorder %s90, 1
    %p916 = scmp.ne.s32.totalorder %s911, %s913
    %p917 = scmp.eq.s32.totalorder %s90, 0
    %p918 = por %p916, %p917
    %p919 = scmp.ne.s32.totalorder %s911, %s913
    %p920 = scmp.eq.s32.totalorder %s95, 1
    %p921 = por %p919, %p920
    %p922 = scmp.ne.s32.totalorder %s913, %s914
    %p923 = scmp.eq.s32.totalorder %s95, 0
    %p924 = por %p922, %p923
    %p925 = scmp.ne.s32.totalorder %s913, %s914
    %p926 = scmp.eq.s32.totalorder %s96, 1
    %p927 = por %p925, %p926
    %p929 = scmp.ne.s32.totalorder %s914, %s928
    %p930 = scmp.eq.s32.totalorder %s96, 0
    %p931 = por %p929, %p930
    %s932 = ssub.s32 %s90, %s97
    %p933 = scmp.eq.s32.totalorder %s932, 0
    %s935 = sadd.s32 %s934, 1
    %s936 = scalar_select %p933, %s934, %s935
    %p939 = pneg %p933
    %p940 = scmp.eq.s32.totalorder %s90, 1
    %p941 = por %p939, %p940
    %p942 = scmp.ne.s32.totalorder %s934, %s937
    %p943 = scmp.eq.s32.totalorder %s90, 0
    %p944 = por %p942, %p943
    %p945 = scmp.ne.s32.totalorder %s934, %s937
    %p946 = scmp.eq.s32.totalorder %s95, 1
    %p947 = por %p945, %p946
    %p948 = scmp.ne.s32.totalorder %s937, %s938
    %p949 = scmp.eq.s32.totalorder %s95, 0
    %p950 = por %p948, %p949
    %p951 = scmp.ne.s32.totalorder %s937, %s938
    %p952 = scmp.eq.s32.totalorder %s96, 1
    %p953 = por %p951, %p952
    %p955 = scmp.ne.s32.totalorder %s938, %s954
    %p956 = scmp.eq.s32.totalorder %s96, 0
    %p957 = por %p955, %p956
    %s958 = ssub.s32 %s90, %s97
    %p959 = scmp.eq.s32.totalorder %s958, 0
    %s961 = sadd.s32 %s960, 1
    %s962 = scalar_select %p959, %s960, %s961
    %p965 = pneg %p959
    %p966 = scmp.eq.s32.totalorder %s90, 1
    %p967 = por %p965, %p966
    %p968 = scmp.ne.s32.totalorder %s960, %s963
    %p969 = scmp.eq.s32.totalorder %s90, 0
    %p970 = por %p968, %p969
    %p971 = scmp.ne.s32.totalorder %s960, %s963
    %p972 = scmp.eq.s32.totalorder %s95, 1
    %p973 = por %p971, %p972
    %p974 = scmp.ne.s32.totalorder %s963, %s964
    %p975 = scmp.eq.s32.totalorder %s95, 0
    %p976 = por %p974, %p975
    %p977 = scmp.ne.s32.totalorder %s963, %s964
    %p978 = scmp.eq.s32.totalorder %s96, 1
    %p979 = por %p977, %p978
    %p981 = scmp.ne.s32.totalorder %s964, %s980
    %p982 = scmp.eq.s32.totalorder %s96, 0
    %p983 = por %p981, %p982
    %p984 = scmp.le.s32.totalorder 1, %s90
    %p985 = scmp.lt.s32.totalorder %s90, 3
    %p986 = pnand %p984, %p985
    %p987 = pneg %p986
    // Predicated region
    $region9: #{_lambda_.2} parent=5 // pred_check
      _
    $region10: #{_lambda_.2} parent=5 // pred_check_branch
      %989 = sbr.rel (%p986) target = $region12
    $region11: #{_lambda_.2} parent=5 // pred_region
      %s990 = ssub.s32 %s90, 1
      // Predicated region
      $region13: #{_lambda_.2} parent=11 // pred_check
        %p991 = pneg %p189
      $region14: #{_lambda_.2} parent=11 // pred_check_branch
        %993 = sbr.rel (%p991) target = $region16
      $region15: #{_lambda_.2} parent=11 // pred_region
        _
      $region16: #{_lambda_.2} parent=11 // pred_fallthru
        _
      // Predicated region
      $region17: #{_lambda_.2} parent=11 // pred_check
        %p994 = pneg %p210
      $region18: #{_lambda_.2} parent=11 // pred_check_branch
        %996 = sbr.rel (%p994) target = $region20
      $region19: #{_lambda_.2} parent=11 // pred_region
        _
      $region20: #{_lambda_.2} parent=11 // pred_fallthru
        _
      // Predicated region
      $region21: #{_lambda_.2} parent=11 // pred_check
        %p997 = pneg %p231
      $region22: #{_lambda_.2} parent=11 // pred_check_branch
        %999 = sbr.rel (%p997) target = $region24
      $region23: #{_lambda_.2} parent=11 // pred_region
        _
      $region24: #{_lambda_.2} parent=11 // pred_fallthru
        _
      // Predicated region
      $region25: #{_lambda_.2} parent=11 // pred_check
        %p1000 = pneg %p252
      $region26: #{_lambda_.2} parent=11 // pred_check_branch
        %1002 = sbr.rel (%p1000) target = $region28
      $region27: #{_lambda_.2} parent=11 // pred_region
        _
      $region28: #{_lambda_.2} parent=11 // pred_fallthru
        _
      // Predicated region
      $region29: #{_lambda_.2} parent=11 // pred_check
        %p1003 = pneg %p273
      $region30: #{_lambda_.2} parent=11 // pred_check_branch
        %1005 = sbr.rel (%p1003) target = $region32
      $region31: #{_lambda_.2} parent=11 // pred_region
        _
      $region32: #{_lambda_.2} parent=11 // pred_fallthru
        _
      // Predicated region
      $region33: #{_lambda_.2} parent=11 // pred_check
        %p1006 = pneg %p294
      $region34: #{_lambda_.2} parent=11 // pred_check_branch
        %1008 = sbr.rel (%p1006) target = $region36
      $region35: #{_lambda_.2} parent=11 // pred_region
        _
      $region36: #{_lambda_.2} parent=11 // pred_fallthru
        _
      // Predicated region
      $region37: #{_lambda_.2} parent=11 // pred_check
        %p1009 = pneg %p315
      $region38: #{_lambda_.2} parent=11 // pred_check_branch
        %1011 = sbr.rel (%p1009) target = $region40
      $region39: #{_lambda_.2} parent=11 // pred_region
        _
      $region40: #{_lambda_.2} parent=11 // pred_fallthru
        _
      // Predicated region
      $region41: #{_lambda_.2} parent=11 // pred_check
        %p1012 = pneg %p336
      $region42: #{_lambda_.2} parent=11 // pred_check_branch
        %1014 = sbr.rel (%p1012) target = $region44
      $region43: #{_lambda_.2} parent=11 // pred_region
        _
      $region44: #{_lambda_.2} parent=11 // pred_fallthru
        _
      // Predicated region
      $region45: #{_lambda_.2} parent=11 // pred_check
        %p1015 = pneg %p357
      $region46: #{_lambda_.2} parent=11 // pred_check_branch
        %1017 = sbr.rel (%p1015) target = $region48
      $region47: #{_lambda_.2} parent=11 // pred_region
        _
      $region48: #{_lambda_.2} parent=11 // pred_fallthru
        _
      // Predicated region
      $region49: #{_lambda_.2} parent=11 // pred_check
        %p1018 = pneg %p378
      $region50: #{_lambda_.2} parent=11 // pred_check_branch
        %1020 = sbr.rel (%p1018) target = $region52
      $region51: #{_lambda_.2} parent=11 // pred_region
        _
      $region52: #{_lambda_.2} parent=11 // pred_fallthru
        _
      // Predicated region
      $region53: #{_lambda_.2} parent=11 // pred_check
        %p1021 = pneg %p399
      $region54: #{_lambda_.2} parent=11 // pred_check_branch
        %1023 = sbr.rel (%p1021) target = $region56
      $region55: #{_lambda_.2} parent=11 // pred_region
        _
      $region56: #{_lambda_.2} parent=11 // pred_fallthru
        _
      // Predicated region
      $region57: #{_lambda_.2} parent=11 // pred_check
        %p1024 = pneg %p420
      $region58: #{_lambda_.2} parent=11 // pred_check_branch
        %1026 = sbr.rel (%p1024) target = $region60
      $region59: #{_lambda_.2} parent=11 // pred_region
        _
      $region60: #{_lambda_.2} parent=11 // pred_fallthru
        _
      // Predicated region
      $region61: #{_lambda_.2} parent=11 // pred_check
        %p1027 = pneg %p441
      $region62: #{_lambda_.2} parent=11 // pred_check_branch
        %1029 = sbr.rel (%p1027) target = $region64
      $region63: #{_lambda_.2} parent=11 // pred_region
        _
      $region64: #{_lambda_.2} parent=11 // pred_fallthru
        _
      // Predicated region
      $region65: #{_lambda_.2} parent=11 // pred_check
        %p1030 = pneg %p462
      $region66: #{_lambda_.2} parent=11 // pred_check_branch
        %1032 = sbr.rel (%p1030) target = $region68
      $region67: #{_lambda_.2} parent=11 // pred_region
        _
      $region68: #{_lambda_.2} parent=11 // pred_fallthru
        _
      // Predicated region
      $region69: #{_lambda_.2} parent=11 // pred_check
        %p1033 = pneg %p483
      $region70: #{_lambda_.2} parent=11 // pred_check_branch
        %1035 = sbr.rel (%p1033) target = $region72
      $region71: #{_lambda_.2} parent=11 // pred_region
        _
      $region72: #{_lambda_.2} parent=11 // pred_fallthru
        _
      // Predicated region
      $region73: #{_lambda_.2} parent=11 // pred_check
        %p1036 = pneg %p504
      $region74: #{_lambda_.2} parent=11 // pred_check_branch
        %1038 = sbr.rel (%p1036) target = $region76
      $region75: #{_lambda_.2} parent=11 // pred_region
        _
      $region76: #{_lambda_.2} parent=11 // pred_fallthru
        _
      // Predicated region
      $region77: #{_lambda_.2} parent=11 // pred_check
        %p1039 = pneg %p525
      $region78: #{_lambda_.2} parent=11 // pred_check_branch
        %1041 = sbr.rel (%p1039) target = $region80
      $region79: #{_lambda_.2} parent=11 // pred_region
        _
      $region80: #{_lambda_.2} parent=11 // pred_fallthru
        _
      // Predicated region
      $region81: #{_lambda_.2} parent=11 // pred_check
        %p1042 = pneg %p546
      $region82: #{_lambda_.2} parent=11 // pred_check_branch
        %1044 = sbr.rel (%p1042) target = $region84
      $region83: #{_lambda_.2} parent=11 // pred_region
        _
      $region84: #{_lambda_.2} parent=11 // pred_fallthru
        _
      // Predicated region
      $region85: #{_lambda_.2} parent=11 // pred_check
        %p1045 = pneg %p567
      $region86: #{_lambda_.2} parent=11 // pred_check_branch
        %1047 = sbr.rel (%p1045) target = $region88
      $region87: #{_lambda_.2} parent=11 // pred_region
        _
      $region88: #{_lambda_.2} parent=11 // pred_fallthru
        _
      // Predicated region
      $region89: #{_lambda_.2} parent=11 // pred_check
        %p1048 = pneg %p588
      $region90: #{_lambda_.2} parent=11 // pred_check_branch
        %1050 = sbr.rel (%p1048) target = $region92
      $region91: #{_lambda_.2} parent=11 // pred_region
        _
      $region92: #{_lambda_.2} parent=11 // pred_fallthru
        _
      // Predicated region
      $region93: #{_lambda_.2} parent=11 // pred_check
        %p1051 = pneg %p609
      $region94: #{_lambda_.2} parent=11 // pred_check_branch
        %1053 = sbr.rel (%p1051) target = $region96
      $region95: #{_lambda_.2} parent=11 // pred_region
        _
      $region96: #{_lambda_.2} parent=11 // pred_fallthru
        _
      // Predicated region
      $region97: #{_lambda_.2} parent=11 // pred_check
        %p1054 = pneg %p630
      $region98: #{_lambda_.2} parent=11 // pred_check_branch
        %1056 = sbr.rel (%p1054) target = $region100
      $region99: #{_lambda_.2} parent=11 // pred_region
        _
      $region100: #{_lambda_.2} parent=11 // pred_fallthru
        _
      // Predicated region
      $region101: #{_lambda_.2} parent=11 // pred_check
        %p1057 = pneg %p651
      $region102: #{_lambda_.2} parent=11 // pred_check_branch
        %1059 = sbr.rel (%p1057) target = $region104
      $region103: #{_lambda_.2} parent=11 // pred_region
        _
      $region104: #{_lambda_.2} parent=11 // pred_fallthru
        _
      // Predicated region
      $region105: #{_lambda_.2} parent=11 // pred_check
        %p1060 = pneg %p672
      $region106: #{_lambda_.2} parent=11 // pred_check_branch
        %1062 = sbr.rel (%p1060) target = $region108
      $region107: #{_lambda_.2} parent=11 // pred_region
        _
      $region108: #{_lambda_.2} parent=11 // pred_fallthru
        _
      // Predicated region
      $region109: #{_lambda_.2} parent=11 // pred_check
        %p1063 = pneg %p693
      $region110: #{_lambda_.2} parent=11 // pred_check_branch
        %1065 = sbr.rel (%p1063) target = $region112
      $region111: #{_lambda_.2} parent=11 // pred_region
        _
      $region112: #{_lambda_.2} parent=11 // pred_fallthru
        _
      // Predicated region
      $region113: #{_lambda_.2} parent=11 // pred_check
        %p1066 = pneg %p714
      $region114: #{_lambda_.2} parent=11 // pred_check_branch
        %1068 = sbr.rel (%p1066) target = $region116
      $region115: #{_lambda_.2} parent=11 // pred_region
        _
      $region116: #{_lambda_.2} parent=11 // pred_fallthru
        _
      // Predicated region
      $region117: #{_lambda_.2} parent=11 // pred_check
        %p1069 = pneg %p735
      $region118: #{_lambda_.2} parent=11 // pred_check_branch
        %1071 = sbr.rel (%p1069) target = $region120
      $region119: #{_lambda_.2} parent=11 // pred_region
        _
      $region120: #{_lambda_.2} parent=11 // pred_fallthru
        _
      // Predicated region
      $region121: #{_lambda_.2} parent=11 // pred_check
        %p1072 = pneg %p756
      $region122: #{_lambda_.2} parent=11 // pred_check_branch
        %1074 = sbr.rel (%p1072) target = $region124
      $region123: #{_lambda_.2} parent=11 // pred_region
        _
      $region124: #{_lambda_.2} parent=11 // pred_fallthru
        _
      // Predicated region
      $region125: #{_lambda_.2} parent=11 // pred_check
        %p1075 = pneg %p777
      $region126: #{_lambda_.2} parent=11 // pred_check_branch
        %1077 = sbr.rel (%p1075) target = $region128
      $region127: #{_lambda_.2} parent=11 // pred_region
        _
      $region128: #{_lambda_.2} parent=11 // pred_fallthru
        _
      // Predicated region
      $region129: #{_lambda_.2} parent=11 // pred_check
        %p1078 = pneg %p798
      $region130: #{_lambda_.2} parent=11 // pred_check_branch
        %1080 = sbr.rel (%p1078) target = $region132
      $region131: #{_lambda_.2} parent=11 // pred_region
        _
      $region132: #{_lambda_.2} parent=11 // pred_fallthru
        _
      // Predicated region
      $region133: #{_lambda_.2} parent=11 // pred_check
        %p1081 = pneg %p819
      $region134: #{_lambda_.2} parent=11 // pred_check_branch
        %1083 = sbr.rel (%p1081) target = $region136
      $region135: #{_lambda_.2} parent=11 // pred_region
        _
      $region136: #{_lambda_.2} parent=11 // pred_fallthru
        _
      // Predicated region
      $region137: #{_lambda_.2} parent=11 // pred_check
        %p1084 = pneg %p840
      $region138: #{_lambda_.2} parent=11 // pred_check_branch
        %1086 = sbr.rel (%p1084) target = $region140
      $region139: #{_lambda_.2} parent=11 // pred_region
        _
      $region140: #{_lambda_.2} parent=11 // pred_fallthru
        _
      // Predicated region
      $region141: #{_lambda_.2} parent=11 // pred_check
        %p1087 = pneg %p861
      $region142: #{_lambda_.2} parent=11 // pred_check_branch
        %1089 = sbr.rel (%p1087) target = $region144
      $region143: #{_lambda_.2} parent=11 // pred_region
        _
      $region144: #{_lambda_.2} parent=11 // pred_fallthru
        _
      // Predicated region
      $region145: #{_lambda_.2} parent=11 // pred_check
        %p1090 = pneg %p882
      $region146: #{_lambda_.2} parent=11 // pred_check_branch
        %1092 = sbr.rel (%p1090) target = $region148
      $region147: #{_lambda_.2} parent=11 // pred_region
        _
      $region148: #{_lambda_.2} parent=11 // pred_fallthru
        _
      // Predicated region
      $region149: #{_lambda_.2} parent=11 // pred_check
        %p1093 = pneg %p903
      $region150: #{_lambda_.2} parent=11 // pred_check_branch
        %1095 = sbr.rel (%p1093) target = $region152
      $region151: #{_lambda_.2} parent=11 // pred_region
        _
      $region152: #{_lambda_.2} parent=11 // pred_fallthru
        _
      // Predicated region
      $region153: #{_lambda_.2} parent=11 // pred_check
        %p1096 = pneg %p924
      $region154: #{_lambda_.2} parent=11 // pred_check_branch
        %1098 = sbr.rel (%p1096) target = $region156
      $region155: #{_lambda_.2} parent=11 // pred_region
        _
      $region156: #{_lambda_.2} parent=11 // pred_fallthru
        _
    $region12: #{_lambda_.2} parent=5 // pred_fallthru
      _
    %p1099 = scmp.lt.s32.totalorder %s90, 2
    // Predicated region
    $region157: #{_lambda_.2} parent=5 // pred_check
      %p1100 = pneg %p1099
    $region158: #{_lambda_.2} parent=5 // pred_check_branch
      %1102 = sbr.rel (%p1100) target = $region160
    $region159: #{_lambda_.2} parent=5 // pred_region
      // Predicated region
      $region161: #{_lambda_.2} parent=159 // pred_check
        %p1103 = pneg %p110
      $region162: #{_lambda_.2} parent=159 // pred_check_branch
        %1105 = sbr.rel (%p1103) target = $region164
      $region163: #{_lambda_.2} parent=159 // pred_region
        %p1106 = scmp.lt.s32.totalorder %s90, 1
        %s1107 = scalar_select %p1106, %s90, 1
        %s1108 = smul.addr %s1107, 8
        %s1109 = scalar_lea.vmem %s1, %s1108
      $region164: #{_lambda_.2} parent=159 // pred_fallthru
        _
      // Predicated region
      $region165: #{_lambda_.2} parent=159 // pred_check
        %p1110 = pneg %p136
      $region166: #{_lambda_.2} parent=159 // pred_check_branch
        %1112 = sbr.rel (%p1110) target = $region168
      $region167: #{_lambda_.2} parent=159 // pred_region
        %p1113 = scmp.lt.s32.totalorder %s90, 1
        %s1114 = scalar_select %p1113, %s90, 1
        %s1115 = scalar_lea.vmem %s3, %s1114
      $region168: #{_lambda_.2} parent=159 // pred_fallthru
        _
      // Predicated region
      $region169: #{_lambda_.2} parent=159 // pred_check
        %p1116 = pneg %p162
      $region170: #{_lambda_.2} parent=159 // pred_check_branch
        %1118 = sbr.rel (%p1116) target = $region172
      $region171: #{_lambda_.2} parent=159 // pred_region
        %p1119 = scmp.lt.s32.totalorder %s90, 1
        %s1120 = scalar_select %p1119, %s90, 1
        %s1121 = smul.addr %s1120, 8
        %s1122 = scalar_lea.vmem %s5, %s1121
      $region172: #{_lambda_.2} parent=159 // pred_fallthru
        _
    $region160: #{_lambda_.2} parent=5 // pred_fallthru
      _
    %p1123 = scmp.le.s32.totalorder 1, %s90
    %p1124 = scmp.lt.s32.totalorder %s90, 3
    %p1125 = pnand %p1123, %p1124
    %p1126 = pneg %p1125
    // Predicated region
    $region173: #{_lambda_.2} parent=5 // pred_check
      _
    $region174: #{_lambda_.2} parent=5 // pred_check_branch
      %1128 = sbr.rel (%p1125) target = $region176
    $region175: #{_lambda_.2} parent=5 // pred_region
      %s1129 = ssub.s32 %s90, 1
      %p1130 = scmp.lt.s32.totalorder %s95, 1
      %s1131 = scalar_select %p1130, %s95, 1
      %s1132 = smul.addr %s1131, 8
      %s1133 = scalar_lea.vmem %s1, %s1132
      %p1134 = pneg %p116
      %p1135 = pneg %p113
      %p1136 = scmp.lt.s32.totalorder %s95, 1
      %s1137 = scalar_select %p1136, %s95, 1
      %s1138 = scalar_lea.vmem %s3, %s1137
      %p1139 = pneg %p142
      %p1140 = pneg %p139
      %p1141 = scmp.lt.s32.totalorder %s95, 1
      %s1142 = scalar_select %p1141, %s95, 1
      %s1143 = smul.addr %s1142, 8
      %s1144 = scalar_lea.vmem %s5, %s1143
      %p1145 = pneg %p168
      %p1146 = pneg %p165
      %p1147 = pneg %p189
      %p1148 = pneg %p186
      %p1149 = pneg %p210
      %p1150 = pneg %p207
      %p1151 = pneg %p231
      %p1152 = pneg %p228
      %p1153 = pneg %p252
      %p1154 = pneg %p249
      %p1155 = pneg %p273
      %p1156 = pneg %p270
      %p1157 = pneg %p294
      %p1158 = pneg %p291
      %p1159 = pneg %p315
      %p1160 = pneg %p312
      %p1161 = pneg %p336
      %p1162 = pneg %p333
      %p1163 = pneg %p357
      %p1164 = pneg %p354
      %p1165 = pneg %p378
      %p1166 = pneg %p375
      %p1167 = pneg %p399
      %p1168 = pneg %p396
      %p1169 = pneg %p420
      %p1170 = pneg %p417
      %p1171 = pneg %p441
      %p1172 = pneg %p438
      %p1173 = pneg %p462
      %p1174 = pneg %p459
      %p1175 = pneg %p483
      %p1176 = pneg %p480
      %p1177 = pneg %p504
      %p1178 = pneg %p501
      %p1179 = pneg %p525
      %p1180 = pneg %p522
      %p1181 = pneg %p546
      %p1182 = pneg %p543
      %p1183 = pneg %p567
      %p1184 = pneg %p564
      %p1185 = pneg %p588
      %p1186 = pneg %p585
      %p1187 = pneg %p609
      %p1188 = pneg %p606
      %p1189 = pneg %p630
      %p1190 = pneg %p627
      %p1191 = pneg %p651
      %p1192 = pneg %p648
      %p1193 = pneg %p672
      %p1194 = pneg %p669
      %p1195 = pneg %p693
      %p1196 = pneg %p690
      %p1197 = pneg %p714
      %p1198 = pneg %p711
      %p1199 = pneg %p735
      %p1200 = pneg %p732
      %p1201 = pneg %p756
      %p1202 = pneg %p753
      %p1203 = pneg %p777
      %p1204 = pneg %p774
      %p1205 = pneg %p798
      %p1206 = pneg %p795
      %p1207 = pneg %p819
      %p1208 = pneg %p816
      %p1209 = pneg %p840
      %p1210 = pneg %p837
      %p1211 = pneg %p861
      %p1212 = pneg %p858
      %p1213 = pneg %p882
      %p1214 = pneg %p879
      %p1215 = pneg %p903
      %p1216 = pneg %p900
      %p1217 = pneg %p924
      %p1218 = pneg %p921
      %p1219 = pneg %p950
      %p1220 = pneg %p947
      %p1221 = scmp.lt.s32.totalorder %s95, 1
      %s1222 = scalar_select %p1221, %s95, 1
      %s1223 = smul.addr %s1222, 8
      %s1224 = scalar_lea.vmem %s79, %s1223
      %p1225 = pneg %p976
      %p1226 = pneg %p973
      %p1227 = scmp.lt.s32.totalorder %s95, 1
      %s1228 = scalar_select %p1227, %s95, 1
      %s1229 = smul.addr %s1228, 8
      %s1230 = scalar_lea.vmem %s81, %s1229
      %p1231 = scmp.lt.s32.totalorder %s95, 1
      %s1232 = scalar_select %p1231, %s95, 1
      %s1233 = smul.addr %s1232, 8
      %s1234 = scalar_lea.vmem %s1, %s1233
      %p1235 = scmp.lt.s32.totalorder %s95, 1
      %s1236 = scalar_select %p1235, %s95, 1
      %s1237 = scalar_lea.vmem %s3, %s1236
      %p1238 = scmp.lt.s32.totalorder %s95, 1
      %s1239 = scalar_select %p1238, %s95, 1
      %s1240 = smul.addr %s1239, 8
      %s1241 = scalar_lea.vmem %s5, %s1240
      %p1242 = scmp.lt.s32.totalorder %s95, 1
      %s1243 = scalar_select %p1242, %s95, 1
      %s1244 = smul.addr %s1243, 8
      %s1245 = scalar_lea.vmem %s79, %s1244
      %p1246 = scmp.lt.s32.totalorder %s95, 1
      %s1247 = scalar_select %p1246, %s95, 1
      %s1248 = smul.addr %s1247, 8
      %s1249 = scalar_lea.vmem %s81, %s1248
      %v1251 = vld [vmem:[%s1241] sm:$0xff]
      %v1252 = vld [vmem:[%s1237] sm:$0x1]
      %v1253 = vmul.f32 %v1252, -1e+09
      %v1254 = vld [vmem:[%s1234] sm:$0xff]
      %1256 = vset.pattern.permute.xlu0 0
      %1257 = vperm.xlu0 %1256, %v1251
      %v1258 = vpop.permute.xlu0 %1257
      %v1260 = vmul.f32 %v1254, %v1258
      %v1261 = vld [vmem:[%s7] sm:$0x1]
      %v1262 = vld [vmem:[%s9] sm:$0x1]
      %vm1263 = vcmask 261120
      %v1264 = vsel %vm1263, %v1260, 0.0
      %1265 = vadd.xlane.f32.xlu0 %v1264
      %v1266 = vpop.xlane.xlu0 %1265
      %v1267 = vrcp.pop 32.0
      %v1268 = vmul.f32 32.0, %v1267
      %v1269 = vsub.f32 1.0, %v1268
      %v1270 = vmul.f32 %v1267, %v1269
      %v1271 = vadd.f32 %v1267, %v1270
      %vm1272 = vweird.f32 %v1267
      %v1273 = vsel %vm1272, %v1267, %v1271
      %v1274 = vmul.f32 %v1266, %v1273
      %v1275 = vsub.f32 %v1260, %v1274
      %v1276 = vmul.f32 %v1275, %v1275
      %v1277 = vsel %vm1263, %v1276, 0.0
      %1278 = vadd.xlane.f32.xlu0 %v1277
      %v1279 = vpop.xlane.xlu0 %1278
      %v1280 = vmul.f32 %v1279, %v1273
      %v1281 = vadd.f32 %v1280, 1e-12
      %v1282 = vrsqrt.pop %v1281
      %v1283 = vmul.f32 %v1282, %v1281
      %v1284 = vmul.f32 %v1283, %v1282
      %v1285 = vmul.f32 0.5, %v1284
      %v1286 = vsub.f32 1.5, %v1285
      %v1287 = vmul.f32 %v1282, %v1286
      %vm1288 = vweird.f32 %v1281
      %vm1289 = vweird.f32 %v1282
      %vm1290 = vmor %vm1288, %vm1289
      %v1291 = vsel %vm1290, %v1282, %v1287
      %v1292 = vmul.f32 %v1275, %v1291
      %v1294 = vperm.slane %v1261, 0
      %v1296 = vmul.f32 %v1292, %v1294
      %v1298 = vperm.slane %v1262, 0
      %v1300 = vadd.f32 %v1296, %v1298
      %v1301 = vpack.c.bf16 %v1300, %v1300
      %v1302 = vld [vmem:[%s11] sm:$0xf]
      %v1303 = vld [vmem:[%s11 + $0x4] sm:$0xf]
      %v1304 = vld [vmem:[%s11 + $0x8] sm:$0xf]
      %v1305 = vld [vmem:[%s11 + $0xc] sm:$0xf]
      %v1306 = vld [vmem:[%s13] sm:$0x1]
      %v1308 = vperm.slane %v1306, 0
      %v1314 = vunpack.c.l.b16 %v1302
      %v1315 = vunpack.c.l.b16 %v1303
      %v1316 = vunpack.c.l.b16 %v1304
      %v1317 = vunpack.c.l.b16 %v1305
      %v1318 = vpack.c.b16 %v1315, %v1314
      %v1319 = vpack.c.b16 %v1317, %v1316
      %v1323 = vsel %vm1263, %v1301, 0
      %1325 = vmatpush.bf16.msra.mxu0 0
      %1326 = vmatpush.bf16.msra.mxu0 0
      %1327 = vmatpush.bf16.msra.mxu0 0
      %1328 = vmatpush.bf16.msra.mxu0 0
      %1329 = vmatpush.bf16.msra.mxu0 0
      %1330 = vmatpush.bf16.msra.mxu0 0
      %1331 = vmatpush.bf16.msra.mxu0 %v1319
      %1332 = vmatpush.bf16.msra.mxu0 %v1318
      %1333 = vmatmul.bf16.gmra.mxu0 %v1323
      %v1334 = vpop.f32.mrf.mxu0
      %v1335 = vadd.f32 %v1308, %v1334
      %v1336 = vpop.f32.mrf.mxu0
      %1337 = vdwg.mxu0
      %v1338 = vmul.f32 %v1335, 0.25
      %v1339 = vpack.c.bf16 %v1338, %v1338
      %v1340 = vpack.c.bf16 %v1335, %v1335
      %v1342 = vperm.slane %v1253, 0
      %1345 = vrot.lane.b32.xlu0 %v1340, 96
      %v1346 = vpop.permute.xlu0 %1345
      %vm1347 = vcmask 130048
      %v1349 = vsel %vm1347, %v1339, 0
      %v1352 = vsel %vm1347, %v1346, 0
      %1354 = vmatpush.bf16.xpose.msra.mxu0 0
      %1355 = vmatpush.bf16.xpose.msra.mxu0 0
      %1356 = vmatpush.bf16.xpose.msra.mxu0 0
      %1357 = vmatpush.bf16.xpose.msra.mxu0 0
      %1358 = vmatpush.bf16.xpose.msra.mxu0 0
      %1359 = vmatpush.bf16.xpose.msra.mxu0 0
      %1360 = vmatpush.bf16.xpose.msra.mxu0 0
      %1361 = vmatpush.bf16.xpose.msra.mxu0 %v1352
      %1362 = vmatmul.bf16.gmra.mxu0 %v1349
      %v1363 = vpop.f32.mrf.mxu0
      %v1364 = vadd.f32 %v1342, %v1363
      %v1365 = vpop.f32.mrf.mxu0
      %1366 = vdwg.mxu0
      %vm1367 = vcmask 64512
      %v1368 = vsel %vm1367, %v1364, -inf
      %1369 = vmax.xlane.f32.xlu0 %v1368
      %v1370 = vpop.xlane.xlu0 %1369
      %v1371 = vsub.f32 %v1364, %v1370
      %v1372 = vmul.f32 %v1371, 1.442695
      %v1373 = vpow.pop %v1372
      %v1374 = vsel %vm1367, %v1373, 0.0
      %1375 = vadd.xlane.f32.xlu0 %v1374
      %v1376 = vpop.xlane.xlu0 %1375
      %v1377 = vpack.c.bf16 %v1373, %v1373
      %1378 = vrot.lane.b32.xlu0 %v1340, 64
      %v1379 = vpop.permute.xlu0 %1378
      %v1381 = vsel %vm1367, %v1377, 0
      %vm1383 = vcmask 1043456
      %v1385 = vsel %vm1383, %v1379, 0
      %1387 = vmatpush.bf16.msra.mxu0 0
      %1388 = vmatpush.bf16.msra.mxu0 0
      %1389 = vmatpush.bf16.msra.mxu0 0
      %1390 = vmatpush.bf16.msra.mxu0 0
      %1391 = vmatpush.bf16.msra.mxu0 0
      %1392 = vmatpush.bf16.msra.mxu0 0
      %1393 = vmatpush.bf16.msra.mxu0 0
      %1394 = vmatpush.bf16.msra.mxu0 %v1385
      %1395 = vmatmul.bf16.gmra.mxu0 %v1381
      %v1396 = vpop.f32.mrf.mxu0
      %v1397 = vadd.f32 0.0, %v1396
      %v1398 = vpop.f32.mrf.mxu0
      %1399 = vdwg.mxu0
      %v1400 = vrcp.pop %v1376
      %v1401 = vmul.f32 %v1397, %v1400
      %1403 = vrot.lane.b32.xlu0 %v1339, 112
      %v1404 = vpop.permute.xlu0 %1403
      %1405 = vrot.lane.b32.xlu0 %v1340, 80
      %v1406 = vpop.permute.xlu0 %1405
      %v1408 = vsel %vm1347, %v1404, 0
      %v1411 = vsel %vm1347, %v1406, 0
      %1413 = vmatpush.bf16.xpose.msra.mxu0 0
      %1414 = vmatpush.bf16.xpose.msra.mxu0 0
      %1415 = vmatpush.bf16.xpose.msra.mxu0 0
      %1416 = vmatpush.bf16.xpose.msra.mxu0 0
      %1417 = vmatpush.bf16.xpose.msra.mxu0 0
      %1418 = vmatpush.bf16.xpose.msra.mxu0 0
      %1419 = vmatpush.bf16.xpose.msra.mxu0 0
      %1420 = vmatpush.bf16.xpose.msra.mxu0 %v1411
      %1421 = vmatmul.bf16.gmra.mxu0 %v1408
      %v1422 = vpop.f32.mrf.mxu0
      %v1423 = vadd.f32 %v1342, %v1422
      %v1424 = vpop.f32.mrf.mxu0
      %1425 = vdwg.mxu0
      %v1426 = vsel %vm1367, %v1423, -inf
      %1427 = vmax.xlane.f32.xlu0 %v1426
      %v1428 = vpop.xlane.xlu0 %1427
      %v1429 = vsub.f32 %v1423, %v1428
      %v1430 = vmul.f32 %v1429, 1.442695
      %v1431 = vpow.pop %v1430
      %v1432 = vsel %vm1367, %v1431, 0.0
      %1433 = vadd.xlane.f32.xlu0 %v1432
      %v1434 = vpop.xlane.xlu0 %1433
      %v1435 = vpack.c.bf16 %v1431, %v1431
      %1436 = vrot.lane.b32.xlu0 %v1340, 48
      %v1437 = vpop.permute.xlu0 %1436
      %v1439 = vsel %vm1367, %v1435, 0
      %v1442 = vsel %vm1383, %v1437, 0
      %1444 = vmatpush.bf16.msra.mxu0 0
      %1445 = vmatpush.bf16.msra.mxu0 0
      %1446 = vmatpush.bf16.msra.mxu0 0
      %1447 = vmatpush.bf16.msra.mxu0 0
      %1448 = vmatpush.bf16.msra.mxu0 0
      %1449 = vmatpush.bf16.msra.mxu0 0
      %1450 = vmatpush.bf16.msra.mxu0 0
      %1451 = vmatpush.bf16.msra.mxu0 %v1442
      %1452 = vmatmul.bf16.gmra.mxu0 %v1439
      %v1453 = vpop.f32.mrf.mxu0
      %v1454 = vadd.f32 0.0, %v1453
      %v1455 = vpop.f32.mrf.mxu0
      %1456 = vdwg.mxu0
      %v1457 = vrcp.pop %v1434
      %v1458 = vmul.f32 %v1454, %v1457
      %1460 = vrot.lane.b32.xlu0 %v1458, 16
      %v1461 = vpop.permute.xlu0 %1460
      %v1463 = vsel %vm1347, %v1401, %v1461
      %v1464 = vpack.c.bf16 %v1463, %v1463
      %v1465 = vld [vmem:[%s15] sm:$0xf]
      %v1466 = vld [vmem:[%s15 + $0x4] sm:$0xf]
      %v1467 = vld [vmem:[%s15 + $0x8] sm:$0xf]
      %v1468 = vld [vmem:[%s15 + $0xc] sm:$0xf]
      %v1469 = vld [vmem:[%s17] sm:$0x1]
      %v1471 = vperm.slane %v1469, 0
      %v1477 = vunpack.c.l.b16 %v1465
      %v1478 = vunpack.c.l.b16 %v1466
      %v1479 = vunpack.c.l.b16 %v1467
      %v1480 = vunpack.c.l.b16 %v1468
      %v1481 = vpack.c.b16 %v1478, %v1477
      %v1482 = vpack.c.b16 %v1480, %v1479
      %v1486 = vsel %vm1263, %v1464, 0
      %1488 = vmatpush.bf16.msra.mxu0 0
      %1489 = vmatpush.bf16.msra.mxu0 0
      %1490 = vmatpush.bf16.msra.mxu0 0
      %1491 = vmatpush.bf16.msra.mxu0 0
      %1492 = vmatpush.bf16.msra.mxu0 0
      %1493 = vmatpush.bf16.msra.mxu0 0
      %1494 = vmatpush.bf16.msra.mxu0 %v1482
      %1495 = vmatpush.bf16.msra.mxu0 %v1481
      %1496 = vmatmul.bf16.gmra.mxu0 %v1486
      %v1497 = vpop.f32.mrf.mxu0
      %v1498 = vadd.f32 %v1471, %v1497
      %v1499 = vpop.f32.mrf.mxu0
      %1500 = vdwg.mxu0
      %v1501 = vadd.f32 %v1260, %v1498
      %v1502 = vmul.f32 %v1501, %v1258
      %v1503 = vld [vmem:[%s19] sm:$0x1]
      %v1504 = vld [vmem:[%s21] sm:$0x1]
      %v1505 = vsel %vm1263, %v1502, 0.0
      %1506 = vadd.xlane.f32.xlu0 %v1505
      %v1507 = vpop.xlane.xlu0 %1506
      %v1508 = vmul.f32 %v1507, %v1273
      %v1509 = vsub.f32 %v1502, %v1508
      %v1510 = vmul.f32 %v1509, %v1509
      %v1511 = vsel %vm1263, %v1510, 0.0
      %1512 = vadd.xlane.f32.xlu0 %v1511
      %v1513 = vpop.xlane.xlu0 %1512
      %v1514 = vmul.f32 %v1513, %v1273
      %v1515 = vadd.f32 %v1514, 1e-12
      %v1516 = vrsqrt.pop %v1515
      %v1517 = vmul.f32 %v1516, %v1515
      %v1518 = vmul.f32 %v1517, %v1516
      %v1519 = vmul.f32 0.5, %v1518
      %v1520 = vsub.f32 1.5, %v1519
      %v1521 = vmul.f32 %v1516, %v1520
      %vm1522 = vweird.f32 %v1515
      %vm1523 = vweird.f32 %v1516
      %vm1524 = vmor %vm1522, %vm1523
      %v1525 = vsel %vm1524, %v1516, %v1521
      %v1526 = vmul.f32 %v1509, %v1525
      %v1528 = vperm.slane %v1503, 0
      %v1530 = vmul.f32 %v1526, %v1528
      %v1532 = vperm.slane %v1504, 0
      %v1534 = vadd.f32 %v1530, %v1532
      %v1536 = vrot.slane %v1534, 4
      %v1538 = vsel %vm1383, 0.0, %v1536
      %v1539 = vsel %vm1383, %v1536, 0.0
      %vm1542 = vcmask 1046528
      %v1543 = vrot.slane %v1538, 1
      %v1544 = vrot.slane %v1539, 1
      %v1545 = vsel %vm1542, %v1543, %v1544
      %1546 = vrot.lane.b32.xlu0 %v1545, 32
      %v1547 = vpop.permute.xlu0 %1546
      %vm1549 = vcmask 1045504
      %v1550 = vrot.slane %v1538, 2
      %v1551 = vrot.slane %v1539, 2
      %v1552 = vsel %vm1549, %v1550, %v1551
      %1553 = vrot.lane.b32.xlu0 %v1552, 64
      %v1554 = vpop.permute.xlu0 %1553
      %vm1556 = vcmask 1044480
      %v1557 = vrot.slane %v1538, 3
      %v1558 = vrot.slane %v1539, 3
      %v1559 = vsel %vm1556, %v1557, %v1558
      %1560 = vrot.lane.b32.xlu0 %v1559, 96
      %v1561 = vpop.permute.xlu0 %1560
      %v1563 = vrot.slane %v1538, 4
      %v1564 = vrot.slane %v1539, 4
      %v1565 = vsel %vm1383, %v1563, %v1564
      %vm1567 = vcmask 1042432
      %v1568 = vrot.slane %v1538, 5
      %v1569 = vrot.slane %v1539, 5
      %v1570 = vsel %vm1567, %v1568, %v1569
      %1571 = vrot.lane.b32.xlu0 %v1570, 32
      %v1572 = vpop.permute.xlu0 %1571
      %vm1574 = vcmask 1041408
      %v1575 = vrot.slane %v1538, 6
      %v1576 = vrot.slane %v1539, 6
      %v1577 = vsel %vm1574, %v1575, %v1576
      %1578 = vrot.lane.b32.xlu0 %v1577, 64
      %v1579 = vpop.permute.xlu0 %1578
      %vm1581 = vcmask 1040384
      %v1582 = vrot.slane %v1538, 7
      %v1583 = vrot.slane %v1539, 7
      %v1584 = vsel %vm1581, %v1582, %v1583
      %1585 = vrot.lane.b32.xlu0 %v1584, 96
      %v1586 = vpop.permute.xlu0 %1585
      %v1588 = vsel %vm1263, %v1538, %v1547
      %vm1589 = vcmask 523264
      %v1590 = vsel %vm1589, %v1588, %v1554
      %vm1591 = vcmask 785408
      %v1592 = vsel %vm1591, %v1590, %v1561
      %v1593 = vsel %vm1263, %v1565, %v1572
      %v1594 = vsel %vm1589, %v1593, %v1579
      %v1595 = vsel %vm1591, %v1594, %v1586
      %v1596 = vpack.c.bf16 %v1592, %v1592
      %v1597 = vpack.c.bf16 %v1595, %v1595
      %v1598 = vpack.c.bf16 %v1539, %v1539
      %v1599 = vld [vmem:[%s23] sm:$0xf]
      %v1600 = vld [vmem:[%s23 + $0x4] sm:$0xf]
      %v1601 = vld [vmem:[%s23 + $0x8] sm:$0xf]
      %v1602 = vld [vmem:[%s23 + $0xc] sm:$0xf]
      %v1603 = vld [vmem:[%s23 + $0x10] sm:$0xf]
      %v1604 = vld [vmem:[%s23 + $0x14] sm:$0xf]
      %v1605 = vld [vmem:[%s23 + $0x18] sm:$0xf]
      %v1606 = vld [vmem:[%s23 + $0x1c] sm:$0xf]
      %v1607 = vld [vmem:[%s23 + $0x20] sm:$0xf]
      %v1608 = vld [vmem:[%s23 + $0x24] sm:$0xf]
      %v1609 = vld [vmem:[%s23 + $0x28] sm:$0xf]
      %v1610 = vld [vmem:[%s23 + $0x2c] sm:$0xf]
      %v1611 = vld [vmem:[%s23 + $0x30] sm:$0xf]
      %v1612 = vld [vmem:[%s23 + $0x34] sm:$0xf]
      %v1613 = vld [vmem:[%s23 + $0x38] sm:$0xf]
      %v1614 = vld [vmem:[%s23 + $0x3c] sm:$0xf]
      %v1615 = vld [vmem:[%s23 + $0x40] sm:$0xf]
      %v1616 = vld [vmem:[%s23 + $0x44] sm:$0xf]
      %v1617 = vld [vmem:[%s23 + $0x48] sm:$0xf]
      %v1618 = vld [vmem:[%s23 + $0x4c] sm:$0xf]
      %v1619 = vld [vmem:[%s23 + $0x50] sm:$0xf]
      %v1620 = vld [vmem:[%s23 + $0x54] sm:$0xf]
      %v1621 = vld [vmem:[%s23 + $0x58] sm:$0xf]
      %v1622 = vld [vmem:[%s23 + $0x5c] sm:$0xf]
      %v1623 = vld [vmem:[%s23 + $0x60] sm:$0xf]
      %v1624 = vld [vmem:[%s23 + $0x64] sm:$0xf]
      %v1625 = vld [vmem:[%s23 + $0x68] sm:$0xf]
      %v1626 = vld [vmem:[%s23 + $0x6c] sm:$0xf]
      %v1627 = vld [vmem:[%s23 + $0x70] sm:$0xf]
      %v1628 = vld [vmem:[%s23 + $0x74] sm:$0xf]
      %v1629 = vld [vmem:[%s23 + $0x78] sm:$0xf]
      %v1630 = vld [vmem:[%s23 + $0x7c] sm:$0xf]
      %v1631 = vld [vmem:[%s23 + $0x80] sm:$0xf]
      %v1632 = vld [vmem:[%s23 + $0x84] sm:$0xf]
      %v1633 = vld [vmem:[%s23 + $0x88] sm:$0xf]
      %v1634 = vld [vmem:[%s23 + $0x8c] sm:$0xf]
      %v1635 = vld [vmem:[%s25] sm:$0x1]
      %v1637 = vperm.slane %v1635, 0
      %v1675 = vunpack.c.l.b16 %v1599
      %v1676 = vunpack.c.l.b16 %v1600
      %v1677 = vunpack.c.l.b16 %v1601
      %v1678 = vunpack.c.l.b16 %v1602
      %v1679 = vunpack.c.l.b16 %v1603
      %v1680 = vunpack.c.l.b16 %v1604
      %v1681 = vunpack.c.l.b16 %v1605
      %v1682 = vunpack.c.l.b16 %v1606
      %v1683 = vunpack.c.l.b16 %v1607
      %v1684 = vunpack.c.l.b16 %v1608
      %v1685 = vunpack.c.l.b16 %v1609
      %v1686 = vunpack.c.l.b16 %v1610
      %v1687 = vunpack.c.l.b16 %v1611
      %v1688 = vunpack.c.l.b16 %v1612
      %v1689 = vunpack.c.l.b16 %v1613
      %v1690 = vunpack.c.l.b16 %v1614
      %v1691 = vunpack.c.l.b16 %v1615
      %v1692 = vunpack.c.l.b16 %v1616
      %v1693 = vunpack.c.l.b16 %v1617
      %v1694 = vunpack.c.l.b16 %v1618
      %v1695 = vunpack.c.l.b16 %v1619
      %v1696 = vunpack.c.l.b16 %v1620
      %v1697 = vunpack.c.l.b16 %v1621
      %v1698 = vunpack.c.l.b16 %v1622
      %v1699 = vunpack.c.l.b16 %v1623
      %v1700 = vunpack.c.l.b16 %v1624
      %v1701 = vunpack.c.l.b16 %v1625
      %v1702 = vunpack.c.l.b16 %v1626
      %v1703 = vunpack.c.l.b16 %v1627
      %v1704 = vunpack.c.l.b16 %v1628
      %v1705 = vunpack.c.l.b16 %v1629
      %v1706 = vunpack.c.l.b16 %v1630
      %v1707 = vunpack.c.l.b16 %v1631
      %v1708 = vunpack.c.l.b16 %v1632
      %v1709 = vunpack.c.l.b16 %v1633
      %v1710 = vunpack.c.l.b16 %v1634
      %v1711 = vpack.c.b16 %v1676, %v1675
      %v1712 = vpack.c.b16 %v1678, %v1677
      %v1713 = vpack.c.b16 %v1680, %v1679
      %v1714 = vpack.c.b16 %v1682, %v1681
      %v1715 = vpack.c.b16 %v1684, %v1683
      %v1716 = vpack.c.b16 %v1686, %v1685
      %v1717 = vpack.c.b16 %v1688, %v1687
      %v1718 = vpack.c.b16 %v1690, %v1689
      %v1719 = vpack.c.b16 %v1692, %v1691
      %v1720 = vpack.c.b16 %v1694, %v1693
      %v1721 = vpack.c.b16 %v1696, %v1695
      %v1722 = vpack.c.b16 %v1698, %v1697
      %v1723 = vpack.c.b16 %v1700, %v1699
      %v1724 = vpack.c.b16 %v1702, %v1701
      %v1725 = vpack.c.b16 %v1704, %v1703
      %v1726 = vpack.c.b16 %v1706, %v1705
      %v1727 = vpack.c.b16 %v1708, %v1707
      %v1728 = vpack.c.b16 %v1710, %v1709
      %v1748 = vsel %vm1263, %v1598, 0
      %1750 = vmatpush.bf16.msra.mxu0 %v1718
      %1751 = vmatpush.bf16.msra.mxu0 %v1717
      %1752 = vmatpush.bf16.msra.mxu0 %v1716
      %1753 = vmatpush.bf16.msra.mxu0 %v1715
      %1754 = vmatpush.bf16.msra.mxu0 %v1714
      %1755 = vmatpush.bf16.msra.mxu0 %v1713
      %1756 = vmatpush.bf16.msra.mxu0 %v1712
      %1757 = vmatpush.bf16.msra.mxu0 %v1711
      %1758 = vmatmul.bf16.gmra.mxu0 %v1596
      %v1759 = vpop.f32.mrf.mxu0
      %v1760 = vadd.f32 %v1637, %v1759
      %v1761 = vpop.f32.mrf.mxu0
      %1762 = vdwg.mxu0
      %1763 = vmatpush.bf16.msra.mxu0 %v1726
      %1764 = vmatpush.bf16.msra.mxu0 %v1725
      %1765 = vmatpush.bf16.msra.mxu0 %v1724
      %1766 = vmatpush.bf16.msra.mxu0 %v1723
      %1767 = vmatpush.bf16.msra.mxu0 %v1722
      %1768 = vmatpush.bf16.msra.mxu0 %v1721
      %1769 = vmatpush.bf16.msra.mxu0 %v1720
      %1770 = vmatpush.bf16.msra.mxu0 %v1719
      %1771 = vmatmul.bf16.gmra.mxu0 %v1597
      %v1772 = vpop.f32.mrf.mxu0
      %v1773 = vadd.f32 %v1760, %v1772
      %v1774 = vpop.f32.mrf.mxu0
      %1775 = vdwg.mxu0
      %1776 = vmatpush.bf16.msra.mxu0 0
      %1777 = vmatpush.bf16.msra.mxu0 0
      %1778 = vmatpush.bf16.msra.mxu0 0
      %1779 = vmatpush.bf16.msra.mxu0 0
      %1780 = vmatpush.bf16.msra.mxu0 0
      %1781 = vmatpush.bf16.msra.mxu0 0
      %1782 = vmatpush.bf16.msra.mxu0 %v1728
      %1783 = vmatpush.bf16.msra.mxu0 %v1727
      %1784 = vmatmul.bf16.gmra.mxu0 %v1748
      %v1785 = vpop.f32.mrf.mxu0
      %v1786 = vadd.f32 %v1773, %v1785
      %v1787 = vpop.f32.mrf.mxu0
      %1788 = vdwg.mxu0
      %v1789 = vmul.f32 %v1786, 0.33333334
      %v1790 = vmul.f32 %v1789, %v1789
      %v1791 = vmul.f32 %v1789, %v1790
      %v1792 = vmul.f32 %v1791, 0.044715
      %v1793 = vadd.f32 %v1789, %v1792
      %v1794 = vmul.f32 %v1793, 0.7978846
      %v1795 = vtanh.pop %v1794
      %v1796 = vadd.f32 %v1795, 1.0
      %v1797 = vmul.f32 %v1796, 0.5
      %v1798 = vmul.f32 %v1789, %v1797
      %v1799 = vpack.c.bf16 %v1798, %v1798
      %v1800 = vld [vmem:[%s27] sm:$0xf]
      %v1801 = vld [vmem:[%s27 + $0x4] sm:$0xf]
      %v1802 = vld [vmem:[%s27 + $0x8] sm:$0xf]
      %v1803 = vld [vmem:[%s27 + $0xc] sm:$0xf]
      %v1804 = vld [vmem:[%s27 + $0x10] sm:$0xf]
      %v1805 = vld [vmem:[%s27 + $0x14] sm:$0xf]
      %v1806 = vld [vmem:[%s27 + $0x18] sm:$0xf]
      %v1807 = vld [vmem:[%s27 + $0x1c] sm:$0xf]
      %v1808 = vld [vmem:[%s27 + $0x20] sm:$0xf]
      %v1809 = vld [vmem:[%s27 + $0x24] sm:$0xf]
      %v1810 = vld [vmem:[%s27 + $0x28] sm:$0xf]
      %v1811 = vld [vmem:[%s27 + $0x2c] sm:$0xf]
      %v1812 = vld [vmem:[%s27 + $0x30] sm:$0xf]
      %v1813 = vld [vmem:[%s27 + $0x34] sm:$0xf]
      %v1814 = vld [vmem:[%s27 + $0x38] sm:$0xf]
      %v1815 = vld [vmem:[%s27 + $0x3c] sm:$0xf]
      %v1816 = vld [vmem:[%s29] sm:$0x1]
      %v1818 = vperm.slane %v1816, 0
      %v1836 = vunpack.c.l.b16 %v1800
      %v1837 = vunpack.c.l.b16 %v1801
      %v1838 = vunpack.c.l.b16 %v1802
      %v1839 = vunpack.c.l.b16 %v1803
      %v1840 = vunpack.c.l.b16 %v1804
      %v1841 = vunpack.c.l.b16 %v1805
      %v1842 = vunpack.c.l.b16 %v1806
      %v1843 = vunpack.c.l.b16 %v1807
      %v1844 = vunpack.c.l.b16 %v1808
      %v1845 = vunpack.c.l.b16 %v1809
      %v1846 = vunpack.c.l.b16 %v1810
      %v1847 = vunpack.c.l.b16 %v1811
      %v1848 = vunpack.c.l.b16 %v1812
      %v1849 = vunpack.c.l.b16 %v1813
      %v1850 = vunpack.c.l.b16 %v1814
      %v1851 = vunpack.c.l.b16 %v1815
      %v1852 = vpack.c.b16 %v1837, %v1836
      %v1853 = vpack.c.b16 %v1839, %v1838
      %v1854 = vpack.c.b16 %v1841, %v1840
      %v1855 = vpack.c.b16 %v1843, %v1842
      %v1856 = vpack.c.b16 %v1845, %v1844
      %v1857 = vpack.c.b16 %v1847, %v1846
      %v1858 = vpack.c.b16 %v1849, %v1848
      %v1859 = vpack.c.b16 %v1851, %v1850
      %1868 = vmatpush.bf16.msra.mxu0 %v1859
      %1869 = vmatpush.bf16.msra.mxu0 %v1858
      %1870 = vmatpush.bf16.msra.mxu0 %v1857
      %1871 = vmatpush.bf16.msra.mxu0 %v1856
      %1872 = vmatpush.bf16.msra.mxu0 %v1855
      %1873 = vmatpush.bf16.msra.mxu0 %v1854
      %1874 = vmatpush.bf16.msra.mxu0 %v1853
      %1875 = vmatpush.bf16.msra.mxu0 %v1852
      %1876 = vmatmul.bf16.gmra.mxu0 %v1799
      %v1877 = vpop.f32.mrf.mxu0
      %v1878 = vadd.f32 %v1818, %v1877
      %v1879 = vpop.f32.mrf.mxu0
      %1880 = vdwg.mxu0
      %v1881 = vadd.f32 %v1502, %v1878
      %v1882 = vmul.f32 %v1881, %v1258
      %v1883 = vld [vmem:[%s31] sm:$0x1]
      %v1884 = vld [vmem:[%s33] sm:$0x1]
      %v1885 = vsel %vm1263, %v1882, 0.0
      %1886 = vadd.xlane.f32.xlu0 %v1885
      %v1887 = vpop.xlane.xlu0 %1886
      %v1888 = vmul.f32 %v1887, %v1273
      %v1889 = vsub.f32 %v1882, %v1888
      %v1890 = vmul.f32 %v1889, %v1889
      %v1891 = vsel %vm1263, %v1890, 0.0
      %1892 = vadd.xlane.f32.xlu0 %v1891
      %v1893 = vpop.xlane.xlu0 %1892
      %v1894 = vmul.f32 %v1893, %v1273
      %v1895 = vadd.f32 %v1894, 1e-12
      %v1896 = vrsqrt.pop %v1895
      %v1897 = vmul.f32 %v1896, %v1895
      %v1898 = vmul.f32 %v1897, %v1896
      %v1899 = vmul.f32 0.5, %v1898
      %v1900 = vsub.f32 1.5, %v1899
      %v1901 = vmul.f32 %v1896, %v1900
      %vm1902 = vweird.f32 %v1895
      %vm1903 = vweird.f32 %v1896
      %vm1904 = vmor %vm1902, %vm1903
      %v1905 = vsel %vm1904, %v1896, %v1901
      %v1906 = vmul.f32 %v1889, %v1905
      %v1908 = vperm.slane %v1883, 0
      %v1910 = vmul.f32 %v1906, %v1908
      %v1912 = vperm.slane %v1884, 0
      %v1914 = vadd.f32 %v1910, %v1912
      %v1915 = vpack.c.bf16 %v1914, %v1914
      %v1916 = vld [vmem:[%s35] sm:$0xf]
      %v1917 = vld [vmem:[%s35 + $0x4] sm:$0xf]
      %v1918 = vld [vmem:[%s35 + $0x8] sm:$0xf]
      %v1919 = vld [vmem:[%s35 + $0xc] sm:$0xf]
      %v1920 = vld [vmem:[%s37] sm:$0x1]
      %v1922 = vperm.slane %v1920, 0
      %v1928 = vunpack.c.l.b16 %v1916
      %v1929 = vunpack.c.l.b16 %v1917
      %v1930 = vunpack.c.l.b16 %v1918
      %v1931 = vunpack.c.l.b16 %v1919
      %v1932 = vpack.c.b16 %v1929, %v1928
      %v1933 = vpack.c.b16 %v1931, %v1930
      %v1937 = vsel %vm1263, %v1915, 0
      %1939 = vmatpush.bf16.msra.mxu0 0
      %1940 = vmatpush.bf16.msra.mxu0 0
      %1941 = vmatpush.bf16.msra.mxu0 0
      %1942 = vmatpush.bf16.msra.mxu0 0
      %1943 = vmatpush.bf16.msra.mxu0 0
      %1944 = vmatpush.bf16.msra.mxu0 0
      %1945 = vmatpush.bf16.msra.mxu0 %v1933
      %1946 = vmatpush.bf16.msra.mxu0 %v1932
      %1947 = vmatmul.bf16.gmra.mxu0 %v1937
      %v1948 = vpop.f32.mrf.mxu0
      %v1949 = vadd.f32 %v1922, %v1948
      %v1950 = vpop.f32.mrf.mxu0
      %1951 = vdwg.mxu0
      %v1952 = vmul.f32 %v1949, 0.25
      %v1953 = vpack.c.bf16 %v1952, %v1952
      %v1954 = vpack.c.bf16 %v1949, %v1949
      %1956 = vrot.lane.b32.xlu0 %v1954, 96
      %v1957 = vpop.permute.xlu0 %1956
      %v1959 = vsel %vm1347, %v1953, 0
      %v1962 = vsel %vm1347, %v1957, 0
      %1964 = vmatpush.bf16.xpose.msra.mxu0 0
      %1965 = vmatpush.bf16.xpose.msra.mxu0 0
      %1966 = vmatpush.bf16.xpose.msra.mxu0 0
      %1967 = vmatpush.bf16.xpose.msra.mxu0 0
      %1968 = vmatpush.bf16.xpose.msra.mxu0 0
      %1969 = vmatpush.bf16.xpose.msra.mxu0 0
      %1970 = vmatpush.bf16.xpose.msra.mxu0 0
      %1971 = vmatpush.bf16.xpose.msra.mxu0 %v1962
      %1972 = vmatmul.bf16.gmra.mxu0 %v1959
      %v1973 = vpop.f32.mrf.mxu0
      %v1974 = vadd.f32 %v1342, %v1973
      %v1975 = vpop.f32.mrf.mxu0
      %1976 = vdwg.mxu0
      %v1977 = vsel %vm1367, %v1974, -inf
      %1978 = vmax.xlane.f32.xlu0 %v1977
      %v1979 = vpop.xlane.xlu0 %1978
      %v1980 = vsub.f32 %v1974, %v1979
      %v1981 = vmul.f32 %v1980, 1.442695
      %v1982 = vpow.pop %v1981
      %v1983 = vsel %vm1367, %v1982, 0.0
      %1984 = vadd.xlane.f32.xlu0 %v1983
      %v1985 = vpop.xlane.xlu0 %1984
      %v1986 = vpack.c.bf16 %v1982, %v1982
      %1987 = vrot.lane.b32.xlu0 %v1954, 64
      %v1988 = vpop.permute.xlu0 %1987
      %v1990 = vsel %vm1367, %v1986, 0
      %v1993 = vsel %vm1383, %v1988, 0
      %1995 = vmatpush.bf16.msra.mxu0 0
      %1996 = vmatpush.bf16.msra.mxu0 0
      %1997 = vmatpush.bf16.msra.mxu0 0
      %1998 = vmatpush.bf16.msra.mxu0 0
      %1999 = vmatpush.bf16.msra.mxu0 0
      %2000 = vmatpush.bf16.msra.mxu0 0
      %2001 = vmatpush.bf16.msra.mxu0 0
      %2002 = vmatpush.bf16.msra.mxu0 %v1993
      %2003 = vmatmul.bf16.gmra.mxu0 %v1990
      %v2004 = vpop.f32.mrf.mxu0
      %v2005 = vadd.f32 0.0, %v2004
      %v2006 = vpop.f32.mrf.mxu0
      %2007 = vdwg.mxu0
      %v2008 = vrcp.pop %v1985
      %v2009 = vmul.f32 %v2005, %v2008
      %2011 = vrot.lane.b32.xlu0 %v1953, 112
      %v2012 = vpop.permute.xlu0 %2011
      %2013 = vrot.lane.b32.xlu0 %v1954, 80
      %v2014 = vpop.permute.xlu0 %2013
      %v2016 = vsel %vm1347, %v2012, 0
      %v2019 = vsel %vm1347, %v2014, 0
      %2021 = vmatpush.bf16.xpose.msra.mxu0 0
      %2022 = vmatpush.bf16.xpose.msra.mxu0 0
      %2023 = vmatpush.bf16.xpose.msra.mxu0 0
      %2024 = vmatpush.bf16.xpose.msra.mxu0 0
      %2025 = vmatpush.bf16.xpose.msra.mxu0 0
      %2026 = vmatpush.bf16.xpose.msra.mxu0 0
      %2027 = vmatpush.bf16.xpose.msra.mxu0 0
      %2028 = vmatpush.bf16.xpose.msra.mxu0 %v2019
      %2029 = vmatmul.bf16.gmra.mxu0 %v2016
      %v2030 = vpop.f32.mrf.mxu0
      %v2031 = vadd.f32 %v1342, %v2030
      %v2032 = vpop.f32.mrf.mxu0
      %2033 = vdwg.mxu0
      %v2034 = vsel %vm1367, %v2031, -inf
      %2035 = vmax.xlane.f32.xlu0 %v2034
      %v2036 = vpop.xlane.xlu0 %2035
      %v2037 = vsub.f32 %v2031, %v2036
      %v2038 = vmul.f32 %v2037, 1.442695
      %v2039 = vpow.pop %v2038
      %v2040 = vsel %vm1367, %v2039, 0.0
      %2041 = vadd.xlane.f32.xlu0 %v2040
      %v2042 = vpop.xlane.xlu0 %2041
      %v2043 = vpack.c.bf16 %v2039, %v2039
      %2044 = vrot.lane.b32.xlu0 %v1954, 48
      %v2045 = vpop.permute.xlu0 %2044
      %v2047 = vsel %vm1367, %v2043, 0
      %v2050 = vsel %vm1383, %v2045, 0
      %2052 = vmatpush.bf16.msra.mxu0 0
      %2053 = vmatpush.bf16.msra.mxu0 0
      %2054 = vmatpush.bf16.msra.mxu0 0
      %2055 = vmatpush.bf16.msra.mxu0 0
      %2056 = vmatpush.bf16.msra.mxu0 0
      %2057 = vmatpush.bf16.msra.mxu0 0
      %2058 = vmatpush.bf16.msra.mxu0 0
      %2059 = vmatpush.bf16.msra.mxu0 %v2050
      %2060 = vmatmul.bf16.gmra.mxu0 %v2047
      %v2061 = vpop.f32.mrf.mxu0
      %v2062 = vadd.f32 0.0, %v2061
      %v2063 = vpop.f32.mrf.mxu0
      %2064 = vdwg.mxu0
      %v2065 = vrcp.pop %v2042
      %v2066 = vmul.f32 %v2062, %v2065
      %2068 = vrot.lane.b32.xlu0 %v2066, 16
      %v2069 = vpop.permute.xlu0 %2068
      %v2071 = vsel %vm1347, %v2009, %v2069
      %v2072 = vpack.c.bf16 %v2071, %v2071
      %v2073 = vld [vmem:[%s39] sm:$0xf]
      %v2074 = vld [vmem:[%s39 + $0x4] sm:$0xf]
      %v2075 = vld [vmem:[%s39 + $0x8] sm:$0xf]
      %v2076 = vld [vmem:[%s39 + $0xc] sm:$0xf]
      %v2077 = vld [vmem:[%s41] sm:$0x1]
      %v2079 = vperm.slane %v2077, 0
      %v2085 = vunpack.c.l.b16 %v2073
      %v2086 = vunpack.c.l.b16 %v2074
      %v2087 = vunpack.c.l.b16 %v2075
      %v2088 = vunpack.c.l.b16 %v2076
      %v2089 = vpack.c.b16 %v2086, %v2085
      %v2090 = vpack.c.b16 %v2088, %v2087
      %v2094 = vsel %vm1263, %v2072, 0
      %2096 = vmatpush.bf16.msra.mxu0 0
      %2097 = vmatpush.bf16.msra.mxu0 0
      %2098 = vmatpush.bf16.msra.mxu0 0
      %2099 = vmatpush.bf16.msra.mxu0 0
      %2100 = vmatpush.bf16.msra.mxu0 0
      %2101 = vmatpush.bf16.msra.mxu0 0
      %2102 = vmatpush.bf16.msra.mxu0 %v2090
      %2103 = vmatpush.bf16.msra.mxu0 %v2089
      %2104 = vmatmul.bf16.gmra.mxu0 %v2094
      %v2105 = vpop.f32.mrf.mxu0
      %v2106 = vadd.f32 %v2079, %v2105
      %v2107 = vpop.f32.mrf.mxu0
      %2108 = vdwg.mxu0
      %v2109 = vadd.f32 %v1882, %v2106
      %v2110 = vmul.f32 %v2109, %v1258
      %v2111 = vld [vmem:[%s43] sm:$0x1]
      %v2112 = vld [vmem:[%s45] sm:$0x1]
      %v2113 = vsel %vm1263, %v2110, 0.0
      %2114 = vadd.xlane.f32.xlu0 %v2113
      %v2115 = vpop.xlane.xlu0 %2114
      %v2116 = vmul.f32 %v2115, %v1273
      %v2117 = vsub.f32 %v2110, %v2116
      %v2118 = vmul.f32 %v2117, %v2117
      %v2119 = vsel %vm1263, %v2118, 0.0
      %2120 = vadd.xlane.f32.xlu0 %v2119
      %v2121 = vpop.xlane.xlu0 %2120
      %v2122 = vmul.f32 %v2121, %v1273
      %v2123 = vadd.f32 %v2122, 1e-12
      %v2124 = vrsqrt.pop %v2123
      %v2125 = vmul.f32 %v2124, %v2123
      %v2126 = vmul.f32 %v2125, %v2124
      %v2127 = vmul.f32 0.5, %v2126
      %v2128 = vsub.f32 1.5, %v2127
      %v2129 = vmul.f32 %v2124, %v2128
      %vm2130 = vweird.f32 %v2123
      %vm2131 = vweird.f32 %v2124
      %vm2132 = vmor %vm2130, %vm2131
      %v2133 = vsel %vm2132, %v2124, %v2129
      %v2134 = vmul.f32 %v2117, %v2133
      %v2136 = vperm.slane %v2111, 0
      %v2138 = vmul.f32 %v2134, %v2136
      %v2140 = vperm.slane %v2112, 0
      %v2142 = vadd.f32 %v2138, %v2140
      %v2144 = vrot.slane %v2142, 4
      %v2146 = vsel %vm1383, 0.0, %v2144
      %v2147 = vsel %vm1383, %v2144, 0.0
      %v2150 = vrot.slane %v2146, 1
      %v2151 = vrot.slane %v2147, 1
      %v2152 = vsel %vm1542, %v2150, %v2151
      %2153 = vrot.lane.b32.xlu0 %v2152, 32
      %v2154 = vpop.permute.xlu0 %2153
      %v2156 = vrot.slane %v2146, 2
      %v2157 = vrot.slane %v2147, 2
      %v2158 = vsel %vm1549, %v2156, %v2157
      %2159 = vrot.lane.b32.xlu0 %v2158, 64
      %v2160 = vpop.permute.xlu0 %2159
      %v2162 = vrot.slane %v2146, 3
      %v2163 = vrot.slane %v2147, 3
      %v2164 = vsel %vm1556, %v2162, %v2163
      %2165 = vrot.lane.b32.xlu0 %v2164, 96
      %v2166 = vpop.permute.xlu0 %2165
      %v2168 = vrot.slane %v2146, 4
      %v2169 = vrot.slane %v2147, 4
      %v2170 = vsel %vm1383, %v2168, %v2169
      %v2172 = vrot.slane %v2146, 5
      %v2173 = vrot.slane %v2147, 5
      %v2174 = vsel %vm1567, %v2172, %v2173
      %2175 = vrot.lane.b32.xlu0 %v2174, 32
      %v2176 = vpop.permute.xlu0 %2175
      %v2178 = vrot.slane %v2146, 6
      %v2179 = vrot.slane %v2147, 6
      %v2180 = vsel %vm1574, %v2178, %v2179
      %2181 = vrot.lane.b32.xlu0 %v2180, 64
      %v2182 = vpop.permute.xlu0 %2181
      %v2184 = vrot.slane %v2146, 7
      %v2185 = vrot.slane %v2147, 7
      %v2186 = vsel %vm1581, %v2184, %v2185
      %2187 = vrot.lane.b32.xlu0 %v2186, 96
      %v2188 = vpop.permute.xlu0 %2187
      %v2190 = vsel %vm1263, %v2146, %v2154
      %v2191 = vsel %vm1589, %v2190, %v2160
      %v2192 = vsel %vm1591, %v2191, %v2166
      %v2193 = vsel %vm1263, %v2170, %v2176
      %v2194 = vsel %vm1589, %v2193, %v2182
      %v2195 = vsel %vm1591, %v2194, %v2188
      %v2196 = vpack.c.bf16 %v2192, %v2192
      %v2197 = vpack.c.bf16 %v2195, %v2195
      %v2198 = vpack.c.bf16 %v2147, %v2147
      %v2199 = vld [vmem:[%s47] sm:$0xf]
      %v2200 = vld [vmem:[%s47 + $0x4] sm:$0xf]
      %v2201 = vld [vmem:[%s47 + $0x8] sm:$0xf]
      %v2202 = vld [vmem:[%s47 + $0xc] sm:$0xf]
      %v2203 = vld [vmem:[%s47 + $0x10] sm:$0xf]
      %v2204 = vld [vmem:[%s47 + $0x14] sm:$0xf]
      %v2205 = vld [vmem:[%s47 + $0x18] sm:$0xf]
      %v2206 = vld [vmem:[%s47 + $0x1c] sm:$0xf]
      %v2207 = vld [vmem:[%s47 + $0x20] sm:$0xf]
      %v2208 = vld [vmem:[%s47 + $0x24] sm:$0xf]
      %v2209 = vld [vmem:[%s47 + $0x28] sm:$0xf]
      %v2210 = vld [vmem:[%s47 + $0x2c] sm:$0xf]
      %v2211 = vld [vmem:[%s47 + $0x30] sm:$0xf]
      %v2212 = vld [vmem:[%s47 + $0x34] sm:$0xf]
      %v2213 = vld [vmem:[%s47 + $0x38] sm:$0xf]
      %v2214 = vld [vmem:[%s47 + $0x3c] sm:$0xf]
      %v2215 = vld [vmem:[%s47 + $0x40] sm:$0xf]
      %v2216 = vld [vmem:[%s47 + $0x44] sm:$0xf]
      %v2217 = vld [vmem:[%s47 + $0x48] sm:$0xf]
      %v2218 = vld [vmem:[%s47 + $0x4c] sm:$0xf]
      %v2219 = vld [vmem:[%s47 + $0x50] sm:$0xf]
      %v2220 = vld [vmem:[%s47 + $0x54] sm:$0xf]
      %v2221 = vld [vmem:[%s47 + $0x58] sm:$0xf]
      %v2222 = vld [vmem:[%s47 + $0x5c] sm:$0xf]
      %v2223 = vld [vmem:[%s47 + $0x60] sm:$0xf]
      %v2224 = vld [vmem:[%s47 + $0x64] sm:$0xf]
      %v2225 = vld [vmem:[%s47 + $0x68] sm:$0xf]
      %v2226 = vld [vmem:[%s47 + $0x6c] sm:$0xf]
      %v2227 = vld [vmem:[%s47 + $0x70] sm:$0xf]
      %v2228 = vld [vmem:[%s47 + $0x74] sm:$0xf]
      %v2229 = vld [vmem:[%s47 + $0x78] sm:$0xf]
      %v2230 = vld [vmem:[%s47 + $0x7c] sm:$0xf]
      %v2231 = vld [vmem:[%s47 + $0x80] sm:$0xf]
      %v2232 = vld [vmem:[%s47 + $0x84] sm:$0xf]
      %v2233 = vld [vmem:[%s47 + $0x88] sm:$0xf]
      %v2234 = vld [vmem:[%s47 + $0x8c] sm:$0xf]
      %v2235 = vld [vmem:[%s49] sm:$0x1]
      %v2237 = vperm.slane %v2235, 0
      %v2275 = vunpack.c.l.b16 %v2199
      %v2276 = vunpack.c.l.b16 %v2200
      %v2277 = vunpack.c.l.b16 %v2201
      %v2278 = vunpack.c.l.b16 %v2202
      %v2279 = vunpack.c.l.b16 %v2203
      %v2280 = vunpack.c.l.b16 %v2204
      %v2281 = vunpack.c.l.b16 %v2205
      %v2282 = vunpack.c.l.b16 %v2206
      %v2283 = vunpack.c.l.b16 %v2207
      %v2284 = vunpack.c.l.b16 %v2208
      %v2285 = vunpack.c.l.b16 %v2209
      %v2286 = vunpack.c.l.b16 %v2210
      %v2287 = vunpack.c.l.b16 %v2211
      %v2288 = vunpack.c.l.b16 %v2212
      %v2289 = vunpack.c.l.b16 %v2213
      %v2290 = vunpack.c.l.b16 %v2214
      %v2291 = vunpack.c.l.b16 %v2215
      %v2292 = vunpack.c.l.b16 %v2216
      %v2293 = vunpack.c.l.b16 %v2217
      %v2294 = vunpack.c.l.b16 %v2218
      %v2295 = vunpack.c.l.b16 %v2219
      %v2296 = vunpack.c.l.b16 %v2220
      %v2297 = vunpack.c.l.b16 %v2221
      %v2298 = vunpack.c.l.b16 %v2222
      %v2299 = vunpack.c.l.b16 %v2223
      %v2300 = vunpack.c.l.b16 %v2224
      %v2301 = vunpack.c.l.b16 %v2225
      %v2302 = vunpack.c.l.b16 %v2226
      %v2303 = vunpack.c.l.b16 %v2227
      %v2304 = vunpack.c.l.b16 %v2228
      %v2305 = vunpack.c.l.b16 %v2229
      %v2306 = vunpack.c.l.b16 %v2230
      %v2307 = vunpack.c.l.b16 %v2231
      %v2308 = vunpack.c.l.b16 %v2232
      %v2309 = vunpack.c.l.b16 %v2233
      %v2310 = vunpack.c.l.b16 %v2234
      %v2311 = vpack.c.b16 %v2276, %v2275
      %v2312 = vpack.c.b16 %v2278, %v2277
      %v2313 = vpack.c.b16 %v2280, %v2279
      %v2314 = vpack.c.b16 %v2282, %v2281
      %v2315 = vpack.c.b16 %v2284, %v2283
      %v2316 = vpack.c.b16 %v2286, %v2285
      %v2317 = vpack.c.b16 %v2288, %v2287
      %v2318 = vpack.c.b16 %v2290, %v2289
      %v2319 = vpack.c.b16 %v2292, %v2291
      %v2320 = vpack.c.b16 %v2294, %v2293
      %v2321 = vpack.c.b16 %v2296, %v2295
      %v2322 = vpack.c.b16 %v2298, %v2297
      %v2323 = vpack.c.b16 %v2300, %v2299
      %v2324 = vpack.c.b16 %v2302, %v2301
      %v2325 = vpack.c.b16 %v2304, %v2303
      %v2326 = vpack.c.b16 %v2306, %v2305
      %v2327 = vpack.c.b16 %v2308, %v2307
      %v2328 = vpack.c.b16 %v2310, %v2309
      %v2348 = vsel %vm1263, %v2198, 0
      %2350 = vmatpush.bf16.msra.mxu0 %v2318
      %2351 = vmatpush.bf16.msra.mxu0 %v2317
      %2352 = vmatpush.bf16.msra.mxu0 %v2316
      %2353 = vmatpush.bf16.msra.mxu0 %v2315
      %2354 = vmatpush.bf16.msra.mxu0 %v2314
      %2355 = vmatpush.bf16.msra.mxu0 %v2313
      %2356 = vmatpush.bf16.msra.mxu0 %v2312
      %2357 = vmatpush.bf16.msra.mxu0 %v2311
      %2358 = vmatmul.bf16.gmra.mxu0 %v2196
      %v2359 = vpop.f32.mrf.mxu0
      %v2360 = vadd.f32 %v2237, %v2359
      %v2361 = vpop.f32.mrf.mxu0
      %2362 = vdwg.mxu0
      %2363 = vmatpush.bf16.msra.mxu0 %v2326
      %2364 = vmatpush.bf16.msra.mxu0 %v2325
      %2365 = vmatpush.bf16.msra.mxu0 %v2324
      %2366 = vmatpush.bf16.msra.mxu0 %v2323
      %2367 = vmatpush.bf16.msra.mxu0 %v2322
      %2368 = vmatpush.bf16.msra.mxu0 %v2321
      %2369 = vmatpush.bf16.msra.mxu0 %v2320
      %2370 = vmatpush.bf16.msra.mxu0 %v2319
      %2371 = vmatmul.bf16.gmra.mxu0 %v2197
      %v2372 = vpop.f32.mrf.mxu0
      %v2373 = vadd.f32 %v2360, %v2372
      %v2374 = vpop.f32.mrf.mxu0
      %2375 = vdwg.mxu0
      %2376 = vmatpush.bf16.msra.mxu0 0
      %2377 = vmatpush.bf16.msra.mxu0 0
      %2378 = vmatpush.bf16.msra.mxu0 0
      %2379 = vmatpush.bf16.msra.mxu0 0
      %2380 = vmatpush.bf16.msra.mxu0 0
      %2381 = vmatpush.bf16.msra.mxu0 0
      %2382 = vmatpush.bf16.msra.mxu0 %v2328
      %2383 = vmatpush.bf16.msra.mxu0 %v2327
      %2384 = vmatmul.bf16.gmra.mxu0 %v2348
      %v2385 = vpop.f32.mrf.mxu0
      %v2386 = vadd.f32 %v2373, %v2385
      %v2387 = vpop.f32.mrf.mxu0
      %2388 = vdwg.mxu0
      %v2389 = vmul.f32 %v2386, 0.33333334
      %v2390 = vmul.f32 %v2389, %v2389
      %v2391 = vmul.f32 %v2389, %v2390
      %v2392 = vmul.f32 %v2391, 0.044715
      %v2393 = vadd.f32 %v2389, %v2392
      %v2394 = vmul.f32 %v2393, 0.7978846
      %v2395 = vtanh.pop %v2394
      %v2396 = vadd.f32 %v2395, 1.0
      %v2397 = vmul.f32 %v2396, 0.5
      %v2398 = vmul.f32 %v2389, %v2397
      %v2399 = vpack.c.bf16 %v2398, %v2398
      %v2400 = vld [vmem:[%s51] sm:$0xf]
      %v2401 = vld [vmem:[%s51 + $0x4] sm:$0xf]
      %v2402 = vld [vmem:[%s51 + $0x8] sm:$0xf]
      %v2403 = vld [vmem:[%s51 + $0xc] sm:$0xf]
      %v2404 = vld [vmem:[%s51 + $0x10] sm:$0xf]
      %v2405 = vld [vmem:[%s51 + $0x14] sm:$0xf]
      %v2406 = vld [vmem:[%s51 + $0x18] sm:$0xf]
      %v2407 = vld [vmem:[%s51 + $0x1c] sm:$0xf]
      %v2408 = vld [vmem:[%s51 + $0x20] sm:$0xf]
      %v2409 = vld [vmem:[%s51 + $0x24] sm:$0xf]
      %v2410 = vld [vmem:[%s51 + $0x28] sm:$0xf]
      %v2411 = vld [vmem:[%s51 + $0x2c] sm:$0xf]
      %v2412 = vld [vmem:[%s51 + $0x30] sm:$0xf]
      %v2413 = vld [vmem:[%s51 + $0x34] sm:$0xf]
      %v2414 = vld [vmem:[%s51 + $0x38] sm:$0xf]
      %v2415 = vld [vmem:[%s51 + $0x3c] sm:$0xf]
      %v2416 = vld [vmem:[%s53] sm:$0x1]
      %v2418 = vperm.slane %v2416, 0
      %v2436 = vunpack.c.l.b16 %v2400
      %v2437 = vunpack.c.l.b16 %v2401
      %v2438 = vunpack.c.l.b16 %v2402
      %v2439 = vunpack.c.l.b16 %v2403
      %v2440 = vunpack.c.l.b16 %v2404
      %v2441 = vunpack.c.l.b16 %v2405
      %v2442 = vunpack.c.l.b16 %v2406
      %v2443 = vunpack.c.l.b16 %v2407
      %v2444 = vunpack.c.l.b16 %v2408
      %v2445 = vunpack.c.l.b16 %v2409
      %v2446 = vunpack.c.l.b16 %v2410
      %v2447 = vunpack.c.l.b16 %v2411
      %v2448 = vunpack.c.l.b16 %v2412
      %v2449 = vunpack.c.l.b16 %v2413
      %v2450 = vunpack.c.l.b16 %v2414
      %v2451 = vunpack.c.l.b16 %v2415
      %v2452 = vpack.c.b16 %v2437, %v2436
      %v2453 = vpack.c.b16 %v2439, %v2438
      %v2454 = vpack.c.b16 %v2441, %v2440
      %v2455 = vpack.c.b16 %v2443, %v2442
      %v2456 = vpack.c.b16 %v2445, %v2444
      %v2457 = vpack.c.b16 %v2447, %v2446
      %v2458 = vpack.c.b16 %v2449, %v2448
      %v2459 = vpack.c.b16 %v2451, %v2450
      %2468 = vmatpush.bf16.msra.mxu0 %v2459
      %2469 = vmatpush.bf16.msra.mxu0 %v2458
      %2470 = vmatpush.bf16.msra.mxu0 %v2457
      %2471 = vmatpush.bf16.msra.mxu0 %v2456
      %2472 = vmatpush.bf16.msra.mxu0 %v2455
      %2473 = vmatpush.bf16.msra.mxu0 %v2454
      %2474 = vmatpush.bf16.msra.mxu0 %v2453
      %2475 = vmatpush.bf16.msra.mxu0 %v2452
      %2476 = vmatmul.bf16.gmra.mxu0 %v2399
      %v2477 = vpop.f32.mrf.mxu0
      %v2478 = vadd.f32 %v2418, %v2477
      %v2479 = vpop.f32.mrf.mxu0
      %2480 = vdwg.mxu0
      %v2481 = vadd.f32 %v2110, %v2478
      %v2482 = vmul.f32 %v2481, %v1258
      %v2483 = vld [vmem:[%s55] sm:$0x1]
      %v2484 = vld [vmem:[%s57] sm:$0x1]
      %v2485 = vsel %vm1263, %v2482, 0.0
      %2486 = vadd.xlane.f32.xlu0 %v2485
      %v2487 = vpop.xlane.xlu0 %2486
      %v2488 = vmul.f32 %v2487, %v1273
      %v2489 = vsub.f32 %v2482, %v2488
      %v2490 = vmul.f32 %v2489, %v2489
      %v2491 = vsel %vm1263, %v2490, 0.0
      %2492 = vadd.xlane.f32.xlu0 %v2491
      %v2493 = vpop.xlane.xlu0 %2492
      %v2494 = vmul.f32 %v2493, %v1273
      %v2495 = vadd.f32 %v2494, 1e-05
      %v2496 = vrsqrt.pop %v2495
      %v2497 = vmul.f32 %v2496, %v2495
      %v2498 = vmul.f32 %v2497, %v2496
      %v2499 = vmul.f32 0.5, %v2498
      %v2500 = vsub.f32 1.5, %v2499
      %v2501 = vmul.f32 %v2496, %v2500
      %vm2502 = vweird.f32 %v2495
      %vm2503 = vweird.f32 %v2496
      %vm2504 = vmor %vm2502, %vm2503
      %v2505 = vsel %vm2504, %v2496, %v2501
      %v2506 = vmul.f32 %v2489, %v2505
      %v2508 = vperm.slane %v2483, 0
      %v2510 = vmul.f32 %v2506, %v2508
      %v2512 = vperm.slane %v2484, 0
      %v2514 = vadd.f32 %v2510, %v2512
      %v2515 = vmul.f32 %v2514, %v1258
      %2516 = vst.msk [vmem:[%s1245] sm:$0xff] %vm1263, %v2515
      %v2518 = vrot.slane %v2515, 7
      %v2520 = vsel %vm1581, 0.0, %v2518
      %v2521 = vsel %vm1581, %v2518, 0.0
      %v2524 = vrot.slane %v2520, 1
      %v2525 = vrot.slane %v2521, 1
      %v2526 = vsel %vm1542, %v2524, %v2525
      %2527 = vrot.lane.b32.xlu0 %v2526, 32
      %v2528 = vpop.permute.xlu0 %2527
      %v2530 = vrot.slane %v2520, 2
      %v2531 = vrot.slane %v2521, 2
      %v2532 = vsel %vm1549, %v2530, %v2531
      %2533 = vrot.lane.b32.xlu0 %v2532, 64
      %v2534 = vpop.permute.xlu0 %2533
      %v2536 = vsel %vm1263, %v2520, %v2528
      %v2537 = vsel %vm1589, %v2536, %v2534
      %v2538 = vpack.c.bf16 %v2537, %v2537
      %v2539 = vld [vmem:[%s59] sm:$0xf]
      %v2540 = vld [vmem:[%s59 + $0x4] sm:$0xf]
      %v2541 = vld [vmem:[%s59 + $0x8] sm:$0xf]
      %v2542 = vld [vmem:[%s59 + $0xc] sm:$0xf]
      %v2543 = vld [vmem:[%s59 + $0x10] sm:$0xf]
      %v2544 = vld [vmem:[%s59 + $0x14] sm:$0xf]
      %v2545 = vld [vmem:[%s59 + $0x18] sm:$0xf]
      %v2546 = vld [vmem:[%s59 + $0x1c] sm:$0xf]
      %v2547 = vld [vmem:[%s59 + $0x20] sm:$0xf]
      %v2548 = vld [vmem:[%s59 + $0x24] sm:$0xf]
      %v2549 = vld [vmem:[%s59 + $0x28] sm:$0xf]
      %v2550 = vld [vmem:[%s59 + $0x2c] sm:$0xf]
      %v2551 = vld [vmem:[%s61] sm:$0x1]
      %v2553 = vperm.slane %v2551, 0
      %v2567 = vunpack.c.l.b16 %v2539
      %v2568 = vunpack.c.l.b16 %v2540
      %v2569 = vunpack.c.l.b16 %v2541
      %v2570 = vunpack.c.l.b16 %v2542
      %v2571 = vunpack.c.l.b16 %v2543
      %v2572 = vunpack.c.l.b16 %v2544
      %v2573 = vunpack.c.l.b16 %v2545
      %v2574 = vunpack.c.l.b16 %v2546
      %v2575 = vunpack.c.l.b16 %v2547
      %v2576 = vunpack.c.l.b16 %v2548
      %v2577 = vunpack.c.l.b16 %v2549
      %v2578 = vunpack.c.l.b16 %v2550
      %v2579 = vpack.c.b16 %v2568, %v2567
      %v2580 = vpack.c.b16 %v2570, %v2569
      %v2581 = vpack.c.b16 %v2572, %v2571
      %v2582 = vpack.c.b16 %v2574, %v2573
      %v2583 = vpack.c.b16 %v2576, %v2575
      %v2584 = vpack.c.b16 %v2578, %v2577
      %v2592 = vsel %vm1591, %v2538, 0
      %2594 = vmatpush.bf16.msra.mxu0 0
      %2595 = vmatpush.bf16.msra.mxu0 0
      %2596 = vmatpush.bf16.msra.mxu0 %v2584
      %2597 = vmatpush.bf16.msra.mxu0 %v2583
      %2598 = vmatpush.bf16.msra.mxu0 %v2582
      %2599 = vmatpush.bf16.msra.mxu0 %v2581
      %2600 = vmatpush.bf16.msra.mxu0 %v2580
      %2601 = vmatpush.bf16.msra.mxu0 %v2579
      %2602 = vmatmul.bf16.gmra.mxu0 %v2592
      %v2603 = vpop.f32.mrf.mxu0
      %v2604 = vadd.f32 %v2553, %v2603
      %v2605 = vpop.f32.mrf.mxu0
      %2606 = vdwg.mxu0
      %v2607 = vmax.f32 %v2604, 0.0
      %v2608 = vld [vmem:[%s63] sm:$0x1]
      %v2609 = vld [vmem:[%s65] sm:$0x1]
      %v2610 = vsel %vm1263, %v2607, 0.0
      %2611 = vadd.xlane.f32.xlu0 %v2610
      %v2612 = vpop.xlane.xlu0 %2611
      %v2613 = vmul.f32 %v2612, %v1273
      %v2614 = vsub.f32 %v2607, %v2613
      %v2615 = vmul.f32 %v2614, %v2614
      %v2616 = vsel %vm1263, %v2615, 0.0
      %2617 = vadd.xlane.f32.xlu0 %v2616
      %v2618 = vpop.xlane.xlu0 %2617
      %v2619 = vmul.f32 %v2618, %v1273
      %v2620 = vadd.f32 %v2619, 1e-12
      %v2621 = vrsqrt.pop %v2620
      %v2622 = vmul.f32 %v2621, %v2620
      %v2623 = vmul.f32 %v2622, %v2621
      %v2624 = vmul.f32 0.5, %v2623
      %v2625 = vsub.f32 1.5, %v2624
      %v2626 = vmul.f32 %v2621, %v2625
      %vm2627 = vweird.f32 %v2620
      %vm2628 = vweird.f32 %v2621
      %vm2629 = vmor %vm2627, %vm2628
      %v2630 = vsel %vm2629, %v2621, %v2626
      %v2631 = vmul.f32 %v2614, %v2630
      %v2633 = vperm.slane %v2608, 0
      %v2635 = vmul.f32 %v2631, %v2633
      %v2637 = vperm.slane %v2609, 0
      %v2639 = vadd.f32 %v2635, %v2637
      %v2640 = vmul.f32 %v2639, %v1258
      %v2642 = vrot.slane %v2640, 7
      %v2644 = vsel %vm1581, 0.0, %v2642
      %v2645 = vsel %vm1581, %v2642, 0.0
      %v2648 = vrot.slane %v2644, 1
      %v2649 = vrot.slane %v2645, 1
      %v2650 = vsel %vm1542, %v2648, %v2649
      %2651 = vrot.lane.b32.xlu0 %v2650, 32
      %v2652 = vpop.permute.xlu0 %2651
      %v2654 = vrot.slane %v2644, 2
      %v2655 = vrot.slane %v2645, 2
      %v2656 = vsel %vm1549, %v2654, %v2655
      %2657 = vrot.lane.b32.xlu0 %v2656, 64
      %v2658 = vpop.permute.xlu0 %2657
      %v2660 = vsel %vm1263, %v2644, %v2652
      %v2661 = vsel %vm1589, %v2660, %v2658
      %v2662 = vpack.c.bf16 %v2661, %v2661
      %v2663 = vld [vmem:[%s67] sm:$0xf]
      %v2664 = vld [vmem:[%s67 + $0x4] sm:$0xf]
      %v2665 = vld [vmem:[%s67 + $0x8] sm:$0xf]
      %v2666 = vld [vmem:[%s67 + $0xc] sm:$0xf]
      %v2667 = vld [vmem:[%s67 + $0x10] sm:$0xf]
      %v2668 = vld [vmem:[%s67 + $0x14] sm:$0xf]
      %v2669 = vld [vmem:[%s67 + $0x18] sm:$0xf]
      %v2670 = vld [vmem:[%s67 + $0x1c] sm:$0xf]
      %v2671 = vld [vmem:[%s67 + $0x20] sm:$0xf]
      %v2672 = vld [vmem:[%s67 + $0x24] sm:$0xf]
      %v2673 = vld [vmem:[%s67 + $0x28] sm:$0xf]
      %v2674 = vld [vmem:[%s67 + $0x2c] sm:$0xf]
      %v2675 = vld [vmem:[%s69] sm:$0x1]
      %v2677 = vperm.slane %v2675, 0
      %v2691 = vunpack.c.l.b16 %v2663
      %v2692 = vunpack.c.l.b16 %v2664
      %v2693 = vunpack.c.l.b16 %v2665
      %v2694 = vunpack.c.l.b16 %v2666
      %v2695 = vunpack.c.l.b16 %v2667
      %v2696 = vunpack.c.l.b16 %v2668
      %v2697 = vunpack.c.l.b16 %v2669
      %v2698 = vunpack.c.l.b16 %v2670
      %v2699 = vunpack.c.l.b16 %v2671
      %v2700 = vunpack.c.l.b16 %v2672
      %v2701 = vunpack.c.l.b16 %v2673
      %v2702 = vunpack.c.l.b16 %v2674
      %v2703 = vpack.c.b16 %v2692, %v2691
      %v2704 = vpack.c.b16 %v2694, %v2693
      %v2705 = vpack.c.b16 %v2696, %v2695
      %v2706 = vpack.c.b16 %v2698, %v2697
      %v2707 = vpack.c.b16 %v2700, %v2699
      %v2708 = vpack.c.b16 %v2702, %v2701
      %v2716 = vsel %vm1591, %v2662, 0
      %2718 = vmatpush.bf16.msra.mxu0 0
      %2719 = vmatpush.bf16.msra.mxu0 0
      %2720 = vmatpush.bf16.msra.mxu0 %v2708
      %2721 = vmatpush.bf16.msra.mxu0 %v2707
      %2722 = vmatpush.bf16.msra.mxu0 %v2706
      %2723 = vmatpush.bf16.msra.mxu0 %v2705
      %2724 = vmatpush.bf16.msra.mxu0 %v2704
      %2725 = vmatpush.bf16.msra.mxu0 %v2703
      %2726 = vmatmul.bf16.gmra.mxu0 %v2716
      %v2727 = vpop.f32.mrf.mxu0
      %v2728 = vadd.f32 %v2677, %v2727
      %v2729 = vpop.f32.mrf.mxu0
      %2730 = vdwg.mxu0
      %v2731 = vmax.f32 %v2728, 0.0
      %v2732 = vld [vmem:[%s71] sm:$0x1]
      %v2733 = vld [vmem:[%s73] sm:$0x1]
      %v2734 = vsel %vm1263, %v2731, 0.0
      %2735 = vadd.xlane.f32.xlu0 %v2734
      %v2736 = vpop.xlane.xlu0 %2735
      %v2737 = vmul.f32 %v2736, %v1273
      %v2738 = vsub.f32 %v2731, %v2737
      %v2739 = vmul.f32 %v2738, %v2738
      %v2740 = vsel %vm1263, %v2739, 0.0
      %2741 = vadd.xlane.f32.xlu0 %v2740
      %v2742 = vpop.xlane.xlu0 %2741
      %v2743 = vmul.f32 %v2742, %v1273
      %v2744 = vadd.f32 %v2743, 1e-12
      %v2745 = vrsqrt.pop %v2744
      %v2746 = vmul.f32 %v2745, %v2744
      %v2747 = vmul.f32 %v2746, %v2745
      %v2748 = vmul.f32 0.5, %v2747
      %v2749 = vsub.f32 1.5, %v2748
      %v2750 = vmul.f32 %v2745, %v2749
      %vm2751 = vweird.f32 %v2744
      %vm2752 = vweird.f32 %v2745
      %vm2753 = vmor %vm2751, %vm2752
      %v2754 = vsel %vm2753, %v2745, %v2750
      %v2755 = vmul.f32 %v2738, %v2754
      %v2757 = vperm.slane %v2732, 0
      %v2759 = vmul.f32 %v2755, %v2757
      %v2761 = vperm.slane %v2733, 0
      %v2763 = vadd.f32 %v2759, %v2761
      %v2764 = vmul.f32 %v2763, %v1258
      %v2765 = vpack.c.bf16 %v2764, %v2764
      %v2766 = vld [vmem:[%s75] sm:$0xf]
      %v2767 = vld [vmem:[%s75 + $0x4] sm:$0xf]
      %v2768 = vld [vmem:[%s75 + $0x8] sm:$0xf]
      %v2769 = vld [vmem:[%s75 + $0xc] sm:$0xf]
      %v2770 = vld [vmem:[#allocation2] sm:$0x1]
      %v2772 = vperm.slane %v2770, 0
      %v2778 = vunpack.c.l.b16 %v2766
      %v2779 = vunpack.c.l.b16 %v2767
      %v2780 = vunpack.c.l.b16 %v2768
      %v2781 = vunpack.c.l.b16 %v2769
      %v2782 = vpack.c.b16 %v2779, %v2778
      %v2783 = vpack.c.b16 %v2781, %v2780
      %v2787 = vsel %vm1263, %v2765, 0
      %2789 = vmatpush.bf16.msra.mxu0 0
      %2790 = vmatpush.bf16.msra.mxu0 0
      %2791 = vmatpush.bf16.msra.mxu0 0
      %2792 = vmatpush.bf16.msra.mxu0 0
      %2793 = vmatpush.bf16.msra.mxu0 0
      %2794 = vmatpush.bf16.msra.mxu0 0
      %2795 = vmatpush.bf16.msra.mxu0 %v2783
      %2796 = vmatpush.bf16.msra.mxu0 %v2782
      %2797 = vmatmul.bf16.gmra.mxu0 %v2787
      %v2798 = vpop.f32.mrf.mxu0
      %v2799 = vadd.f32 %v2772, %v2798
      %v2800 = vpop.f32.mrf.mxu0
      %2801 = vdwg.mxu0
      %v2802 = vmax.f32 %v2799, 0.0
      %v2803 = vand.u32 2147483647, %v2799
      %v2804 = vsub.f32 0.0, %v2803
      %v2805 = vmul.f32 %v2804, 1.442695
      %v2806 = vpow.pop %v2805
      %v2807 = vadd.f32 %v2806, 1.0
      %v2808 = vlog2.pop %v2807
      %v2809 = vmul.f32 %v2808, 0.6931472
      %v2810 = vadd.f32 %v2802, %v2809
      %v2811 = vmul.f32 %v2810, %v1251
      %vm2812 = vcmask 7168
      %2813 = vst.msk [vmem:[%s1249] sm:$0xff] %vm2812, %v2811
      %p2814 = scmp.lt.s32.totalorder %s95, 1
      %s2815 = scalar_select %p2814, %s95, 1
      %s2816 = smul.addr %s2815, 8
      %s2817 = scalar_lea.vmem %s79, %s2816
      %p2818 = scmp.lt.s32.totalorder %s95, 1
      %s2819 = scalar_select %p2818, %s95, 1
      %s2820 = smul.addr %s2819, 8
      %s2821 = scalar_lea.vmem %s81, %s2820
      // Predicated region
      $region177: #{_lambda_.2} parent=175 // pred_check
        %p2822 = pneg %p947
      $region178: #{_lambda_.2} parent=175 // pred_check_branch
        %2824 = sbr.rel (%p2822) target = $region180
      $region179: #{_lambda_.2} parent=175 // pred_region
        _
      $region180: #{_lambda_.2} parent=175 // pred_fallthru
        _
      // Predicated region
      $region181: #{_lambda_.2} parent=175 // pred_check
        %p2825 = pneg %p973
      $region182: #{_lambda_.2} parent=175 // pred_check_branch
        %2827 = sbr.rel (%p2825) target = $region184
      $region183: #{_lambda_.2} parent=175 // pred_region
        _
      $region184: #{_lambda_.2} parent=175 // pred_fallthru
        _
    $region176: #{_lambda_.2} parent=5 // pred_fallthru
      _
    %p2828 = scmp.le.s32.totalorder 2, %s90
    // Predicated region
    $region185: #{_lambda_.2} parent=5 // pred_check
      %p2829 = pneg %p2828
    $region186: #{_lambda_.2} parent=5 // pred_check_branch
      %2831 = sbr.rel (%p2829) target = $region188
    $region187: #{_lambda_.2} parent=5 // pred_region
      %s2832 = ssub.s32 %s90, 2
      // Predicated region
      $region189: #{_lambda_.2} parent=187 // pred_check
        %p2833 = pneg %p953
      $region190: #{_lambda_.2} parent=187 // pred_check_branch
        %2835 = sbr.rel (%p2833) target = $region192
      $region191: #{_lambda_.2} parent=187 // pred_region
        %p2836 = scmp.lt.s32.totalorder %s96, 1
        %s2837 = scalar_select %p2836, %s96, 1
        %s2838 = smul.addr %s2837, 8
        %s2839 = scalar_lea.vmem %s79, %s2838
      $region192: #{_lambda_.2} parent=187 // pred_fallthru
        _
      // Predicated region
      $region193: #{_lambda_.2} parent=187 // pred_check
        %p2840 = pneg %p979
      $region194: #{_lambda_.2} parent=187 // pred_check_branch
        %2842 = sbr.rel (%p2840) target = $region196
      $region195: #{_lambda_.2} parent=187 // pred_region
        %p2843 = scmp.lt.s32.totalorder %s96, 1
        %s2844 = scalar_select %p2843, %s96, 1
        %s2845 = smul.addr %s2844, 8
        %s2846 = scalar_lea.vmem %s81, %s2845
      $region196: #{_lambda_.2} parent=187 // pred_fallthru
        _
    $region188: #{_lambda_.2} parent=5 // pred_fallthru
      _
  $region6: #{_lambda_.2} parent=0 // loop_footer
    %s94 = sadd.s32 1, %s90
  $region7: #{_lambda_.2} parent=0 // loop_footer_branch
    %89 = sbr.rel target = $region3
  $region8: #{_lambda_.2} parent=0 // loop_exit
    _

// kernel: _lambda_.3
$region0: #{_lambda_.3}
  #allocation0 [shape = 'u32[]', space=smem, size = 0x4, offset = 0x4, fixed_abs, tag = 'smem constant byte address 0x4 - core index']
  #allocation1 [shape = 'u32[72,128]{1,0:T(1,128)}', space=vmem, size = 0x9000, scoped, tag = 'internal scratch']
  %s0 = inlined_call_operand.smem [shape: u32[34], index: -1, kind: input, shape index: {}]
  %s1 = sld [smem:[%s0]]
  %s2 = scalar_lea.smem %s0, 1
  %s3 = sld [smem:[%s2]]
  %s4 = scalar_lea.smem %s0, 2
  %s5 = sld [smem:[%s4]]
  %s6 = scalar_lea.smem %s0, 3
  %s7 = sld [smem:[%s6]]
  %s8 = scalar_lea.smem %s0, 4
  %s9 = sld [smem:[%s8]]
  %s10 = scalar_lea.smem %s0, 5
  %s11 = sld [smem:[%s10]]
  %s12 = scalar_lea.smem %s0, 6
  %s13 = sld [smem:[%s12]]
  %s14 = scalar_lea.smem %s0, 7
  %s15 = sld [smem:[%s14]]
  %s16 = scalar_lea.smem %s0, 8
  %s17 = sld [smem:[%s16]]
  %s18 = scalar_lea.smem %s0, 9
  %s19 = sld [smem:[%s18]]
  %s20 = scalar_lea.smem %s0, 10
  %s21 = sld [smem:[%s20]]
  %s22 = scalar_lea.smem %s0, 11
  %s23 = sld [smem:[%s22]]
  %s24 = scalar_lea.smem %s0, 12
  %s25 = sld [smem:[%s24]]
  %s26 = scalar_lea.smem %s0, 13
  %s27 = sld [smem:[%s26]]
  %s28 = scalar_lea.smem %s0, 14
  %s29 = sld [smem:[%s28]]
  %s30 = scalar_lea.smem %s0, 15
  %s31 = sld [smem:[%s30]]
  %s32 = scalar_lea.smem %s0, 16
  %s33 = sld [smem:[%s32]]
  %s34 = scalar_lea.smem %s0, 17
  %s35 = sld [smem:[%s34]]
  %s36 = scalar_lea.smem %s0, 18
  %s37 = sld [smem:[%s36]]
  %s38 = scalar_lea.smem %s0, 19
  %s39 = sld [smem:[%s38]]
  %s40 = scalar_lea.smem %s0, 20
  %s41 = sld [smem:[%s40]]
  %s42 = scalar_lea.smem %s0, 21
  %s43 = sld [smem:[%s42]]
  %s44 = scalar_lea.smem %s0, 22
  %s45 = sld [smem:[%s44]]
  %s46 = scalar_lea.smem %s0, 23
  %s47 = sld [smem:[%s46]]
  %s48 = scalar_lea.smem %s0, 24
  %s49 = sld [smem:[%s48]]
  %s50 = scalar_lea.smem %s0, 25
  %s51 = sld [smem:[%s50]]
  %s52 = scalar_lea.smem %s0, 26
  %s53 = sld [smem:[%s52]]
  %s54 = scalar_lea.smem %s0, 27
  %s55 = sld [smem:[%s54]]
  %s56 = scalar_lea.smem %s0, 28
  %s57 = sld [smem:[%s56]]
  %s58 = scalar_lea.smem %s0, 29
  %s59 = sld [smem:[%s58]]
  %s60 = scalar_lea.smem %s0, 30
  %s61 = sld [smem:[%s60]]
  %s62 = scalar_lea.smem %s0, 31
  %s63 = sld [smem:[%s62]]
  %s64 = scalar_lea.smem %s0, 32
  %s65 = sld [smem:[%s64]]
  %s66 = scalar_lea.smem %s0, 33
  %s67 = sld [smem:[%s66]]
  %s68 = sld [smem:[#allocation0]]
  $region165: #{_lambda_.3} parent=0
    _
  %s70 = ssub.s32 1, %s68
  %s71 = scalar_select 0, %s70, %s68
  $region1: #{_lambda_.3} parent=0
    #allocation2 [shape = 'u8[16384]{0}', space=vmem, size = 0x4000, scoped, tag = 'output window, operand 0']
    #allocation3 [shape = 's32[2]{0}', space=sflag, size = 0x8, scoped, tag = 'scoped memory for _lambda_.3']
    %72 = vsyncpa [#allocation3], 0
    %s73 = scalar_lea.sflag [#allocation3], 1
    %74 = vsyncpa %s73, 0
    loop: start=0, step=1, limit=4
    $region2: #{_lambda_.3} parent=1 // loop_pre_header
      _
    $region3: #{_lambda_.3} parent=1 // loop_header
      %s76 = sphi 0, %s80
      %p77 = scmp.ge.s32.totalorder %s76, 4
      %s86 = sphi 0, %s88
      %s89 = sphi 0, %s86
      %s90 = sphi 0, %s89
      %s106 = sphi 0, %s90
      %s112 = sphi 0, %s114
      %s115 = sphi 0, %s112
      %s116 = sphi 0, %s115
      %s132 = sphi 0, %s116
      %s138 = sphi 0, %s140
      %s141 = sphi 0, %s138
      %s142 = sphi 0, %s141
      %s158 = sphi 0, %s142
      %s164 = sphi 0, %s166
      %s167 = sphi 0, %s164
      %s168 = sphi 0, %s167
      %s184 = sphi 0, %s168
      %s188 = sphi 0, %s188
      %s190 = sphi 0, %s188
      %s191 = sphi 0, %s190
      %s205 = sphi 0, %s191
      %s209 = sphi 0, %s209
      %s211 = sphi 0, %s209
      %s212 = sphi 0, %s211
      %s226 = sphi 0, %s212
      %s230 = sphi 0, %s230
      %s232 = sphi 0, %s230
      %s233 = sphi 0, %s232
      %s247 = sphi 0, %s233
      %s251 = sphi 0, %s251
      %s253 = sphi 0, %s251
      %s254 = sphi 0, %s253
      %s268 = sphi 0, %s254
      %s272 = sphi 0, %s272
      %s274 = sphi 0, %s272
      %s275 = sphi 0, %s274
      %s289 = sphi 0, %s275
      %s293 = sphi 0, %s293
      %s295 = sphi 0, %s293
      %s296 = sphi 0, %s295
      %s310 = sphi 0, %s296
      %s314 = sphi 0, %s314
      %s316 = sphi 0, %s314
      %s317 = sphi 0, %s316
      %s331 = sphi 0, %s317
      %s335 = sphi 0, %s335
      %s337 = sphi 0, %s335
      %s338 = sphi 0, %s337
      %s352 = sphi 0, %s338
      %s356 = sphi 0, %s356
      %s358 = sphi 0, %s356
      %s359 = sphi 0, %s358
      %s373 = sphi 0, %s359
      %s377 = sphi 0, %s377
      %s379 = sphi 0, %s377
      %s380 = sphi 0, %s379
      %s394 = sphi 0, %s380
      %s398 = sphi 0, %s398
      %s400 = sphi 0, %s398
      %s401 = sphi 0, %s400
      %s415 = sphi 0, %s401
      %s419 = sphi 0, %s419
      %s421 = sphi 0, %s419
      %s422 = sphi 0, %s421
      %s436 = sphi 0, %s422
      %s440 = sphi 0, %s440
      %s442 = sphi 0, %s440
      %s443 = sphi 0, %s442
      %s457 = sphi 0, %s443
      %s461 = sphi 0, %s461
      %s463 = sphi 0, %s461
      %s464 = sphi 0, %s463
      %s478 = sphi 0, %s464
      %s482 = sphi 0, %s482
      %s484 = sphi 0, %s482
      %s485 = sphi 0, %s484
      %s499 = sphi 0, %s485
      %s503 = sphi 0, %s503
      %s505 = sphi 0, %s503
      %s506 = sphi 0, %s505
      %s520 = sphi 0, %s506
      %s524 = sphi 0, %s524
      %s526 = sphi 0, %s524
      %s527 = sphi 0, %s526
      %s541 = sphi 0, %s527
      %s545 = sphi 0, %s545
      %s547 = sphi 0, %s545
      %s548 = sphi 0, %s547
      %s562 = sphi 0, %s548
      %s566 = sphi 0, %s566
      %s568 = sphi 0, %s566
      %s569 = sphi 0, %s568
      %s583 = sphi 0, %s569
      %s587 = sphi 0, %s587
      %s589 = sphi 0, %s587
      %s590 = sphi 0, %s589
      %s604 = sphi 0, %s590
      %s608 = sphi 0, %s608
      %s610 = sphi 0, %s608
      %s611 = sphi 0, %s610
      %s625 = sphi 0, %s611
      %s629 = sphi 0, %s629
      %s631 = sphi 0, %s629
      %s632 = sphi 0, %s631
      %s646 = sphi 0, %s632
      %s650 = sphi 0, %s650
      %s652 = sphi 0, %s650
      %s653 = sphi 0, %s652
      %s667 = sphi 0, %s653
      %s671 = sphi 0, %s671
      %s673 = sphi 0, %s671
      %s674 = sphi 0, %s673
      %s688 = sphi 0, %s674
      %s692 = sphi 0, %s692
      %s694 = sphi 0, %s692
      %s695 = sphi 0, %s694
      %s709 = sphi 0, %s695
      %s713 = sphi 0, %s713
      %s715 = sphi 0, %s713
      %s716 = sphi 0, %s715
      %s730 = sphi 0, %s716
      %s734 = sphi 0, %s734
      %s736 = sphi 0, %s734
      %s737 = sphi 0, %s736
      %s751 = sphi 0, %s737
      %s755 = sphi 0, %s755
      %s757 = sphi 0, %s755
      %s758 = sphi 0, %s757
      %s772 = sphi 0, %s758
      %s778 = sphi 0, %s780
      %s781 = sphi 0, %s778
      %s782 = sphi 0, %s781
      %s798 = sphi 0, %s782
      %s804 = sphi 0, %s806
      %s807 = sphi 0, %s804
      %s808 = sphi 0, %s807
      %s824 = sphi 0, %s808
    $region4: #{_lambda_.3} parent=1 // loop_header_branch
      %79 = sbr.rel (%p77) target = $region8
    $region5: #{_lambda_.3} parent=1 // loop_body
      %s81 = ssub.s32 %s76, 1
      %s82 = ssub.s32 %s76, 2
      %s83 = sadd.s32 %s76, 1
      %s84 = ssub.s32 %s76, %s83
      %p85 = scmp.eq.s32.totalorder %s84, 0
      %s87 = sadd.s32 %s86, 1
      %s88 = scalar_select %p85, %s86, %s87
      %p91 = pneg %p85
      %p92 = scmp.eq.s32.totalorder %s76, 1
      %p93 = por %p91, %p92
      %p94 = scmp.ne.s32.totalorder %s86, %s89
      %p95 = scmp.eq.s32.totalorder %s76, 0
      %p96 = por %p94, %p95
      %p97 = scmp.ne.s32.totalorder %s86, %s89
      %p98 = scmp.eq.s32.totalorder %s81, 1
      %p99 = por %p97, %p98
      %p100 = scmp.ne.s32.totalorder %s89, %s90
      %p101 = scmp.eq.s32.totalorder %s81, 0
      %p102 = por %p100, %p101
      %p103 = scmp.ne.s32.totalorder %s89, %s90
      %p104 = scmp.eq.s32.totalorder %s82, 1
      %p105 = por %p103, %p104
      %p107 = scmp.ne.s32.totalorder %s90, %s106
      %p108 = scmp.eq.s32.totalorder %s82, 0
      %p109 = por %p107, %p108
      %s110 = ssub.s32 %s76, %s83
      %p111 = scmp.eq.s32.totalorder %s110, 0
      %s113 = sadd.s32 %s112, 1
      %s114 = scalar_select %p111, %s112, %s113
      %p117 = pneg %p111
      %p118 = scmp.eq.s32.totalorder %s76, 1
      %p119 = por %p117, %p118
      %p120 = scmp.ne.s32.totalorder %s112, %s115
      %p121 = scmp.eq.s32.totalorder %s76, 0
      %p122 = por %p120, %p121
      %p123 = scmp.ne.s32.totalorder %s112, %s115
      %p124 = scmp.eq.s32.totalorder %s81, 1
      %p125 = por %p123, %p124
      %p126 = scmp.ne.s32.totalorder %s115, %s116
      %p127 = scmp.eq.s32.totalorder %s81, 0
      %p128 = por %p126, %p127
      %p129 = scmp.ne.s32.totalorder %s115, %s116
      %p130 = scmp.eq.s32.totalorder %s82, 1
      %p131 = por %p129, %p130
      %p133 = scmp.ne.s32.totalorder %s116, %s132
      %p134 = scmp.eq.s32.totalorder %s82, 0
      %p135 = por %p133, %p134
      %s136 = ssub.s32 %s76, %s83
      %p137 = scmp.eq.s32.totalorder %s136, 0
      %s139 = sadd.s32 %s138, 1
      %s140 = scalar_select %p137, %s138, %s139
      %p143 = pneg %p137
      %p144 = scmp.eq.s32.totalorder %s76, 1
      %p145 = por %p143, %p144
      %p146 = scmp.ne.s32.totalorder %s138, %s141
      %p147 = scmp.eq.s32.totalorder %s76, 0
      %p148 = por %p146, %p147
      %p149 = scmp.ne.s32.totalorder %s138, %s141
      %p150 = scmp.eq.s32.totalorder %s81, 1
      %p151 = por %p149, %p150
      %p152 = scmp.ne.s32.totalorder %s141, %s142
      %p153 = scmp.eq.s32.totalorder %s81, 0
      %p154 = por %p152, %p153
      %p155 = scmp.ne.s32.totalorder %s141, %s142
      %p156 = scmp.eq.s32.totalorder %s82, 1
      %p157 = por %p155, %p156
      %p159 = scmp.ne.s32.totalorder %s142, %s158
      %p160 = scmp.eq.s32.totalorder %s82, 0
      %p161 = por %p159, %p160
      %s162 = ssub.s32 %s76, %s83
      %p163 = scmp.eq.s32.totalorder %s162, 0
      %s165 = sadd.s32 %s164, 1
      %s166 = scalar_select %p163, %s164, %s165
      %p169 = pneg %p163
      %p170 = scmp.eq.s32.totalorder %s76, 1
      %p171 = por %p169, %p170
      %p172 = scmp.ne.s32.totalorder %s164, %s167
      %p173 = scmp.eq.s32.totalorder %s76, 0
      %p174 = por %p172, %p173
      %p175 = scmp.ne.s32.totalorder %s164, %s167
      %p176 = scmp.eq.s32.totalorder %s81, 1
      %p177 = por %p175, %p176
      %p178 = scmp.ne.s32.totalorder %s167, %s168
      %p179 = scmp.eq.s32.totalorder %s81, 0
      %p180 = por %p178, %p179
      %p181 = scmp.ne.s32.totalorder %s167, %s168
      %p182 = scmp.eq.s32.totalorder %s82, 1
      %p183 = por %p181, %p182
      %p185 = scmp.ne.s32.totalorder %s168, %s184
      %p186 = scmp.eq.s32.totalorder %s82, 0
      %p187 = por %p185, %p186
      %s189 = sadd.s32 %s188, 1
      %p192 = scmp.eq.s32.totalorder %s76, 1
      %p193 = scmp.ne.s32.totalorder %s188, %s190
      %p194 = scmp.eq.s32.totalorder %s76, 0
      %p195 = por %p193, %p194
      %p196 = scmp.ne.s32.totalorder %s188, %s190
      %p197 = scmp.eq.s32.totalorder %s81, 1
      %p198 = por %p196, %p197
      %p199 = scmp.ne.s32.totalorder %s190, %s191
      %p200 = scmp.eq.s32.totalorder %s81, 0
      %p201 = por %p199, %p200
      %p202 = scmp.ne.s32.totalorder %s190, %s191
      %p203 = scmp.eq.s32.totalorder %s82, 1
      %p204 = por %p202, %p203
      %p206 = scmp.ne.s32.totalorder %s191, %s205
      %p207 = scmp.eq.s32.totalorder %s82, 0
      %p208 = por %p206, %p207
      %s210 = sadd.s32 %s209, 1
      %p213 = scmp.eq.s32.totalorder %s76, 1
      %p214 = scmp.ne.s32.totalorder %s209, %s211
      %p215 = scmp.eq.s32.totalorder %s76, 0
      %p216 = por %p214, %p215
      %p217 = scmp.ne.s32.totalorder %s209, %s211
      %p218 = scmp.eq.s32.totalorder %s81, 1
      %p219 = por %p217, %p218
      %p220 = scmp.ne.s32.totalorder %s211, %s212
      %p221 = scmp.eq.s32.totalorder %s81, 0
      %p222 = por %p220, %p221
      %p223 = scmp.ne.s32.totalorder %s211, %s212
      %p224 = scmp.eq.s32.totalorder %s82, 1
      %p225 = por %p223, %p224
      %p227 = scmp.ne.s32.totalorder %s212, %s226
      %p228 = scmp.eq.s32.totalorder %s82, 0
      %p229 = por %p227, %p228
      %s231 = sadd.s32 %s230, 1
      %p234 = scmp.eq.s32.totalorder %s76, 1
      %p235 = scmp.ne.s32.totalorder %s230, %s232
      %p236 = scmp.eq.s32.totalorder %s76, 0
      %p237 = por %p235, %p236
      %p238 = scmp.ne.s32.totalorder %s230, %s232
      %p239 = scmp.eq.s32.totalorder %s81, 1
      %p240 = por %p238, %p239
      %p241 = scmp.ne.s32.totalorder %s232, %s233
      %p242 = scmp.eq.s32.totalorder %s81, 0
      %p243 = por %p241, %p242
      %p244 = scmp.ne.s32.totalorder %s232, %s233
      %p245 = scmp.eq.s32.totalorder %s82, 1
      %p246 = por %p244, %p245
      %p248 = scmp.ne.s32.totalorder %s233, %s247
      %p249 = scmp.eq.s32.totalorder %s82, 0
      %p250 = por %p248, %p249
      %s252 = sadd.s32 %s251, 1
      %p255 = scmp.eq.s32.totalorder %s76, 1
      %p256 = scmp.ne.s32.totalorder %s251, %s253
      %p257 = scmp.eq.s32.totalorder %s76, 0
      %p258 = por %p256, %p257
      %p259 = scmp.ne.s32.totalorder %s251, %s253
      %p260 = scmp.eq.s32.totalorder %s81, 1
      %p261 = por %p259, %p260
      %p262 = scmp.ne.s32.totalorder %s253, %s254
      %p263 = scmp.eq.s32.totalorder %s81, 0
      %p264 = por %p262, %p263
      %p265 = scmp.ne.s32.totalorder %s253, %s254
      %p266 = scmp.eq.s32.totalorder %s82, 1
      %p267 = por %p265, %p266
      %p269 = scmp.ne.s32.totalorder %s254, %s268
      %p270 = scmp.eq.s32.totalorder %s82, 0
      %p271 = por %p269, %p270
      %s273 = sadd.s32 %s272, 1
      %p276 = scmp.eq.s32.totalorder %s76, 1
      %p277 = scmp.ne.s32.totalorder %s272, %s274
      %p278 = scmp.eq.s32.totalorder %s76, 0
      %p279 = por %p277, %p278
      %p280 = scmp.ne.s32.totalorder %s272, %s274
      %p281 = scmp.eq.s32.totalorder %s81, 1
      %p282 = por %p280, %p281
      %p283 = scmp.ne.s32.totalorder %s274, %s275
      %p284 = scmp.eq.s32.totalorder %s81, 0
      %p285 = por %p283, %p284
      %p286 = scmp.ne.s32.totalorder %s274, %s275
      %p287 = scmp.eq.s32.totalorder %s82, 1
      %p288 = por %p286, %p287
      %p290 = scmp.ne.s32.totalorder %s275, %s289
      %p291 = scmp.eq.s32.totalorder %s82, 0
      %p292 = por %p290, %p291
      %s294 = sadd.s32 %s293, 1
      %p297 = scmp.eq.s32.totalorder %s76, 1
      %p298 = scmp.ne.s32.totalorder %s293, %s295
      %p299 = scmp.eq.s32.totalorder %s76, 0
      %p300 = por %p298, %p299
      %p301 = scmp.ne.s32.totalorder %s293, %s295
      %p302 = scmp.eq.s32.totalorder %s81, 1
      %p303 = por %p301, %p302
      %p304 = scmp.ne.s32.totalorder %s295, %s296
      %p305 = scmp.eq.s32.totalorder %s81, 0
      %p306 = por %p304, %p305
      %p307 = scmp.ne.s32.totalorder %s295, %s296
      %p308 = scmp.eq.s32.totalorder %s82, 1
      %p309 = por %p307, %p308
      %p311 = scmp.ne.s32.totalorder %s296, %s310
      %p312 = scmp.eq.s32.totalorder %s82, 0
      %p313 = por %p311, %p312
      %s315 = sadd.s32 %s314, 1
      %p318 = scmp.eq.s32.totalorder %s76, 1
      %p319 = scmp.ne.s32.totalorder %s314, %s316
      %p320 = scmp.eq.s32.totalorder %s76, 0
      %p321 = por %p319, %p320
      %p322 = scmp.ne.s32.totalorder %s314, %s316
      %p323 = scmp.eq.s32.totalorder %s81, 1
      %p324 = por %p322, %p323
      %p325 = scmp.ne.s32.totalorder %s316, %s317
      %p326 = scmp.eq.s32.totalorder %s81, 0
      %p327 = por %p325, %p326
      %p328 = scmp.ne.s32.totalorder %s316, %s317
      %p329 = scmp.eq.s32.totalorder %s82, 1
      %p330 = por %p328, %p329
      %p332 = scmp.ne.s32.totalorder %s317, %s331
      %p333 = scmp.eq.s32.totalorder %s82, 0
      %p334 = por %p332, %p333
      %s336 = sadd.s32 %s335, 1
      %p339 = scmp.eq.s32.totalorder %s76, 1
      %p340 = scmp.ne.s32.totalorder %s335, %s337
      %p341 = scmp.eq.s32.totalorder %s76, 0
      %p342 = por %p340, %p341
      %p343 = scmp.ne.s32.totalorder %s335, %s337
      %p344 = scmp.eq.s32.totalorder %s81, 1
      %p345 = por %p343, %p344
      %p346 = scmp.ne.s32.totalorder %s337, %s338
      %p347 = scmp.eq.s32.totalorder %s81, 0
      %p348 = por %p346, %p347
      %p349 = scmp.ne.s32.totalorder %s337, %s338
      %p350 = scmp.eq.s32.totalorder %s82, 1
      %p351 = por %p349, %p350
      %p353 = scmp.ne.s32.totalorder %s338, %s352
      %p354 = scmp.eq.s32.totalorder %s82, 0
      %p355 = por %p353, %p354
      %s357 = sadd.s32 %s356, 1
      %p360 = scmp.eq.s32.totalorder %s76, 1
      %p361 = scmp.ne.s32.totalorder %s356, %s358
      %p362 = scmp.eq.s32.totalorder %s76, 0
      %p363 = por %p361, %p362
      %p364 = scmp.ne.s32.totalorder %s356, %s358
      %p365 = scmp.eq.s32.totalorder %s81, 1
      %p366 = por %p364, %p365
      %p367 = scmp.ne.s32.totalorder %s358, %s359
      %p368 = scmp.eq.s32.totalorder %s81, 0
      %p369 = por %p367, %p368
      %p370 = scmp.ne.s32.totalorder %s358, %s359
      %p371 = scmp.eq.s32.totalorder %s82, 1
      %p372 = por %p370, %p371
      %p374 = scmp.ne.s32.totalorder %s359, %s373
      %p375 = scmp.eq.s32.totalorder %s82, 0
      %p376 = por %p374, %p375
      %s378 = sadd.s32 %s377, 1
      %p381 = scmp.eq.s32.totalorder %s76, 1
      %p382 = scmp.ne.s32.totalorder %s377, %s379
      %p383 = scmp.eq.s32.totalorder %s76, 0
      %p384 = por %p382, %p383
      %p385 = scmp.ne.s32.totalorder %s377, %s379
      %p386 = scmp.eq.s32.totalorder %s81, 1
      %p387 = por %p385, %p386
      %p388 = scmp.ne.s32.totalorder %s379, %s380
      %p389 = scmp.eq.s32.totalorder %s81, 0
      %p390 = por %p388, %p389
      %p391 = scmp.ne.s32.totalorder %s379, %s380
      %p392 = scmp.eq.s32.totalorder %s82, 1
      %p393 = por %p391, %p392
      %p395 = scmp.ne.s32.totalorder %s380, %s394
      %p396 = scmp.eq.s32.totalorder %s82, 0
      %p397 = por %p395, %p396
      %s399 = sadd.s32 %s398, 1
      %p402 = scmp.eq.s32.totalorder %s76, 1
      %p403 = scmp.ne.s32.totalorder %s398, %s400
      %p404 = scmp.eq.s32.totalorder %s76, 0
      %p405 = por %p403, %p404
      %p406 = scmp.ne.s32.totalorder %s398, %s400
      %p407 = scmp.eq.s32.totalorder %s81, 1
      %p408 = por %p406, %p407
      %p409 = scmp.ne.s32.totalorder %s400, %s401
      %p410 = scmp.eq.s32.totalorder %s81, 0
      %p411 = por %p409, %p410
      %p412 = scmp.ne.s32.totalorder %s400, %s401
      %p413 = scmp.eq.s32.totalorder %s82, 1
      %p414 = por %p412, %p413
      %p416 = scmp.ne.s32.totalorder %s401, %s415
      %p417 = scmp.eq.s32.totalorder %s82, 0
      %p418 = por %p416, %p417
      %s420 = sadd.s32 %s419, 1
      %p423 = scmp.eq.s32.totalorder %s76, 1
      %p424 = scmp.ne.s32.totalorder %s419, %s421
      %p425 = scmp.eq.s32.totalorder %s76, 0
      %p426 = por %p424, %p425
      %p427 = scmp.ne.s32.totalorder %s419, %s421
      %p428 = scmp.eq.s32.totalorder %s81, 1
      %p429 = por %p427, %p428
      %p430 = scmp.ne.s32.totalorder %s421, %s422
      %p431 = scmp.eq.s32.totalorder %s81, 0
      %p432 = por %p430, %p431
      %p433 = scmp.ne.s32.totalorder %s421, %s422
      %p434 = scmp.eq.s32.totalorder %s82, 1
      %p435 = por %p433, %p434
      %p437 = scmp.ne.s32.totalorder %s422, %s436
      %p438 = scmp.eq.s32.totalorder %s82, 0
      %p439 = por %p437, %p438
      %s441 = sadd.s32 %s440, 1
      %p444 = scmp.eq.s32.totalorder %s76, 1
      %p445 = scmp.ne.s32.totalorder %s440, %s442
      %p446 = scmp.eq.s32.totalorder %s76, 0
      %p447 = por %p445, %p446
      %p448 = scmp.ne.s32.totalorder %s440, %s442
      %p449 = scmp.eq.s32.totalorder %s81, 1
      %p450 = por %p448, %p449
      %p451 = scmp.ne.s32.totalorder %s442, %s443
      %p452 = scmp.eq.s32.totalorder %s81, 0
      %p453 = por %p451, %p452
      %p454 = scmp.ne.s32.totalorder %s442, %s443
      %p455 = scmp.eq.s32.totalorder %s82, 1
      %p456 = por %p454, %p455
      %p458 = scmp.ne.s32.totalorder %s443, %s457
      %p459 = scmp.eq.s32.totalorder %s82, 0
      %p460 = por %p458, %p459
      %s462 = sadd.s32 %s461, 1
      %p465 = scmp.eq.s32.totalorder %s76, 1
      %p466 = scmp.ne.s32.totalorder %s461, %s463
      %p467 = scmp.eq.s32.totalorder %s76, 0
      %p468 = por %p466, %p467
      %p469 = scmp.ne.s32.totalorder %s461, %s463
      %p470 = scmp.eq.s32.totalorder %s81, 1
      %p471 = por %p469, %p470
      %p472 = scmp.ne.s32.totalorder %s463, %s464
      %p473 = scmp.eq.s32.totalorder %s81, 0
      %p474 = por %p472, %p473
      %p475 = scmp.ne.s32.totalorder %s463, %s464
      %p476 = scmp.eq.s32.totalorder %s82, 1
      %p477 = por %p475, %p476
      %p479 = scmp.ne.s32.totalorder %s464, %s478
      %p480 = scmp.eq.s32.totalorder %s82, 0
      %p481 = por %p479, %p480
      %s483 = sadd.s32 %s482, 1
      %p486 = scmp.eq.s32.totalorder %s76, 1
      %p487 = scmp.ne.s32.totalorder %s482, %s484
      %p488 = scmp.eq.s32.totalorder %s76, 0
      %p489 = por %p487, %p488
      %p490 = scmp.ne.s32.totalorder %s482, %s484
      %p491 = scmp.eq.s32.totalorder %s81, 1
      %p492 = por %p490, %p491
      %p493 = scmp.ne.s32.totalorder %s484, %s485
      %p494 = scmp.eq.s32.totalorder %s81, 0
      %p495 = por %p493, %p494
      %p496 = scmp.ne.s32.totalorder %s484, %s485
      %p497 = scmp.eq.s32.totalorder %s82, 1
      %p498 = por %p496, %p497
      %p500 = scmp.ne.s32.totalorder %s485, %s499
      %p501 = scmp.eq.s32.totalorder %s82, 0
      %p502 = por %p500, %p501
      %s504 = sadd.s32 %s503, 1
      %p507 = scmp.eq.s32.totalorder %s76, 1
      %p508 = scmp.ne.s32.totalorder %s503, %s505
      %p509 = scmp.eq.s32.totalorder %s76, 0
      %p510 = por %p508, %p509
      %p511 = scmp.ne.s32.totalorder %s503, %s505
      %p512 = scmp.eq.s32.totalorder %s81, 1
      %p513 = por %p511, %p512
      %p514 = scmp.ne.s32.totalorder %s505, %s506
      %p515 = scmp.eq.s32.totalorder %s81, 0
      %p516 = por %p514, %p515
      %p517 = scmp.ne.s32.totalorder %s505, %s506
      %p518 = scmp.eq.s32.totalorder %s82, 1
      %p519 = por %p517, %p518
      %p521 = scmp.ne.s32.totalorder %s506, %s520
      %p522 = scmp.eq.s32.totalorder %s82, 0
      %p523 = por %p521, %p522
      %s525 = sadd.s32 %s524, 1
      %p528 = scmp.eq.s32.totalorder %s76, 1
      %p529 = scmp.ne.s32.totalorder %s524, %s526
      %p530 = scmp.eq.s32.totalorder %s76, 0
      %p531 = por %p529, %p530
      %p532 = scmp.ne.s32.totalorder %s524, %s526
      %p533 = scmp.eq.s32.totalorder %s81, 1
      %p534 = por %p532, %p533
      %p535 = scmp.ne.s32.totalorder %s526, %s527
      %p536 = scmp.eq.s32.totalorder %s81, 0
      %p537 = por %p535, %p536
      %p538 = scmp.ne.s32.totalorder %s526, %s527
      %p539 = scmp.eq.s32.totalorder %s82, 1
      %p540 = por %p538, %p539
      %p542 = scmp.ne.s32.totalorder %s527, %s541
      %p543 = scmp.eq.s32.totalorder %s82, 0
      %p544 = por %p542, %p543
      %s546 = sadd.s32 %s545, 1
      %p549 = scmp.eq.s32.totalorder %s76, 1
      %p550 = scmp.ne.s32.totalorder %s545, %s547
      %p551 = scmp.eq.s32.totalorder %s76, 0
      %p552 = por %p550, %p551
      %p553 = scmp.ne.s32.totalorder %s545, %s547
      %p554 = scmp.eq.s32.totalorder %s81, 1
      %p555 = por %p553, %p554
      %p556 = scmp.ne.s32.totalorder %s547, %s548
      %p557 = scmp.eq.s32.totalorder %s81, 0
      %p558 = por %p556, %p557
      %p559 = scmp.ne.s32.totalorder %s547, %s548
      %p560 = scmp.eq.s32.totalorder %s82, 1
      %p561 = por %p559, %p560
      %p563 = scmp.ne.s32.totalorder %s548, %s562
      %p564 = scmp.eq.s32.totalorder %s82, 0
      %p565 = por %p563, %p564
      %s567 = sadd.s32 %s566, 1
      %p570 = scmp.eq.s32.totalorder %s76, 1
      %p571 = scmp.ne.s32.totalorder %s566, %s568
      %p572 = scmp.eq.s32.totalorder %s76, 0
      %p573 = por %p571, %p572
      %p574 = scmp.ne.s32.totalorder %s566, %s568
      %p575 = scmp.eq.s32.totalorder %s81, 1
      %p576 = por %p574, %p575
      %p577 = scmp.ne.s32.totalorder %s568, %s569
      %p578 = scmp.eq.s32.totalorder %s81, 0
      %p579 = por %p577, %p578
      %p580 = scmp.ne.s32.totalorder %s568, %s569
      %p581 = scmp.eq.s32.totalorder %s82, 1
      %p582 = por %p580, %p581
      %p584 = scmp.ne.s32.totalorder %s569, %s583
      %p585 = scmp.eq.s32.totalorder %s82, 0
      %p586 = por %p584, %p585
      %s588 = sadd.s32 %s587, 1
      %p591 = scmp.eq.s32.totalorder %s76, 1
      %p592 = scmp.ne.s32.totalorder %s587, %s589
      %p593 = scmp.eq.s32.totalorder %s76, 0
      %p594 = por %p592, %p593
      %p595 = scmp.ne.s32.totalorder %s587, %s589
      %p596 = scmp.eq.s32.totalorder %s81, 1
      %p597 = por %p595, %p596
      %p598 = scmp.ne.s32.totalorder %s589, %s590
      %p599 = scmp.eq.s32.totalorder %s81, 0
      %p600 = por %p598, %p599
      %p601 = scmp.ne.s32.totalorder %s589, %s590
      %p602 = scmp.eq.s32.totalorder %s82, 1
      %p603 = por %p601, %p602
      %p605 = scmp.ne.s32.totalorder %s590, %s604
      %p606 = scmp.eq.s32.totalorder %s82, 0
      %p607 = por %p605, %p606
      %s609 = sadd.s32 %s608, 1
      %p612 = scmp.eq.s32.totalorder %s76, 1
      %p613 = scmp.ne.s32.totalorder %s608, %s610
      %p614 = scmp.eq.s32.totalorder %s76, 0
      %p615 = por %p613, %p614
      %p616 = scmp.ne.s32.totalorder %s608, %s610
      %p617 = scmp.eq.s32.totalorder %s81, 1
      %p618 = por %p616, %p617
      %p619 = scmp.ne.s32.totalorder %s610, %s611
      %p620 = scmp.eq.s32.totalorder %s81, 0
      %p621 = por %p619, %p620
      %p622 = scmp.ne.s32.totalorder %s610, %s611
      %p623 = scmp.eq.s32.totalorder %s82, 1
      %p624 = por %p622, %p623
      %p626 = scmp.ne.s32.totalorder %s611, %s625
      %p627 = scmp.eq.s32.totalorder %s82, 0
      %p628 = por %p626, %p627
      %s630 = sadd.s32 %s629, 1
      %p633 = scmp.eq.s32.totalorder %s76, 1
      %p634 = scmp.ne.s32.totalorder %s629, %s631
      %p635 = scmp.eq.s32.totalorder %s76, 0
      %p636 = por %p634, %p635
      %p637 = scmp.ne.s32.totalorder %s629, %s631
      %p638 = scmp.eq.s32.totalorder %s81, 1
      %p639 = por %p637, %p638
      %p640 = scmp.ne.s32.totalorder %s631, %s632
      %p641 = scmp.eq.s32.totalorder %s81, 0
      %p642 = por %p640, %p641
      %p643 = scmp.ne.s32.totalorder %s631, %s632
      %p644 = scmp.eq.s32.totalorder %s82, 1
      %p645 = por %p643, %p644
      %p647 = scmp.ne.s32.totalorder %s632, %s646
      %p648 = scmp.eq.s32.totalorder %s82, 0
      %p649 = por %p647, %p648
      %s651 = sadd.s32 %s650, 1
      %p654 = scmp.eq.s32.totalorder %s76, 1
      %p655 = scmp.ne.s32.totalorder %s650, %s652
      %p656 = scmp.eq.s32.totalorder %s76, 0
      %p657 = por %p655, %p656
      %p658 = scmp.ne.s32.totalorder %s650, %s652
      %p659 = scmp.eq.s32.totalorder %s81, 1
      %p660 = por %p658, %p659
      %p661 = scmp.ne.s32.totalorder %s652, %s653
      %p662 = scmp.eq.s32.totalorder %s81, 0
      %p663 = por %p661, %p662
      %p664 = scmp.ne.s32.totalorder %s652, %s653
      %p665 = scmp.eq.s32.totalorder %s82, 1
      %p666 = por %p664, %p665
      %p668 = scmp.ne.s32.totalorder %s653, %s667
      %p669 = scmp.eq.s32.totalorder %s82, 0
      %p670 = por %p668, %p669
      %s672 = sadd.s32 %s671, 1
      %p675 = scmp.eq.s32.totalorder %s76, 1
      %p676 = scmp.ne.s32.totalorder %s671, %s673
      %p677 = scmp.eq.s32.totalorder %s76, 0
      %p678 = por %p676, %p677
      %p679 = scmp.ne.s32.totalorder %s671, %s673
      %p680 = scmp.eq.s32.totalorder %s81, 1
      %p681 = por %p679, %p680
      %p682 = scmp.ne.s32.totalorder %s673, %s674
      %p683 = scmp.eq.s32.totalorder %s81, 0
      %p684 = por %p682, %p683
      %p685 = scmp.ne.s32.totalorder %s673, %s674
      %p686 = scmp.eq.s32.totalorder %s82, 1
      %p687 = por %p685, %p686
      %p689 = scmp.ne.s32.totalorder %s674, %s688
      %p690 = scmp.eq.s32.totalorder %s82, 0
      %p691 = por %p689, %p690
      %s693 = sadd.s32 %s692, 1
      %p696 = scmp.eq.s32.totalorder %s76, 1
      %p697 = scmp.ne.s32.totalorder %s692, %s694
      %p698 = scmp.eq.s32.totalorder %s76, 0
      %p699 = por %p697, %p698
      %p700 = scmp.ne.s32.totalorder %s692, %s694
      %p701 = scmp.eq.s32.totalorder %s81, 1
      %p702 = por %p700, %p701
      %p703 = scmp.ne.s32.totalorder %s694, %s695
      %p704 = scmp.eq.s32.totalorder %s81, 0
      %p705 = por %p703, %p704
      %p706 = scmp.ne.s32.totalorder %s694, %s695
      %p707 = scmp.eq.s32.totalorder %s82, 1
      %p708 = por %p706, %p707
      %p710 = scmp.ne.s32.totalorder %s695, %s709
      %p711 = scmp.eq.s32.totalorder %s82, 0
      %p712 = por %p710, %p711
      %s714 = sadd.s32 %s713, 1
      %p717 = scmp.eq.s32.totalorder %s76, 1
      %p718 = scmp.ne.s32.totalorder %s713, %s715
      %p719 = scmp.eq.s32.totalorder %s76, 0
      %p720 = por %p718, %p719
      %p721 = scmp.ne.s32.totalorder %s713, %s715
      %p722 = scmp.eq.s32.totalorder %s81, 1
      %p723 = por %p721, %p722
      %p724 = scmp.ne.s32.totalorder %s715, %s716
      %p725 = scmp.eq.s32.totalorder %s81, 0
      %p726 = por %p724, %p725
      %p727 = scmp.ne.s32.totalorder %s715, %s716
      %p728 = scmp.eq.s32.totalorder %s82, 1
      %p729 = por %p727, %p728
      %p731 = scmp.ne.s32.totalorder %s716, %s730
      %p732 = scmp.eq.s32.totalorder %s82, 0
      %p733 = por %p731, %p732
      %s735 = sadd.s32 %s734, 1
      %p738 = scmp.eq.s32.totalorder %s76, 1
      %p739 = scmp.ne.s32.totalorder %s734, %s736
      %p740 = scmp.eq.s32.totalorder %s76, 0
      %p741 = por %p739, %p740
      %p742 = scmp.ne.s32.totalorder %s734, %s736
      %p743 = scmp.eq.s32.totalorder %s81, 1
      %p744 = por %p742, %p743
      %p745 = scmp.ne.s32.totalorder %s736, %s737
      %p746 = scmp.eq.s32.totalorder %s81, 0
      %p747 = por %p745, %p746
      %p748 = scmp.ne.s32.totalorder %s736, %s737
      %p749 = scmp.eq.s32.totalorder %s82, 1
      %p750 = por %p748, %p749
      %p752 = scmp.ne.s32.totalorder %s737, %s751
      %p753 = scmp.eq.s32.totalorder %s82, 0
      %p754 = por %p752, %p753
      %s756 = sadd.s32 %s755, 1
      %p759 = scmp.eq.s32.totalorder %s76, 1
      %p760 = scmp.ne.s32.totalorder %s755, %s757
      %p761 = scmp.eq.s32.totalorder %s76, 0
      %p762 = por %p760, %p761
      %p763 = scmp.ne.s32.totalorder %s755, %s757
      %p764 = scmp.eq.s32.totalorder %s81, 1
      %p765 = por %p763, %p764
      %p766 = scmp.ne.s32.totalorder %s757, %s758
      %p767 = scmp.eq.s32.totalorder %s81, 0
      %p768 = por %p766, %p767
      %p769 = scmp.ne.s32.totalorder %s757, %s758
      %p770 = scmp.eq.s32.totalorder %s82, 1
      %p771 = por %p769, %p770
      %p773 = scmp.ne.s32.totalorder %s758, %s772
      %p774 = scmp.eq.s32.totalorder %s82, 0
      %p775 = por %p773, %p774
      %s776 = ssub.s32 %s76, %s83
      %p777 = scmp.eq.s32.totalorder %s776, 0
      %s779 = sadd.s32 %s778, 1
      %s780 = scalar_select %p777, %s778, %s779
      %p783 = pneg %p777
      %p784 = scmp.eq.s32.totalorder %s76, 1
      %p785 = por %p783, %p784
      %p786 = scmp.ne.s32.totalorder %s778, %s781
      %p787 = scmp.eq.s32.totalorder %s76, 0
      %p788 = por %p786, %p787
      %p789 = scmp.ne.s32.totalorder %s778, %s781
      %p790 = scmp.eq.s32.totalorder %s81, 1
      %p791 = por %p789, %p790
      %p792 = scmp.ne.s32.totalorder %s781, %s782
      %p793 = scmp.eq.s32.totalorder %s81, 0
      %p794 = por %p792, %p793
      %p795 = scmp.ne.s32.totalorder %s781, %s782
      %p796 = scmp.eq.s32.totalorder %s82, 1
      %p797 = por %p795, %p796
      %p799 = scmp.ne.s32.totalorder %s782, %s798
      %p800 = scmp.eq.s32.totalorder %s82, 0
      %p801 = por %p799, %p800
      %s802 = ssub.s32 %s76, %s83
      %p803 = scmp.eq.s32.totalorder %s802, 0
      %s805 = sadd.s32 %s804, 1
      %s806 = scalar_select %p803, %s804, %s805
      %p809 = pneg %p803
      %p810 = scmp.eq.s32.totalorder %s76, 1
      %p811 = por %p809, %p810
      %p812 = scmp.ne.s32.totalorder %s804, %s807
      %p813 = scmp.eq.s32.totalorder %s76, 0
      %p814 = por %p812, %p813
      %p815 = scmp.ne.s32.totalorder %s804, %s807
      %p816 = scmp.eq.s32.totalorder %s81, 1
      %p817 = por %p815, %p816
      %p818 = scmp.ne.s32.totalorder %s807, %s808
      %p819 = scmp.eq.s32.totalorder %s81, 0
      %p820 = por %p818, %p819
      %p821 = scmp.ne.s32.totalorder %s807, %s808
      %p822 = scmp.eq.s32.totalorder %s82, 1
      %p823 = por %p821, %p822
      %p825 = scmp.ne.s32.totalorder %s808, %s824
      %p826 = scmp.eq.s32.totalorder %s82, 0
      %p827 = por %p825, %p826
      %p828 = scmp.le.s32.totalorder 1, %s76
      %p829 = scmp.lt.s32.totalorder %s76, 3
      %p830 = pnand %p828, %p829
      %p831 = pneg %p830
      // Predicated region
      $region9: #{_lambda_.3} parent=5 // pred_check
        _
      $region10: #{_lambda_.3} parent=5 // pred_check_branch
        %833 = sbr.rel (%p830) target = $region12
      $region11: #{_lambda_.3} parent=5 // pred_region
        %s834 = ssub.s32 %s76, 1
        // Predicated region
        $region13: #{_lambda_.3} parent=11 // pred_check
          %p835 = pneg %p201
        $region14: #{_lambda_.3} parent=11 // pred_check_branch
          %837 = sbr.rel (%p835) target = $region16
        $region15: #{_lambda_.3} parent=11 // pred_region
          _
        $region16: #{_lambda_.3} parent=11 // pred_fallthru
          _
        // Predicated region
        $region17: #{_lambda_.3} parent=11 // pred_check
          %p838 = pneg %p222
        $region18: #{_lambda_.3} parent=11 // pred_check_branch
          %840 = sbr.rel (%p838) target = $region20
        $region19: #{_lambda_.3} parent=11 // pred_region
          _
        $region20: #{_lambda_.3} parent=11 // pred_fallthru
          _
        // Predicated region
        $region21: #{_lambda_.3} parent=11 // pred_check
          %p841 = pneg %p243
        $region22: #{_lambda_.3} parent=11 // pred_check_branch
          %843 = sbr.rel (%p841) target = $region24
        $region23: #{_lambda_.3} parent=11 // pred_region
          _
        $region24: #{_lambda_.3} parent=11 // pred_fallthru
          _
        // Predicated region
        $region25: #{_lambda_.3} parent=11 // pred_check
          %p844 = pneg %p264
        $region26: #{_lambda_.3} parent=11 // pred_check_branch
          %846 = sbr.rel (%p844) target = $region28
        $region27: #{_lambda_.3} parent=11 // pred_region
          _
        $region28: #{_lambda_.3} parent=11 // pred_fallthru
          _
        // Predicated region
        $region29: #{_lambda_.3} parent=11 // pred_check
          %p847 = pneg %p285
        $region30: #{_lambda_.3} parent=11 // pred_check_branch
          %849 = sbr.rel (%p847) target = $region32
        $region31: #{_lambda_.3} parent=11 // pred_region
          _
        $region32: #{_lambda_.3} parent=11 // pred_fallthru
          _
        // Predicated region
        $region33: #{_lambda_.3} parent=11 // pred_check
          %p850 = pneg %p306
        $region34: #{_lambda_.3} parent=11 // pred_check_branch
          %852 = sbr.rel (%p850) target = $region36
        $region35: #{_lambda_.3} parent=11 // pred_region
          _
        $region36: #{_lambda_.3} parent=11 // pred_fallthru
          _
        // Predicated region
        $region37: #{_lambda_.3} parent=11 // pred_check
          %p853 = pneg %p327
        $region38: #{_lambda_.3} parent=11 // pred_check_branch
          %855 = sbr.rel (%p853) target = $region40
        $region39: #{_lambda_.3} parent=11 // pred_region
          _
        $region40: #{_lambda_.3} parent=11 // pred_fallthru
          _
        // Predicated region
        $region41: #{_lambda_.3} parent=11 // pred_check
          %p856 = pneg %p348
        $region42: #{_lambda_.3} parent=11 // pred_check_branch
          %858 = sbr.rel (%p856) target = $region44
        $region43: #{_lambda_.3} parent=11 // pred_region
          _
        $region44: #{_lambda_.3} parent=11 // pred_fallthru
          _
        // Predicated region
        $region45: #{_lambda_.3} parent=11 // pred_check
          %p859 = pneg %p369
        $region46: #{_lambda_.3} parent=11 // pred_check_branch
          %861 = sbr.rel (%p859) target = $region48
        $region47: #{_lambda_.3} parent=11 // pred_region
          _
        $region48: #{_lambda_.3} parent=11 // pred_fallthru
          _
        // Predicated region
        $region49: #{_lambda_.3} parent=11 // pred_check
          %p862 = pneg %p390
        $region50: #{_lambda_.3} parent=11 // pred_check_branch
          %864 = sbr.rel (%p862) target = $region52
        $region51: #{_lambda_.3} parent=11 // pred_region
          _
        $region52: #{_lambda_.3} parent=11 // pred_fallthru
          _
        // Predicated region
        $region53: #{_lambda_.3} parent=11 // pred_check
          %p865 = pneg %p411
        $region54: #{_lambda_.3} parent=11 // pred_check_branch
          %867 = sbr.rel (%p865) target = $region56
        $region55: #{_lambda_.3} parent=11 // pred_region
          _
        $region56: #{_lambda_.3} parent=11 // pred_fallthru
          _
        // Predicated region
        $region57: #{_lambda_.3} parent=11 // pred_check
          %p868 = pneg %p432
        $region58: #{_lambda_.3} parent=11 // pred_check_branch
          %870 = sbr.rel (%p868) target = $region60
        $region59: #{_lambda_.3} parent=11 // pred_region
          _
        $region60: #{_lambda_.3} parent=11 // pred_fallthru
          _
        // Predicated region
        $region61: #{_lambda_.3} parent=11 // pred_check
          %p871 = pneg %p453
        $region62: #{_lambda_.3} parent=11 // pred_check_branch
          %873 = sbr.rel (%p871) target = $region64
        $region63: #{_lambda_.3} parent=11 // pred_region
          _
        $region64: #{_lambda_.3} parent=11 // pred_fallthru
          _
        // Predicated region
        $region65: #{_lambda_.3} parent=11 // pred_check
          %p874 = pneg %p474
        $region66: #{_lambda_.3} parent=11 // pred_check_branch
          %876 = sbr.rel (%p874) target = $region68
        $region67: #{_lambda_.3} parent=11 // pred_region
          _
        $region68: #{_lambda_.3} parent=11 // pred_fallthru
          _
        // Predicated region
        $region69: #{_lambda_.3} parent=11 // pred_check
          %p877 = pneg %p495
        $region70: #{_lambda_.3} parent=11 // pred_check_branch
          %879 = sbr.rel (%p877) target = $region72
        $region71: #{_lambda_.3} parent=11 // pred_region
          _
        $region72: #{_lambda_.3} parent=11 // pred_fallthru
          _
        // Predicated region
        $region73: #{_lambda_.3} parent=11 // pred_check
          %p880 = pneg %p516
        $region74: #{_lambda_.3} parent=11 // pred_check_branch
          %882 = sbr.rel (%p880) target = $region76
        $region75: #{_lambda_.3} parent=11 // pred_region
          _
        $region76: #{_lambda_.3} parent=11 // pred_fallthru
          _
        // Predicated region
        $region77: #{_lambda_.3} parent=11 // pred_check
          %p883 = pneg %p537
        $region78: #{_lambda_.3} parent=11 // pred_check_branch
          %885 = sbr.rel (%p883) target = $region80
        $region79: #{_lambda_.3} parent=11 // pred_region
          _
        $region80: #{_lambda_.3} parent=11 // pred_fallthru
          _
        // Predicated region
        $region81: #{_lambda_.3} parent=11 // pred_check
          %p886 = pneg %p558
        $region82: #{_lambda_.3} parent=11 // pred_check_branch
          %888 = sbr.rel (%p886) target = $region84
        $region83: #{_lambda_.3} parent=11 // pred_region
          _
        $region84: #{_lambda_.3} parent=11 // pred_fallthru
          _
        // Predicated region
        $region85: #{_lambda_.3} parent=11 // pred_check
          %p889 = pneg %p579
        $region86: #{_lambda_.3} parent=11 // pred_check_branch
          %891 = sbr.rel (%p889) target = $region88
        $region87: #{_lambda_.3} parent=11 // pred_region
          _
        $region88: #{_lambda_.3} parent=11 // pred_fallthru
          _
        // Predicated region
        $region89: #{_lambda_.3} parent=11 // pred_check
          %p892 = pneg %p600
        $region90: #{_lambda_.3} parent=11 // pred_check_branch
          %894 = sbr.rel (%p892) target = $region92
        $region91: #{_lambda_.3} parent=11 // pred_region
          _
        $region92: #{_lambda_.3} parent=11 // pred_fallthru
          _
        // Predicated region
        $region93: #{_lambda_.3} parent=11 // pred_check
          %p895 = pneg %p621
        $region94: #{_lambda_.3} parent=11 // pred_check_branch
          %897 = sbr.rel (%p895) target = $region96
        $region95: #{_lambda_.3} parent=11 // pred_region
          _
        $region96: #{_lambda_.3} parent=11 // pred_fallthru
          _
        // Predicated region
        $region97: #{_lambda_.3} parent=11 // pred_check
          %p898 = pneg %p642
        $region98: #{_lambda_.3} parent=11 // pred_check_branch
          %900 = sbr.rel (%p898) target = $region100
        $region99: #{_lambda_.3} parent=11 // pred_region
          _
        $region100: #{_lambda_.3} parent=11 // pred_fallthru
          _
        // Predicated region
        $region101: #{_lambda_.3} parent=11 // pred_check
          %p901 = pneg %p663
        $region102: #{_lambda_.3} parent=11 // pred_check_branch
          %903 = sbr.rel (%p901) target = $region104
        $region103: #{_lambda_.3} parent=11 // pred_region
          _
        $region104: #{_lambda_.3} parent=11 // pred_fallthru
          _
        // Predicated region
        $region105: #{_lambda_.3} parent=11 // pred_check
          %p904 = pneg %p684
        $region106: #{_lambda_.3} parent=11 // pred_check_branch
          %906 = sbr.rel (%p904) target = $region108
        $region107: #{_lambda_.3} parent=11 // pred_region
          _
        $region108: #{_lambda_.3} parent=11 // pred_fallthru
          _
        // Predicated region
        $region109: #{_lambda_.3} parent=11 // pred_check
          %p907 = pneg %p705
        $region110: #{_lambda_.3} parent=11 // pred_check_branch
          %909 = sbr.rel (%p907) target = $region112
        $region111: #{_lambda_.3} parent=11 // pred_region
          _
        $region112: #{_lambda_.3} parent=11 // pred_fallthru
          _
        // Predicated region
        $region113: #{_lambda_.3} parent=11 // pred_check
          %p910 = pneg %p726
        $region114: #{_lambda_.3} parent=11 // pred_check_branch
          %912 = sbr.rel (%p910) target = $region116
        $region115: #{_lambda_.3} parent=11 // pred_region
          _
        $region116: #{_lambda_.3} parent=11 // pred_fallthru
          _
        // Predicated region
        $region117: #{_lambda_.3} parent=11 // pred_check
          %p913 = pneg %p747
        $region118: #{_lambda_.3} parent=11 // pred_check_branch
          %915 = sbr.rel (%p913) target = $region120
        $region119: #{_lambda_.3} parent=11 // pred_region
          _
        $region120: #{_lambda_.3} parent=11 // pred_fallthru
          _
        // Predicated region
        $region121: #{_lambda_.3} parent=11 // pred_check
          %p916 = pneg %p768
        $region122: #{_lambda_.3} parent=11 // pred_check_branch
          %918 = sbr.rel (%p916) target = $region124
        $region123: #{_lambda_.3} parent=11 // pred_region
          _
        $region124: #{_lambda_.3} parent=11 // pred_fallthru
          _
      $region12: #{_lambda_.3} parent=5 // pred_fallthru
        _
      %p919 = scmp.lt.s32.totalorder %s76, 2
      // Predicated region
      $region125: #{_lambda_.3} parent=5 // pred_check
        %p920 = pneg %p919
      $region126: #{_lambda_.3} parent=5 // pred_check_branch
        %922 = sbr.rel (%p920) target = $region128
      $region127: #{_lambda_.3} parent=5 // pred_region
        // Predicated region
        $region129: #{_lambda_.3} parent=127 // pred_check
          %p923 = pneg %p96
        $region130: #{_lambda_.3} parent=127 // pred_check_branch
          %925 = sbr.rel (%p923) target = $region132
        $region131: #{_lambda_.3} parent=127 // pred_region
          %p926 = scmp.lt.s32.totalorder %s76, 1
          %s927 = scalar_select %p926, %s76, 1
          %s928 = smul.addr %s927, 2
          %s929 = smul.addr %s928, 8
          %s930 = scalar_lea.vmem %s1, %s929
        $region132: #{_lambda_.3} parent=127 // pred_fallthru
          _
        // Predicated region
        $region133: #{_lambda_.3} parent=127 // pred_check
          %p931 = pneg %p122
        $region134: #{_lambda_.3} parent=127 // pred_check_branch
          %933 = sbr.rel (%p931) target = $region136
        $region135: #{_lambda_.3} parent=127 // pred_region
          %p934 = scmp.lt.s32.totalorder %s76, 1
          %s935 = scalar_select %p934, %s76, 1
          %s936 = smul.addr %s935, 2
          %s937 = smul.addr %s936, 8
          %s938 = scalar_lea.vmem %s3, %s937
        $region136: #{_lambda_.3} parent=127 // pred_fallthru
          _
        // Predicated region
        $region137: #{_lambda_.3} parent=127 // pred_check
          %p939 = pneg %p148
        $region138: #{_lambda_.3} parent=127 // pred_check_branch
          %941 = sbr.rel (%p939) target = $region140
        $region139: #{_lambda_.3} parent=127 // pred_region
          %p942 = scmp.lt.s32.totalorder %s76, 1
          %s943 = scalar_select %p942, %s76, 1
          %s944 = scalar_lea.vmem %s5, %s943
        $region140: #{_lambda_.3} parent=127 // pred_fallthru
          _
        // Predicated region
        $region141: #{_lambda_.3} parent=127 // pred_check
          %p945 = pneg %p174
        $region142: #{_lambda_.3} parent=127 // pred_check_branch
          %947 = sbr.rel (%p945) target = $region144
        $region143: #{_lambda_.3} parent=127 // pred_region
          %p948 = scmp.lt.s32.totalorder %s76, 1
          %s949 = scalar_select %p948, %s76, 1
          %s950 = smul.addr %s949, 2
          %s951 = smul.addr %s950, 8
          %s952 = scalar_lea.vmem %s7, %s951
        $region144: #{_lambda_.3} parent=127 // pred_fallthru
          _
        // Predicated region
        $region145: #{_lambda_.3} parent=127 // pred_check
          %p953 = pneg %p788
        $region146: #{_lambda_.3} parent=127 // pred_check_branch
          %955 = sbr.rel (%p953) target = $region148
        $region147: #{_lambda_.3} parent=127 // pred_region
          %p956 = scmp.lt.s32.totalorder %s76, 1
          %s957 = scalar_select %p956, %s76, 1
          %s958 = smul.addr %s957, 2
          %s959 = smul.addr %s958, 8
          %s960 = scalar_lea.vmem %s65, %s959
        $region148: #{_lambda_.3} parent=127 // pred_fallthru
          _
      $region128: #{_lambda_.3} parent=5 // pred_fallthru
        _
      %p961 = scmp.le.s32.totalorder 1, %s76
      %p962 = scmp.lt.s32.totalorder %s76, 3
      %p963 = pnand %p961, %p962
      %p964 = pneg %p963
      // Predicated region
      $region149: #{_lambda_.3} parent=5 // pred_check
        _
      $region150: #{_lambda_.3} parent=5 // pred_check_branch
        %966 = sbr.rel (%p963) target = $region152
      $region151: #{_lambda_.3} parent=5 // pred_region
        %s967 = ssub.s32 %s76, 1
        %p968 = scmp.lt.s32.totalorder %s81, 1
        %s969 = scalar_select %p968, %s81, 1
        %s970 = smul.addr %s969, 2
        %s971 = smul.addr %s970, 8
        %s972 = scalar_lea.vmem %s1, %s971
        %p973 = pneg %p102
        %p974 = pneg %p99
        %p975 = scmp.lt.s32.totalorder %s81, 1
        %s976 = scalar_select %p975, %s81, 1
        %s977 = smul.addr %s976, 2
        %s978 = smul.addr %s977, 8
        %s979 = scalar_lea.vmem %s3, %s978
        %p980 = pneg %p128
        %p981 = pneg %p125
        %p982 = scmp.lt.s32.totalorder %s81, 1
        %s983 = scalar_select %p982, %s81, 1
        %s984 = scalar_lea.vmem %s5, %s983
        %p985 = pneg %p154
        %p986 = pneg %p151
        %p987 = scmp.lt.s32.totalorder %s81, 1
        %s988 = scalar_select %p987, %s81, 1
        %s989 = smul.addr %s988, 2
        %s990 = smul.addr %s989, 8
        %s991 = scalar_lea.vmem %s7, %s990
        %p992 = pneg %p180
        %p993 = pneg %p177
        %p994 = pneg %p201
        %p995 = pneg %p198
        %p996 = pneg %p222
        %p997 = pneg %p219
        %p998 = pneg %p243
        %p999 = pneg %p240
        %p1000 = pneg %p264
        %p1001 = pneg %p261
        %p1002 = pneg %p285
        %p1003 = pneg %p282
        %p1004 = pneg %p306
        %p1005 = pneg %p303
        %p1006 = pneg %p327
        %p1007 = pneg %p324
        %p1008 = pneg %p348
        %p1009 = pneg %p345
        %p1010 = pneg %p369
        %p1011 = pneg %p366
        %p1012 = pneg %p390
        %p1013 = pneg %p387
        %p1014 = pneg %p411
        %p1015 = pneg %p408
        %p1016 = pneg %p432
        %p1017 = pneg %p429
        %p1018 = pneg %p453
        %p1019 = pneg %p450
        %p1020 = pneg %p474
        %p1021 = pneg %p471
        %p1022 = pneg %p495
        %p1023 = pneg %p492
        %p1024 = pneg %p516
        %p1025 = pneg %p513
        %p1026 = pneg %p537
        %p1027 = pneg %p534
        %p1028 = pneg %p558
        %p1029 = pneg %p555
        %p1030 = pneg %p579
        %p1031 = pneg %p576
        %p1032 = pneg %p600
        %p1033 = pneg %p597
        %p1034 = pneg %p621
        %p1035 = pneg %p618
        %p1036 = pneg %p642
        %p1037 = pneg %p639
        %p1038 = pneg %p663
        %p1039 = pneg %p660
        %p1040 = pneg %p684
        %p1041 = pneg %p681
        %p1042 = pneg %p705
        %p1043 = pneg %p702
        %p1044 = pneg %p726
        %p1045 = pneg %p723
        %p1046 = pneg %p747
        %p1047 = pneg %p744
        %p1048 = pneg %p768
        %p1049 = pneg %p765
        %p1050 = scmp.lt.s32.totalorder %s81, 1
        %s1051 = scalar_select %p1050, %s81, 1
        %s1052 = smul.addr %s1051, 2
        %s1053 = smul.addr %s1052, 8
        %s1054 = scalar_lea.vmem %s65, %s1053
        %p1055 = pneg %p794
        %p1056 = pneg %p791
        %p1057 = pneg %p820
        %p1058 = pneg %p817
        %s1059 = sand.u32 %s807, 1
        %s1060 = scalar_lea.sflag [#allocation3], %s1059
        %s1061 = sand.u32 %s807, 1
        %s1062 = smul.addr %s1061, 16
        %s1063 = scalar_lea.vmem [#allocation2], %s1062
        %p1064 = scmp.lt.s32.totalorder %s81, 1
        %s1065 = scalar_select %p1064, %s81, 1
        %s1066 = smul.addr %s1065, 2
        %s1067 = smul.addr %s1066, 8
        %s1068 = scalar_lea.vmem %s1, %s1067
        %p1069 = scmp.lt.s32.totalorder %s81, 1
        %s1070 = scalar_select %p1069, %s81, 1
        %s1071 = smul.addr %s1070, 2
        %s1072 = smul.addr %s1071, 8
        %s1073 = scalar_lea.vmem %s3, %s1072
        %p1074 = scmp.lt.s32.totalorder %s81, 1
        %s1075 = scalar_select %p1074, %s81, 1
        %s1076 = scalar_lea.vmem %s5, %s1075
        %p1077 = scmp.lt.s32.totalorder %s81, 1
        %s1078 = scalar_select %p1077, %s81, 1
        %s1079 = smul.addr %s1078, 2
        %s1080 = smul.addr %s1079, 8
        %s1081 = scalar_lea.vmem %s7, %s1080
        %p1082 = scmp.lt.s32.totalorder %s81, 1
        %s1083 = scalar_select %p1082, %s81, 1
        %s1084 = smul.addr %s1083, 2
        %s1085 = smul.addr %s1084, 8
        %s1086 = scalar_lea.vmem %s65, %s1085
        %v1088 = vld [vmem:[%s1081] sm:$0xff]
        %v1089 = vld [vmem:[%s1081 + $0x8] sm:$0xff]
        %v1090 = vld [vmem:[%s1076] sm:$0x1]
        %v1091 = vmul.f32 %v1090, -1e+09
        %v1092 = vld [vmem:[%s1068] sm:$0xff]
        %v1093 = vld [vmem:[%s1068 + $0x8] sm:$0xff]
        %v1094 = vld [vmem:[%s1073] sm:$0xff]
        %v1095 = vld [vmem:[%s1073 + $0x8] sm:$0xff]
        %v1096 = vadd.f32 %v1092, %v1094
        %v1097 = vadd.f32 %v1093, %v1095
        %1099 = vset.pattern.permute.xlu0 0
        %1100 = vperm.xlu0 %1099, %v1088
        %v1101 = vpop.permute.xlu0 %1100
        %1104 = vset.pattern.permute.xlu0 0
        %1105 = vperm.xlu0 %1104, %v1089
        %v1106 = vpop.permute.xlu0 %1105
        %v1108 = vmul.f32 %v1096, %v1101
        %v1109 = vmul.f32 %v1097, %v1106
        %v1110 = vld [vmem:[%s9] sm:$0x1]
        %v1111 = vld [vmem:[%s11] sm:$0x1]
        %vm1112 = vcmask 261120
        %v1113 = vsel %vm1112, %v1108, 0.0
        %1114 = vadd.xlane.f32.xlu0 %v1113
        %v1115 = vpop.xlane.xlu0 %1114
        %v1116 = vsel %vm1112, %v1109, 0.0
        %1117 = vadd.xlane.f32.xlu0 %v1116
        %v1118 = vpop.xlane.xlu0 %1117
        %v1119 = vrcp.pop 32.0
        %v1120 = vmul.f32 32.0, %v1119
        %v1121 = vsub.f32 1.0, %v1120
        %v1122 = vmul.f32 %v1119, %v1121
        %v1123 = vadd.f32 %v1119, %v1122
        %vm1124 = vweird.f32 %v1119
        %v1125 = vsel %vm1124, %v1119, %v1123
        %v1126 = vmul.f32 %v1115, %v1125
        %v1127 = vmul.f32 %v1118, %v1125
        %v1128 = vsub.f32 %v1108, %v1126
        %v1129 = vsub.f32 %v1109, %v1127
        %v1130 = vmul.f32 %v1128, %v1128
        %v1131 = vmul.f32 %v1129, %v1129
        %v1132 = vsel %vm1112, %v1130, 0.0
        %1133 = vadd.xlane.f32.xlu0 %v1132
        %v1134 = vpop.xlane.xlu0 %1133
        %v1135 = vsel %vm1112, %v1131, 0.0
        %1136 = vadd.xlane.f32.xlu0 %v1135
        %v1137 = vpop.xlane.xlu0 %1136
        %v1138 = vmul.f32 %v1134, %v1125
        %v1139 = vmul.f32 %v1137, %v1125
        %v1140 = vadd.f32 %v1138, 1e-12
        %v1141 = vadd.f32 %v1139, 1e-12
        %v1142 = vrsqrt.pop %v1140
        %v1143 = vmul.f32 %v1142, %v1140
        %v1144 = vmul.f32 %v1143, %v1142
        %v1145 = vmul.f32 0.5, %v1144
        %v1146 = vsub.f32 1.5, %v1145
        %v1147 = vmul.f32 %v1142, %v1146
        %vm1148 = vweird.f32 %v1140
        %vm1149 = vweird.f32 %v1142
        %vm1150 = vmor %vm1148, %vm1149
        %v1151 = vsel %vm1150, %v1142, %v1147
        %v1152 = vrsqrt.pop %v1141
        %v1153 = vmul.f32 %v1152, %v1141
        %v1154 = vmul.f32 %v1153, %v1152
        %v1155 = vmul.f32 0.5, %v1154
        %v1156 = vsub.f32 1.5, %v1155
        %v1157 = vmul.f32 %v1152, %v1156
        %vm1158 = vweird.f32 %v1141
        %vm1159 = vweird.f32 %v1152
        %vm1160 = vmor %vm1158, %vm1159
        %v1161 = vsel %vm1160, %v1152, %v1157
        %v1162 = vmul.f32 %v1128, %v1151
        %v1163 = vmul.f32 %v1129, %v1161
        %v1165 = vperm.slane %v1110, 0
        %v1167 = vmul.f32 %v1162, %v1165
        %v1168 = vmul.f32 %v1163, %v1165
        %v1170 = vperm.slane %v1111, 0
        %v1172 = vadd.f32 %v1167, %v1170
        %v1173 = vadd.f32 %v1168, %v1170
        %v1174 = vpack.c.bf16 %v1173, %v1172
        %v1175 = vld [vmem:[%s13] sm:$0xf]
        %v1176 = vld [vmem:[%s13 + $0x4] sm:$0xf]
        %v1177 = vld [vmem:[%s13 + $0x8] sm:$0xf]
        %v1178 = vld [vmem:[%s13 + $0xc] sm:$0xf]
        %v1179 = vld [vmem:[%s15] sm:$0x1]
        %v1181 = vperm.slane %v1179, 0
        %v1187 = vunpack.c.l.b16 %v1175
        %v1188 = vunpack.c.l.b16 %v1176
        %v1189 = vunpack.c.l.b16 %v1177
        %v1190 = vunpack.c.l.b16 %v1178
        %v1191 = vpack.c.b16 %v1188, %v1187
        %v1192 = vpack.c.b16 %v1190, %v1189
        %v1196 = vsel %vm1112, %v1174, 0
        %1198 = vmatpush.bf16.msra.mxu0 0
        %1199 = vmatpush.bf16.msra.mxu0 0
        %1200 = vmatpush.bf16.msra.mxu0 0
        %1201 = vmatpush.bf16.msra.mxu0 0
        %1202 = vmatpush.bf16.msra.mxu0 0
        %1203 = vmatpush.bf16.msra.mxu0 0
        %1204 = vmatpush.bf16.msra.mxu0 %v1192
        %1205 = vmatpush.bf16.msra.mxu0 %v1191
        %1206 = vmatmul.bf16.gmra.mxu0 %v1196
        %v1207 = vpop.f32.mrf.mxu0
        %v1208 = vadd.f32 %v1181, %v1207
        %v1209 = vpop.f32.mrf.mxu0
        %v1210 = vadd.f32 %v1181, %v1209
        %1211 = vdwg.mxu0
        %v1212 = vmul.f32 %v1208, 0.25
        %v1213 = vmul.f32 %v1210, 0.25
        %v1214 = vpack.c.bf16 %v1213, %v1212
        %v1215 = vpack.c.bf16 %v1210, %v1208
        %v1217 = vperm.slane %v1091, 0
        %1220 = vrot.lane.b32.xlu0 %v1215, 96
        %v1221 = vpop.permute.xlu0 %1220
        %vm1222 = vcmask 130048
        %v1224 = vsel %vm1222, %v1214, 0
        %v1227 = vsel %vm1222, %v1221, 0
        %1229 = vmatpush.bf16.xpose.msra.mxu0 0
        %1230 = vmatpush.bf16.xpose.msra.mxu0 0
        %1231 = vmatpush.bf16.xpose.msra.mxu0 0
        %1232 = vmatpush.bf16.xpose.msra.mxu0 0
        %1233 = vmatpush.bf16.xpose.msra.mxu0 0
        %1234 = vmatpush.bf16.xpose.msra.mxu0 0
        %1235 = vmatpush.bf16.xpose.msra.mxu0 0
        %1236 = vmatpush.bf16.xpose.msra.mxu0 %v1227
        %1237 = vmatmul.bf16.gmra.mxu0 %v1224
        %v1238 = vpop.f32.mrf.mxu0
        %v1239 = vadd.f32 %v1217, %v1238
        %v1240 = vpop.f32.mrf.mxu0
        %v1241 = vadd.f32 %v1217, %v1240
        %1242 = vdwg.mxu0
        %v1243 = vsel %vm1222, %v1239, -inf
        %1244 = vmax.xlane.f32.xlu0 %v1243
        %v1245 = vpop.xlane.xlu0 %1244
        %v1246 = vsel %vm1222, %v1241, -inf
        %1247 = vmax.xlane.f32.xlu0 %v1246
        %v1248 = vpop.xlane.xlu0 %1247
        %v1249 = vsub.f32 %v1239, %v1245
        %v1250 = vsub.f32 %v1241, %v1248
        %v1251 = vmul.f32 %v1249, 1.442695
        %v1252 = vpow.pop %v1251
        %v1253 = vmul.f32 %v1250, 1.442695
        %v1254 = vpow.pop %v1253
        %v1255 = vsel %vm1222, %v1252, 0.0
        %1256 = vadd.xlane.f32.xlu0 %v1255
        %v1257 = vpop.xlane.xlu0 %1256
        %v1258 = vsel %vm1222, %v1254, 0.0
        %1259 = vadd.xlane.f32.xlu0 %v1258
        %v1260 = vpop.xlane.xlu0 %1259
        %v1261 = vpack.c.bf16 %v1254, %v1252
        %1262 = vrot.lane.b32.xlu0 %v1215, 64
        %v1263 = vpop.permute.xlu0 %1262
        %v1266 = vsel %vm1222, %v1261, 0
        %1268 = vmatpush.bf16.msra.mxu0 0
        %1269 = vmatpush.bf16.msra.mxu0 0
        %1270 = vmatpush.bf16.msra.mxu0 0
        %1271 = vmatpush.bf16.msra.mxu0 0
        %1272 = vmatpush.bf16.msra.mxu0 0
        %1273 = vmatpush.bf16.msra.mxu0 0
        %1274 = vmatpush.bf16.msra.mxu0 0
        %1275 = vmatpush.bf16.msra.mxu0 %v1263
        %1276 = vmatmul.bf16.gmra.mxu0 %v1266
        %v1277 = vpop.f32.mrf.mxu0
        %v1278 = vadd.f32 0.0, %v1277
        %v1279 = vpop.f32.mrf.mxu0
        %v1280 = vadd.f32 0.0, %v1279
        %1281 = vdwg.mxu0
        %v1282 = vrcp.pop %v1257
        %v1283 = vrcp.pop %v1260
        %v1284 = vmul.f32 %v1278, %v1282
        %v1285 = vmul.f32 %v1280, %v1283
        %1287 = vrot.lane.b32.xlu0 %v1214, 112
        %v1288 = vpop.permute.xlu0 %1287
        %1289 = vrot.lane.b32.xlu0 %v1215, 80
        %v1290 = vpop.permute.xlu0 %1289
        %v1292 = vsel %vm1222, %v1288, 0
        %v1295 = vsel %vm1222, %v1290, 0
        %1297 = vmatpush.bf16.xpose.msra.mxu0 0
        %1298 = vmatpush.bf16.xpose.msra.mxu0 0
        %1299 = vmatpush.bf16.xpose.msra.mxu0 0
        %1300 = vmatpush.bf16.xpose.msra.mxu0 0
        %1301 = vmatpush.bf16.xpose.msra.mxu0 0
        %1302 = vmatpush.bf16.xpose.msra.mxu0 0
        %1303 = vmatpush.bf16.xpose.msra.mxu0 0
        %1304 = vmatpush.bf16.xpose.msra.mxu0 %v1295
        %1305 = vmatmul.bf16.gmra.mxu0 %v1292
        %v1306 = vpop.f32.mrf.mxu0
        %v1307 = vadd.f32 %v1217, %v1306
        %v1308 = vpop.f32.mrf.mxu0
        %v1309 = vadd.f32 %v1217, %v1308
        %1310 = vdwg.mxu0
        %v1311 = vsel %vm1222, %v1307, -inf
        %1312 = vmax.xlane.f32.xlu0 %v1311
        %v1313 = vpop.xlane.xlu0 %1312
        %v1314 = vsel %vm1222, %v1309, -inf
        %1315 = vmax.xlane.f32.xlu0 %v1314
        %v1316 = vpop.xlane.xlu0 %1315
        %v1317 = vsub.f32 %v1307, %v1313
        %v1318 = vsub.f32 %v1309, %v1316
        %v1319 = vmul.f32 %v1317, 1.442695
        %v1320 = vpow.pop %v1319
        %v1321 = vmul.f32 %v1318, 1.442695
        %v1322 = vpow.pop %v1321
        %v1323 = vsel %vm1222, %v1320, 0.0
        %1324 = vadd.xlane.f32.xlu0 %v1323
        %v1325 = vpop.xlane.xlu0 %1324
        %v1326 = vsel %vm1222, %v1322, 0.0
        %1327 = vadd.xlane.f32.xlu0 %v1326
        %v1328 = vpop.xlane.xlu0 %1327
        %v1329 = vpack.c.bf16 %v1322, %v1320
        %1330 = vrot.lane.b32.xlu0 %v1215, 48
        %v1331 = vpop.permute.xlu0 %1330
        %v1334 = vsel %vm1222, %v1329, 0
        %1336 = vmatpush.bf16.msra.mxu0 0
        %1337 = vmatpush.bf16.msra.mxu0 0
        %1338 = vmatpush.bf16.msra.mxu0 0
        %1339 = vmatpush.bf16.msra.mxu0 0
        %1340 = vmatpush.bf16.msra.mxu0 0
        %1341 = vmatpush.bf16.msra.mxu0 0
        %1342 = vmatpush.bf16.msra.mxu0 0
        %1343 = vmatpush.bf16.msra.mxu0 %v1331
        %1344 = vmatmul.bf16.gmra.mxu0 %v1334
        %v1345 = vpop.f32.mrf.mxu0
        %v1346 = vadd.f32 0.0, %v1345
        %v1347 = vpop.f32.mrf.mxu0
        %v1348 = vadd.f32 0.0, %v1347
        %1349 = vdwg.mxu0
        %v1350 = vrcp.pop %v1325
        %v1351 = vrcp.pop %v1328
        %v1352 = vmul.f32 %v1346, %v1350
        %v1353 = vmul.f32 %v1348, %v1351
        %1356 = vrot.lane.b32.xlu0 %v1352, 16
        %v1357 = vpop.permute.xlu0 %1356
        %1358 = vrot.lane.b32.xlu0 %v1353, 16
        %v1359 = vpop.permute.xlu0 %1358
        %v1362 = vsel %vm1222, %v1284, %v1357
        %v1363 = vsel %vm1222, %v1285, %v1359
        %v1364 = vpack.c.bf16 %v1363, %v1362
        %v1365 = vld [vmem:[%s17] sm:$0xf]
        %v1366 = vld [vmem:[%s17 + $0x4] sm:$0xf]
        %v1367 = vld [vmem:[%s17 + $0x8] sm:$0xf]
        %v1368 = vld [vmem:[%s17 + $0xc] sm:$0xf]
        %v1369 = vld [vmem:[%s19] sm:$0x1]
        %v1371 = vperm.slane %v1369, 0
        %v1377 = vunpack.c.l.b16 %v1365
        %v1378 = vunpack.c.l.b16 %v1366
        %v1379 = vunpack.c.l.b16 %v1367
        %v1380 = vunpack.c.l.b16 %v1368
        %v1381 = vpack.c.b16 %v1378, %v1377
        %v1382 = vpack.c.b16 %v1380, %v1379
        %v1386 = vsel %vm1112, %v1364, 0
        %1388 = vmatpush.bf16.msra.mxu0 0
        %1389 = vmatpush.bf16.msra.mxu0 0
        %1390 = vmatpush.bf16.msra.mxu0 0
        %1391 = vmatpush.bf16.msra.mxu0 0
        %1392 = vmatpush.bf16.msra.mxu0 0
        %1393 = vmatpush.bf16.msra.mxu0 0
        %1394 = vmatpush.bf16.msra.mxu0 %v1382
        %1395 = vmatpush.bf16.msra.mxu0 %v1381
        %1396 = vmatmul.bf16.gmra.mxu0 %v1386
        %v1397 = vpop.f32.mrf.mxu0
        %v1398 = vadd.f32 %v1371, %v1397
        %v1399 = vpop.f32.mrf.mxu0
        %v1400 = vadd.f32 %v1371, %v1399
        %1401 = vdwg.mxu0
        %v1402 = vadd.f32 %v1108, %v1398
        %v1403 = vadd.f32 %v1109, %v1400
        %v1404 = vmul.f32 %v1402, %v1101
        %v1405 = vmul.f32 %v1403, %v1106
        %v1406 = vld [vmem:[%s21] sm:$0x1]
        %v1407 = vld [vmem:[%s23] sm:$0x1]
        %v1408 = vsel %vm1112, %v1404, 0.0
        %1409 = vadd.xlane.f32.xlu0 %v1408
        %v1410 = vpop.xlane.xlu0 %1409
        %v1411 = vsel %vm1112, %v1405, 0.0
        %1412 = vadd.xlane.f32.xlu0 %v1411
        %v1413 = vpop.xlane.xlu0 %1412
        %v1414 = vmul.f32 %v1410, %v1125
        %v1415 = vmul.f32 %v1413, %v1125
        %v1416 = vsub.f32 %v1404, %v1414
        %v1417 = vsub.f32 %v1405, %v1415
        %v1418 = vmul.f32 %v1416, %v1416
        %v1419 = vmul.f32 %v1417, %v1417
        %v1420 = vsel %vm1112, %v1418, 0.0
        %1421 = vadd.xlane.f32.xlu0 %v1420
        %v1422 = vpop.xlane.xlu0 %1421
        %v1423 = vsel %vm1112, %v1419, 0.0
        %1424 = vadd.xlane.f32.xlu0 %v1423
        %v1425 = vpop.xlane.xlu0 %1424
        %v1426 = vmul.f32 %v1422, %v1125
        %v1427 = vmul.f32 %v1425, %v1125
        %v1428 = vadd.f32 %v1426, 1e-12
        %v1429 = vadd.f32 %v1427, 1e-12
        %v1430 = vrsqrt.pop %v1428
        %v1431 = vmul.f32 %v1430, %v1428
        %v1432 = vmul.f32 %v1431, %v1430
        %v1433 = vmul.f32 0.5, %v1432
        %v1434 = vsub.f32 1.5, %v1433
        %v1435 = vmul.f32 %v1430, %v1434
        %vm1436 = vweird.f32 %v1428
        %vm1437 = vweird.f32 %v1430
        %vm1438 = vmor %vm1436, %vm1437
        %v1439 = vsel %vm1438, %v1430, %v1435
        %v1440 = vrsqrt.pop %v1429
        %v1441 = vmul.f32 %v1440, %v1429
        %v1442 = vmul.f32 %v1441, %v1440
        %v1443 = vmul.f32 0.5, %v1442
        %v1444 = vsub.f32 1.5, %v1443
        %v1445 = vmul.f32 %v1440, %v1444
        %vm1446 = vweird.f32 %v1429
        %vm1447 = vweird.f32 %v1440
        %vm1448 = vmor %vm1446, %vm1447
        %v1449 = vsel %vm1448, %v1440, %v1445
        %v1450 = vmul.f32 %v1416, %v1439
        %v1451 = vmul.f32 %v1417, %v1449
        %v1453 = vperm.slane %v1406, 0
        %v1455 = vmul.f32 %v1450, %v1453
        %v1456 = vmul.f32 %v1451, %v1453
        %v1458 = vperm.slane %v1407, 0
        %v1460 = vadd.f32 %v1455, %v1458
        %v1461 = vadd.f32 %v1456, %v1458
        %vm1464 = vcmask 1043456
        %v1465 = vrot.slane %v1460, 4
        %v1466 = vrot.slane %v1461, 4
        %v1467 = vsel %vm1464, %v1465, %v1466
        %v1471 = vsel %vm1464, 0.0, %v1465
        %v1472 = vsel %vm1464, %v1466, 0.0
        %vm1475 = vcmask 1046528
        %v1476 = vrot.slane %v1471, 1
        %v1477 = vrot.slane %v1467, 1
        %v1478 = vsel %vm1475, %v1476, %v1477
        %v1479 = vrot.slane %v1472, 1
        %v1480 = vsel %vm1475, %v1477, %v1479
        %1481 = vrot.lane.b32.xlu0 %v1478, 32
        %v1482 = vpop.permute.xlu0 %1481
        %1483 = vrot.lane.b32.xlu0 %v1480, 32
        %v1484 = vpop.permute.xlu0 %1483
        %vm1487 = vcmask 1045504
        %v1488 = vrot.slane %v1471, 2
        %v1489 = vrot.slane %v1467, 2
        %v1490 = vsel %vm1487, %v1488, %v1489
        %v1491 = vrot.slane %v1472, 2
        %v1492 = vsel %vm1487, %v1489, %v1491
        %1493 = vrot.lane.b32.xlu0 %v1490, 64
        %v1494 = vpop.permute.xlu0 %1493
        %1495 = vrot.lane.b32.xlu0 %v1492, 64
        %v1496 = vpop.permute.xlu0 %1495
        %vm1499 = vcmask 1044480
        %v1500 = vrot.slane %v1471, 3
        %v1501 = vrot.slane %v1467, 3
        %v1502 = vsel %vm1499, %v1500, %v1501
        %v1503 = vrot.slane %v1472, 3
        %v1504 = vsel %vm1499, %v1501, %v1503
        %1505 = vrot.lane.b32.xlu0 %v1502, 96
        %v1506 = vpop.permute.xlu0 %1505
        %1507 = vrot.lane.b32.xlu0 %v1504, 96
        %v1508 = vpop.permute.xlu0 %1507
        %v1511 = vrot.slane %v1471, 4
        %v1512 = vrot.slane %v1467, 4
        %v1513 = vsel %vm1464, %v1511, %v1512
        %v1514 = vrot.slane %v1472, 4
        %v1515 = vsel %vm1464, %v1512, %v1514
        %vm1518 = vcmask 1042432
        %v1519 = vrot.slane %v1471, 5
        %v1520 = vrot.slane %v1467, 5
        %v1521 = vsel %vm1518, %v1519, %v1520
        %v1522 = vrot.slane %v1472, 5
        %v1523 = vsel %vm1518, %v1520, %v1522
        %1524 = vrot.lane.b32.xlu0 %v1521, 32
        %v1525 = vpop.permute.xlu0 %1524
        %1526 = vrot.lane.b32.xlu0 %v1523, 32
        %v1527 = vpop.permute.xlu0 %1526
        %vm1530 = vcmask 1041408
        %v1531 = vrot.slane %v1471, 6
        %v1532 = vrot.slane %v1467, 6
        %v1533 = vsel %vm1530, %v1531, %v1532
        %v1534 = vrot.slane %v1472, 6
        %v1535 = vsel %vm1530, %v1532, %v1534
        %1536 = vrot.lane.b32.xlu0 %v1533, 64
        %v1537 = vpop.permute.xlu0 %1536
        %1538 = vrot.lane.b32.xlu0 %v1535, 64
        %v1539 = vpop.permute.xlu0 %1538
        %vm1542 = vcmask 1040384
        %v1543 = vrot.slane %v1471, 7
        %v1544 = vrot.slane %v1467, 7
        %v1545 = vsel %vm1542, %v1543, %v1544
        %v1546 = vrot.slane %v1472, 7
        %v1547 = vsel %vm1542, %v1544, %v1546
        %1548 = vrot.lane.b32.xlu0 %v1545, 96
        %v1549 = vpop.permute.xlu0 %1548
        %1550 = vrot.lane.b32.xlu0 %v1547, 96
        %v1551 = vpop.permute.xlu0 %1550
        %v1554 = vsel %vm1112, %v1471, %v1482
        %v1555 = vsel %vm1112, %v1467, %v1484
        %vm1556 = vcmask 523264
        %v1557 = vsel %vm1556, %v1554, %v1494
        %v1558 = vsel %vm1556, %v1555, %v1496
        %vm1559 = vcmask 785408
        %v1560 = vsel %vm1559, %v1557, %v1506
        %v1561 = vsel %vm1559, %v1558, %v1508
        %v1562 = vsel %vm1112, %v1513, %v1525
        %v1563 = vsel %vm1112, %v1515, %v1527
        %v1564 = vsel %vm1556, %v1562, %v1537
        %v1565 = vsel %vm1556, %v1563, %v1539
        %v1566 = vsel %vm1559, %v1564, %v1549
        %v1567 = vsel %vm1559, %v1565, %v1551
        %v1568 = vpack.c.bf16 %v1561, %v1560
        %v1569 = vpack.c.bf16 %v1567, %v1566
        %v1570 = vpack.c.bf16 %v1472, %v1467
        %v1571 = vld [vmem:[%s25] sm:$0xf]
        %v1572 = vld [vmem:[%s25 + $0x4] sm:$0xf]
        %v1573 = vld [vmem:[%s25 + $0x8] sm:$0xf]
        %v1574 = vld [vmem:[%s25 + $0xc] sm:$0xf]
        %v1575 = vld [vmem:[%s25 + $0x10] sm:$0xf]
        %v1576 = vld [vmem:[%s25 + $0x14] sm:$0xf]
        %v1577 = vld [vmem:[%s25 + $0x18] sm:$0xf]
        %v1578 = vld [vmem:[%s25 + $0x1c] sm:$0xf]
        %v1579 = vld [vmem:[%s25 + $0x20] sm:$0xf]
        %v1580 = vld [vmem:[%s25 + $0x24] sm:$0xf]
        %v1581 = vld [vmem:[%s25 + $0x28] sm:$0xf]
        %v1582 = vld [vmem:[%s25 + $0x2c] sm:$0xf]
        %v1583 = vld [vmem:[%s25 + $0x30] sm:$0xf]
        %v1584 = vld [vmem:[%s25 + $0x34] sm:$0xf]
        %v1585 = vld [vmem:[%s25 + $0x38] sm:$0xf]
        %v1586 = vld [vmem:[%s25 + $0x3c] sm:$0xf]
        %v1587 = vld [vmem:[%s25 + $0x40] sm:$0xf]
        %v1588 = vld [vmem:[%s25 + $0x44] sm:$0xf]
        %v1589 = vld [vmem:[%s25 + $0x48] sm:$0xf]
        %v1590 = vld [vmem:[%s25 + $0x4c] sm:$0xf]
        %v1591 = vld [vmem:[%s25 + $0x50] sm:$0xf]
        %v1592 = vld [vmem:[%s25 + $0x54] sm:$0xf]
        %v1593 = vld [vmem:[%s25 + $0x58] sm:$0xf]
        %v1594 = vld [vmem:[%s25 + $0x5c] sm:$0xf]
        %v1595 = vld [vmem:[%s25 + $0x60] sm:$0xf]
        %v1596 = vld [vmem:[%s25 + $0x64] sm:$0xf]
        %v1597 = vld [vmem:[%s25 + $0x68] sm:$0xf]
        %v1598 = vld [vmem:[%s25 + $0x6c] sm:$0xf]
        %v1599 = vld [vmem:[%s25 + $0x70] sm:$0xf]
        %v1600 = vld [vmem:[%s25 + $0x74] sm:$0xf]
        %v1601 = vld [vmem:[%s25 + $0x78] sm:$0xf]
        %v1602 = vld [vmem:[%s25 + $0x7c] sm:$0xf]
        %v1603 = vld [vmem:[%s25 + $0x80] sm:$0xf]
        %v1604 = vld [vmem:[%s25 + $0x84] sm:$0xf]
        %v1605 = vld [vmem:[%s25 + $0x88] sm:$0xf]
        %v1606 = vld [vmem:[%s25 + $0x8c] sm:$0xf]
        %v1607 = vld [vmem:[%s27] sm:$0x1]
        %v1609 = vperm.slane %v1607, 0
        %v1647 = vunpack.c.l.b16 %v1571
        %v1648 = vunpack.c.l.b16 %v1572
        %v1649 = vunpack.c.l.b16 %v1573
        %v1650 = vunpack.c.l.b16 %v1574
        %v1651 = vunpack.c.l.b16 %v1575
        %v1652 = vunpack.c.l.b16 %v1576
        %v1653 = vunpack.c.l.b16 %v1577
        %v1654 = vunpack.c.l.b16 %v1578
        %v1655 = vunpack.c.l.b16 %v1579
        %v1656 = vunpack.c.l.b16 %v1580
        %v1657 = vunpack.c.l.b16 %v1581
        %v1658 = vunpack.c.l.b16 %v1582
        %v1659 = vunpack.c.l.b16 %v1583
        %v1660 = vunpack.c.l.b16 %v1584
        %v1661 = vunpack.c.l.b16 %v1585
        %v1662 = vunpack.c.l.b16 %v1586
        %v1663 = vunpack.c.l.b16 %v1587
        %v1664 = vunpack.c.l.b16 %v1588
        %v1665 = vunpack.c.l.b16 %v1589
        %v1666 = vunpack.c.l.b16 %v1590
        %v1667 = vunpack.c.l.b16 %v1591
        %v1668 = vunpack.c.l.b16 %v1592
        %v1669 = vunpack.c.l.b16 %v1593
        %v1670 = vunpack.c.l.b16 %v1594
        %v1671 = vunpack.c.l.b16 %v1595
        %v1672 = vunpack.c.l.b16 %v1596
        %v1673 = vunpack.c.l.b16 %v1597
        %v1674 = vunpack.c.l.b16 %v1598
        %v1675 = vunpack.c.l.b16 %v1599
        %v1676 = vunpack.c.l.b16 %v1600
        %v1677 = vunpack.c.l.b16 %v1601
        %v1678 = vunpack.c.l.b16 %v1602
        %v1679 = vunpack.c.l.b16 %v1603
        %v1680 = vunpack.c.l.b16 %v1604
        %v1681 = vunpack.c.l.b16 %v1605
        %v1682 = vunpack.c.l.b16 %v1606
        %v1683 = vpack.c.b16 %v1648, %v1647
        %v1684 = vpack.c.b16 %v1650, %v1649
        %v1685 = vpack.c.b16 %v1652, %v1651
        %v1686 = vpack.c.b16 %v1654, %v1653
        %v1687 = vpack.c.b16 %v1656, %v1655
        %v1688 = vpack.c.b16 %v1658, %v1657
        %v1689 = vpack.c.b16 %v1660, %v1659
        %v1690 = vpack.c.b16 %v1662, %v1661
        %v1691 = vpack.c.b16 %v1664, %v1663
        %v1692 = vpack.c.b16 %v1666, %v1665
        %v1693 = vpack.c.b16 %v1668, %v1667
        %v1694 = vpack.c.b16 %v1670, %v1669
        %v1695 = vpack.c.b16 %v1672, %v1671
        %v1696 = vpack.c.b16 %v1674, %v1673
        %v1697 = vpack.c.b16 %v1676, %v1675
        %v1698 = vpack.c.b16 %v1678, %v1677
        %v1699 = vpack.c.b16 %v1680, %v1679
        %v1700 = vpack.c.b16 %v1682, %v1681
        %v1720 = vsel %vm1112, %v1570, 0
        %1722 = vmatpush.bf16.msra.mxu0 %v1690
        %1723 = vmatpush.bf16.msra.mxu0 %v1689
        %1724 = vmatpush.bf16.msra.mxu0 %v1688
        %1725 = vmatpush.bf16.msra.mxu0 %v1687
        %1726 = vmatpush.bf16.msra.mxu0 %v1686
        %1727 = vmatpush.bf16.msra.mxu0 %v1685
        %1728 = vmatpush.bf16.msra.mxu0 %v1684
        %1729 = vmatpush.bf16.msra.mxu0 %v1683
        %1730 = vmatmul.bf16.gmra.mxu0 %v1568
        %v1731 = vpop.f32.mrf.mxu0
        %v1732 = vadd.f32 %v1609, %v1731
        %v1733 = vpop.f32.mrf.mxu0
        %v1734 = vadd.f32 %v1609, %v1733
        %1735 = vdwg.mxu0
        %1736 = vmatpush.bf16.msra.mxu0 %v1698
        %1737 = vmatpush.bf16.msra.mxu0 %v1697
        %1738 = vmatpush.bf16.msra.mxu0 %v1696
        %1739 = vmatpush.bf16.msra.mxu0 %v1695
        %1740 = vmatpush.bf16.msra.mxu0 %v1694
        %1741 = vmatpush.bf16.msra.mxu0 %v1693
        %1742 = vmatpush.bf16.msra.mxu0 %v1692
        %1743 = vmatpush.bf16.msra.mxu0 %v1691
        %1744 = vmatmul.bf16.gmra.mxu0 %v1569
        %v1745 = vpop.f32.mrf.mxu0
        %v1746 = vadd.f32 %v1732, %v1745
        %v1747 = vpop.f32.mrf.mxu0
        %v1748 = vadd.f32 %v1734, %v1747
        %1749 = vdwg.mxu0
        %1750 = vmatpush.bf16.msra.mxu0 0
        %1751 = vmatpush.bf16.msra.mxu0 0
        %1752 = vmatpush.bf16.msra.mxu0 0
        %1753 = vmatpush.bf16.msra.mxu0 0
        %1754 = vmatpush.bf16.msra.mxu0 0
        %1755 = vmatpush.bf16.msra.mxu0 0
        %1756 = vmatpush.bf16.msra.mxu0 %v1700
        %1757 = vmatpush.bf16.msra.mxu0 %v1699
        %1758 = vmatmul.bf16.gmra.mxu0 %v1720
        %v1759 = vpop.f32.mrf.mxu0
        %v1760 = vadd.f32 %v1746, %v1759
        %v1761 = vpop.f32.mrf.mxu0
        %v1762 = vadd.f32 %v1748, %v1761
        %1763 = vdwg.mxu0
        %v1764 = vmul.f32 %v1760, 0.33333334
        %v1765 = vmul.f32 %v1762, 0.33333334
        %v1766 = vmul.f32 %v1764, %v1764
        %v1767 = vmul.f32 %v1765, %v1765
        %v1768 = vmul.f32 %v1764, %v1766
        %v1769 = vmul.f32 %v1765, %v1767
        %v1770 = vmul.f32 %v1768, 0.044715
        %v1771 = vmul.f32 %v1769, 0.044715
        %v1772 = vadd.f32 %v1764, %v1770
        %v1773 = vadd.f32 %v1765, %v1771
        %v1774 = vmul.f32 %v1772, 0.7978846
        %v1775 = vmul.f32 %v1773, 0.7978846
        %v1776 = vtanh.pop %v1774
        %v1777 = vtanh.pop %v1775
        %v1778 = vadd.f32 %v1776, 1.0
        %v1779 = vadd.f32 %v1777, 1.0
        %v1780 = vmul.f32 %v1778, 0.5
        %v1781 = vmul.f32 %v1779, 0.5
        %v1782 = vmul.f32 %v1764, %v1780
        %v1783 = vmul.f32 %v1765, %v1781
        %v1784 = vpack.c.bf16 %v1783, %v1782
        %v1785 = vld [vmem:[%s29] sm:$0xf]
        %v1786 = vld [vmem:[%s29 + $0x4] sm:$0xf]
        %v1787 = vld [vmem:[%s29 + $0x8] sm:$0xf]
        %v1788 = vld [vmem:[%s29 + $0xc] sm:$0xf]
        %v1789 = vld [vmem:[%s29 + $0x10] sm:$0xf]
        %v1790 = vld [vmem:[%s29 + $0x14] sm:$0xf]
        %v1791 = vld [vmem:[%s29 + $0x18] sm:$0xf]
        %v1792 = vld [vmem:[%s29 + $0x1c] sm:$0xf]
        %v1793 = vld [vmem:[%s29 + $0x20] sm:$0xf]
        %v1794 = vld [vmem:[%s29 + $0x24] sm:$0xf]
        %v1795 = vld [vmem:[%s29 + $0x28] sm:$0xf]
        %v1796 = vld [vmem:[%s29 + $0x2c] sm:$0xf]
        %v1797 = vld [vmem:[%s29 + $0x30] sm:$0xf]
        %v1798 = vld [vmem:[%s29 + $0x34] sm:$0xf]
        %v1799 = vld [vmem:[%s29 + $0x38] sm:$0xf]
        %v1800 = vld [vmem:[%s29 + $0x3c] sm:$0xf]
        %v1801 = vld [vmem:[%s31] sm:$0x1]
        %v1803 = vperm.slane %v1801, 0
        %v1821 = vunpack.c.l.b16 %v1785
        %v1822 = vunpack.c.l.b16 %v1786
        %v1823 = vunpack.c.l.b16 %v1787
        %v1824 = vunpack.c.l.b16 %v1788
        %v1825 = vunpack.c.l.b16 %v1789
        %v1826 = vunpack.c.l.b16 %v1790
        %v1827 = vunpack.c.l.b16 %v1791
        %v1828 = vunpack.c.l.b16 %v1792
        %v1829 = vunpack.c.l.b16 %v1793
        %v1830 = vunpack.c.l.b16 %v1794
        %v1831 = vunpack.c.l.b16 %v1795
        %v1832 = vunpack.c.l.b16 %v1796
        %v1833 = vunpack.c.l.b16 %v1797
        %v1834 = vunpack.c.l.b16 %v1798
        %v1835 = vunpack.c.l.b16 %v1799
        %v1836 = vunpack.c.l.b16 %v1800
        %v1837 = vpack.c.b16 %v1822, %v1821
        %v1838 = vpack.c.b16 %v1824, %v1823
        %v1839 = vpack.c.b16 %v1826, %v1825
        %v1840 = vpack.c.b16 %v1828, %v1827
        %v1841 = vpack.c.b16 %v1830, %v1829
        %v1842 = vpack.c.b16 %v1832, %v1831
        %v1843 = vpack.c.b16 %v1834, %v1833
        %v1844 = vpack.c.b16 %v1836, %v1835
        %1853 = vmatpush.bf16.msra.mxu0 %v1844
        %1854 = vmatpush.bf16.msra.mxu0 %v1843
        %1855 = vmatpush.bf16.msra.mxu0 %v1842
        %1856 = vmatpush.bf16.msra.mxu0 %v1841
        %1857 = vmatpush.bf16.msra.mxu0 %v1840
        %1858 = vmatpush.bf16.msra.mxu0 %v1839
        %1859 = vmatpush.bf16.msra.mxu0 %v1838
        %1860 = vmatpush.bf16.msra.mxu0 %v1837
        %1861 = vmatmul.bf16.gmra.mxu0 %v1784
        %v1862 = vpop.f32.mrf.mxu0
        %v1863 = vadd.f32 %v1803, %v1862
        %v1864 = vpop.f32.mrf.mxu0
        %v1865 = vadd.f32 %v1803, %v1864
        %1866 = vdwg.mxu0
        %v1867 = vadd.f32 %v1404, %v1863
        %v1868 = vadd.f32 %v1405, %v1865
        %v1869 = vmul.f32 %v1867, %v1101
        %v1870 = vmul.f32 %v1868, %v1106
        %v1871 = vld [vmem:[%s33] sm:$0x1]
        %v1872 = vld [vmem:[%s35] sm:$0x1]
        %v1873 = vsel %vm1112, %v1869, 0.0
        %1874 = vadd.xlane.f32.xlu0 %v1873
        %v1875 = vpop.xlane.xlu0 %1874
        %v1876 = vsel %vm1112, %v1870, 0.0
        %1877 = vadd.xlane.f32.xlu0 %v1876
        %v1878 = vpop.xlane.xlu0 %1877
        %v1879 = vmul.f32 %v1875, %v1125
        %v1880 = vmul.f32 %v1878, %v1125
        %v1881 = vsub.f32 %v1869, %v1879
        %v1882 = vsub.f32 %v1870, %v1880
        %v1883 = vmul.f32 %v1881, %v1881
        %v1884 = vmul.f32 %v1882, %v1882
        %v1885 = vsel %vm1112, %v1883, 0.0
        %1886 = vadd.xlane.f32.xlu0 %v1885
        %v1887 = vpop.xlane.xlu0 %1886
        %v1888 = vsel %vm1112, %v1884, 0.0
        %1889 = vadd.xlane.f32.xlu0 %v1888
        %v1890 = vpop.xlane.xlu0 %1889
        %v1891 = vmul.f32 %v1887, %v1125
        %v1892 = vmul.f32 %v1890, %v1125
        %v1893 = vadd.f32 %v1891, 1e-12
        %v1894 = vadd.f32 %v1892, 1e-12
        %v1895 = vrsqrt.pop %v1893
        %v1896 = vmul.f32 %v1895, %v1893
        %v1897 = vmul.f32 %v1896, %v1895
        %v1898 = vmul.f32 0.5, %v1897
        %v1899 = vsub.f32 1.5, %v1898
        %v1900 = vmul.f32 %v1895, %v1899
        %vm1901 = vweird.f32 %v1893
        %vm1902 = vweird.f32 %v1895
        %vm1903 = vmor %vm1901, %vm1902
        %v1904 = vsel %vm1903, %v1895, %v1900
        %v1905 = vrsqrt.pop %v1894
        %v1906 = vmul.f32 %v1905, %v1894
        %v1907 = vmul.f32 %v1906, %v1905
        %v1908 = vmul.f32 0.5, %v1907
        %v1909 = vsub.f32 1.5, %v1908
        %v1910 = vmul.f32 %v1905, %v1909
        %vm1911 = vweird.f32 %v1894
        %vm1912 = vweird.f32 %v1905
        %vm1913 = vmor %vm1911, %vm1912
        %v1914 = vsel %vm1913, %v1905, %v1910
        %v1915 = vmul.f32 %v1881, %v1904
        %v1916 = vmul.f32 %v1882, %v1914
        %v1918 = vperm.slane %v1871, 0
        %v1920 = vmul.f32 %v1915, %v1918
        %v1921 = vmul.f32 %v1916, %v1918
        %v1923 = vperm.slane %v1872, 0
        %v1925 = vadd.f32 %v1920, %v1923
        %v1926 = vadd.f32 %v1921, %v1923
        %v1927 = vpack.c.bf16 %v1926, %v1925
        %v1928 = vld [vmem:[%s37] sm:$0xf]
        %v1929 = vld [vmem:[%s37 + $0x4] sm:$0xf]
        %v1930 = vld [vmem:[%s37 + $0x8] sm:$0xf]
        %v1931 = vld [vmem:[%s37 + $0xc] sm:$0xf]
        %v1932 = vld [vmem:[%s39] sm:$0x1]
        %v1934 = vperm.slane %v1932, 0
        %v1940 = vunpack.c.l.b16 %v1928
        %v1941 = vunpack.c.l.b16 %v1929
        %v1942 = vunpack.c.l.b16 %v1930
        %v1943 = vunpack.c.l.b16 %v1931
        %v1944 = vpack.c.b16 %v1941, %v1940
        %v1945 = vpack.c.b16 %v1943, %v1942
        %v1949 = vsel %vm1112, %v1927, 0
        %1951 = vmatpush.bf16.msra.mxu0 0
        %1952 = vmatpush.bf16.msra.mxu0 0
        %1953 = vmatpush.bf16.msra.mxu0 0
        %1954 = vmatpush.bf16.msra.mxu0 0
        %1955 = vmatpush.bf16.msra.mxu0 0
        %1956 = vmatpush.bf16.msra.mxu0 0
        %1957 = vmatpush.bf16.msra.mxu0 %v1945
        %1958 = vmatpush.bf16.msra.mxu0 %v1944
        %1959 = vmatmul.bf16.gmra.mxu0 %v1949
        %v1960 = vpop.f32.mrf.mxu0
        %v1961 = vadd.f32 %v1934, %v1960
        %v1962 = vpop.f32.mrf.mxu0
        %v1963 = vadd.f32 %v1934, %v1962
        %1964 = vdwg.mxu0
        %v1965 = vmul.f32 %v1961, 0.25
        %v1966 = vmul.f32 %v1963, 0.25
        %v1967 = vpack.c.bf16 %v1966, %v1965
        %v1968 = vpack.c.bf16 %v1963, %v1961
        %1970 = vrot.lane.b32.xlu0 %v1968, 96
        %v1971 = vpop.permute.xlu0 %1970
        %v1973 = vsel %vm1222, %v1967, 0
        %v1976 = vsel %vm1222, %v1971, 0
        %1978 = vmatpush.bf16.xpose.msra.mxu0 0
        %1979 = vmatpush.bf16.xpose.msra.mxu0 0
        %1980 = vmatpush.bf16.xpose.msra.mxu0 0
        %1981 = vmatpush.bf16.xpose.msra.mxu0 0
        %1982 = vmatpush.bf16.xpose.msra.mxu0 0
        %1983 = vmatpush.bf16.xpose.msra.mxu0 0
        %1984 = vmatpush.bf16.xpose.msra.mxu0 0
        %1985 = vmatpush.bf16.xpose.msra.mxu0 %v1976
        %1986 = vmatmul.bf16.gmra.mxu0 %v1973
        %v1987 = vpop.f32.mrf.mxu0
        %v1988 = vadd.f32 %v1217, %v1987
        %v1989 = vpop.f32.mrf.mxu0
        %v1990 = vadd.f32 %v1217, %v1989
        %1991 = vdwg.mxu0
        %v1992 = vsel %vm1222, %v1988, -inf
        %1993 = vmax.xlane.f32.xlu0 %v1992
        %v1994 = vpop.xlane.xlu0 %1993
        %v1995 = vsel %vm1222, %v1990, -inf
        %1996 = vmax.xlane.f32.xlu0 %v1995
        %v1997 = vpop.xlane.xlu0 %1996
        %v1998 = vsub.f32 %v1988, %v1994
        %v1999 = vsub.f32 %v1990, %v1997
        %v2000 = vmul.f32 %v1998, 1.442695
        %v2001 = vpow.pop %v2000
        %v2002 = vmul.f32 %v1999, 1.442695
        %v2003 = vpow.pop %v2002
        %v2004 = vsel %vm1222, %v2001, 0.0
        %2005 = vadd.xlane.f32.xlu0 %v2004
        %v2006 = vpop.xlane.xlu0 %2005
        %v2007 = vsel %vm1222, %v2003, 0.0
        %2008 = vadd.xlane.f32.xlu0 %v2007
        %v2009 = vpop.xlane.xlu0 %2008
        %v2010 = vpack.c.bf16 %v2003, %v2001
        %2011 = vrot.lane.b32.xlu0 %v1968, 64
        %v2012 = vpop.permute.xlu0 %2011
        %v2015 = vsel %vm1222, %v2010, 0
        %2017 = vmatpush.bf16.msra.mxu0 0
        %2018 = vmatpush.bf16.msra.mxu0 0
        %2019 = vmatpush.bf16.msra.mxu0 0
        %2020 = vmatpush.bf16.msra.mxu0 0
        %2021 = vmatpush.bf16.msra.mxu0 0
        %2022 = vmatpush.bf16.msra.mxu0 0
        %2023 = vmatpush.bf16.msra.mxu0 0
        %2024 = vmatpush.bf16.msra.mxu0 %v2012
        %2025 = vmatmul.bf16.gmra.mxu0 %v2015
        %v2026 = vpop.f32.mrf.mxu0
        %v2027 = vadd.f32 0.0, %v2026
        %v2028 = vpop.f32.mrf.mxu0
        %v2029 = vadd.f32 0.0, %v2028
        %2030 = vdwg.mxu0
        %v2031 = vrcp.pop %v2006
        %v2032 = vrcp.pop %v2009
        %v2033 = vmul.f32 %v2027, %v2031
        %v2034 = vmul.f32 %v2029, %v2032
        %2036 = vrot.lane.b32.xlu0 %v1967, 112
        %v2037 = vpop.permute.xlu0 %2036
        %2038 = vrot.lane.b32.xlu0 %v1968, 80
        %v2039 = vpop.permute.xlu0 %2038
        %v2041 = vsel %vm1222, %v2037, 0
        %v2044 = vsel %vm1222, %v2039, 0
        %2046 = vmatpush.bf16.xpose.msra.mxu0 0
        %2047 = vmatpush.bf16.xpose.msra.mxu0 0
        %2048 = vmatpush.bf16.xpose.msra.mxu0 0
        %2049 = vmatpush.bf16.xpose.msra.mxu0 0
        %2050 = vmatpush.bf16.xpose.msra.mxu0 0
        %2051 = vmatpush.bf16.xpose.msra.mxu0 0
        %2052 = vmatpush.bf16.xpose.msra.mxu0 0
        %2053 = vmatpush.bf16.xpose.msra.mxu0 %v2044
        %2054 = vmatmul.bf16.gmra.mxu0 %v2041
        %v2055 = vpop.f32.mrf.mxu0
        %v2056 = vadd.f32 %v1217, %v2055
        %v2057 = vpop.f32.mrf.mxu0
        %v2058 = vadd.f32 %v1217, %v2057
        %2059 = vdwg.mxu0
        %v2060 = vsel %vm1222, %v2056, -inf
        %2061 = vmax.xlane.f32.xlu0 %v2060
        %v2062 = vpop.xlane.xlu0 %2061
        %v2063 = vsel %vm1222, %v2058, -inf
        %2064 = vmax.xlane.f32.xlu0 %v2063
        %v2065 = vpop.xlane.xlu0 %2064
        %v2066 = vsub.f32 %v2056, %v2062
        %v2067 = vsub.f32 %v2058, %v2065
        %v2068 = vmul.f32 %v2066, 1.442695
        %v2069 = vpow.pop %v2068
        %v2070 = vmul.f32 %v2067, 1.442695
        %v2071 = vpow.pop %v2070
        %v2072 = vsel %vm1222, %v2069, 0.0
        %2073 = vadd.xlane.f32.xlu0 %v2072
        %v2074 = vpop.xlane.xlu0 %2073
        %v2075 = vsel %vm1222, %v2071, 0.0
        %2076 = vadd.xlane.f32.xlu0 %v2075
        %v2077 = vpop.xlane.xlu0 %2076
        %v2078 = vpack.c.bf16 %v2071, %v2069
        %2079 = vrot.lane.b32.xlu0 %v1968, 48
        %v2080 = vpop.permute.xlu0 %2079
        %v2083 = vsel %vm1222, %v2078, 0
        %2085 = vmatpush.bf16.msra.mxu0 0
        %2086 = vmatpush.bf16.msra.mxu0 0
        %2087 = vmatpush.bf16.msra.mxu0 0
        %2088 = vmatpush.bf16.msra.mxu0 0
        %2089 = vmatpush.bf16.msra.mxu0 0
        %2090 = vmatpush.bf16.msra.mxu0 0
        %2091 = vmatpush.bf16.msra.mxu0 0
        %2092 = vmatpush.bf16.msra.mxu0 %v2080
        %2093 = vmatmul.bf16.gmra.mxu0 %v2083
        %v2094 = vpop.f32.mrf.mxu0
        %v2095 = vadd.f32 0.0, %v2094
        %v2096 = vpop.f32.mrf.mxu0
        %v2097 = vadd.f32 0.0, %v2096
        %2098 = vdwg.mxu0
        %v2099 = vrcp.pop %v2074
        %v2100 = vrcp.pop %v2077
        %v2101 = vmul.f32 %v2095, %v2099
        %v2102 = vmul.f32 %v2097, %v2100
        %2105 = vrot.lane.b32.xlu0 %v2101, 16
        %v2106 = vpop.permute.xlu0 %2105
        %2107 = vrot.lane.b32.xlu0 %v2102, 16
        %v2108 = vpop.permute.xlu0 %2107
        %v2111 = vsel %vm1222, %v2033, %v2106
        %v2112 = vsel %vm1222, %v2034, %v2108
        %v2113 = vpack.c.bf16 %v2112, %v2111
        %v2114 = vld [vmem:[%s41] sm:$0xf]
        %v2115 = vld [vmem:[%s41 + $0x4] sm:$0xf]
        %v2116 = vld [vmem:[%s41 + $0x8] sm:$0xf]
        %v2117 = vld [vmem:[%s41 + $0xc] sm:$0xf]
        %v2118 = vld [vmem:[%s43] sm:$0x1]
        %v2120 = vperm.slane %v2118, 0
        %v2126 = vunpack.c.l.b16 %v2114
        %v2127 = vunpack.c.l.b16 %v2115
        %v2128 = vunpack.c.l.b16 %v2116
        %v2129 = vunpack.c.l.b16 %v2117
        %v2130 = vpack.c.b16 %v2127, %v2126
        %v2131 = vpack.c.b16 %v2129, %v2128
        %v2135 = vsel %vm1112, %v2113, 0
        %2137 = vmatpush.bf16.msra.mxu0 0
        %2138 = vmatpush.bf16.msra.mxu0 0
        %2139 = vmatpush.bf16.msra.mxu0 0
        %2140 = vmatpush.bf16.msra.mxu0 0
        %2141 = vmatpush.bf16.msra.mxu0 0
        %2142 = vmatpush.bf16.msra.mxu0 0
        %2143 = vmatpush.bf16.msra.mxu0 %v2131
        %2144 = vmatpush.bf16.msra.mxu0 %v2130
        %2145 = vmatmul.bf16.gmra.mxu0 %v2135
        %v2146 = vpop.f32.mrf.mxu0
        %v2147 = vadd.f32 %v2120, %v2146
        %v2148 = vpop.f32.mrf.mxu0
        %v2149 = vadd.f32 %v2120, %v2148
        %2150 = vdwg.mxu0
        %v2151 = vadd.f32 %v1869, %v2147
        %v2152 = vadd.f32 %v1870, %v2149
        %v2153 = vmul.f32 %v2151, %v1101
        %v2154 = vmul.f32 %v2152, %v1106
        %v2155 = vld [vmem:[%s45] sm:$0x1]
        %v2156 = vld [vmem:[%s47] sm:$0x1]
        %v2157 = vsel %vm1112, %v2153, 0.0
        %2158 = vadd.xlane.f32.xlu0 %v2157
        %v2159 = vpop.xlane.xlu0 %2158
        %v2160 = vsel %vm1112, %v2154, 0.0
        %2161 = vadd.xlane.f32.xlu0 %v2160
        %v2162 = vpop.xlane.xlu0 %2161
        %v2163 = vmul.f32 %v2159, %v1125
        %v2164 = vmul.f32 %v2162, %v1125
        %v2165 = vsub.f32 %v2153, %v2163
        %v2166 = vsub.f32 %v2154, %v2164
        %v2167 = vmul.f32 %v2165, %v2165
        %v2168 = vmul.f32 %v2166, %v2166
        %v2169 = vsel %vm1112, %v2167, 0.0
        %2170 = vadd.xlane.f32.xlu0 %v2169
        %v2171 = vpop.xlane.xlu0 %2170
        %v2172 = vsel %vm1112, %v2168, 0.0
        %2173 = vadd.xlane.f32.xlu0 %v2172
        %v2174 = vpop.xlane.xlu0 %2173
        %v2175 = vmul.f32 %v2171, %v1125
        %v2176 = vmul.f32 %v2174, %v1125
        %v2177 = vadd.f32 %v2175, 1e-12
        %v2178 = vadd.f32 %v2176, 1e-12
        %v2179 = vrsqrt.pop %v2177
        %v2180 = vmul.f32 %v2179, %v2177
        %v2181 = vmul.f32 %v2180, %v2179
        %v2182 = vmul.f32 0.5, %v2181
        %v2183 = vsub.f32 1.5, %v2182
        %v2184 = vmul.f32 %v2179, %v2183
        %vm2185 = vweird.f32 %v2177
        %vm2186 = vweird.f32 %v2179
        %vm2187 = vmor %vm2185, %vm2186
        %v2188 = vsel %vm2187, %v2179, %v2184
        %v2189 = vrsqrt.pop %v2178
        %v2190 = vmul.f32 %v2189, %v2178
        %v2191 = vmul.f32 %v2190, %v2189
        %v2192 = vmul.f32 0.5, %v2191
        %v2193 = vsub.f32 1.5, %v2192
        %v2194 = vmul.f32 %v2189, %v2193
        %vm2195 = vweird.f32 %v2178
        %vm2196 = vweird.f32 %v2189
        %vm2197 = vmor %vm2195, %vm2196
        %v2198 = vsel %vm2197, %v2189, %v2194
        %v2199 = vmul.f32 %v2165, %v2188
        %v2200 = vmul.f32 %v2166, %v2198
        %v2202 = vperm.slane %v2155, 0
        %v2204 = vmul.f32 %v2199, %v2202
        %v2205 = vmul.f32 %v2200, %v2202
        %v2207 = vperm.slane %v2156, 0
        %v2209 = vadd.f32 %v2204, %v2207
        %v2210 = vadd.f32 %v2205, %v2207
        %v2213 = vrot.slane %v2209, 4
        %v2214 = vrot.slane %v2210, 4
        %v2215 = vsel %vm1464, %v2213, %v2214
        %v2219 = vsel %vm1464, 0.0, %v2213
        %v2220 = vsel %vm1464, %v2214, 0.0
        %v2223 = vrot.slane %v2219, 1
        %v2224 = vrot.slane %v2215, 1
        %v2225 = vsel %vm1475, %v2223, %v2224
        %v2226 = vrot.slane %v2220, 1
        %v2227 = vsel %vm1475, %v2224, %v2226
        %2228 = vrot.lane.b32.xlu0 %v2225, 32
        %v2229 = vpop.permute.xlu0 %2228
        %2230 = vrot.lane.b32.xlu0 %v2227, 32
        %v2231 = vpop.permute.xlu0 %2230
        %v2234 = vrot.slane %v2219, 2
        %v2235 = vrot.slane %v2215, 2
        %v2236 = vsel %vm1487, %v2234, %v2235
        %v2237 = vrot.slane %v2220, 2
        %v2238 = vsel %vm1487, %v2235, %v2237
        %2239 = vrot.lane.b32.xlu0 %v2236, 64
        %v2240 = vpop.permute.xlu0 %2239
        %2241 = vrot.lane.b32.xlu0 %v2238, 64
        %v2242 = vpop.permute.xlu0 %2241
        %v2245 = vrot.slane %v2219, 3
        %v2246 = vrot.slane %v2215, 3
        %v2247 = vsel %vm1499, %v2245, %v2246
        %v2248 = vrot.slane %v2220, 3
        %v2249 = vsel %vm1499, %v2246, %v2248
        %2250 = vrot.lane.b32.xlu0 %v2247, 96
        %v2251 = vpop.permute.xlu0 %2250
        %2252 = vrot.lane.b32.xlu0 %v2249, 96
        %v2253 = vpop.permute.xlu0 %2252
        %v2256 = vrot.slane %v2219, 4
        %v2257 = vrot.slane %v2215, 4
        %v2258 = vsel %vm1464, %v2256, %v2257
        %v2259 = vrot.slane %v2220, 4
        %v2260 = vsel %vm1464, %v2257, %v2259
        %v2263 = vrot.slane %v2219, 5
        %v2264 = vrot.slane %v2215, 5
        %v2265 = vsel %vm1518, %v2263, %v2264
        %v2266 = vrot.slane %v2220, 5
        %v2267 = vsel %vm1518, %v2264, %v2266
        %2268 = vrot.lane.b32.xlu0 %v2265, 32
        %v2269 = vpop.permute.xlu0 %2268
        %2270 = vrot.lane.b32.xlu0 %v2267, 32
        %v2271 = vpop.permute.xlu0 %2270
        %v2274 = vrot.slane %v2219, 6
        %v2275 = vrot.slane %v2215, 6
        %v2276 = vsel %vm1530, %v2274, %v2275
        %v2277 = vrot.slane %v2220, 6
        %v2278 = vsel %vm1530, %v2275, %v2277
        %2279 = vrot.lane.b32.xlu0 %v2276, 64
        %v2280 = vpop.permute.xlu0 %2279
        %2281 = vrot.lane.b32.xlu0 %v2278, 64
        %v2282 = vpop.permute.xlu0 %2281
        %v2285 = vrot.slane %v2219, 7
        %v2286 = vrot.slane %v2215, 7
        %v2287 = vsel %vm1542, %v2285, %v2286
        %v2288 = vrot.slane %v2220, 7
        %v2289 = vsel %vm1542, %v2286, %v2288
        %2290 = vrot.lane.b32.xlu0 %v2287, 96
        %v2291 = vpop.permute.xlu0 %2290
        %2292 = vrot.lane.b32.xlu0 %v2289, 96
        %v2293 = vpop.permute.xlu0 %2292
        %v2296 = vsel %vm1112, %v2219, %v2229
        %v2297 = vsel %vm1112, %v2215, %v2231
        %v2298 = vsel %vm1556, %v2296, %v2240
        %v2299 = vsel %vm1556, %v2297, %v2242
        %v2300 = vsel %vm1559, %v2298, %v2251
        %v2301 = vsel %vm1559, %v2299, %v2253
        %v2302 = vsel %vm1112, %v2258, %v2269
        %v2303 = vsel %vm1112, %v2260, %v2271
        %v2304 = vsel %vm1556, %v2302, %v2280
        %v2305 = vsel %vm1556, %v2303, %v2282
        %v2306 = vsel %vm1559, %v2304, %v2291
        %v2307 = vsel %vm1559, %v2305, %v2293
        %v2308 = vpack.c.bf16 %v2301, %v2300
        %v2309 = vpack.c.bf16 %v2307, %v2306
        %v2310 = vpack.c.bf16 %v2220, %v2215
        %v2311 = vld [vmem:[%s49] sm:$0xf]
        %v2312 = vld [vmem:[%s49 + $0x4] sm:$0xf]
        %v2313 = vld [vmem:[%s49 + $0x8] sm:$0xf]
        %v2314 = vld [vmem:[%s49 + $0xc] sm:$0xf]
        %v2315 = vld [vmem:[%s49 + $0x10] sm:$0xf]
        %v2316 = vld [vmem:[%s49 + $0x14] sm:$0xf]
        %v2317 = vld [vmem:[%s49 + $0x18] sm:$0xf]
        %v2318 = vld [vmem:[%s49 + $0x1c] sm:$0xf]
        %v2319 = vld [vmem:[%s49 + $0x20] sm:$0xf]
        %v2320 = vld [vmem:[%s49 + $0x24] sm:$0xf]
        %v2321 = vld [vmem:[%s49 + $0x28] sm:$0xf]
        %v2322 = vld [vmem:[%s49 + $0x2c] sm:$0xf]
        %v2323 = vld [vmem:[%s49 + $0x30] sm:$0xf]
        %v2324 = vld [vmem:[%s49 + $0x34] sm:$0xf]
        %v2325 = vld [vmem:[%s49 + $0x38] sm:$0xf]
        %v2326 = vld [vmem:[%s49 + $0x3c] sm:$0xf]
        %v2327 = vld [vmem:[%s49 + $0x40] sm:$0xf]
        %v2328 = vld [vmem:[%s49 + $0x44] sm:$0xf]
        %v2329 = vld [vmem:[%s49 + $0x48] sm:$0xf]
        %v2330 = vld [vmem:[%s49 + $0x4c] sm:$0xf]
        %v2331 = vld [vmem:[%s49 + $0x50] sm:$0xf]
        %v2332 = vld [vmem:[%s49 + $0x54] sm:$0xf]
        %v2333 = vld [vmem:[%s49 + $0x58] sm:$0xf]
        %v2334 = vld [vmem:[%s49 + $0x5c] sm:$0xf]
        %v2335 = vld [vmem:[%s49 + $0x60] sm:$0xf]
        %v2336 = vld [vmem:[%s49 + $0x64] sm:$0xf]
        %v2337 = vld [vmem:[%s49 + $0x68] sm:$0xf]
        %v2338 = vld [vmem:[%s49 + $0x6c] sm:$0xf]
        %v2339 = vld [vmem:[%s49 + $0x70] sm:$0xf]
        %v2340 = vld [vmem:[%s49 + $0x74] sm:$0xf]
        %v2341 = vld [vmem:[%s49 + $0x78] sm:$0xf]
        %v2342 = vld [vmem:[%s49 + $0x7c] sm:$0xf]
        %v2343 = vld [vmem:[%s49 + $0x80] sm:$0xf]
        %v2344 = vld [vmem:[%s49 + $0x84] sm:$0xf]
        %v2345 = vld [vmem:[%s49 + $0x88] sm:$0xf]
        %v2346 = vld [vmem:[%s49 + $0x8c] sm:$0xf]
        %v2347 = vld [vmem:[%s51] sm:$0x1]
        %v2349 = vperm.slane %v2347, 0
        %v2387 = vunpack.c.l.b16 %v2311
        %v2388 = vunpack.c.l.b16 %v2312
        %v2389 = vunpack.c.l.b16 %v2313
        %v2390 = vunpack.c.l.b16 %v2314
        %v2391 = vunpack.c.l.b16 %v2315
        %v2392 = vunpack.c.l.b16 %v2316
        %v2393 = vunpack.c.l.b16 %v2317
        %v2394 = vunpack.c.l.b16 %v2318
        %v2395 = vunpack.c.l.b16 %v2319
        %v2396 = vunpack.c.l.b16 %v2320
        %v2397 = vunpack.c.l.b16 %v2321
        %v2398 = vunpack.c.l.b16 %v2322
        %v2399 = vunpack.c.l.b16 %v2323
        %v2400 = vunpack.c.l.b16 %v2324
        %v2401 = vunpack.c.l.b16 %v2325
        %v2402 = vunpack.c.l.b16 %v2326
        %v2403 = vunpack.c.l.b16 %v2327
        %v2404 = vunpack.c.l.b16 %v2328
        %v2405 = vunpack.c.l.b16 %v2329
        %v2406 = vunpack.c.l.b16 %v2330
        %v2407 = vunpack.c.l.b16 %v2331
        %v2408 = vunpack.c.l.b16 %v2332
        %v2409 = vunpack.c.l.b16 %v2333
        %v2410 = vunpack.c.l.b16 %v2334
        %v2411 = vunpack.c.l.b16 %v2335
        %v2412 = vunpack.c.l.b16 %v2336
        %v2413 = vunpack.c.l.b16 %v2337
        %v2414 = vunpack.c.l.b16 %v2338
        %v2415 = vunpack.c.l.b16 %v2339
        %v2416 = vunpack.c.l.b16 %v2340
        %v2417 = vunpack.c.l.b16 %v2341
        %v2418 = vunpack.c.l.b16 %v2342
        %v2419 = vunpack.c.l.b16 %v2343
        %v2420 = vunpack.c.l.b16 %v2344
        %v2421 = vunpack.c.l.b16 %v2345
        %v2422 = vunpack.c.l.b16 %v2346
        %v2423 = vpack.c.b16 %v2388, %v2387
        %v2424 = vpack.c.b16 %v2390, %v2389
        %v2425 = vpack.c.b16 %v2392, %v2391
        %v2426 = vpack.c.b16 %v2394, %v2393
        %v2427 = vpack.c.b16 %v2396, %v2395
        %v2428 = vpack.c.b16 %v2398, %v2397
        %v2429 = vpack.c.b16 %v2400, %v2399
        %v2430 = vpack.c.b16 %v2402, %v2401
        %v2431 = vpack.c.b16 %v2404, %v2403
        %v2432 = vpack.c.b16 %v2406, %v2405
        %v2433 = vpack.c.b16 %v2408, %v2407
        %v2434 = vpack.c.b16 %v2410, %v2409
        %v2435 = vpack.c.b16 %v2412, %v2411
        %v2436 = vpack.c.b16 %v2414, %v2413
        %v2437 = vpack.c.b16 %v2416, %v2415
        %v2438 = vpack.c.b16 %v2418, %v2417
        %v2439 = vpack.c.b16 %v2420, %v2419
        %v2440 = vpack.c.b16 %v2422, %v2421
        %v2460 = vsel %vm1112, %v2310, 0
        %2462 = vmatpush.bf16.msra.mxu0 %v2430
        %2463 = vmatpush.bf16.msra.mxu0 %v2429
        %2464 = vmatpush.bf16.msra.mxu0 %v2428
        %2465 = vmatpush.bf16.msra.mxu0 %v2427
        %2466 = vmatpush.bf16.msra.mxu0 %v2426
        %2467 = vmatpush.bf16.msra.mxu0 %v2425
        %2468 = vmatpush.bf16.msra.mxu0 %v2424
        %2469 = vmatpush.bf16.msra.mxu0 %v2423
        %2470 = vmatmul.bf16.gmra.mxu0 %v2308
        %v2471 = vpop.f32.mrf.mxu0
        %v2472 = vadd.f32 %v2349, %v2471
        %v2473 = vpop.f32.mrf.mxu0
        %v2474 = vadd.f32 %v2349, %v2473
        %2475 = vdwg.mxu0
        %2476 = vmatpush.bf16.msra.mxu0 %v2438
        %2477 = vmatpush.bf16.msra.mxu0 %v2437
        %2478 = vmatpush.bf16.msra.mxu0 %v2436
        %2479 = vmatpush.bf16.msra.mxu0 %v2435
        %2480 = vmatpush.bf16.msra.mxu0 %v2434
        %2481 = vmatpush.bf16.msra.mxu0 %v2433
        %2482 = vmatpush.bf16.msra.mxu0 %v2432
        %2483 = vmatpush.bf16.msra.mxu0 %v2431
        %2484 = vmatmul.bf16.gmra.mxu0 %v2309
        %v2485 = vpop.f32.mrf.mxu0
        %v2486 = vadd.f32 %v2472, %v2485
        %v2487 = vpop.f32.mrf.mxu0
        %v2488 = vadd.f32 %v2474, %v2487
        %2489 = vdwg.mxu0
        %2490 = vmatpush.bf16.msra.mxu0 0
        %2491 = vmatpush.bf16.msra.mxu0 0
        %2492 = vmatpush.bf16.msra.mxu0 0
        %2493 = vmatpush.bf16.msra.mxu0 0
        %2494 = vmatpush.bf16.msra.mxu0 0
        %2495 = vmatpush.bf16.msra.mxu0 0
        %2496 = vmatpush.bf16.msra.mxu0 %v2440
        %2497 = vmatpush.bf16.msra.mxu0 %v2439
        %2498 = vmatmul.bf16.gmra.mxu0 %v2460
        %v2499 = vpop.f32.mrf.mxu0
        %v2500 = vadd.f32 %v2486, %v2499
        %v2501 = vpop.f32.mrf.mxu0
        %v2502 = vadd.f32 %v2488, %v2501
        %2503 = vdwg.mxu0
        %v2504 = vmul.f32 %v2500, 0.33333334
        %v2505 = vmul.f32 %v2502, 0.33333334
        %v2506 = vmul.f32 %v2504, %v2504
        %v2507 = vmul.f32 %v2505, %v2505
        %v2508 = vmul.f32 %v2504, %v2506
        %v2509 = vmul.f32 %v2505, %v2507
        %v2510 = vmul.f32 %v2508, 0.044715
        %v2511 = vmul.f32 %v2509, 0.044715
        %v2512 = vadd.f32 %v2504, %v2510
        %v2513 = vadd.f32 %v2505, %v2511
        %v2514 = vmul.f32 %v2512, 0.7978846
        %v2515 = vmul.f32 %v2513, 0.7978846
        %v2516 = vtanh.pop %v2514
        %v2517 = vtanh.pop %v2515
        %v2518 = vadd.f32 %v2516, 1.0
        %v2519 = vadd.f32 %v2517, 1.0
        %v2520 = vmul.f32 %v2518, 0.5
        %v2521 = vmul.f32 %v2519, 0.5
        %v2522 = vmul.f32 %v2504, %v2520
        %v2523 = vmul.f32 %v2505, %v2521
        %v2524 = vpack.c.bf16 %v2523, %v2522
        %v2525 = vld [vmem:[%s53] sm:$0xf]
        %v2526 = vld [vmem:[%s53 + $0x4] sm:$0xf]
        %v2527 = vld [vmem:[%s53 + $0x8] sm:$0xf]
        %v2528 = vld [vmem:[%s53 + $0xc] sm:$0xf]
        %v2529 = vld [vmem:[%s53 + $0x10] sm:$0xf]
        %v2530 = vld [vmem:[%s53 + $0x14] sm:$0xf]
        %v2531 = vld [vmem:[%s53 + $0x18] sm:$0xf]
        %v2532 = vld [vmem:[%s53 + $0x1c] sm:$0xf]
        %v2533 = vld [vmem:[%s53 + $0x20] sm:$0xf]
        %v2534 = vld [vmem:[%s53 + $0x24] sm:$0xf]
        %v2535 = vld [vmem:[%s53 + $0x28] sm:$0xf]
        %v2536 = vld [vmem:[%s53 + $0x2c] sm:$0xf]
        %v2537 = vld [vmem:[%s53 + $0x30] sm:$0xf]
        %v2538 = vld [vmem:[%s53 + $0x34] sm:$0xf]
        %v2539 = vld [vmem:[%s53 + $0x38] sm:$0xf]
        %v2540 = vld [vmem:[%s53 + $0x3c] sm:$0xf]
        %v2541 = vld [vmem:[%s55] sm:$0x1]
        %v2543 = vperm.slane %v2541, 0
        %v2561 = vunpack.c.l.b16 %v2525
        %v2562 = vunpack.c.l.b16 %v2526
        %v2563 = vunpack.c.l.b16 %v2527
        %v2564 = vunpack.c.l.b16 %v2528
        %v2565 = vunpack.c.l.b16 %v2529
        %v2566 = vunpack.c.l.b16 %v2530
        %v2567 = vunpack.c.l.b16 %v2531
        %v2568 = vunpack.c.l.b16 %v2532
        %v2569 = vunpack.c.l.b16 %v2533
        %v2570 = vunpack.c.l.b16 %v2534
        %v2571 = vunpack.c.l.b16 %v2535
        %v2572 = vunpack.c.l.b16 %v2536
        %v2573 = vunpack.c.l.b16 %v2537
        %v2574 = vunpack.c.l.b16 %v2538
        %v2575 = vunpack.c.l.b16 %v2539
        %v2576 = vunpack.c.l.b16 %v2540
        %v2577 = vpack.c.b16 %v2562, %v2561
        %v2578 = vpack.c.b16 %v2564, %v2563
        %v2579 = vpack.c.b16 %v2566, %v2565
        %v2580 = vpack.c.b16 %v2568, %v2567
        %v2581 = vpack.c.b16 %v2570, %v2569
        %v2582 = vpack.c.b16 %v2572, %v2571
        %v2583 = vpack.c.b16 %v2574, %v2573
        %v2584 = vpack.c.b16 %v2576, %v2575
        %2593 = vmatpush.bf16.msra.mxu0 %v2584
        %2594 = vmatpush.bf16.msra.mxu0 %v2583
        %2595 = vmatpush.bf16.msra.mxu0 %v2582
        %2596 = vmatpush.bf16.msra.mxu0 %v2581
        %2597 = vmatpush.bf16.msra.mxu0 %v2580
        %2598 = vmatpush.bf16.msra.mxu0 %v2579
        %2599 = vmatpush.bf16.msra.mxu0 %v2578
        %2600 = vmatpush.bf16.msra.mxu0 %v2577
        %2601 = vmatmul.bf16.gmra.mxu0 %v2524
        %v2602 = vpop.f32.mrf.mxu0
        %v2603 = vadd.f32 %v2543, %v2602
        %v2604 = vpop.f32.mrf.mxu0
        %v2605 = vadd.f32 %v2543, %v2604
        %2606 = vdwg.mxu0
        %v2607 = vadd.f32 %v2153, %v2603
        %v2608 = vadd.f32 %v2154, %v2605
        %v2609 = vmul.f32 %v2607, %v1101
        %v2610 = vmul.f32 %v2608, %v1106
        %v2611 = vld [vmem:[%s57] sm:$0x1]
        %v2612 = vld [vmem:[%s59] sm:$0x1]
        %v2613 = vsel %vm1112, %v2609, 0.0
        %2614 = vadd.xlane.f32.xlu0 %v2613
        %v2615 = vpop.xlane.xlu0 %2614
        %v2616 = vsel %vm1112, %v2610, 0.0
        %2617 = vadd.xlane.f32.xlu0 %v2616
        %v2618 = vpop.xlane.xlu0 %2617
        %v2619 = vmul.f32 %v2615, %v1125
        %v2620 = vmul.f32 %v2618, %v1125
        %v2621 = vsub.f32 %v2609, %v2619
        %v2622 = vsub.f32 %v2610, %v2620
        %v2623 = vmul.f32 %v2621, %v2621
        %v2624 = vmul.f32 %v2622, %v2622
        %v2625 = vsel %vm1112, %v2623, 0.0
        %2626 = vadd.xlane.f32.xlu0 %v2625
        %v2627 = vpop.xlane.xlu0 %2626
        %v2628 = vsel %vm1112, %v2624, 0.0
        %2629 = vadd.xlane.f32.xlu0 %v2628
        %v2630 = vpop.xlane.xlu0 %2629
        %v2631 = vmul.f32 %v2627, %v1125
        %v2632 = vmul.f32 %v2630, %v1125
        %v2633 = vadd.f32 %v2631, 1e-05
        %v2634 = vadd.f32 %v2632, 1e-05
        %v2635 = vrsqrt.pop %v2633
        %v2636 = vmul.f32 %v2635, %v2633
        %v2637 = vmul.f32 %v2636, %v2635
        %v2638 = vmul.f32 0.5, %v2637
        %v2639 = vsub.f32 1.5, %v2638
        %v2640 = vmul.f32 %v2635, %v2639
        %vm2641 = vweird.f32 %v2633
        %vm2642 = vweird.f32 %v2635
        %vm2643 = vmor %vm2641, %vm2642
        %v2644 = vsel %vm2643, %v2635, %v2640
        %v2645 = vrsqrt.pop %v2634
        %v2646 = vmul.f32 %v2645, %v2634
        %v2647 = vmul.f32 %v2646, %v2645
        %v2648 = vmul.f32 0.5, %v2647
        %v2649 = vsub.f32 1.5, %v2648
        %v2650 = vmul.f32 %v2645, %v2649
        %vm2651 = vweird.f32 %v2634
        %vm2652 = vweird.f32 %v2645
        %vm2653 = vmor %vm2651, %vm2652
        %v2654 = vsel %vm2653, %v2645, %v2650
        %v2655 = vmul.f32 %v2621, %v2644
        %v2656 = vmul.f32 %v2622, %v2654
        %v2658 = vperm.slane %v2611, 0
        %v2660 = vmul.f32 %v2655, %v2658
        %v2661 = vmul.f32 %v2656, %v2658
        %v2663 = vperm.slane %v2612, 0
        %v2665 = vadd.f32 %v2660, %v2663
        %v2666 = vadd.f32 %v2661, %v2663
        %v2667 = vmul.f32 %v2665, %v1101
        %v2668 = vmul.f32 %v2666, %v1106
        %v2669 = vpack.c.bf16 %v2668, %v2667
        %v2670 = vld [vmem:[%s61] sm:$0xf]
        %v2671 = vld [vmem:[%s61 + $0x4] sm:$0xf]
        %v2672 = vld [vmem:[%s61 + $0x8] sm:$0xf]
        %v2673 = vld [vmem:[%s61 + $0xc] sm:$0xf]
        %v2674 = vld [vmem:[%s63] sm:$0x1]
        %v2676 = vperm.slane %v2674, 0
        %v2682 = vunpack.c.l.b16 %v2670
        %v2683 = vunpack.c.l.b16 %v2671
        %v2684 = vunpack.c.l.b16 %v2672
        %v2685 = vunpack.c.l.b16 %v2673
        %v2686 = vpack.c.b16 %v2683, %v2682
        %v2687 = vpack.c.b16 %v2685, %v2684
        %v2691 = vsel %vm1112, %v2669, 0
        %2693 = vmatpush.bf16.msra.mxu0 0
        %2694 = vmatpush.bf16.msra.mxu0 0
        %2695 = vmatpush.bf16.msra.mxu0 0
        %2696 = vmatpush.bf16.msra.mxu0 0
        %2697 = vmatpush.bf16.msra.mxu0 0
        %2698 = vmatpush.bf16.msra.mxu0 0
        %2699 = vmatpush.bf16.msra.mxu0 %v2687
        %2700 = vmatpush.bf16.msra.mxu0 %v2686
        %2701 = vmatmul.bf16.gmra.mxu0 %v2691
        %v2702 = vpop.f32.mrf.mxu0
        %v2703 = vadd.f32 %v2676, %v2702
        %v2704 = vpop.f32.mrf.mxu0
        %v2705 = vadd.f32 %v2676, %v2704
        %2706 = vdwg.mxu0
        %v2707 = vld [vmem:[%s1086] sm:$0xff]
        %v2708 = vld [vmem:[%s1086 + $0x8] sm:$0xff]
        %2710 = vset.pattern.permute.xlu0 0
        %2711 = vperm.xlu0 %2710, %v2707
        %v2712 = vpop.permute.xlu0 %2711
        %2715 = vset.pattern.permute.xlu0 0
        %2716 = vperm.xlu0 %2715, %v2708
        %v2717 = vpop.permute.xlu0 %2716
        %v2719 = vmul.f32 %v2703, %v2712
        %v2720 = vmul.f32 %v2705, %v2717
        %vm2721 = vcmask 162816
        %2722 = vst.msk [vmem:[%s1063] sm:$0xff] %vm2721, %v2719
        %2723 = vst.msk [vmem:[%s1063 + $0x8] sm:$0xff] %vm2721, %v2720
        %s2724 = sand.u32 %s807, 1
        %s2725 = scalar_lea.sflag [#allocation3], %s2724
        %s2726 = sand.u32 %s807, 1
        %s2727 = smul.addr %s2726, 16
        %s2728 = scalar_lea.vmem [#allocation2], %s2727
        // Predicated region
        $region153: #{_lambda_.3} parent=151 // pred_check
          %p2729 = pneg %p817
        $region154: #{_lambda_.3} parent=151 // pred_check_branch
          %2731 = sbr.rel (%p2729) target = $region156
        $region155: #{_lambda_.3} parent=151 // pred_region
          %2733 = vsyncadd %s2725, 0
          %s2734 = smul.addr %s81, 2
          %s2735 = smul.addr %s2734, 8
          %s2736 = scalar_lea.hbm %s67, %s2735
          %s2737 = sshll.u32 %s2728, 4
          %s2738 = int_to_ptr.vmem [resolvable:$true] %s2737
          %s2739 = sshll.u32 %s2736, 4
          %s2740 = int_to_ptr.hbm [resolvable:$true] %s2739
          %2745 = dma.vmem_to_hbm [thread:$0]  %s2738, 256, %s2740, %s2725, 128, 128, 8
        $region156: #{_lambda_.3} parent=151 // pred_fallthru
          _
      $region152: #{_lambda_.3} parent=5 // pred_fallthru
        _
      %p2746 = scmp.le.s32.totalorder 2, %s76
      // Predicated region
      $region157: #{_lambda_.3} parent=5 // pred_check
        %p2747 = pneg %p2746
      $region158: #{_lambda_.3} parent=5 // pred_check_branch
        %2749 = sbr.rel (%p2747) target = $region160
      $region159: #{_lambda_.3} parent=5 // pred_region
        %s2750 = ssub.s32 %s76, 2
        // Predicated region
        $region161: #{_lambda_.3} parent=159 // pred_check
          %p2751 = pneg %p823
        $region162: #{_lambda_.3} parent=159 // pred_check_branch
          %2753 = sbr.rel (%p2751) target = $region164
        $region163: #{_lambda_.3} parent=159 // pred_region
          %s2754 = sand.u32 %s808, 1
          %s2755 = scalar_lea.sflag [#allocation3], %s2754
          %s2756 = sand.u32 %s808, 1
          %s2757 = smul.addr %s2756, 16
          %s2758 = scalar_lea.vmem [#allocation2], %s2757
          %2760 = dma.done %s2755, 256
        $region164: #{_lambda_.3} parent=159 // pred_fallthru
          _
      $region160: #{_lambda_.3} parent=5 // pred_fallthru
        _
    $region6: #{_lambda_.3} parent=1 // loop_footer
      %s80 = sadd.s32 1, %s76
    $region7: #{_lambda_.3} parent=1 // loop_footer_branch
      %75 = sbr.rel target = $region3
    $region8: #{_lambda_.3} parent=1 // loop_exit
      _
    %2761 = vsyncpa [#allocation3], 1
    %s2762 = scalar_lea.sflag [#allocation3], 1
    %2763 = vsyncpa %s2762, 1

</llo_original>
